<compile_context>
chip_gen: v7x
topology: tpu7x:2x2x1
jax: 0.10.0
libtpu: 0.0.40
codegen_flags: <defaults>
</compile_context>

<pallas_src>
import numpy as np
import jax
import jax.numpy as jnp
from jax import lax
from jax.experimental import pallas as pl
from jax.experimental.pallas import tpu as pltpu


# 3x3 taps, row-major over (ky, kx); tap index t = (dy+1)*3 + (dx+1).
_TAPS = [(dy, dx) for dy in (-1, 0, 1) for dx in (-1, 0, 1)]

_UPMAT_CACHE = {}
_MASK_CACHE = {}


def _upsample_matrix_np(h, w):
    """(h*w, 4*h*w) matrix M with flat_out = flat_in @ M  (bilinear x2, align_corners=True)."""
    key = (h, w)
    if key in _UPMAT_CACHE:
        return _UPMAT_CACHE[key]

    def axis_mat(n):
        m = 2 * n
        a = np.zeros((m, n), np.float64)
        if n == 1:
            a[:, 0] = 1.0
            return a
        scale = (n - 1) / (m - 1)
        for o in range(m):
            src = o * scale
            i0 = min(int(np.floor(src)), n - 1)
            i1 = min(i0 + 1, n - 1)
            f = src - i0
            a[o, i0] += 1.0 - f
            a[o, i1] += f
        return a

    k = np.kron(axis_mat(h), axis_mat(w))              # (4hw, hw): out_flat = k @ in_flat
    m = np.ascontiguousarray(k.T).astype(np.float32)   # (hw, 4hw): out = in_flat @ m
    _UPMAT_CACHE[key] = m
    return m


def _tap_masks_np(h, w):
    """(9, 1, h*w) float masks zeroing out-of-bounds (zero-padding) pixels per tap."""
    key = (h, w)
    if key in _MASK_CACHE:
        return _MASK_CACHE[key]
    yy, xx = np.meshgrid(np.arange(h), np.arange(w), indexing="ij")
    yy = yy.reshape(-1)
    xx = xx.reshape(-1)
    m = np.zeros((9, 1, h * w), np.float32)
    for t, (oy, ox) in enumerate(_TAPS):
        valid = ((yy + oy >= 0) & (yy + oy < h) & (xx + ox >= 0) & (xx + ox < w))
        m[t, 0, :] = valid.astype(np.float32)
    _MASK_CACHE[key] = m
    return m


def _make_cfm_kernel(C, H2, W2, H3, W3, mxu_dtype=jnp.float32):
    """Whole-graph fused CFM kernel for one batch element."""

    def mm(a, b):
        # MXU matmul; operands optionally cast to bf16 (v6e/v7x), f32 accumulate.
        return jnp.dot(a.astype(mxu_dtype), b.astype(mxu_dtype),
                       preferred_element_type=jnp.float32)

    def conv(x, width, slab, masks, weight, bias):
        """3x3 conv (zero pad=1) on a flat (C_in, H*W) tile.

        BN scale is pre-folded into `weight`; only the bias add remains.  The 9
        rolled+masked taps are streamed through the VMEM scratch `slab` (one tap
        live in vregs at a time), then contracted with the (C_out, 9*C_in) weight
        in a single MXU matmul.
        """
        cp = x.shape[0]
        for t, (oy, ox) in enumerate(_TAPS):
            d = oy * width + ox                         # static flat shift
            tap = x if d == 0 else jnp.roll(x, -d, axis=1) * masks[t]
            slab[pl.ds(t * cp, cp), :] = tap
        stacked = slab[pl.ds(0, 9 * cp), :]             # (9*C_in, HW)
        return mm(weight, stacked) + bias

    def kernel(x1_ref, x2_ref, x3_ref, u1_ref, u2_ref, m2_ref, m3_ref,
               w14_ref, b14_ref, wcu2_ref, bcu2_ref, wcu3_ref, bcu3_ref,
               wcc2_ref, bcc2_ref, wcu5_ref, bcu5_ref, wcc3_ref, bcc3_ref,
               wc4_ref, bc4_ref, o_ref, slab2, slab3):
        x1 = x1_ref[0].astype(jnp.float32)              # (C, HW1)
        x2 = x2_ref[0].astype(jnp.float32)              # (C, HW2)
        x3 = x3_ref[0].astype(jnp.float32)              # (C, HW3)
        U1 = u1_ref[...]                                # (HW1, HW2)
        U2 = u2_ref[...]                                # (HW2, HW3)
        masks2 = [m2_ref[t] for t in range(9)]          # hoisted (1, HW2) masks
        masks3 = [m3_ref[t] for t in range(9)]          # hoisted (1, HW3) masks

        # Bilinear x2 upsamples as lane-dense matmuls; up(up(x1)) reuses U2.
        up1 = mm(x1, U1)                                # (C, HW2)
        up12 = mm(up1, U2)                              # (C, HW3)  == up(up(x1))
        upx2 = mm(x2, U2)                               # (C, HW3)  == up(x2)

        # conv_upsample1 & conv_upsample4 share input up(x1): shared taps, weights
        # stacked along C_out, one matmul, then split.
        y14 = conv(up1, W2, slab2, masks2, w14_ref[...], b14_ref[...])      # (2C, HW2)
        x2_1 = y14[0:C, :] * x2                         # fused "* x2" gate
        c4 = y14[C:2 * C, :]                            # conv_upsample4(up(x1))

        c3 = conv(upx2, W3, slab3, masks3, wcu3_ref[...], bcu3_ref[...])    # (C, HW3)
        x3_1 = (conv(up12, W3, slab3, masks3, wcu2_ref[...], bcu2_ref[...])
                * c3 * x3)                                                  # (C, HW3)

        # conv_concat2: concat fused -> single K = 9*2C matmul.
        x2_2 = conv(jnp.concatenate([x2_1, c4], axis=0), W2, slab2, masks2,
                    wcc2_ref[...], bcc2_ref[...])                           # (2C, HW2)

        # conv_upsample5(up(x2_2))
        c5 = conv(mm(x2_2, U2), W3, slab3, masks3,
                  wcu5_ref[...], bcu5_ref[...])                             # (2C, HW3)

        # conv_concat3: concat fused -> single K = 9*3C matmul.
        x3_2 = conv(jnp.concatenate([x3_1, c5], axis=0), W3, slab3, masks3,
                    wcc3_ref[...], bcc3_ref[...])                           # (3C, HW3)

        out = conv(x3_2, W3, slab3, masks3, wc4_ref[...], bc4_ref[...])     # (C, HW3)
        o_ref[0] = out.astype(o_ref.dtype)

    return kernel


def cfm_forward_pallas(x1, x2, x3, params, mxu_dtype=jnp.float32):
    """CFM forward pass as ONE fused Pallas kernel (grid over batch)."""
    B, C, H1, W1 = x1.shape
    H2, W2 = 2 * H1, 2 * W1
    H3, W3 = 2 * H2, 2 * W2
    assert x2.shape == (B, C, H2, W2) and x3.shape == (B, C, H3, W3)
    HW1, HW2, HW3 = H1 * W1, H2 * W2, H3 * W3

    # Structural constants derived from shapes (baked at trace time).
    U1 = jnp.asarray(_upsample_matrix_np(H1, W1))       # (HW1, HW2)  8x8  -> 16x16
    U2 = jnp.asarray(_upsample_matrix_np(H2, W2))       # (HW2, HW3) 16x16 -> 32x32
    masks2 = jnp.asarray(_tap_masks_np(H2, W2))         # (9, 1, HW2)
    masks3 = jnp.asarray(_tap_masks_np(H3, W3))         # (9, 1, HW3)

    def fold(p):
        """Fold eval-mode BN scale into the conv weight; layout (C_out, 9*C_in)."""
        w, s, b = p
        co, ci = w.shape[0], w.shape[1]
        wp = jnp.transpose(w, (0, 2, 3, 1)).reshape(co, 9 * ci)   # col = tap*ci + cin
        wp = (wp * s.reshape(co, 1)).astype(jnp.float32)
        return wp, b.reshape(co, 1).astype(jnp.float32)

    w1, b1 = fold(params["cu1"])
    w4, b4 = fold(params["cu4"])
    w14 = jnp.concatenate([w1, w4], axis=0)             # (2C, 9C): cu1 rows then cu4 rows
    b14 = jnp.concatenate([b1, b4], axis=0)
    wcu2, bcu2 = fold(params["cu2"])
    wcu3, bcu3 = fold(params["cu3"])
    wcc2, bcc2 = fold(params["cc2"])
    wcu5, bcu5 = fold(params["cu5"])
    wcc3, bcc3 = fold(params["cc3"])
    wc4, bc4 = fold(params["c4"])

    # Lane-dense flat layout (B, C, H*W).  Note: x1's 64-lane tile is tiny; at
    # B>=2 a "parallel" batch grid axis (v7x dual-TC) is worth more than folding
    # the batch into lanes.
    x1f = x1.reshape(B, C, HW1)
    x2f = x2.reshape(B, C, HW2)
    x3f = x3.reshape(B, C, HW3)

    kernel = _make_cfm_kernel(C, H2, W2, H3, W3, mxu_dtype=mxu_dtype)

    def full2(shape):
        return pl.BlockSpec(shape, lambda b: (0, 0))

    def full3(shape):
        return pl.BlockSpec(shape, lambda b: (0, 0, 0))

    in_specs = [
        pl.BlockSpec((1, C, HW1), lambda b: (b, 0, 0)),
        pl.BlockSpec((1, C, HW2), lambda b: (b, 0, 0)),
        pl.BlockSpec((1, C, HW3), lambda b: (b, 0, 0)),
        full2((HW1, HW2)),            # U1
        full2((HW2, HW3)),            # U2
        full3((9, 1, HW2)),           # masks2
        full3((9, 1, HW3)),           # masks3
        full2(w14.shape), full2(b14.shape),
        full2(wcu2.shape), full2(bcu2.shape),
        full2(wcu3.shape), full2(bcu3.shape),
        full2(wcc2.shape), full2(bcc2.shape),
        full2(wcu5.shape), full2(bcu5.shape),
        full2(wcc3.shape), full2(bcc3.shape),
        full2(wc4.shape), full2(bc4.shape),
    ]

    out = pl.pallas_call(
        kernel,
        out_shape=jax.ShapeDtypeStruct((B, C, HW3), x1.dtype),
        grid_spec=pltpu.PrefetchScalarGridSpec(
            num_scalar_prefetch=0,
            grid=(B,),
            in_specs=in_specs,
            out_specs=pl.BlockSpec((1, C, HW3), lambda b: (b, 0, 0)),
            scratch_shapes=[
                pltpu.VMEM((9 * 2 * C, HW2), jnp.float32),   # tap slab for HW2 convs
                pltpu.VMEM((9 * 3 * C, HW3), jnp.float32),   # tap slab for HW3 convs
            ],
        ),
        compiler_params=pltpu.CompilerParams(dimension_semantics=("parallel",)),
    )(x1f, x2f, x3f, U1, U2, masks2, masks3,
      w14, b14, wcu2, bcu2, wcu3, bcu3,
      wcc2, bcc2, wcu5, bcu5, wcc3, bcc3, wc4, bc4)

    return out.reshape(B, C, H3, W3)


# ----------------------------- pure-JAX reference -----------------------------

def _upsample2x_ref(x):
    """nn.Upsample(scale_factor=2, mode='bilinear', align_corners=True) reference."""
    B, C, H, W = x.shape
    Ho, Wo = 2 * H, 2 * W

    def coords(n_in, n_out):
        if n_in == 1:
            z = jnp.zeros((n_out,), jnp.int32)
            return z, z, jnp.zeros((n_out,), jnp.float32)
        src = jnp.arange(n_out, dtype=jnp.float32) * ((n_in - 1) / (n_out - 1))
        i0 = jnp.clip(jnp.floor(src).astype(jnp.int32), 0, n_in - 1)
        i1 = jnp.clip(i0 + 1, 0, n_in - 1)
        w1 = src - i0.astype(jnp.float32)
        return i0, i1, w1

    y0, y1, wy = coords(H, Ho)
    x0, x1, wx = coords(W, Wo)
    rows = (x[:, :, y0, :] * (1.0 - wy)[None, None, :, None]
            + x[:, :, y1, :] * wy[None, None, :, None])
    out = (rows[:, :, :, x0] * (1.0 - wx)[None, None, None, :]
           + rows[:, :, :, x1] * wx[None, None, None, :])
    return out


def _conv_bn_ref(x, p):
    w, s, b = p
    y = lax.conv_general_dilated(
        x, w, window_strides=(1, 1), padding=((1, 1), (1, 1)),
        dimension_numbers=("NCHW", "OIHW", "NCHW"),
        precision=lax.Precision.HIGHEST)
    return y * s[None, :, None, None] + b[None, :, None, None]


def cfm_forward_ref(x1, x2, x3, params):
    up = _upsample2x_ref
    x1_1 = x1
    x2_1 = _conv_bn_ref(up(x1), params["cu1"]) * x2
    x3_1 = (_conv_bn_ref(up(up(x1)), params["cu2"])
            * _conv_bn_ref(up(x2), params["cu3"]) * x3)
    x2_2 = jnp.concatenate([x2_1, _conv_bn_ref(up(x1_1), params["cu4"])], axis=1)
    x2_2 = _conv_bn_ref(x2_2, params["cc2"])
    x3_2 = jnp.concatenate([x3_1, _conv_bn_ref(up(x2_2), params["cu5"])], axis=1)
    x3_2 = _conv_bn_ref(x3_2, params["cc3"])
    return _conv_bn_ref(x3_2, params["c4"])


# ---------------------------------- test -------------------------------------

def init_params(key, channel):
    """Conv weights + eval-mode BatchNorm folded into per-channel (scale, bias)."""
    def conv_bn(k, cin, cout):
        k1, k2, k3, k4, k5 = jax.random.split(k, 5)
        fan_in = cin * 9
        w = jax.random.normal(k1, (cout, cin, 3, 3), jnp.float32) * np.sqrt(2.0 / fan_in)
        gamma = jax.random.uniform(k2, (cout,), jnp.float32, 0.8, 1.2)
        beta = jax.random.normal(k3, (cout,), jnp.float32) * 0.1
        mean = jax.random.normal(k4, (cout,), jnp.float32) * 0.1
        var = jax.random.uniform(k5, (cout,), jnp.float32, 0.5, 1.5)
        scale = gamma / jnp.sqrt(var + 1e-5)
        bias = beta - mean * scale
        return (w, scale, bias)

    keys = jax.random.split(key, 8)
    C = channel
    return {
        "cu1": conv_bn(keys[0], C, C),
        "cu2": conv_bn(keys[1], C, C),
        "cu3": conv_bn(keys[2], C, C),
        "cu4": conv_bn(keys[3], C, C),
        "cu5": conv_bn(keys[4], 2 * C, 2 * C),
        "cc2": conv_bn(keys[5], 2 * C, 2 * C),
        "cc3": conv_bn(keys[6], 3 * C, 3 * C),
        "c4": conv_bn(keys[7], 3 * C, C),
    }


if __name__ == "__main__":
    key = jax.random.PRNGKey(0)
    k1, k2, k3, kp = jax.random.split(key, 4)

    B, C, H1, W1 = 2, 8, 8, 8
    x1 = jax.random.normal(k1, (B, C, H1, W1), jnp.float32)
    x2 = jax.random.normal(k2, (B, C, 2 * H1, 2 * W1), jnp.float32)
    x3 = jax.random.normal(k3, (B, C, 4 * H1, 4 * W1), jnp.float32)
    params = init_params(kp, C)

    out = jax.jit(cfm_forward_pallas)(x1, x2, x3, params)
    out = jax.block_until_ready(out)

    ref = jax.block_until_ready(jax.jit(cfm_forward_ref)(x1, x2, x3, params))

    # f32 MXU path: tight tolerance (catches tap/weight-layout mistakes).
    np.testing.assert_allclose(np.asarray(out), np.asarray(ref), rtol=1e-3, atol=1e-3)

    print("KERNEL_OK")
</pallas_src>

<mosaic_0001>
module attributes {stable_mosaic.version = 11 : i64} {
  func.func @kernel(%arg0: i32, %arg1: memref<1x8x64xf32, #tpu.memory_space<vmem>>, %arg2: memref<1x8x256xf32, #tpu.memory_space<vmem>>, %arg3: memref<1x8x1024xf32, #tpu.memory_space<vmem>>, %arg4: memref<64x256xf32, #tpu.memory_space<vmem>>, %arg5: memref<256x1024xf32, #tpu.memory_space<vmem>>, %arg6: memref<9x1x256xf32, #tpu.memory_space<vmem>>, %arg7: memref<9x1x1024xf32, #tpu.memory_space<vmem>>, %arg8: memref<16x72xf32, #tpu.memory_space<vmem>>, %arg9: memref<16x1xf32, #tpu.memory_space<vmem>>, %arg10: memref<8x72xf32, #tpu.memory_space<vmem>>, %arg11: memref<8x1xf32, #tpu.memory_space<vmem>>, %arg12: memref<8x72xf32, #tpu.memory_space<vmem>>, %arg13: memref<8x1xf32, #tpu.memory_space<vmem>>, %arg14: memref<16x144xf32, #tpu.memory_space<vmem>>, %arg15: memref<16x1xf32, #tpu.memory_space<vmem>>, %arg16: memref<16x144xf32, #tpu.memory_space<vmem>>, %arg17: memref<16x1xf32, #tpu.memory_space<vmem>>, %arg18: memref<24x216xf32, #tpu.memory_space<vmem>>, %arg19: memref<24x1xf32, #tpu.memory_space<vmem>>, %arg20: memref<8x216xf32, #tpu.memory_space<vmem>>, %arg21: memref<8x1xf32, #tpu.memory_space<vmem>>, %arg22: memref<1x8x1024xf32, #tpu.memory_space<vmem>>, %arg23: memref<144x256xf32, #tpu.memory_space<vmem>>, %arg24: memref<216x1024xf32, #tpu.memory_space<vmem>>) attributes {dimension_semantics = [#tpu.dimension_semantics<parallel>], iteration_bounds = array<i64: 2>, scalar_prefetch = 0 : i64, scratch_operands = 2 : i64, tpu.core_type = #tpu.core_type<tc>, window_params = [{transform_indices = @transform_0, window_bounds = array<i64: 1, 8, 64>}, {transform_indices = @transform_1, window_bounds = array<i64: 1, 8, 256>}, {transform_indices = @transform_2, window_bounds = array<i64: 1, 8, 1024>}, {pipeline_mode = #tpu.pipeline_mode<synchronous>, transform_indices = @transform_3, window_bounds = array<i64: 64, 256>}, {pipeline_mode = #tpu.pipeline_mode<synchronous>, transform_indices = @transform_4, window_bounds = array<i64: 256, 1024>}, {pipeline_mode = #tpu.pipeline_mode<synchronous>, transform_indices = @transform_5, window_bounds = array<i64: 9, 1, 256>}, {pipeline_mode = #tpu.pipeline_mode<synchronous>, transform_indices = @transform_6, window_bounds = array<i64: 9, 1, 1024>}, {pipeline_mode = #tpu.pipeline_mode<synchronous>, transform_indices = @transform_7, window_bounds = array<i64: 16, 72>}, {pipeline_mode = #tpu.pipeline_mode<synchronous>, transform_indices = @transform_8, window_bounds = array<i64: 16, 1>}, {pipeline_mode = #tpu.pipeline_mode<synchronous>, transform_indices = @transform_9, window_bounds = array<i64: 8, 72>}, {pipeline_mode = #tpu.pipeline_mode<synchronous>, transform_indices = @transform_10, window_bounds = array<i64: 8, 1>}, {pipeline_mode = #tpu.pipeline_mode<synchronous>, transform_indices = @transform_11, window_bounds = array<i64: 8, 72>}, {pipeline_mode = #tpu.pipeline_mode<synchronous>, transform_indices = @transform_12, window_bounds = array<i64: 8, 1>}, {pipeline_mode = #tpu.pipeline_mode<synchronous>, transform_indices = @transform_13, window_bounds = array<i64: 16, 144>}, {pipeline_mode = #tpu.pipeline_mode<synchronous>, transform_indices = @transform_14, window_bounds = array<i64: 16, 1>}, {pipeline_mode = #tpu.pipeline_mode<synchronous>, transform_indices = @transform_15, window_bounds = array<i64: 16, 144>}, {pipeline_mode = #tpu.pipeline_mode<synchronous>, transform_indices = @transform_16, window_bounds = array<i64: 16, 1>}, {pipeline_mode = #tpu.pipeline_mode<synchronous>, transform_indices = @transform_17, window_bounds = array<i64: 24, 216>}, {pipeline_mode = #tpu.pipeline_mode<synchronous>, transform_indices = @transform_18, window_bounds = array<i64: 24, 1>}, {pipeline_mode = #tpu.pipeline_mode<synchronous>, transform_indices = @transform_19, window_bounds = array<i64: 8, 216>}, {pipeline_mode = #tpu.pipeline_mode<synchronous>, transform_indices = @transform_20, window_bounds = array<i64: 8, 1>}, {transform_indices = @transform_21, window_bounds = array<i64: 1, 8, 1024>}]} {
    %c0 = arith.constant 0 : index
    %c0_0 = arith.constant 0 : index
    %c0_1 = arith.constant 0 : index
    %0 = vector.load %arg1[%c0, %c0_0, %c0_1] : memref<1x8x64xf32, #tpu.memory_space<vmem>>, vector<1x8x64xf32>
    %1 = vector.shape_cast %0 : vector<1x8x64xf32> to vector<8x64xf32>
    %c0_2 = arith.constant 0 : index
    %c0_3 = arith.constant 0 : index
    %c0_4 = arith.constant 0 : index
    %2 = vector.load %arg2[%c0_2, %c0_3, %c0_4] : memref<1x8x256xf32, #tpu.memory_space<vmem>>, vector<1x8x256xf32>
    %3 = vector.shape_cast %2 : vector<1x8x256xf32> to vector<8x256xf32>
    %c0_5 = arith.constant 0 : index
    %c0_6 = arith.constant 0 : index
    %c0_7 = arith.constant 0 : index
    %4 = vector.load %arg3[%c0_5, %c0_6, %c0_7] : memref<1x8x1024xf32, #tpu.memory_space<vmem>>, vector<1x8x1024xf32>
    %5 = vector.shape_cast %4 : vector<1x8x1024xf32> to vector<8x1024xf32>
    %c0_8 = arith.constant 0 : index
    %c0_9 = arith.constant 0 : index
    %6 = vector.load %arg4[%c0_8, %c0_9] : memref<64x256xf32, #tpu.memory_space<vmem>>, vector<64x256xf32>
    %c0_10 = arith.constant 0 : index
    %c0_11 = arith.constant 0 : index
    %7 = vector.load %arg5[%c0_10, %c0_11] : memref<256x1024xf32, #tpu.memory_space<vmem>>, vector<256x1024xf32>
    %c0_12 = arith.constant 0 : index
    %c0_13 = arith.constant 0 : index
    %c0_14 = arith.constant 0 : index
    %8 = vector.load %arg6[%c0_12, %c0_13, %c0_14] : memref<9x1x256xf32, #tpu.memory_space<vmem>>, vector<1x1x256xf32>
    %9 = vector.shape_cast %8 : vector<1x1x256xf32> to vector<1x256xf32>
    %c1 = arith.constant 1 : index
    %c0_15 = arith.constant 0 : index
    %c0_16 = arith.constant 0 : index
    %10 = vector.load %arg6[%c1, %c0_15, %c0_16] : memref<9x1x256xf32, #tpu.memory_space<vmem>>, vector<1x1x256xf32>
    %11 = vector.shape_cast %10 : vector<1x1x256xf32> to vector<1x256xf32>
    %c2 = arith.constant 2 : index
    %c0_17 = arith.constant 0 : index
    %c0_18 = arith.constant 0 : index
    %12 = vector.load %arg6[%c2, %c0_17, %c0_18] : memref<9x1x256xf32, #tpu.memory_space<vmem>>, vector<1x1x256xf32>
    %13 = vector.shape_cast %12 : vector<1x1x256xf32> to vector<1x256xf32>
    %c3 = arith.constant 3 : index
    %c0_19 = arith.constant 0 : index
    %c0_20 = arith.constant 0 : index
    %14 = vector.load %arg6[%c3, %c0_19, %c0_20] : memref<9x1x256xf32, #tpu.memory_space<vmem>>, vector<1x1x256xf32>
    %15 = vector.shape_cast %14 : vector<1x1x256xf32> to vector<1x256xf32>
    %c5 = arith.constant 5 : index
    %c0_21 = arith.constant 0 : index
    %c0_22 = arith.constant 0 : index
    %16 = vector.load %arg6[%c5, %c0_21, %c0_22] : memref<9x1x256xf32, #tpu.memory_space<vmem>>, vector<1x1x256xf32>
    %17 = vector.shape_cast %16 : vector<1x1x256xf32> to vector<1x256xf32>
    %c6 = arith.constant 6 : index
    %c0_23 = arith.constant 0 : index
    %c0_24 = arith.constant 0 : index
    %18 = vector.load %arg6[%c6, %c0_23, %c0_24] : memref<9x1x256xf32, #tpu.memory_space<vmem>>, vector<1x1x256xf32>
    %19 = vector.shape_cast %18 : vector<1x1x256xf32> to vector<1x256xf32>
    %c7 = arith.constant 7 : index
    %c0_25 = arith.constant 0 : index
    %c0_26 = arith.constant 0 : index
    %20 = vector.load %arg6[%c7, %c0_25, %c0_26] : memref<9x1x256xf32, #tpu.memory_space<vmem>>, vector<1x1x256xf32>
    %21 = vector.shape_cast %20 : vector<1x1x256xf32> to vector<1x256xf32>
    %c8 = arith.constant 8 : index
    %c0_27 = arith.constant 0 : index
    %c0_28 = arith.constant 0 : index
    %22 = vector.load %arg6[%c8, %c0_27, %c0_28] : memref<9x1x256xf32, #tpu.memory_space<vmem>>, vector<1x1x256xf32>
    %23 = vector.shape_cast %22 : vector<1x1x256xf32> to vector<1x256xf32>
    %c0_29 = arith.constant 0 : index
    %c0_30 = arith.constant 0 : index
    %c0_31 = arith.constant 0 : index
    %24 = vector.load %arg7[%c0_29, %c0_30, %c0_31] : memref<9x1x1024xf32, #tpu.memory_space<vmem>>, vector<1x1x1024xf32>
    %25 = vector.shape_cast %24 : vector<1x1x1024xf32> to vector<1x1024xf32>
    %c1_32 = arith.constant 1 : index
    %c0_33 = arith.constant 0 : index
    %c0_34 = arith.constant 0 : index
    %26 = vector.load %arg7[%c1_32, %c0_33, %c0_34] : memref<9x1x1024xf32, #tpu.memory_space<vmem>>, vector<1x1x1024xf32>
    %27 = vector.shape_cast %26 : vector<1x1x1024xf32> to vector<1x1024xf32>
    %c2_35 = arith.constant 2 : index
    %c0_36 = arith.constant 0 : index
    %c0_37 = arith.constant 0 : index
    %28 = vector.load %arg7[%c2_35, %c0_36, %c0_37] : memref<9x1x1024xf32, #tpu.memory_space<vmem>>, vector<1x1x1024xf32>
    %29 = vector.shape_cast %28 : vector<1x1x1024xf32> to vector<1x1024xf32>
    %c3_38 = arith.constant 3 : index
    %c0_39 = arith.constant 0 : index
    %c0_40 = arith.constant 0 : index
    %30 = vector.load %arg7[%c3_38, %c0_39, %c0_40] : memref<9x1x1024xf32, #tpu.memory_space<vmem>>, vector<1x1x1024xf32>
    %31 = vector.shape_cast %30 : vector<1x1x1024xf32> to vector<1x1024xf32>
    %c5_41 = arith.constant 5 : index
    %c0_42 = arith.constant 0 : index
    %c0_43 = arith.constant 0 : index
    %32 = vector.load %arg7[%c5_41, %c0_42, %c0_43] : memref<9x1x1024xf32, #tpu.memory_space<vmem>>, vector<1x1x1024xf32>
    %33 = vector.shape_cast %32 : vector<1x1x1024xf32> to vector<1x1024xf32>
    %c6_44 = arith.constant 6 : index
    %c0_45 = arith.constant 0 : index
    %c0_46 = arith.constant 0 : index
    %34 = vector.load %arg7[%c6_44, %c0_45, %c0_46] : memref<9x1x1024xf32, #tpu.memory_space<vmem>>, vector<1x1x1024xf32>
    %35 = vector.shape_cast %34 : vector<1x1x1024xf32> to vector<1x1024xf32>
    %c7_47 = arith.constant 7 : index
    %c0_48 = arith.constant 0 : index
    %c0_49 = arith.constant 0 : index
    %36 = vector.load %arg7[%c7_47, %c0_48, %c0_49] : memref<9x1x1024xf32, #tpu.memory_space<vmem>>, vector<1x1x1024xf32>
    %37 = vector.shape_cast %36 : vector<1x1x1024xf32> to vector<1x1024xf32>
    %c8_50 = arith.constant 8 : index
    %c0_51 = arith.constant 0 : index
    %c0_52 = arith.constant 0 : index
    %38 = vector.load %arg7[%c8_50, %c0_51, %c0_52] : memref<9x1x1024xf32, #tpu.memory_space<vmem>>, vector<1x1x1024xf32>
    %39 = vector.shape_cast %38 : vector<1x1x1024xf32> to vector<1x1024xf32>
    %cst = arith.constant dense<0.000000e+00> : vector<8x256xf32>
    %40 = tpu.matmul %1, %6, %cst {dimension_numbers = #tpu.dot_dimension_numbers<[1], [0], [0], [1], [0, 0, 1, 1], [], []>} : vector<8x64xf32>, vector<64x256xf32>, vector<8x256xf32> -> vector<8x256xf32>
    %cst_53 = arith.constant dense<0.000000e+00> : vector<8x1024xf32>
    %41 = tpu.matmul %40, %7, %cst_53 {dimension_numbers = #tpu.dot_dimension_numbers<[1], [0], [0], [1], [0, 0, 1, 1], [], []>} : vector<8x256xf32>, vector<256x1024xf32>, vector<8x1024xf32> -> vector<8x1024xf32>
    %cst_54 = arith.constant dense<0.000000e+00> : vector<8x1024xf32>
    %42 = tpu.matmul %3, %7, %cst_54 {dimension_numbers = #tpu.dot_dimension_numbers<[1], [0], [0], [1], [0, 0, 1, 1], [], []>} : vector<8x256xf32>, vector<256x1024xf32>, vector<8x1024xf32> -> vector<8x1024xf32>
    %c0_55 = arith.constant 0 : index
    %c0_56 = arith.constant 0 : index
    %43 = vector.load %arg8[%c0_55, %c0_56] : memref<16x72xf32, #tpu.memory_space<vmem>>, vector<16x72xf32>
    %c0_57 = arith.constant 0 : index
    %c0_58 = arith.constant 0 : index
    %44 = vector.load %arg9[%c0_57, %c0_58] : memref<16x1xf32, #tpu.memory_space<vmem>>, vector<16x1xf32>
    %45 = vector.extract_strided_slice %40 {offsets = [0, 239], sizes = [8, 17], strides = [1, 1]} : vector<8x256xf32> to vector<8x17xf32>
    %46 = vector.extract_strided_slice %40 {offsets = [0, 0], sizes = [8, 239], strides = [1, 1]} : vector<8x256xf32> to vector<8x239xf32>
    %47 = tpu.concatenate %45, %46 in 1 : vector<8x17xf32>, vector<8x239xf32> -> vector<8x256xf32>
    %48 = vector.broadcast %9 : vector<1x256xf32> to vector<8x256xf32>
    %49 = arith.mulf %47, %48 : vector<8x256xf32>
    %c0_59 = arith.constant 0 : index
    %c0_60 = arith.constant 0 : index
    %50 = vector.load %arg23[%c0_59, %c0_60] : memref<144x256xf32, #tpu.memory_space<vmem>>, vector<8x256xf32>
    tpu.vector_store %arg23[%c0_59, %c0_60], %49 {strides = array<i32>} : memref<144x256xf32, #tpu.memory_space<vmem>>, vector<8x256xf32>,
    %51 = vector.extract_strided_slice %40 {offsets = [0, 240], sizes = [8, 16], strides = [1, 1]} : vector<8x256xf32> to vector<8x16xf32>
    %52 = vector.extract_strided_slice %40 {offsets = [0, 0], sizes = [8, 240], strides = [1, 1]} : vector<8x256xf32> to vector<8x240xf32>
    %53 = tpu.concatenate %51, %52 in 1 : vector<8x16xf32>, vector<8x240xf32> -> vector<8x256xf32>
    %54 = vector.broadcast %11 : vector<1x256xf32> to vector<8x256xf32>
    %55 = arith.mulf %53, %54 : vector<8x256xf32>
    %c8_61 = arith.constant 8 : index
    %c0_62 = arith.constant 0 : index
    %56 = vector.load %arg23[%c8_61, %c0_62] : memref<144x256xf32, #tpu.memory_space<vmem>>, vector<8x256xf32>
    tpu.vector_store %arg23[%c8_61, %c0_62], %55 {strides = array<i32>} : memref<144x256xf32, #tpu.memory_space<vmem>>, vector<8x256xf32>,
    %57 = vector.extract_strided_slice %40 {offsets = [0, 241], sizes = [8, 15], strides = [1, 1]} : vector<8x256xf32> to vector<8x15xf32>
    %58 = vector.extract_strided_slice %40 {offsets = [0, 0], sizes = [8, 241], strides = [1, 1]} : vector<8x256xf32> to vector<8x241xf32>
    %59 = tpu.concatenate %57, %58 in 1 : vector<8x15xf32>, vector<8x241xf32> -> vector<8x256xf32>
    %60 = vector.broadcast %13 : vector<1x256xf32> to vector<8x256xf32>
    %61 = arith.mulf %59, %60 : vector<8x256xf32>
    %c16 = arith.constant 16 : index
    %c0_63 = arith.constant 0 : index
    %62 = vector.load %arg23[%c16, %c0_63] : memref<144x256xf32, #tpu.memory_space<vmem>>, vector<8x256xf32>
    tpu.vector_store %arg23[%c16, %c0_63], %61 {strides = array<i32>} : memref<144x256xf32, #tpu.memory_space<vmem>>, vector<8x256xf32>,
    %63 = vector.extract_strided_slice %40 {offsets = [0, 255], sizes = [8, 1], strides = [1, 1]} : vector<8x256xf32> to vector<8x1xf32>
    %64 = vector.extract_strided_slice %40 {offsets = [0, 0], sizes = [8, 255], strides = [1, 1]} : vector<8x256xf32> to vector<8x255xf32>
    %65 = tpu.concatenate %63, %64 in 1 : vector<8x1xf32>, vector<8x255xf32> -> vector<8x256xf32>
    %66 = vector.broadcast %15 : vector<1x256xf32> to vector<8x256xf32>
    %67 = arith.mulf %65, %66 : vector<8x256xf32>
    %c24 = arith.constant 24 : index
    %c0_64 = arith.constant 0 : index
    %68 = vector.load %arg23[%c24, %c0_64] : memref<144x256xf32, #tpu.memory_space<vmem>>, vector<8x256xf32>
    tpu.vector_store %arg23[%c24, %c0_64], %67 {strides = array<i32>} : memref<144x256xf32, #tpu.memory_space<vmem>>, vector<8x256xf32>,
    %c32 = arith.constant 32 : index
    %c0_65 = arith.constant 0 : index
    %69 = vector.load %arg23[%c32, %c0_65] : memref<144x256xf32, #tpu.memory_space<vmem>>, vector<8x256xf32>
    tpu.vector_store %arg23[%c32, %c0_65], %40 {strides = array<i32>} : memref<144x256xf32, #tpu.memory_space<vmem>>, vector<8x256xf32>,
    %70 = vector.extract_strided_slice %40 {offsets = [0, 1], sizes = [8, 255], strides = [1, 1]} : vector<8x256xf32> to vector<8x255xf32>
    %71 = vector.extract_strided_slice %40 {offsets = [0, 0], sizes = [8, 1], strides = [1, 1]} : vector<8x256xf32> to vector<8x1xf32>
    %72 = tpu.concatenate %70, %71 in 1 : vector<8x255xf32>, vector<8x1xf32> -> vector<8x256xf32>
    %73 = vector.broadcast %17 : vector<1x256xf32> to vector<8x256xf32>
    %74 = arith.mulf %72, %73 : vector<8x256xf32>
    %c40 = arith.constant 40 : index
    %c0_66 = arith.constant 0 : index
    %75 = vector.load %arg23[%c40, %c0_66] : memref<144x256xf32, #tpu.memory_space<vmem>>, vector<8x256xf32>
    tpu.vector_store %arg23[%c40, %c0_66], %74 {strides = array<i32>} : memref<144x256xf32, #tpu.memory_space<vmem>>, vector<8x256xf32>,
    %76 = vector.extract_strided_slice %40 {offsets = [0, 15], sizes = [8, 241], strides = [1, 1]} : vector<8x256xf32> to vector<8x241xf32>
    %77 = vector.extract_strided_slice %40 {offsets = [0, 0], sizes = [8, 15], strides = [1, 1]} : vector<8x256xf32> to vector<8x15xf32>
    %78 = tpu.concatenate %76, %77 in 1 : vector<8x241xf32>, vector<8x15xf32> -> vector<8x256xf32>
    %79 = vector.broadcast %19 : vector<1x256xf32> to vector<8x256xf32>
    %80 = arith.mulf %78, %79 : vector<8x256xf32>
    %c48 = arith.constant 48 : index
    %c0_67 = arith.constant 0 : index
    %81 = vector.load %arg23[%c48, %c0_67] : memref<144x256xf32, #tpu.memory_space<vmem>>, vector<8x256xf32>
    tpu.vector_store %arg23[%c48, %c0_67], %80 {strides = array<i32>} : memref<144x256xf32, #tpu.memory_space<vmem>>, vector<8x256xf32>,
    %82 = vector.extract_strided_slice %40 {offsets = [0, 16], sizes = [8, 240], strides = [1, 1]} : vector<8x256xf32> to vector<8x240xf32>
    %83 = vector.extract_strided_slice %40 {offsets = [0, 0], sizes = [8, 16], strides = [1, 1]} : vector<8x256xf32> to vector<8x16xf32>
    %84 = tpu.concatenate %82, %83 in 1 : vector<8x240xf32>, vector<8x16xf32> -> vector<8x256xf32>
    %85 = vector.broadcast %21 : vector<1x256xf32> to vector<8x256xf32>
    %86 = arith.mulf %84, %85 : vector<8x256xf32>
    %c56 = arith.constant 56 : index
    %c0_68 = arith.constant 0 : index
    %87 = vector.load %arg23[%c56, %c0_68] : memref<144x256xf32, #tpu.memory_space<vmem>>, vector<8x256xf32>
    tpu.vector_store %arg23[%c56, %c0_68], %86 {strides = array<i32>} : memref<144x256xf32, #tpu.memory_space<vmem>>, vector<8x256xf32>,
    %88 = vector.extract_strided_slice %40 {offsets = [0, 17], sizes = [8, 239], strides = [1, 1]} : vector<8x256xf32> to vector<8x239xf32>
    %89 = vector.extract_strided_slice %40 {offsets = [0, 0], sizes = [8, 17], strides = [1, 1]} : vector<8x256xf32> to vector<8x17xf32>
    %90 = tpu.concatenate %88, %89 in 1 : vector<8x239xf32>, vector<8x17xf32> -> vector<8x256xf32>
    %91 = vector.broadcast %23 : vector<1x256xf32> to vector<8x256xf32>
    %92 = arith.mulf %90, %91 : vector<8x256xf32>
    %c64 = arith.constant 64 : index
    %c0_69 = arith.constant 0 : index
    %93 = vector.load %arg23[%c64, %c0_69] : memref<144x256xf32, #tpu.memory_space<vmem>>, vector<8x256xf32>
    tpu.vector_store %arg23[%c64, %c0_69], %92 {strides = array<i32>} : memref<144x256xf32, #tpu.memory_space<vmem>>, vector<8x256xf32>,
    %c0_70 = arith.constant 0 : index
    %c0_71 = arith.constant 0 : index
    %94 = vector.load %arg23[%c0_70, %c0_71] : memref<144x256xf32, #tpu.memory_space<vmem>>, vector<72x256xf32>
    %cst_72 = arith.constant dense<0.000000e+00> : vector<16x256xf32>
    %95 = tpu.matmul %43, %94, %cst_72 {dimension_numbers = #tpu.dot_dimension_numbers<[1], [0], [0], [1], [0, 0, 1, 1], [], []>} : vector<16x72xf32>, vector<72x256xf32>, vector<16x256xf32> -> vector<16x256xf32>
    %96 = vector.broadcast %44 : vector<16x1xf32> to vector<16x256xf32>
    %97 = arith.addf %95, %96 : vector<16x256xf32>
    %98 = vector.extract_strided_slice %97 {offsets = [0, 0], sizes = [8, 256], strides = [1, 1]} : vector<16x256xf32> to vector<8x256xf32>
    %99 = arith.mulf %98, %3 : vector<8x256xf32>
    %100 = vector.extract_strided_slice %97 {offsets = [8, 0], sizes = [8, 256], strides = [1, 1]} : vector<16x256xf32> to vector<8x256xf32>
    %c0_73 = arith.constant 0 : index
    %c0_74 = arith.constant 0 : index
    %101 = vector.load %arg12[%c0_73, %c0_74] : memref<8x72xf32, #tpu.memory_space<vmem>>, vector<8x72xf32>
    %c0_75 = arith.constant 0 : index
    %c0_76 = arith.constant 0 : index
    %102 = vector.load %arg13[%c0_75, %c0_76] : memref<8x1xf32, #tpu.memory_space<vmem>>, vector<8x1xf32>
    %103 = vector.extract_strided_slice %42 {offsets = [0, 991], sizes = [8, 33], strides = [1, 1]} : vector<8x1024xf32> to vector<8x33xf32>
    %104 = vector.extract_strided_slice %42 {offsets = [0, 0], sizes = [8, 991], strides = [1, 1]} : vector<8x1024xf32> to vector<8x991xf32>
    %105 = tpu.concatenate %103, %104 in 1 : vector<8x33xf32>, vector<8x991xf32> -> vector<8x1024xf32>
    %106 = vector.broadcast %25 : vector<1x1024xf32> to vector<8x1024xf32>
    %107 = arith.mulf %105, %106 : vector<8x1024xf32>
    %c0_77 = arith.constant 0 : index
    %c0_78 = arith.constant 0 : index
    %108 = vector.load %arg24[%c0_77, %c0_78] : memref<216x1024xf32, #tpu.memory_space<vmem>>, vector<8x1024xf32>
    tpu.vector_store %arg24[%c0_77, %c0_78], %107 {strides = array<i32>} : memref<216x1024xf32, #tpu.memory_space<vmem>>, vector<8x1024xf32>,
    %109 = vector.extract_strided_slice %42 {offsets = [0, 992], sizes = [8, 32], strides = [1, 1]} : vector<8x1024xf32> to vector<8x32xf32>
    %110 = vector.extract_strided_slice %42 {offsets = [0, 0], sizes = [8, 992], strides = [1, 1]} : vector<8x1024xf32> to vector<8x992xf32>
    %111 = tpu.concatenate %109, %110 in 1 : vector<8x32xf32>, vector<8x992xf32> -> vector<8x1024xf32>
    %112 = vector.broadcast %27 : vector<1x1024xf32> to vector<8x1024xf32>
    %113 = arith.mulf %111, %112 : vector<8x1024xf32>
    %c8_79 = arith.constant 8 : index
    %c0_80 = arith.constant 0 : index
    %114 = vector.load %arg24[%c8_79, %c0_80] : memref<216x1024xf32, #tpu.memory_space<vmem>>, vector<8x1024xf32>
    tpu.vector_store %arg24[%c8_79, %c0_80], %113 {strides = array<i32>} : memref<216x1024xf32, #tpu.memory_space<vmem>>, vector<8x1024xf32>,
    %115 = vector.extract_strided_slice %42 {offsets = [0, 993], sizes = [8, 31], strides = [1, 1]} : vector<8x1024xf32> to vector<8x31xf32>
    %116 = vector.extract_strided_slice %42 {offsets = [0, 0], sizes = [8, 993], strides = [1, 1]} : vector<8x1024xf32> to vector<8x993xf32>
    %117 = tpu.concatenate %115, %116 in 1 : vector<8x31xf32>, vector<8x993xf32> -> vector<8x1024xf32>
    %118 = vector.broadcast %29 : vector<1x1024xf32> to vector<8x1024xf32>
    %119 = arith.mulf %117, %118 : vector<8x1024xf32>
    %c16_81 = arith.constant 16 : index
    %c0_82 = arith.constant 0 : index
    %120 = vector.load %arg24[%c16_81, %c0_82] : memref<216x1024xf32, #tpu.memory_space<vmem>>, vector<8x1024xf32>
    tpu.vector_store %arg24[%c16_81, %c0_82], %119 {strides = array<i32>} : memref<216x1024xf32, #tpu.memory_space<vmem>>, vector<8x1024xf32>,
    %121 = vector.extract_strided_slice %42 {offsets = [0, 1023], sizes = [8, 1], strides = [1, 1]} : vector<8x1024xf32> to vector<8x1xf32>
    %122 = vector.extract_strided_slice %42 {offsets = [0, 0], sizes = [8, 1023], strides = [1, 1]} : vector<8x1024xf32> to vector<8x1023xf32>
    %123 = tpu.concatenate %121, %122 in 1 : vector<8x1xf32>, vector<8x1023xf32> -> vector<8x1024xf32>
    %124 = vector.broadcast %31 : vector<1x1024xf32> to vector<8x1024xf32>
    %125 = arith.mulf %123, %124 : vector<8x1024xf32>
    %c24_83 = arith.constant 24 : index
    %c0_84 = arith.constant 0 : index
    %126 = vector.load %arg24[%c24_83, %c0_84] : memref<216x1024xf32, #tpu.memory_space<vmem>>, vector<8x1024xf32>
    tpu.vector_store %arg24[%c24_83, %c0_84], %125 {strides = array<i32>} : memref<216x1024xf32, #tpu.memory_space<vmem>>, vector<8x1024xf32>,
    %c32_85 = arith.constant 32 : index
    %c0_86 = arith.constant 0 : index
    %127 = vector.load %arg24[%c32_85, %c0_86] : memref<216x1024xf32, #tpu.memory_space<vmem>>, vector<8x1024xf32>
    tpu.vector_store %arg24[%c32_85, %c0_86], %42 {strides = array<i32>} : memref<216x1024xf32, #tpu.memory_space<vmem>>, vector<8x1024xf32>,
    %128 = vector.extract_strided_slice %42 {offsets = [0, 1], sizes = [8, 1023], strides = [1, 1]} : vector<8x1024xf32> to vector<8x1023xf32>
    %129 = vector.extract_strided_slice %42 {offsets = [0, 0], sizes = [8, 1], strides = [1, 1]} : vector<8x1024xf32> to vector<8x1xf32>
    %130 = tpu.concatenate %128, %129 in 1 : vector<8x1023xf32>, vector<8x1xf32> -> vector<8x1024xf32>
    %131 = vector.broadcast %33 : vector<1x1024xf32> to vector<8x1024xf32>
    %132 = arith.mulf %130, %131 : vector<8x1024xf32>
    %c40_87 = arith.constant 40 : index
    %c0_88 = arith.constant 0 : index
    %133 = vector.load %arg24[%c40_87, %c0_88] : memref<216x1024xf32, #tpu.memory_space<vmem>>, vector<8x1024xf32>
    tpu.vector_store %arg24[%c40_87, %c0_88], %132 {strides = array<i32>} : memref<216x1024xf32, #tpu.memory_space<vmem>>, vector<8x1024xf32>,
    %134 = vector.extract_strided_slice %42 {offsets = [0, 31], sizes = [8, 993], strides = [1, 1]} : vector<8x1024xf32> to vector<8x993xf32>
    %135 = vector.extract_strided_slice %42 {offsets = [0, 0], sizes = [8, 31], strides = [1, 1]} : vector<8x1024xf32> to vector<8x31xf32>
    %136 = tpu.concatenate %134, %135 in 1 : vector<8x993xf32>, vector<8x31xf32> -> vector<8x1024xf32>
    %137 = vector.broadcast %35 : vector<1x1024xf32> to vector<8x1024xf32>
    %138 = arith.mulf %136, %137 : vector<8x1024xf32>
    %c48_89 = arith.constant 48 : index
    %c0_90 = arith.constant 0 : index
    %139 = vector.load %arg24[%c48_89, %c0_90] : memref<216x1024xf32, #tpu.memory_space<vmem>>, vector<8x1024xf32>
    tpu.vector_store %arg24[%c48_89, %c0_90], %138 {strides = array<i32>} : memref<216x1024xf32, #tpu.memory_space<vmem>>, vector<8x1024xf32>,
    %140 = vector.extract_strided_slice %42 {offsets = [0, 32], sizes = [8, 992], strides = [1, 1]} : vector<8x1024xf32> to vector<8x992xf32>
    %141 = vector.extract_strided_slice %42 {offsets = [0, 0], sizes = [8, 32], strides = [1, 1]} : vector<8x1024xf32> to vector<8x32xf32>
    %142 = tpu.concatenate %140, %141 in 1 : vector<8x992xf32>, vector<8x32xf32> -> vector<8x1024xf32>
    %143 = vector.broadcast %37 : vector<1x1024xf32> to vector<8x1024xf32>
    %144 = arith.mulf %142, %143 : vector<8x1024xf32>
    %c56_91 = arith.constant 56 : index
    %c0_92 = arith.constant 0 : index
    %145 = vector.load %arg24[%c56_91, %c0_92] : memref<216x1024xf32, #tpu.memory_space<vmem>>, vector<8x1024xf32>
    tpu.vector_store %arg24[%c56_91, %c0_92], %144 {strides = array<i32>} : memref<216x1024xf32, #tpu.memory_space<vmem>>, vector<8x1024xf32>,
    %146 = vector.extract_strided_slice %42 {offsets = [0, 33], sizes = [8, 991], strides = [1, 1]} : vector<8x1024xf32> to vector<8x991xf32>
    %147 = vector.extract_strided_slice %42 {offsets = [0, 0], sizes = [8, 33], strides = [1, 1]} : vector<8x1024xf32> to vector<8x33xf32>
    %148 = tpu.concatenate %146, %147 in 1 : vector<8x991xf32>, vector<8x33xf32> -> vector<8x1024xf32>
    %149 = vector.broadcast %39 : vector<1x1024xf32> to vector<8x1024xf32>
    %150 = arith.mulf %148, %149 : vector<8x1024xf32>
    %c64_93 = arith.constant 64 : index
    %c0_94 = arith.constant 0 : index
    %151 = vector.load %arg24[%c64_93, %c0_94] : memref<216x1024xf32, #tpu.memory_space<vmem>>, vector<8x1024xf32>
    tpu.vector_store %arg24[%c64_93, %c0_94], %150 {strides = array<i32>} : memref<216x1024xf32, #tpu.memory_space<vmem>>, vector<8x1024xf32>,
    %c0_95 = arith.constant 0 : index
    %c0_96 = arith.constant 0 : index
    %152 = vector.load %arg24[%c0_95, %c0_96] : memref<216x1024xf32, #tpu.memory_space<vmem>>, vector<72x1024xf32>
    %cst_97 = arith.constant dense<0.000000e+00> : vector<8x1024xf32>
    %153 = tpu.matmul %101, %152, %cst_97 {dimension_numbers = #tpu.dot_dimension_numbers<[1], [0], [0], [1], [0, 0, 1, 1], [], []>} : vector<8x72xf32>, vector<72x1024xf32>, vector<8x1024xf32> -> vector<8x1024xf32>
    %154 = vector.broadcast %102 : vector<8x1xf32> to vector<8x1024xf32>
    %155 = arith.addf %153, %154 : vector<8x1024xf32>
    %c0_98 = arith.constant 0 : index
    %c0_99 = arith.constant 0 : index
    %156 = vector.load %arg10[%c0_98, %c0_99] : memref<8x72xf32, #tpu.memory_space<vmem>>, vector<8x72xf32>
    %c0_100 = arith.constant 0 : index
    %c0_101 = arith.constant 0 : index
    %157 = vector.load %arg11[%c0_100, %c0_101] : memref<8x1xf32, #tpu.memory_space<vmem>>, vector<8x1xf32>
    %158 = vector.extract_strided_slice %41 {offsets = [0, 991], sizes = [8, 33], strides = [1, 1]} : vector<8x1024xf32> to vector<8x33xf32>
    %159 = vector.extract_strided_slice %41 {offsets = [0, 0], sizes = [8, 991], strides = [1, 1]} : vector<8x1024xf32> to vector<8x991xf32>
    %160 = tpu.concatenate %158, %159 in 1 : vector<8x33xf32>, vector<8x991xf32> -> vector<8x1024xf32>
    %161 = vector.broadcast %25 : vector<1x1024xf32> to vector<8x1024xf32>
    %162 = arith.mulf %160, %161 : vector<8x1024xf32>
    %c0_102 = arith.constant 0 : index
    %c0_103 = arith.constant 0 : index
    %163 = vector.load %arg24[%c0_102, %c0_103] : memref<216x1024xf32, #tpu.memory_space<vmem>>, vector<8x1024xf32>
    tpu.vector_store %arg24[%c0_102, %c0_103], %162 {strides = array<i32>} : memref<216x1024xf32, #tpu.memory_space<vmem>>, vector<8x1024xf32>,
    %164 = vector.extract_strided_slice %41 {offsets = [0, 992], sizes = [8, 32], strides = [1, 1]} : vector<8x1024xf32> to vector<8x32xf32>
    %165 = vector.extract_strided_slice %41 {offsets = [0, 0], sizes = [8, 992], strides = [1, 1]} : vector<8x1024xf32> to vector<8x992xf32>
    %166 = tpu.concatenate %164, %165 in 1 : vector<8x32xf32>, vector<8x992xf32> -> vector<8x1024xf32>
    %167 = vector.broadcast %27 : vector<1x1024xf32> to vector<8x1024xf32>
    %168 = arith.mulf %166, %167 : vector<8x1024xf32>
    %c8_104 = arith.constant 8 : index
    %c0_105 = arith.constant 0 : index
    %169 = vector.load %arg24[%c8_104, %c0_105] : memref<216x1024xf32, #tpu.memory_space<vmem>>, vector<8x1024xf32>
    tpu.vector_store %arg24[%c8_104, %c0_105], %168 {strides = array<i32>} : memref<216x1024xf32, #tpu.memory_space<vmem>>, vector<8x1024xf32>,
    %170 = vector.extract_strided_slice %41 {offsets = [0, 993], sizes = [8, 31], strides = [1, 1]} : vector<8x1024xf32> to vector<8x31xf32>
    %171 = vector.extract_strided_slice %41 {offsets = [0, 0], sizes = [8, 993], strides = [1, 1]} : vector<8x1024xf32> to vector<8x993xf32>
    %172 = tpu.concatenate %170, %171 in 1 : vector<8x31xf32>, vector<8x993xf32> -> vector<8x1024xf32>
    %173 = vector.broadcast %29 : vector<1x1024xf32> to vector<8x1024xf32>
    %174 = arith.mulf %172, %173 : vector<8x1024xf32>
    %c16_106 = arith.constant 16 : index
    %c0_107 = arith.constant 0 : index
    %175 = vector.load %arg24[%c16_106, %c0_107] : memref<216x1024xf32, #tpu.memory_space<vmem>>, vector<8x1024xf32>
    tpu.vector_store %arg24[%c16_106, %c0_107], %174 {strides = array<i32>} : memref<216x1024xf32, #tpu.memory_space<vmem>>, vector<8x1024xf32>,
    %176 = vector.extract_strided_slice %41 {offsets = [0, 1023], sizes = [8, 1], strides = [1, 1]} : vector<8x1024xf32> to vector<8x1xf32>
    %177 = vector.extract_strided_slice %41 {offsets = [0, 0], sizes = [8, 1023], strides = [1, 1]} : vector<8x1024xf32> to vector<8x1023xf32>
    %178 = tpu.concatenate %176, %177 in 1 : vector<8x1xf32>, vector<8x1023xf32> -> vector<8x1024xf32>
    %179 = vector.broadcast %31 : vector<1x1024xf32> to vector<8x1024xf32>
    %180 = arith.mulf %178, %179 : vector<8x1024xf32>
    %c24_108 = arith.constant 24 : index
    %c0_109 = arith.constant 0 : index
    %181 = vector.load %arg24[%c24_108, %c0_109] : memref<216x1024xf32, #tpu.memory_space<vmem>>, vector<8x1024xf32>
    tpu.vector_store %arg24[%c24_108, %c0_109], %180 {strides = array<i32>} : memref<216x1024xf32, #tpu.memory_space<vmem>>, vector<8x1024xf32>,
    %c32_110 = arith.constant 32 : index
    %c0_111 = arith.constant 0 : index
    %182 = vector.load %arg24[%c32_110, %c0_111] : memref<216x1024xf32, #tpu.memory_space<vmem>>, vector<8x1024xf32>
    tpu.vector_store %arg24[%c32_110, %c0_111], %41 {strides = array<i32>} : memref<216x1024xf32, #tpu.memory_space<vmem>>, vector<8x1024xf32>,
    %183 = vector.extract_strided_slice %41 {offsets = [0, 1], sizes = [8, 1023], strides = [1, 1]} : vector<8x1024xf32> to vector<8x1023xf32>
    %184 = vector.extract_strided_slice %41 {offsets = [0, 0], sizes = [8, 1], strides = [1, 1]} : vector<8x1024xf32> to vector<8x1xf32>
    %185 = tpu.concatenate %183, %184 in 1 : vector<8x1023xf32>, vector<8x1xf32> -> vector<8x1024xf32>
    %186 = vector.broadcast %33 : vector<1x1024xf32> to vector<8x1024xf32>
    %187 = arith.mulf %185, %186 : vector<8x1024xf32>
    %c40_112 = arith.constant 40 : index
    %c0_113 = arith.constant 0 : index
    %188 = vector.load %arg24[%c40_112, %c0_113] : memref<216x1024xf32, #tpu.memory_space<vmem>>, vector<8x1024xf32>
    tpu.vector_store %arg24[%c40_112, %c0_113], %187 {strides = array<i32>} : memref<216x1024xf32, #tpu.memory_space<vmem>>, vector<8x1024xf32>,
    %189 = vector.extract_strided_slice %41 {offsets = [0, 31], sizes = [8, 993], strides = [1, 1]} : vector<8x1024xf32> to vector<8x993xf32>
    %190 = vector.extract_strided_slice %41 {offsets = [0, 0], sizes = [8, 31], strides = [1, 1]} : vector<8x1024xf32> to vector<8x31xf32>
    %191 = tpu.concatenate %189, %190 in 1 : vector<8x993xf32>, vector<8x31xf32> -> vector<8x1024xf32>
    %192 = vector.broadcast %35 : vector<1x1024xf32> to vector<8x1024xf32>
    %193 = arith.mulf %191, %192 : vector<8x1024xf32>
    %c48_114 = arith.constant 48 : index
    %c0_115 = arith.constant 0 : index
    %194 = vector.load %arg24[%c48_114, %c0_115] : memref<216x1024xf32, #tpu.memory_space<vmem>>, vector<8x1024xf32>
    tpu.vector_store %arg24[%c48_114, %c0_115], %193 {strides = array<i32>} : memref<216x1024xf32, #tpu.memory_space<vmem>>, vector<8x1024xf32>,
    %195 = vector.extract_strided_slice %41 {offsets = [0, 32], sizes = [8, 992], strides = [1, 1]} : vector<8x1024xf32> to vector<8x992xf32>
    %196 = vector.extract_strided_slice %41 {offsets = [0, 0], sizes = [8, 32], strides = [1, 1]} : vector<8x1024xf32> to vector<8x32xf32>
    %197 = tpu.concatenate %195, %196 in 1 : vector<8x992xf32>, vector<8x32xf32> -> vector<8x1024xf32>
    %198 = vector.broadcast %37 : vector<1x1024xf32> to vector<8x1024xf32>
    %199 = arith.mulf %197, %198 : vector<8x1024xf32>
    %c56_116 = arith.constant 56 : index
    %c0_117 = arith.constant 0 : index
    %200 = vector.load %arg24[%c56_116, %c0_117] : memref<216x1024xf32, #tpu.memory_space<vmem>>, vector<8x1024xf32>
    tpu.vector_store %arg24[%c56_116, %c0_117], %199 {strides = array<i32>} : memref<216x1024xf32, #tpu.memory_space<vmem>>, vector<8x1024xf32>,
    %201 = vector.extract_strided_slice %41 {offsets = [0, 33], sizes = [8, 991], strides = [1, 1]} : vector<8x1024xf32> to vector<8x991xf32>
    %202 = vector.extract_strided_slice %41 {offsets = [0, 0], sizes = [8, 33], strides = [1, 1]} : vector<8x1024xf32> to vector<8x33xf32>
    %203 = tpu.concatenate %201, %202 in 1 : vector<8x991xf32>, vector<8x33xf32> -> vector<8x1024xf32>
    %204 = vector.broadcast %39 : vector<1x1024xf32> to vector<8x1024xf32>
    %205 = arith.mulf %203, %204 : vector<8x1024xf32>
    %c64_118 = arith.constant 64 : index
    %c0_119 = arith.constant 0 : index
    %206 = vector.load %arg24[%c64_118, %c0_119] : memref<216x1024xf32, #tpu.memory_space<vmem>>, vector<8x1024xf32>
    tpu.vector_store %arg24[%c64_118, %c0_119], %205 {strides = array<i32>} : memref<216x1024xf32, #tpu.memory_space<vmem>>, vector<8x1024xf32>,
    %c0_120 = arith.constant 0 : index
    %c0_121 = arith.constant 0 : index
    %207 = vector.load %arg24[%c0_120, %c0_121] : memref<216x1024xf32, #tpu.memory_space<vmem>>, vector<72x1024xf32>
    %cst_122 = arith.constant dense<0.000000e+00> : vector<8x1024xf32>
    %208 = tpu.matmul %156, %207, %cst_122 {dimension_numbers = #tpu.dot_dimension_numbers<[1], [0], [0], [1], [0, 0, 1, 1], [], []>} : vector<8x72xf32>, vector<72x1024xf32>, vector<8x1024xf32> -> vector<8x1024xf32>
    %209 = vector.broadcast %157 : vector<8x1xf32> to vector<8x1024xf32>
    %210 = arith.addf %208, %209 : vector<8x1024xf32>
    %211 = arith.mulf %210, %155 : vector<8x1024xf32>
    %212 = arith.mulf %211, %5 : vector<8x1024xf32>
    %213 = tpu.concatenate %99, %100 in 0 : vector<8x256xf32>, vector<8x256xf32> -> vector<16x256xf32>
    %c0_123 = arith.constant 0 : index
    %c0_124 = arith.constant 0 : index
    %214 = vector.load %arg14[%c0_123, %c0_124] : memref<16x144xf32, #tpu.memory_space<vmem>>, vector<16x144xf32>
    %c0_125 = arith.constant 0 : index
    %c0_126 = arith.constant 0 : index
    %215 = vector.load %arg15[%c0_125, %c0_126] : memref<16x1xf32, #tpu.memory_space<vmem>>, vector<16x1xf32>
    %216 = vector.extract_strided_slice %213 {offsets = [0, 239], sizes = [16, 17], strides = [1, 1]} : vector<16x256xf32> to vector<16x17xf32>
    %217 = vector.extract_strided_slice %213 {offsets = [0, 0], sizes = [16, 239], strides = [1, 1]} : vector<16x256xf32> to vector<16x239xf32>
    %218 = tpu.concatenate %216, %217 in 1 : vector<16x17xf32>, vector<16x239xf32> -> vector<16x256xf32>
    %219 = vector.broadcast %9 : vector<1x256xf32> to vector<16x256xf32>
    %220 = arith.mulf %218, %219 : vector<16x256xf32>
    %c0_127 = arith.constant 0 : index
    %c0_128 = arith.constant 0 : index
    %221 = vector.load %arg23[%c0_127, %c0_128] : memref<144x256xf32, #tpu.memory_space<vmem>>, vector<16x256xf32>
    tpu.vector_store %arg23[%c0_127, %c0_128], %220 {strides = array<i32>} : memref<144x256xf32, #tpu.memory_space<vmem>>, vector<16x256xf32>,
    %222 = vector.extract_strided_slice %213 {offsets = [0, 240], sizes = [16, 16], strides = [1, 1]} : vector<16x256xf32> to vector<16x16xf32>
    %223 = vector.extract_strided_slice %213 {offsets = [0, 0], sizes = [16, 240], strides = [1, 1]} : vector<16x256xf32> to vector<16x240xf32>
    %224 = tpu.concatenate %222, %223 in 1 : vector<16x16xf32>, vector<16x240xf32> -> vector<16x256xf32>
    %225 = vector.broadcast %11 : vector<1x256xf32> to vector<16x256xf32>
    %226 = arith.mulf %224, %225 : vector<16x256xf32>
    %c16_129 = arith.constant 16 : index
    %c0_130 = arith.constant 0 : index
    %227 = vector.load %arg23[%c16_129, %c0_130] : memref<144x256xf32, #tpu.memory_space<vmem>>, vector<16x256xf32>
    tpu.vector_store %arg23[%c16_129, %c0_130], %226 {strides = array<i32>} : memref<144x256xf32, #tpu.memory_space<vmem>>, vector<16x256xf32>,
    %228 = vector.extract_strided_slice %213 {offsets = [0, 241], sizes = [16, 15], strides = [1, 1]} : vector<16x256xf32> to vector<16x15xf32>
    %229 = vector.extract_strided_slice %213 {offsets = [0, 0], sizes = [16, 241], strides = [1, 1]} : vector<16x256xf32> to vector<16x241xf32>
    %230 = tpu.concatenate %228, %229 in 1 : vector<16x15xf32>, vector<16x241xf32> -> vector<16x256xf32>
    %231 = vector.broadcast %13 : vector<1x256xf32> to vector<16x256xf32>
    %232 = arith.mulf %230, %231 : vector<16x256xf32>
    %c32_131 = arith.constant 32 : index
    %c0_132 = arith.constant 0 : index
    %233 = vector.load %arg23[%c32_131, %c0_132] : memref<144x256xf32, #tpu.memory_space<vmem>>, vector<16x256xf32>
    tpu.vector_store %arg23[%c32_131, %c0_132], %232 {strides = array<i32>} : memref<144x256xf32, #tpu.memory_space<vmem>>, vector<16x256xf32>,
    %234 = vector.extract_strided_slice %213 {offsets = [0, 255], sizes = [16, 1], strides = [1, 1]} : vector<16x256xf32> to vector<16x1xf32>
    %235 = vector.extract_strided_slice %213 {offsets = [0, 0], sizes = [16, 255], strides = [1, 1]} : vector<16x256xf32> to vector<16x255xf32>
    %236 = tpu.concatenate %234, %235 in 1 : vector<16x1xf32>, vector<16x255xf32> -> vector<16x256xf32>
    %237 = vector.broadcast %15 : vector<1x256xf32> to vector<16x256xf32>
    %238 = arith.mulf %236, %237 : vector<16x256xf32>
    %c48_133 = arith.constant 48 : index
    %c0_134 = arith.constant 0 : index
    %239 = vector.load %arg23[%c48_133, %c0_134] : memref<144x256xf32, #tpu.memory_space<vmem>>, vector<16x256xf32>
    tpu.vector_store %arg23[%c48_133, %c0_134], %238 {strides = array<i32>} : memref<144x256xf32, #tpu.memory_space<vmem>>, vector<16x256xf32>,
    %c64_135 = arith.constant 64 : index
    %c0_136 = arith.constant 0 : index
    %240 = vector.load %arg23[%c64_135, %c0_136] : memref<144x256xf32, #tpu.memory_space<vmem>>, vector<16x256xf32>
    tpu.vector_store %arg23[%c64_135, %c0_136], %213 {strides = array<i32>} : memref<144x256xf32, #tpu.memory_space<vmem>>, vector<16x256xf32>,
    %241 = vector.extract_strided_slice %213 {offsets = [0, 1], sizes = [16, 255], strides = [1, 1]} : vector<16x256xf32> to vector<16x255xf32>
    %242 = vector.extract_strided_slice %213 {offsets = [0, 0], sizes = [16, 1], strides = [1, 1]} : vector<16x256xf32> to vector<16x1xf32>
    %243 = tpu.concatenate %241, %242 in 1 : vector<16x255xf32>, vector<16x1xf32> -> vector<16x256xf32>
    %244 = vector.broadcast %17 : vector<1x256xf32> to vector<16x256xf32>
    %245 = arith.mulf %243, %244 : vector<16x256xf32>
    %c80 = arith.constant 80 : index
    %c0_137 = arith.constant 0 : index
    %246 = vector.load %arg23[%c80, %c0_137] : memref<144x256xf32, #tpu.memory_space<vmem>>, vector<16x256xf32>
    tpu.vector_store %arg23[%c80, %c0_137], %245 {strides = array<i32>} : memref<144x256xf32, #tpu.memory_space<vmem>>, vector<16x256xf32>,
    %247 = vector.extract_strided_slice %213 {offsets = [0, 15], sizes = [16, 241], strides = [1, 1]} : vector<16x256xf32> to vector<16x241xf32>
    %248 = vector.extract_strided_slice %213 {offsets = [0, 0], sizes = [16, 15], strides = [1, 1]} : vector<16x256xf32> to vector<16x15xf32>
    %249 = tpu.concatenate %247, %248 in 1 : vector<16x241xf32>, vector<16x15xf32> -> vector<16x256xf32>
    %250 = vector.broadcast %19 : vector<1x256xf32> to vector<16x256xf32>
    %251 = arith.mulf %249, %250 : vector<16x256xf32>
    %c96 = arith.constant 96 : index
    %c0_138 = arith.constant 0 : index
    %252 = vector.load %arg23[%c96, %c0_138] : memref<144x256xf32, #tpu.memory_space<vmem>>, vector<16x256xf32>
    tpu.vector_store %arg23[%c96, %c0_138], %251 {strides = array<i32>} : memref<144x256xf32, #tpu.memory_space<vmem>>, vector<16x256xf32>,
    %253 = vector.extract_strided_slice %213 {offsets = [0, 16], sizes = [16, 240], strides = [1, 1]} : vector<16x256xf32> to vector<16x240xf32>
    %254 = vector.extract_strided_slice %213 {offsets = [0, 0], sizes = [16, 16], strides = [1, 1]} : vector<16x256xf32> to vector<16x16xf32>
    %255 = tpu.concatenate %253, %254 in 1 : vector<16x240xf32>, vector<16x16xf32> -> vector<16x256xf32>
    %256 = vector.broadcast %21 : vector<1x256xf32> to vector<16x256xf32>
    %257 = arith.mulf %255, %256 : vector<16x256xf32>
    %c112 = arith.constant 112 : index
    %c0_139 = arith.constant 0 : index
    %258 = vector.load %arg23[%c112, %c0_139] : memref<144x256xf32, #tpu.memory_space<vmem>>, vector<16x256xf32>
    tpu.vector_store %arg23[%c112, %c0_139], %257 {strides = array<i32>} : memref<144x256xf32, #tpu.memory_space<vmem>>, vector<16x256xf32>,
    %259 = vector.extract_strided_slice %213 {offsets = [0, 17], sizes = [16, 239], strides = [1, 1]} : vector<16x256xf32> to vector<16x239xf32>
    %260 = vector.extract_strided_slice %213 {offsets = [0, 0], sizes = [16, 17], strides = [1, 1]} : vector<16x256xf32> to vector<16x17xf32>
    %261 = tpu.concatenate %259, %260 in 1 : vector<16x239xf32>, vector<16x17xf32> -> vector<16x256xf32>
    %262 = vector.broadcast %23 : vector<1x256xf32> to vector<16x256xf32>
    %263 = arith.mulf %261, %262 : vector<16x256xf32>
    %c128 = arith.constant 128 : index
    %c0_140 = arith.constant 0 : index
    %264 = vector.load %arg23[%c128, %c0_140] : memref<144x256xf32, #tpu.memory_space<vmem>>, vector<16x256xf32>
    tpu.vector_store %arg23[%c128, %c0_140], %263 {strides = array<i32>} : memref<144x256xf32, #tpu.memory_space<vmem>>, vector<16x256xf32>,
    %c0_141 = arith.constant 0 : index
    %c0_142 = arith.constant 0 : index
    %265 = vector.load %arg23[%c0_141, %c0_142] : memref<144x256xf32, #tpu.memory_space<vmem>>, vector<144x256xf32>
    %cst_143 = arith.constant dense<0.000000e+00> : vector<16x256xf32>
    %266 = tpu.matmul %214, %265, %cst_143 {dimension_numbers = #tpu.dot_dimension_numbers<[1], [0], [0], [1], [0, 0, 1, 1], [], []>} : vector<16x144xf32>, vector<144x256xf32>, vector<16x256xf32> -> vector<16x256xf32>
    %267 = vector.broadcast %215 : vector<16x1xf32> to vector<16x256xf32>
    %268 = arith.addf %266, %267 : vector<16x256xf32>
    %cst_144 = arith.constant dense<0.000000e+00> : vector<16x1024xf32>
    %269 = tpu.matmul %268, %7, %cst_144 {dimension_numbers = #tpu.dot_dimension_numbers<[1], [0], [0], [1], [0, 0, 1, 1], [], []>} : vector<16x256xf32>, vector<256x1024xf32>, vector<16x1024xf32> -> vector<16x1024xf32>
    %c0_145 = arith.constant 0 : index
    %c0_146 = arith.constant 0 : index
    %270 = vector.load %arg16[%c0_145, %c0_146] : memref<16x144xf32, #tpu.memory_space<vmem>>, vector<16x144xf32>
    %c0_147 = arith.constant 0 : index
    %c0_148 = arith.constant 0 : index
    %271 = vector.load %arg17[%c0_147, %c0_148] : memref<16x1xf32, #tpu.memory_space<vmem>>, vector<16x1xf32>
    %272 = vector.extract_strided_slice %269 {offsets = [0, 991], sizes = [16, 33], strides = [1, 1]} : vector<16x1024xf32> to vector<16x33xf32>
    %273 = vector.extract_strided_slice %269 {offsets = [0, 0], sizes = [16, 991], strides = [1, 1]} : vector<16x1024xf32> to vector<16x991xf32>
    %274 = tpu.concatenate %272, %273 in 1 : vector<16x33xf32>, vector<16x991xf32> -> vector<16x1024xf32>
    %275 = vector.broadcast %25 : vector<1x1024xf32> to vector<16x1024xf32>
    %276 = arith.mulf %274, %275 : vector<16x1024xf32>
    %c0_149 = arith.constant 0 : index
    %c0_150 = arith.constant 0 : index
    %277 = vector.load %arg24[%c0_149, %c0_150] : memref<216x1024xf32, #tpu.memory_space<vmem>>, vector<16x1024xf32>
    tpu.vector_store %arg24[%c0_149, %c0_150], %276 {strides = array<i32>} : memref<216x1024xf32, #tpu.memory_space<vmem>>, vector<16x1024xf32>,
    %278 = vector.extract_strided_slice %269 {offsets = [0, 992], sizes = [16, 32], strides = [1, 1]} : vector<16x1024xf32> to vector<16x32xf32>
    %279 = vector.extract_strided_slice %269 {offsets = [0, 0], sizes = [16, 992], strides = [1, 1]} : vector<16x1024xf32> to vector<16x992xf32>
    %280 = tpu.concatenate %278, %279 in 1 : vector<16x32xf32>, vector<16x992xf32> -> vector<16x1024xf32>
    %281 = vector.broadcast %27 : vector<1x1024xf32> to vector<16x1024xf32>
    %282 = arith.mulf %280, %281 : vector<16x1024xf32>
    %c16_151 = arith.constant 16 : index
    %c0_152 = arith.constant 0 : index
    %283 = vector.load %arg24[%c16_151, %c0_152] : memref<216x1024xf32, #tpu.memory_space<vmem>>, vector<16x1024xf32>
    tpu.vector_store %arg24[%c16_151, %c0_152], %282 {strides = array<i32>} : memref<216x1024xf32, #tpu.memory_space<vmem>>, vector<16x1024xf32>,
    %284 = vector.extract_strided_slice %269 {offsets = [0, 993], sizes = [16, 31], strides = [1, 1]} : vector<16x1024xf32> to vector<16x31xf32>
    %285 = vector.extract_strided_slice %269 {offsets = [0, 0], sizes = [16, 993], strides = [1, 1]} : vector<16x1024xf32> to vector<16x993xf32>
    %286 = tpu.concatenate %284, %285 in 1 : vector<16x31xf32>, vector<16x993xf32> -> vector<16x1024xf32>
    %287 = vector.broadcast %29 : vector<1x1024xf32> to vector<16x1024xf32>
    %288 = arith.mulf %286, %287 : vector<16x1024xf32>
    %c32_153 = arith.constant 32 : index
    %c0_154 = arith.constant 0 : index
    %289 = vector.load %arg24[%c32_153, %c0_154] : memref<216x1024xf32, #tpu.memory_space<vmem>>, vector<16x1024xf32>
    tpu.vector_store %arg24[%c32_153, %c0_154], %288 {strides = array<i32>} : memref<216x1024xf32, #tpu.memory_space<vmem>>, vector<16x1024xf32>,
    %290 = vector.extract_strided_slice %269 {offsets = [0, 1023], sizes = [16, 1], strides = [1, 1]} : vector<16x1024xf32> to vector<16x1xf32>
    %291 = vector.extract_strided_slice %269 {offsets = [0, 0], sizes = [16, 1023], strides = [1, 1]} : vector<16x1024xf32> to vector<16x1023xf32>
    %292 = tpu.concatenate %290, %291 in 1 : vector<16x1xf32>, vector<16x1023xf32> -> vector<16x1024xf32>
    %293 = vector.broadcast %31 : vector<1x1024xf32> to vector<16x1024xf32>
    %294 = arith.mulf %292, %293 : vector<16x1024xf32>
    %c48_155 = arith.constant 48 : index
    %c0_156 = arith.constant 0 : index
    %295 = vector.load %arg24[%c48_155, %c0_156] : memref<216x1024xf32, #tpu.memory_space<vmem>>, vector<16x1024xf32>
    tpu.vector_store %arg24[%c48_155, %c0_156], %294 {strides = array<i32>} : memref<216x1024xf32, #tpu.memory_space<vmem>>, vector<16x1024xf32>,
    %c64_157 = arith.constant 64 : index
    %c0_158 = arith.constant 0 : index
    %296 = vector.load %arg24[%c64_157, %c0_158] : memref<216x1024xf32, #tpu.memory_space<vmem>>, vector<16x1024xf32>
    tpu.vector_store %arg24[%c64_157, %c0_158], %269 {strides = array<i32>} : memref<216x1024xf32, #tpu.memory_space<vmem>>, vector<16x1024xf32>,
    %297 = vector.extract_strided_slice %269 {offsets = [0, 1], sizes = [16, 1023], strides = [1, 1]} : vector<16x1024xf32> to vector<16x1023xf32>
    %298 = vector.extract_strided_slice %269 {offsets = [0, 0], sizes = [16, 1], strides = [1, 1]} : vector<16x1024xf32> to vector<16x1xf32>
    %299 = tpu.concatenate %297, %298 in 1 : vector<16x1023xf32>, vector<16x1xf32> -> vector<16x1024xf32>
    %300 = vector.broadcast %33 : vector<1x1024xf32> to vector<16x1024xf32>
    %301 = arith.mulf %299, %300 : vector<16x1024xf32>
    %c80_159 = arith.constant 80 : index
    %c0_160 = arith.constant 0 : index
    %302 = vector.load %arg24[%c80_159, %c0_160] : memref<216x1024xf32, #tpu.memory_space<vmem>>, vector<16x1024xf32>
    tpu.vector_store %arg24[%c80_159, %c0_160], %301 {strides = array<i32>} : memref<216x1024xf32, #tpu.memory_space<vmem>>, vector<16x1024xf32>,
    %303 = vector.extract_strided_slice %269 {offsets = [0, 31], sizes = [16, 993], strides = [1, 1]} : vector<16x1024xf32> to vector<16x993xf32>
    %304 = vector.extract_strided_slice %269 {offsets = [0, 0], sizes = [16, 31], strides = [1, 1]} : vector<16x1024xf32> to vector<16x31xf32>
    %305 = tpu.concatenate %303, %304 in 1 : vector<16x993xf32>, vector<16x31xf32> -> vector<16x1024xf32>
    %306 = vector.broadcast %35 : vector<1x1024xf32> to vector<16x1024xf32>
    %307 = arith.mulf %305, %306 : vector<16x1024xf32>
    %c96_161 = arith.constant 96 : index
    %c0_162 = arith.constant 0 : index
    %308 = vector.load %arg24[%c96_161, %c0_162] : memref<216x1024xf32, #tpu.memory_space<vmem>>, vector<16x1024xf32>
    tpu.vector_store %arg24[%c96_161, %c0_162], %307 {strides = array<i32>} : memref<216x1024xf32, #tpu.memory_space<vmem>>, vector<16x1024xf32>,
    %309 = vector.extract_strided_slice %269 {offsets = [0, 32], sizes = [16, 992], strides = [1, 1]} : vector<16x1024xf32> to vector<16x992xf32>
    %310 = vector.extract_strided_slice %269 {offsets = [0, 0], sizes = [16, 32], strides = [1, 1]} : vector<16x1024xf32> to vector<16x32xf32>
    %311 = tpu.concatenate %309, %310 in 1 : vector<16x992xf32>, vector<16x32xf32> -> vector<16x1024xf32>
    %312 = vector.broadcast %37 : vector<1x1024xf32> to vector<16x1024xf32>
    %313 = arith.mulf %311, %312 : vector<16x1024xf32>
    %c112_163 = arith.constant 112 : index
    %c0_164 = arith.constant 0 : index
    %314 = vector.load %arg24[%c112_163, %c0_164] : memref<216x1024xf32, #tpu.memory_space<vmem>>, vector<16x1024xf32>
    tpu.vector_store %arg24[%c112_163, %c0_164], %313 {strides = array<i32>} : memref<216x1024xf32, #tpu.memory_space<vmem>>, vector<16x1024xf32>,
    %315 = vector.extract_strided_slice %269 {offsets = [0, 33], sizes = [16, 991], strides = [1, 1]} : vector<16x1024xf32> to vector<16x991xf32>
    %316 = vector.extract_strided_slice %269 {offsets = [0, 0], sizes = [16, 33], strides = [1, 1]} : vector<16x1024xf32> to vector<16x33xf32>
    %317 = tpu.concatenate %315, %316 in 1 : vector<16x991xf32>, vector<16x33xf32> -> vector<16x1024xf32>
    %318 = vector.broadcast %39 : vector<1x1024xf32> to vector<16x1024xf32>
    %319 = arith.mulf %317, %318 : vector<16x1024xf32>
    %c128_165 = arith.constant 128 : index
    %c0_166 = arith.constant 0 : index
    %320 = vector.load %arg24[%c128_165, %c0_166] : memref<216x1024xf32, #tpu.memory_space<vmem>>, vector<16x1024xf32>
    tpu.vector_store %arg24[%c128_165, %c0_166], %319 {strides = array<i32>} : memref<216x1024xf32, #tpu.memory_space<vmem>>, vector<16x1024xf32>,
    %c0_167 = arith.constant 0 : index
    %c0_168 = arith.constant 0 : index
    %321 = vector.load %arg24[%c0_167, %c0_168] : memref<216x1024xf32, #tpu.memory_space<vmem>>, vector<144x1024xf32>
    %cst_169 = arith.constant dense<0.000000e+00> : vector<16x1024xf32>
    %322 = tpu.matmul %270, %321, %cst_169 {dimension_numbers = #tpu.dot_dimension_numbers<[1], [0], [0], [1], [0, 0, 1, 1], [], []>} : vector<16x144xf32>, vector<144x1024xf32>, vector<16x1024xf32> -> vector<16x1024xf32>
    %323 = vector.broadcast %271 : vector<16x1xf32> to vector<16x1024xf32>
    %324 = arith.addf %322, %323 : vector<16x1024xf32>
    %325 = tpu.concatenate %212, %324 in 0 : vector<8x1024xf32>, vector<16x1024xf32> -> vector<24x1024xf32>
    %c0_170 = arith.constant 0 : index
    %c0_171 = arith.constant 0 : index
    %326 = vector.load %arg18[%c0_170, %c0_171] : memref<24x216xf32, #tpu.memory_space<vmem>>, vector<24x216xf32>
    %c0_172 = arith.constant 0 : index
    %c0_173 = arith.constant 0 : index
    %327 = vector.load %arg19[%c0_172, %c0_173] : memref<24x1xf32, #tpu.memory_space<vmem>>, vector<24x1xf32>
    %328 = vector.extract_strided_slice %325 {offsets = [0, 991], sizes = [24, 33], strides = [1, 1]} : vector<24x1024xf32> to vector<24x33xf32>
    %329 = vector.extract_strided_slice %325 {offsets = [0, 0], sizes = [24, 991], strides = [1, 1]} : vector<24x1024xf32> to vector<24x991xf32>
    %330 = tpu.concatenate %328, %329 in 1 : vector<24x33xf32>, vector<24x991xf32> -> vector<24x1024xf32>
    %331 = vector.broadcast %25 : vector<1x1024xf32> to vector<24x1024xf32>
    %332 = arith.mulf %330, %331 : vector<24x1024xf32>
    %c0_174 = arith.constant 0 : index
    %c0_175 = arith.constant 0 : index
    %333 = vector.load %arg24[%c0_174, %c0_175] : memref<216x1024xf32, #tpu.memory_space<vmem>>, vector<24x1024xf32>
    tpu.vector_store %arg24[%c0_174, %c0_175], %332 {strides = array<i32>} : memref<216x1024xf32, #tpu.memory_space<vmem>>, vector<24x1024xf32>,
    %334 = vector.extract_strided_slice %325 {offsets = [0, 992], sizes = [24, 32], strides = [1, 1]} : vector<24x1024xf32> to vector<24x32xf32>
    %335 = vector.extract_strided_slice %325 {offsets = [0, 0], sizes = [24, 992], strides = [1, 1]} : vector<24x1024xf32> to vector<24x992xf32>
    %336 = tpu.concatenate %334, %335 in 1 : vector<24x32xf32>, vector<24x992xf32> -> vector<24x1024xf32>
    %337 = vector.broadcast %27 : vector<1x1024xf32> to vector<24x1024xf32>
    %338 = arith.mulf %336, %337 : vector<24x1024xf32>
    %c24_176 = arith.constant 24 : index
    %c0_177 = arith.constant 0 : index
    %339 = vector.load %arg24[%c24_176, %c0_177] : memref<216x1024xf32, #tpu.memory_space<vmem>>, vector<24x1024xf32>
    tpu.vector_store %arg24[%c24_176, %c0_177], %338 {strides = array<i32>} : memref<216x1024xf32, #tpu.memory_space<vmem>>, vector<24x1024xf32>,
    %340 = vector.extract_strided_slice %325 {offsets = [0, 993], sizes = [24, 31], strides = [1, 1]} : vector<24x1024xf32> to vector<24x31xf32>
    %341 = vector.extract_strided_slice %325 {offsets = [0, 0], sizes = [24, 993], strides = [1, 1]} : vector<24x1024xf32> to vector<24x993xf32>
    %342 = tpu.concatenate %340, %341 in 1 : vector<24x31xf32>, vector<24x993xf32> -> vector<24x1024xf32>
    %343 = vector.broadcast %29 : vector<1x1024xf32> to vector<24x1024xf32>
    %344 = arith.mulf %342, %343 : vector<24x1024xf32>
    %c48_178 = arith.constant 48 : index
    %c0_179 = arith.constant 0 : index
    %345 = vector.load %arg24[%c48_178, %c0_179] : memref<216x1024xf32, #tpu.memory_space<vmem>>, vector<24x1024xf32>
    tpu.vector_store %arg24[%c48_178, %c0_179], %344 {strides = array<i32>} : memref<216x1024xf32, #tpu.memory_space<vmem>>, vector<24x1024xf32>,
    %346 = vector.extract_strided_slice %325 {offsets = [0, 1023], sizes = [24, 1], strides = [1, 1]} : vector<24x1024xf32> to vector<24x1xf32>
    %347 = vector.extract_strided_slice %325 {offsets = [0, 0], sizes = [24, 1023], strides = [1, 1]} : vector<24x1024xf32> to vector<24x1023xf32>
    %348 = tpu.concatenate %346, %347 in 1 : vector<24x1xf32>, vector<24x1023xf32> -> vector<24x1024xf32>
    %349 = vector.broadcast %31 : vector<1x1024xf32> to vector<24x1024xf32>
    %350 = arith.mulf %348, %349 : vector<24x1024xf32>
    %c72 = arith.constant 72 : index
    %c0_180 = arith.constant 0 : index
    %351 = vector.load %arg24[%c72, %c0_180] : memref<216x1024xf32, #tpu.memory_space<vmem>>, vector<24x1024xf32>
    tpu.vector_store %arg24[%c72, %c0_180], %350 {strides = array<i32>} : memref<216x1024xf32, #tpu.memory_space<vmem>>, vector<24x1024xf32>,
    %c96_181 = arith.constant 96 : index
    %c0_182 = arith.constant 0 : index
    %352 = vector.load %arg24[%c96_181, %c0_182] : memref<216x1024xf32, #tpu.memory_space<vmem>>, vector<24x1024xf32>
    tpu.vector_store %arg24[%c96_181, %c0_182], %325 {strides = array<i32>} : memref<216x1024xf32, #tpu.memory_space<vmem>>, vector<24x1024xf32>,
    %353 = vector.extract_strided_slice %325 {offsets = [0, 1], sizes = [24, 1023], strides = [1, 1]} : vector<24x1024xf32> to vector<24x1023xf32>
    %354 = vector.extract_strided_slice %325 {offsets = [0, 0], sizes = [24, 1], strides = [1, 1]} : vector<24x1024xf32> to vector<24x1xf32>
    %355 = tpu.concatenate %353, %354 in 1 : vector<24x1023xf32>, vector<24x1xf32> -> vector<24x1024xf32>
    %356 = vector.broadcast %33 : vector<1x1024xf32> to vector<24x1024xf32>
    %357 = arith.mulf %355, %356 : vector<24x1024xf32>
    %c120 = arith.constant 120 : index
    %c0_183 = arith.constant 0 : index
    %358 = vector.load %arg24[%c120, %c0_183] : memref<216x1024xf32, #tpu.memory_space<vmem>>, vector<24x1024xf32>
    tpu.vector_store %arg24[%c120, %c0_183], %357 {strides = array<i32>} : memref<216x1024xf32, #tpu.memory_space<vmem>>, vector<24x1024xf32>,
    %359 = vector.extract_strided_slice %325 {offsets = [0, 31], sizes = [24, 993], strides = [1, 1]} : vector<24x1024xf32> to vector<24x993xf32>
    %360 = vector.extract_strided_slice %325 {offsets = [0, 0], sizes = [24, 31], strides = [1, 1]} : vector<24x1024xf32> to vector<24x31xf32>
    %361 = tpu.concatenate %359, %360 in 1 : vector<24x993xf32>, vector<24x31xf32> -> vector<24x1024xf32>
    %362 = vector.broadcast %35 : vector<1x1024xf32> to vector<24x1024xf32>
    %363 = arith.mulf %361, %362 : vector<24x1024xf32>
    %c144 = arith.constant 144 : index
    %c0_184 = arith.constant 0 : index
    %364 = vector.load %arg24[%c144, %c0_184] : memref<216x1024xf32, #tpu.memory_space<vmem>>, vector<24x1024xf32>
    tpu.vector_store %arg24[%c144, %c0_184], %363 {strides = array<i32>} : memref<216x1024xf32, #tpu.memory_space<vmem>>, vector<24x1024xf32>,
    %365 = vector.extract_strided_slice %325 {offsets = [0, 32], sizes = [24, 992], strides = [1, 1]} : vector<24x1024xf32> to vector<24x992xf32>
    %366 = vector.extract_strided_slice %325 {offsets = [0, 0], sizes = [24, 32], strides = [1, 1]} : vector<24x1024xf32> to vector<24x32xf32>
    %367 = tpu.concatenate %365, %366 in 1 : vector<24x992xf32>, vector<24x32xf32> -> vector<24x1024xf32>
    %368 = vector.broadcast %37 : vector<1x1024xf32> to vector<24x1024xf32>
    %369 = arith.mulf %367, %368 : vector<24x1024xf32>
    %c168 = arith.constant 168 : index
    %c0_185 = arith.constant 0 : index
    %370 = vector.load %arg24[%c168, %c0_185] : memref<216x1024xf32, #tpu.memory_space<vmem>>, vector<24x1024xf32>
    tpu.vector_store %arg24[%c168, %c0_185], %369 {strides = array<i32>} : memref<216x1024xf32, #tpu.memory_space<vmem>>, vector<24x1024xf32>,
    %371 = vector.extract_strided_slice %325 {offsets = [0, 33], sizes = [24, 991], strides = [1, 1]} : vector<24x1024xf32> to vector<24x991xf32>
    %372 = vector.extract_strided_slice %325 {offsets = [0, 0], sizes = [24, 33], strides = [1, 1]} : vector<24x1024xf32> to vector<24x33xf32>
    %373 = tpu.concatenate %371, %372 in 1 : vector<24x991xf32>, vector<24x33xf32> -> vector<24x1024xf32>
    %374 = vector.broadcast %39 : vector<1x1024xf32> to vector<24x1024xf32>
    %375 = arith.mulf %373, %374 : vector<24x1024xf32>
    %c192 = arith.constant 192 : index
    %c0_186 = arith.constant 0 : index
    %376 = vector.load %arg24[%c192, %c0_186] : memref<216x1024xf32, #tpu.memory_space<vmem>>, vector<24x1024xf32>
    tpu.vector_store %arg24[%c192, %c0_186], %375 {strides = array<i32>} : memref<216x1024xf32, #tpu.memory_space<vmem>>, vector<24x1024xf32>,
    %c0_187 = arith.constant 0 : index
    %c0_188 = arith.constant 0 : index
    %377 = vector.load %arg24[%c0_187, %c0_188] : memref<216x1024xf32, #tpu.memory_space<vmem>>, vector<216x1024xf32>
    %cst_189 = arith.constant dense<0.000000e+00> : vector<24x1024xf32>
    %378 = tpu.matmul %326, %377, %cst_189 {dimension_numbers = #tpu.dot_dimension_numbers<[1], [0], [0], [1], [0, 0, 1, 1], [], []>} : vector<24x216xf32>, vector<216x1024xf32>, vector<24x1024xf32> -> vector<24x1024xf32>
    %379 = vector.broadcast %327 : vector<24x1xf32> to vector<24x1024xf32>
    %380 = arith.addf %378, %379 : vector<24x1024xf32>
    %c0_190 = arith.constant 0 : index
    %c0_191 = arith.constant 0 : index
    %381 = vector.load %arg20[%c0_190, %c0_191] : memref<8x216xf32, #tpu.memory_space<vmem>>, vector<8x216xf32>
    %c0_192 = arith.constant 0 : index
    %c0_193 = arith.constant 0 : index
    %382 = vector.load %arg21[%c0_192, %c0_193] : memref<8x1xf32, #tpu.memory_space<vmem>>, vector<8x1xf32>
    %383 = vector.extract_strided_slice %380 {offsets = [0, 991], sizes = [24, 33], strides = [1, 1]} : vector<24x1024xf32> to vector<24x33xf32>
    %384 = vector.extract_strided_slice %380 {offsets = [0, 0], sizes = [24, 991], strides = [1, 1]} : vector<24x1024xf32> to vector<24x991xf32>
    %385 = tpu.concatenate %383, %384 in 1 : vector<24x33xf32>, vector<24x991xf32> -> vector<24x1024xf32>
    %386 = vector.broadcast %25 : vector<1x1024xf32> to vector<24x1024xf32>
    %387 = arith.mulf %385, %386 : vector<24x1024xf32>
    %c0_194 = arith.constant 0 : index
    %c0_195 = arith.constant 0 : index
    %388 = vector.load %arg24[%c0_194, %c0_195] : memref<216x1024xf32, #tpu.memory_space<vmem>>, vector<24x1024xf32>
    tpu.vector_store %arg24[%c0_194, %c0_195], %387 {strides = array<i32>} : memref<216x1024xf32, #tpu.memory_space<vmem>>, vector<24x1024xf32>,
    %389 = vector.extract_strided_slice %380 {offsets = [0, 992], sizes = [24, 32], strides = [1, 1]} : vector<24x1024xf32> to vector<24x32xf32>
    %390 = vector.extract_strided_slice %380 {offsets = [0, 0], sizes = [24, 992], strides = [1, 1]} : vector<24x1024xf32> to vector<24x992xf32>
    %391 = tpu.concatenate %389, %390 in 1 : vector<24x32xf32>, vector<24x992xf32> -> vector<24x1024xf32>
    %392 = vector.broadcast %27 : vector<1x1024xf32> to vector<24x1024xf32>
    %393 = arith.mulf %391, %392 : vector<24x1024xf32>
    %c24_196 = arith.constant 24 : index
    %c0_197 = arith.constant 0 : index
    %394 = vector.load %arg24[%c24_196, %c0_197] : memref<216x1024xf32, #tpu.memory_space<vmem>>, vector<24x1024xf32>
    tpu.vector_store %arg24[%c24_196, %c0_197], %393 {strides = array<i32>} : memref<216x1024xf32, #tpu.memory_space<vmem>>, vector<24x1024xf32>,
    %395 = vector.extract_strided_slice %380 {offsets = [0, 993], sizes = [24, 31], strides = [1, 1]} : vector<24x1024xf32> to vector<24x31xf32>
    %396 = vector.extract_strided_slice %380 {offsets = [0, 0], sizes = [24, 993], strides = [1, 1]} : vector<24x1024xf32> to vector<24x993xf32>
    %397 = tpu.concatenate %395, %396 in 1 : vector<24x31xf32>, vector<24x993xf32> -> vector<24x1024xf32>
    %398 = vector.broadcast %29 : vector<1x1024xf32> to vector<24x1024xf32>
    %399 = arith.mulf %397, %398 : vector<24x1024xf32>
    %c48_198 = arith.constant 48 : index
    %c0_199 = arith.constant 0 : index
    %400 = vector.load %arg24[%c48_198, %c0_199] : memref<216x1024xf32, #tpu.memory_space<vmem>>, vector<24x1024xf32>
    tpu.vector_store %arg24[%c48_198, %c0_199], %399 {strides = array<i32>} : memref<216x1024xf32, #tpu.memory_space<vmem>>, vector<24x1024xf32>,
    %401 = vector.extract_strided_slice %380 {offsets = [0, 1023], sizes = [24, 1], strides = [1, 1]} : vector<24x1024xf32> to vector<24x1xf32>
    %402 = vector.extract_strided_slice %380 {offsets = [0, 0], sizes = [24, 1023], strides = [1, 1]} : vector<24x1024xf32> to vector<24x1023xf32>
    %403 = tpu.concatenate %401, %402 in 1 : vector<24x1xf32>, vector<24x1023xf32> -> vector<24x1024xf32>
    %404 = vector.broadcast %31 : vector<1x1024xf32> to vector<24x1024xf32>
    %405 = arith.mulf %403, %404 : vector<24x1024xf32>
    %c72_200 = arith.constant 72 : index
    %c0_201 = arith.constant 0 : index
    %406 = vector.load %arg24[%c72_200, %c0_201] : memref<216x1024xf32, #tpu.memory_space<vmem>>, vector<24x1024xf32>
    tpu.vector_store %arg24[%c72_200, %c0_201], %405 {strides = array<i32>} : memref<216x1024xf32, #tpu.memory_space<vmem>>, vector<24x1024xf32>,
    %c96_202 = arith.constant 96 : index
    %c0_203 = arith.constant 0 : index
    %407 = vector.load %arg24[%c96_202, %c0_203] : memref<216x1024xf32, #tpu.memory_space<vmem>>, vector<24x1024xf32>
    tpu.vector_store %arg24[%c96_202, %c0_203], %380 {strides = array<i32>} : memref<216x1024xf32, #tpu.memory_space<vmem>>, vector<24x1024xf32>,
    %408 = vector.extract_strided_slice %380 {offsets = [0, 1], sizes = [24, 1023], strides = [1, 1]} : vector<24x1024xf32> to vector<24x1023xf32>
    %409 = vector.extract_strided_slice %380 {offsets = [0, 0], sizes = [24, 1], strides = [1, 1]} : vector<24x1024xf32> to vector<24x1xf32>
    %410 = tpu.concatenate %408, %409 in 1 : vector<24x1023xf32>, vector<24x1xf32> -> vector<24x1024xf32>
    %411 = vector.broadcast %33 : vector<1x1024xf32> to vector<24x1024xf32>
    %412 = arith.mulf %410, %411 : vector<24x1024xf32>
    %c120_204 = arith.constant 120 : index
    %c0_205 = arith.constant 0 : index
    %413 = vector.load %arg24[%c120_204, %c0_205] : memref<216x1024xf32, #tpu.memory_space<vmem>>, vector<24x1024xf32>
    tpu.vector_store %arg24[%c120_204, %c0_205], %412 {strides = array<i32>} : memref<216x1024xf32, #tpu.memory_space<vmem>>, vector<24x1024xf32>,
    %414 = vector.extract_strided_slice %380 {offsets = [0, 31], sizes = [24, 993], strides = [1, 1]} : vector<24x1024xf32> to vector<24x993xf32>
    %415 = vector.extract_strided_slice %380 {offsets = [0, 0], sizes = [24, 31], strides = [1, 1]} : vector<24x1024xf32> to vector<24x31xf32>
    %416 = tpu.concatenate %414, %415 in 1 : vector<24x993xf32>, vector<24x31xf32> -> vector<24x1024xf32>
    %417 = vector.broadcast %35 : vector<1x1024xf32> to vector<24x1024xf32>
    %418 = arith.mulf %416, %417 : vector<24x1024xf32>
    %c144_206 = arith.constant 144 : index
    %c0_207 = arith.constant 0 : index
    %419 = vector.load %arg24[%c144_206, %c0_207] : memref<216x1024xf32, #tpu.memory_space<vmem>>, vector<24x1024xf32>
    tpu.vector_store %arg24[%c144_206, %c0_207], %418 {strides = array<i32>} : memref<216x1024xf32, #tpu.memory_space<vmem>>, vector<24x1024xf32>,
    %420 = vector.extract_strided_slice %380 {offsets = [0, 32], sizes = [24, 992], strides = [1, 1]} : vector<24x1024xf32> to vector<24x992xf32>
    %421 = vector.extract_strided_slice %380 {offsets = [0, 0], sizes = [24, 32], strides = [1, 1]} : vector<24x1024xf32> to vector<24x32xf32>
    %422 = tpu.concatenate %420, %421 in 1 : vector<24x992xf32>, vector<24x32xf32> -> vector<24x1024xf32>
    %423 = vector.broadcast %37 : vector<1x1024xf32> to vector<24x1024xf32>
    %424 = arith.mulf %422, %423 : vector<24x1024xf32>
    %c168_208 = arith.constant 168 : index
    %c0_209 = arith.constant 0 : index
    %425 = vector.load %arg24[%c168_208, %c0_209] : memref<216x1024xf32, #tpu.memory_space<vmem>>, vector<24x1024xf32>
    tpu.vector_store %arg24[%c168_208, %c0_209], %424 {strides = array<i32>} : memref<216x1024xf32, #tpu.memory_space<vmem>>, vector<24x1024xf32>,
    %426 = vector.extract_strided_slice %380 {offsets = [0, 33], sizes = [24, 991], strides = [1, 1]} : vector<24x1024xf32> to vector<24x991xf32>
    %427 = vector.extract_strided_slice %380 {offsets = [0, 0], sizes = [24, 33], strides = [1, 1]} : vector<24x1024xf32> to vector<24x33xf32>
    %428 = tpu.concatenate %426, %427 in 1 : vector<24x991xf32>, vector<24x33xf32> -> vector<24x1024xf32>
    %429 = vector.broadcast %39 : vector<1x1024xf32> to vector<24x1024xf32>
    %430 = arith.mulf %428, %429 : vector<24x1024xf32>
    %c192_210 = arith.constant 192 : index
    %c0_211 = arith.constant 0 : index
    %431 = vector.load %arg24[%c192_210, %c0_211] : memref<216x1024xf32, #tpu.memory_space<vmem>>, vector<24x1024xf32>
    tpu.vector_store %arg24[%c192_210, %c0_211], %430 {strides = array<i32>} : memref<216x1024xf32, #tpu.memory_space<vmem>>, vector<24x1024xf32>,
    %c0_212 = arith.constant 0 : index
    %c0_213 = arith.constant 0 : index
    %432 = vector.load %arg24[%c0_212, %c0_213] : memref<216x1024xf32, #tpu.memory_space<vmem>>, vector<216x1024xf32>
    %cst_214 = arith.constant dense<0.000000e+00> : vector<8x1024xf32>
    %433 = tpu.matmul %381, %432, %cst_214 {dimension_numbers = #tpu.dot_dimension_numbers<[1], [0], [0], [1], [0, 0, 1, 1], [], []>} : vector<8x216xf32>, vector<216x1024xf32>, vector<8x1024xf32> -> vector<8x1024xf32>
    %434 = vector.broadcast %382 : vector<8x1xf32> to vector<8x1024xf32>
    %435 = arith.addf %433, %434 : vector<8x1024xf32>
    %c0_215 = arith.constant 0 : index
    %c0_216 = arith.constant 0 : index
    %c0_217 = arith.constant 0 : index
    %436 = vector.load %arg22[%c0_215, %c0_216, %c0_217] : memref<1x8x1024xf32, #tpu.memory_space<vmem>>, vector<1x8x1024xf32>
    %437 = vector.shape_cast %436 : vector<1x8x1024xf32> to vector<8x1024xf32>
    %438 = vector.shape_cast %435 : vector<8x1024xf32> to vector<1x8x1024xf32>
    tpu.vector_store %arg22[%c0_215, %c0_216, %c0_217], %438 {strides = array<i32>} : memref<1x8x1024xf32, #tpu.memory_space<vmem>>, vector<1x8x1024xf32>,
    return
  }
  func.func @transform_0(%arg0: i32) -> (i32, i32, i32) {
    %c0_i32 = arith.constant 0 : i32
    %c0_i32_0 = arith.constant 0 : i32
    %c0_i32_1 = arith.constant 0 : i32
    return %arg0, %c0_i32, %c0_i32_0 : i32, i32, i32
  }
  func.func @transform_1(%arg0: i32) -> (i32, i32, i32) {
    %c0_i32 = arith.constant 0 : i32
    %c0_i32_0 = arith.constant 0 : i32
    %c0_i32_1 = arith.constant 0 : i32
    return %arg0, %c0_i32, %c0_i32_0 : i32, i32, i32
  }
  func.func @transform_2(%arg0: i32) -> (i32, i32, i32) {
    %c0_i32 = arith.constant 0 : i32
    %c0_i32_0 = arith.constant 0 : i32
    %c0_i32_1 = arith.constant 0 : i32
    return %arg0, %c0_i32, %c0_i32_0 : i32, i32, i32
  }
  func.func @transform_3(%arg0: i32) -> (i32, i32) {
    %c0_i32 = arith.constant 0 : i32
    %c0_i32_0 = arith.constant 0 : i32
    %c0_i32_1 = arith.constant 0 : i32
    return %c0_i32, %c0_i32_0 : i32, i32
  }
  func.func @transform_4(%arg0: i32) -> (i32, i32) {
    %c0_i32 = arith.constant 0 : i32
    %c0_i32_0 = arith.constant 0 : i32
    %c0_i32_1 = arith.constant 0 : i32
    return %c0_i32, %c0_i32_0 : i32, i32
  }
  func.func @transform_5(%arg0: i32) -> (i32, i32, i32) {
    %c0_i32 = arith.constant 0 : i32
    %c0_i32_0 = arith.constant 0 : i32
    %c0_i32_1 = arith.constant 0 : i32
    %c0_i32_2 = arith.constant 0 : i32
    return %c0_i32, %c0_i32_0, %c0_i32_1 : i32, i32, i32
  }
  func.func @transform_6(%arg0: i32) -> (i32, i32, i32) {
    %c0_i32 = arith.constant 0 : i32
    %c0_i32_0 = arith.constant 0 : i32
    %c0_i32_1 = arith.constant 0 : i32
    %c0_i32_2 = arith.constant 0 : i32
    return %c0_i32, %c0_i32_0, %c0_i32_1 : i32, i32, i32
  }
  func.func @transform_7(%arg0: i32) -> (i32, i32) {
    %c0_i32 = arith.constant 0 : i32
    %c0_i32_0 = arith.constant 0 : i32
    %c0_i32_1 = arith.constant 0 : i32
    return %c0_i32, %c0_i32_0 : i32, i32
  }
  func.func @transform_8(%arg0: i32) -> (i32, i32) {
    %c0_i32 = arith.constant 0 : i32
    %c0_i32_0 = arith.constant 0 : i32
    %c0_i32_1 = arith.constant 0 : i32
    return %c0_i32, %c0_i32_0 : i32, i32
  }
  func.func @transform_9(%arg0: i32) -> (i32, i32) {
    %c0_i32 = arith.constant 0 : i32
    %c0_i32_0 = arith.constant 0 : i32
    %c0_i32_1 = arith.constant 0 : i32
    return %c0_i32, %c0_i32_0 : i32, i32
  }
  func.func @transform_10(%arg0: i32) -> (i32, i32) {
    %c0_i32 = arith.constant 0 : i32
    %c0_i32_0 = arith.constant 0 : i32
    %c0_i32_1 = arith.constant 0 : i32
    return %c0_i32, %c0_i32_0 : i32, i32
  }
  func.func @transform_11(%arg0: i32) -> (i32, i32) {
    %c0_i32 = arith.constant 0 : i32
    %c0_i32_0 = arith.constant 0 : i32
    %c0_i32_1 = arith.constant 0 : i32
    return %c0_i32, %c0_i32_0 : i32, i32
  }
  func.func @transform_12(%arg0: i32) -> (i32, i32) {
    %c0_i32 = arith.constant 0 : i32
    %c0_i32_0 = arith.constant 0 : i32
    %c0_i32_1 = arith.constant 0 : i32
    return %c0_i32, %c0_i32_0 : i32, i32
  }
  func.func @transform_13(%arg0: i32) -> (i32, i32) {
    %c0_i32 = arith.constant 0 : i32
    %c0_i32_0 = arith.constant 0 : i32
    %c0_i32_1 = arith.constant 0 : i32
    return %c0_i32, %c0_i32_0 : i32, i32
  }
  func.func @transform_14(%arg0: i32) -> (i32, i32) {
    %c0_i32 = arith.constant 0 : i32
    %c0_i32_0 = arith.constant 0 : i32
    %c0_i32_1 = arith.constant 0 : i32
    return %c0_i32, %c0_i32_0 : i32, i32
  }
  func.func @transform_15(%arg0: i32) -> (i32, i32) {
    %c0_i32 = arith.constant 0 : i32
    %c0_i32_0 = arith.constant 0 : i32
    %c0_i32_1 = arith.constant 0 : i32
    return %c0_i32, %c0_i32_0 : i32, i32
  }
  func.func @transform_16(%arg0: i32) -> (i32, i32) {
    %c0_i32 = arith.constant 0 : i32
    %c0_i32_0 = arith.constant 0 : i32
    %c0_i32_1 = arith.constant 0 : i32
    return %c0_i32, %c0_i32_0 : i32, i32
  }
  func.func @transform_17(%arg0: i32) -> (i32, i32) {
    %c0_i32 = arith.constant 0 : i32
    %c0_i32_0 = arith.constant 0 : i32
    %c0_i32_1 = arith.constant 0 : i32
    return %c0_i32, %c0_i32_0 : i32, i32
  }
  func.func @transform_18(%arg0: i32) -> (i32, i32) {
    %c0_i32 = arith.constant 0 : i32
    %c0_i32_0 = arith.constant 0 : i32
    %c0_i32_1 = arith.constant 0 : i32
    return %c0_i32, %c0_i32_0 : i32, i32
  }
  func.func @transform_19(%arg0: i32) -> (i32, i32) {
    %c0_i32 = arith.constant 0 : i32
    %c0_i32_0 = arith.constant 0 : i32
    %c0_i32_1 = arith.constant 0 : i32
    return %c0_i32, %c0_i32_0 : i32, i32
  }
  func.func @transform_20(%arg0: i32) -> (i32, i32) {
    %c0_i32 = arith.constant 0 : i32
    %c0_i32_0 = arith.constant 0 : i32
    %c0_i32_1 = arith.constant 0 : i32
    return %c0_i32, %c0_i32_0 : i32, i32
  }
  func.func @transform_21(%arg0: i32) -> (i32, i32, i32) {
    %c0_i32 = arith.constant 0 : i32
    %c0_i32_0 = arith.constant 0 : i32
    %c0_i32_1 = arith.constant 0 : i32
    return %arg0, %c0_i32, %c0_i32_0 : i32, i32, i32
  }
}

</mosaic_0001>

<llo_original>
// kernel: cfm_forward_pallas.1
$region0: #{cfm_forward_pallas.1}
  #allocation0 [shape = 'u32[]', space=smem, size = 0x4, offset = 0x4, fixed_abs, tag = 'smem constant byte address 0x4 - core index']
  #allocation1 [shape = 'u32[144,128]{1,0:T(1,128)}', space=vmem, size = 0x12000, scoped, tag = 'internal scratch']
  #allocation2 [shape = 'f32[144,256]{1,0:T(8,128)}', space=vmem, size = 0x24000, scoped, tag = 'scratch operand']
  #allocation3 [shape = 'f32[216,1024]{1,0:T(8,128)}', space=vmem, size = 0xd8000, scoped, tag = 'scratch operand']
  %s0 = inlined_call_operand.vmem [shape: f32[2,8,64], index: 0, kind: input, shape index: {}]
  %s1 = inlined_call_operand.vmem [shape: f32[2,8,256], index: 1, kind: input, shape index: {}]
  %s2 = inlined_call_operand.vmem [shape: f32[2,8,1024], index: 2, kind: input, shape index: {}]
  %s3 = inlined_call_operand.vmem [shape: f32[64,256], index: 3, kind: input, shape index: {}]
  %s4 = inlined_call_operand.vmem [shape: f32[256,1024], index: 4, kind: input, shape index: {}]
  %s5 = inlined_call_operand.vmem [shape: f32[9,1,256], index: 5, kind: input, shape index: {}]
  %s6 = inlined_call_operand.vmem [shape: f32[9,1,1024], index: 6, kind: input, shape index: {}]
  %s7 = inlined_call_operand.vmem [shape: f32[16,72], index: 7, kind: input, shape index: {}]
  %s8 = inlined_call_operand.vmem [shape: f32[16,1], index: 8, kind: input, shape index: {}]
  %s9 = inlined_call_operand.vmem [shape: f32[8,72], index: 9, kind: input, shape index: {}]
  %s10 = inlined_call_operand.vmem [shape: f32[8,1], index: 10, kind: input, shape index: {}]
  %s11 = inlined_call_operand.vmem [shape: f32[8,72], index: 11, kind: input, shape index: {}]
  %s12 = inlined_call_operand.vmem [shape: f32[8,1], index: 12, kind: input, shape index: {}]
  %s13 = inlined_call_operand.vmem [shape: f32[16,144], index: 13, kind: input, shape index: {}]
  %s14 = inlined_call_operand.vmem [shape: f32[16,1], index: 14, kind: input, shape index: {}]
  %s15 = inlined_call_operand.vmem [shape: f32[16,144], index: 15, kind: input, shape index: {}]
  %s16 = inlined_call_operand.vmem [shape: f32[16,1], index: 16, kind: input, shape index: {}]
  %s17 = inlined_call_operand.vmem [shape: f32[24,216], index: 17, kind: input, shape index: {}]
  %s18 = inlined_call_operand.vmem [shape: f32[24,1], index: 18, kind: input, shape index: {}]
  %s19 = inlined_call_operand.vmem [shape: f32[8,216], index: 19, kind: input, shape index: {}]
  %s20 = inlined_call_operand.vmem [shape: f32[8,1], index: 20, kind: input, shape index: {}]
  %s21 = inlined_call_operand.vmem [shape: f32[2,8,1024], index: 21, kind: output, shape index: {}]
  %s22 = sld [smem:[#allocation0]]
  $region117: #{cfm_forward_pallas.1} parent=0
    _
  %s24 = ssub.s32 1, %s22
  %s25 = scalar_select 0, %s24, %s22
  loop: start=0, step=1, limit=4
  $region2: #{cfm_forward_pallas.1} parent=0 // loop_pre_header
    _
  $region3: #{cfm_forward_pallas.1} parent=0 // loop_header
    %s27 = sphi 0, %s31
    %p28 = scmp.ge.s32.totalorder %s27, 4
    %s37 = sphi 0, %s39
    %s40 = sphi 0, %s37
    %s41 = sphi 0, %s40
    %s57 = sphi 0, %s41
    %s63 = sphi 0, %s65
    %s66 = sphi 0, %s63
    %s67 = sphi 0, %s66
    %s83 = sphi 0, %s67
    %s89 = sphi 0, %s91
    %s92 = sphi 0, %s89
    %s93 = sphi 0, %s92
    %s109 = sphi 0, %s93
    %s113 = sphi 0, %s113
    %s115 = sphi 0, %s113
    %s116 = sphi 0, %s115
    %s130 = sphi 0, %s116
    %s134 = sphi 0, %s134
    %s136 = sphi 0, %s134
    %s137 = sphi 0, %s136
    %s151 = sphi 0, %s137
    %s155 = sphi 0, %s155
    %s157 = sphi 0, %s155
    %s158 = sphi 0, %s157
    %s172 = sphi 0, %s158
    %s176 = sphi 0, %s176
    %s178 = sphi 0, %s176
    %s179 = sphi 0, %s178
    %s193 = sphi 0, %s179
    %s197 = sphi 0, %s197
    %s199 = sphi 0, %s197
    %s200 = sphi 0, %s199
    %s214 = sphi 0, %s200
    %s218 = sphi 0, %s218
    %s220 = sphi 0, %s218
    %s221 = sphi 0, %s220
    %s235 = sphi 0, %s221
    %s239 = sphi 0, %s239
    %s241 = sphi 0, %s239
    %s242 = sphi 0, %s241
    %s256 = sphi 0, %s242
    %s260 = sphi 0, %s260
    %s262 = sphi 0, %s260
    %s263 = sphi 0, %s262
    %s277 = sphi 0, %s263
    %s281 = sphi 0, %s281
    %s283 = sphi 0, %s281
    %s284 = sphi 0, %s283
    %s298 = sphi 0, %s284
    %s302 = sphi 0, %s302
    %s304 = sphi 0, %s302
    %s305 = sphi 0, %s304
    %s319 = sphi 0, %s305
    %s323 = sphi 0, %s323
    %s325 = sphi 0, %s323
    %s326 = sphi 0, %s325
    %s340 = sphi 0, %s326
    %s344 = sphi 0, %s344
    %s346 = sphi 0, %s344
    %s347 = sphi 0, %s346
    %s361 = sphi 0, %s347
    %s365 = sphi 0, %s365
    %s367 = sphi 0, %s365
    %s368 = sphi 0, %s367
    %s382 = sphi 0, %s368
    %s386 = sphi 0, %s386
    %s388 = sphi 0, %s386
    %s389 = sphi 0, %s388
    %s403 = sphi 0, %s389
    %s407 = sphi 0, %s407
    %s409 = sphi 0, %s407
    %s410 = sphi 0, %s409
    %s424 = sphi 0, %s410
    %s428 = sphi 0, %s428
    %s430 = sphi 0, %s428
    %s431 = sphi 0, %s430
    %s445 = sphi 0, %s431
    %s449 = sphi 0, %s449
    %s451 = sphi 0, %s449
    %s452 = sphi 0, %s451
    %s466 = sphi 0, %s452
    %s470 = sphi 0, %s470
    %s472 = sphi 0, %s470
    %s473 = sphi 0, %s472
    %s487 = sphi 0, %s473
    %s493 = sphi 0, %s495
    %s496 = sphi 0, %s493
    %s497 = sphi 0, %s496
    %s513 = sphi 0, %s497
  $region4: #{cfm_forward_pallas.1} parent=0 // loop_header_branch
    %30 = sbr.rel (%p28) target = $region8
  $region5: #{cfm_forward_pallas.1} parent=0 // loop_body
    %s32 = ssub.s32 %s27, 1
    %s33 = ssub.s32 %s27, 2
    %s34 = sadd.s32 %s27, 1
    %s35 = ssub.s32 %s27, %s34
    %p36 = scmp.eq.s32.totalorder %s35, 0
    %s38 = sadd.s32 %s37, 1
    %s39 = scalar_select %p36, %s37, %s38
    %p42 = pneg %p36
    %p43 = scmp.eq.s32.totalorder %s27, 1
    %p44 = por %p42, %p43
    %p45 = scmp.ne.s32.totalorder %s37, %s40
    %p46 = scmp.eq.s32.totalorder %s27, 0
    %p47 = por %p45, %p46
    %p48 = scmp.ne.s32.totalorder %s37, %s40
    %p49 = scmp.eq.s32.totalorder %s32, 1
    %p50 = por %p48, %p49
    %p51 = scmp.ne.s32.totalorder %s40, %s41
    %p52 = scmp.eq.s32.totalorder %s32, 0
    %p53 = por %p51, %p52
    %p54 = scmp.ne.s32.totalorder %s40, %s41
    %p55 = scmp.eq.s32.totalorder %s33, 1
    %p56 = por %p54, %p55
    %p58 = scmp.ne.s32.totalorder %s41, %s57
    %p59 = scmp.eq.s32.totalorder %s33, 0
    %p60 = por %p58, %p59
    %s61 = ssub.s32 %s27, %s34
    %p62 = scmp.eq.s32.totalorder %s61, 0
    %s64 = sadd.s32 %s63, 1
    %s65 = scalar_select %p62, %s63, %s64
    %p68 = pneg %p62
    %p69 = scmp.eq.s32.totalorder %s27, 1
    %p70 = por %p68, %p69
    %p71 = scmp.ne.s32.totalorder %s63, %s66
    %p72 = scmp.eq.s32.totalorder %s27, 0
    %p73 = por %p71, %p72
    %p74 = scmp.ne.s32.totalorder %s63, %s66
    %p75 = scmp.eq.s32.totalorder %s32, 1
    %p76 = por %p74, %p75
    %p77 = scmp.ne.s32.totalorder %s66, %s67
    %p78 = scmp.eq.s32.totalorder %s32, 0
    %p79 = por %p77, %p78
    %p80 = scmp.ne.s32.totalorder %s66, %s67
    %p81 = scmp.eq.s32.totalorder %s33, 1
    %p82 = por %p80, %p81
    %p84 = scmp.ne.s32.totalorder %s67, %s83
    %p85 = scmp.eq.s32.totalorder %s33, 0
    %p86 = por %p84, %p85
    %s87 = ssub.s32 %s27, %s34
    %p88 = scmp.eq.s32.totalorder %s87, 0
    %s90 = sadd.s32 %s89, 1
    %s91 = scalar_select %p88, %s89, %s90
    %p94 = pneg %p88
    %p95 = scmp.eq.s32.totalorder %s27, 1
    %p96 = por %p94, %p95
    %p97 = scmp.ne.s32.totalorder %s89, %s92
    %p98 = scmp.eq.s32.totalorder %s27, 0
    %p99 = por %p97, %p98
    %p100 = scmp.ne.s32.totalorder %s89, %s92
    %p101 = scmp.eq.s32.totalorder %s32, 1
    %p102 = por %p100, %p101
    %p103 = scmp.ne.s32.totalorder %s92, %s93
    %p104 = scmp.eq.s32.totalorder %s32, 0
    %p105 = por %p103, %p104
    %p106 = scmp.ne.s32.totalorder %s92, %s93
    %p107 = scmp.eq.s32.totalorder %s33, 1
    %p108 = por %p106, %p107
    %p110 = scmp.ne.s32.totalorder %s93, %s109
    %p111 = scmp.eq.s32.totalorder %s33, 0
    %p112 = por %p110, %p111
    %s114 = sadd.s32 %s113, 1
    %p117 = scmp.eq.s32.totalorder %s27, 1
    %p118 = scmp.ne.s32.totalorder %s113, %s115
    %p119 = scmp.eq.s32.totalorder %s27, 0
    %p120 = por %p118, %p119
    %p121 = scmp.ne.s32.totalorder %s113, %s115
    %p122 = scmp.eq.s32.totalorder %s32, 1
    %p123 = por %p121, %p122
    %p124 = scmp.ne.s32.totalorder %s115, %s116
    %p125 = scmp.eq.s32.totalorder %s32, 0
    %p126 = por %p124, %p125
    %p127 = scmp.ne.s32.totalorder %s115, %s116
    %p128 = scmp.eq.s32.totalorder %s33, 1
    %p129 = por %p127, %p128
    %p131 = scmp.ne.s32.totalorder %s116, %s130
    %p132 = scmp.eq.s32.totalorder %s33, 0
    %p133 = por %p131, %p132
    %s135 = sadd.s32 %s134, 1
    %p138 = scmp.eq.s32.totalorder %s27, 1
    %p139 = scmp.ne.s32.totalorder %s134, %s136
    %p140 = scmp.eq.s32.totalorder %s27, 0
    %p141 = por %p139, %p140
    %p142 = scmp.ne.s32.totalorder %s134, %s136
    %p143 = scmp.eq.s32.totalorder %s32, 1
    %p144 = por %p142, %p143
    %p145 = scmp.ne.s32.totalorder %s136, %s137
    %p146 = scmp.eq.s32.totalorder %s32, 0
    %p147 = por %p145, %p146
    %p148 = scmp.ne.s32.totalorder %s136, %s137
    %p149 = scmp.eq.s32.totalorder %s33, 1
    %p150 = por %p148, %p149
    %p152 = scmp.ne.s32.totalorder %s137, %s151
    %p153 = scmp.eq.s32.totalorder %s33, 0
    %p154 = por %p152, %p153
    %s156 = sadd.s32 %s155, 1
    %p159 = scmp.eq.s32.totalorder %s27, 1
    %p160 = scmp.ne.s32.totalorder %s155, %s157
    %p161 = scmp.eq.s32.totalorder %s27, 0
    %p162 = por %p160, %p161
    %p163 = scmp.ne.s32.totalorder %s155, %s157
    %p164 = scmp.eq.s32.totalorder %s32, 1
    %p165 = por %p163, %p164
    %p166 = scmp.ne.s32.totalorder %s157, %s158
    %p167 = scmp.eq.s32.totalorder %s32, 0
    %p168 = por %p166, %p167
    %p169 = scmp.ne.s32.totalorder %s157, %s158
    %p170 = scmp.eq.s32.totalorder %s33, 1
    %p171 = por %p169, %p170
    %p173 = scmp.ne.s32.totalorder %s158, %s172
    %p174 = scmp.eq.s32.totalorder %s33, 0
    %p175 = por %p173, %p174
    %s177 = sadd.s32 %s176, 1
    %p180 = scmp.eq.s32.totalorder %s27, 1
    %p181 = scmp.ne.s32.totalorder %s176, %s178
    %p182 = scmp.eq.s32.totalorder %s27, 0
    %p183 = por %p181, %p182
    %p184 = scmp.ne.s32.totalorder %s176, %s178
    %p185 = scmp.eq.s32.totalorder %s32, 1
    %p186 = por %p184, %p185
    %p187 = scmp.ne.s32.totalorder %s178, %s179
    %p188 = scmp.eq.s32.totalorder %s32, 0
    %p189 = por %p187, %p188
    %p190 = scmp.ne.s32.totalorder %s178, %s179
    %p191 = scmp.eq.s32.totalorder %s33, 1
    %p192 = por %p190, %p191
    %p194 = scmp.ne.s32.totalorder %s179, %s193
    %p195 = scmp.eq.s32.totalorder %s33, 0
    %p196 = por %p194, %p195
    %s198 = sadd.s32 %s197, 1
    %p201 = scmp.eq.s32.totalorder %s27, 1
    %p202 = scmp.ne.s32.totalorder %s197, %s199
    %p203 = scmp.eq.s32.totalorder %s27, 0
    %p204 = por %p202, %p203
    %p205 = scmp.ne.s32.totalorder %s197, %s199
    %p206 = scmp.eq.s32.totalorder %s32, 1
    %p207 = por %p205, %p206
    %p208 = scmp.ne.s32.totalorder %s199, %s200
    %p209 = scmp.eq.s32.totalorder %s32, 0
    %p210 = por %p208, %p209
    %p211 = scmp.ne.s32.totalorder %s199, %s200
    %p212 = scmp.eq.s32.totalorder %s33, 1
    %p213 = por %p211, %p212
    %p215 = scmp.ne.s32.totalorder %s200, %s214
    %p216 = scmp.eq.s32.totalorder %s33, 0
    %p217 = por %p215, %p216
    %s219 = sadd.s32 %s218, 1
    %p222 = scmp.eq.s32.totalorder %s27, 1
    %p223 = scmp.ne.s32.totalorder %s218, %s220
    %p224 = scmp.eq.s32.totalorder %s27, 0
    %p225 = por %p223, %p224
    %p226 = scmp.ne.s32.totalorder %s218, %s220
    %p227 = scmp.eq.s32.totalorder %s32, 1
    %p228 = por %p226, %p227
    %p229 = scmp.ne.s32.totalorder %s220, %s221
    %p230 = scmp.eq.s32.totalorder %s32, 0
    %p231 = por %p229, %p230
    %p232 = scmp.ne.s32.totalorder %s220, %s221
    %p233 = scmp.eq.s32.totalorder %s33, 1
    %p234 = por %p232, %p233
    %p236 = scmp.ne.s32.totalorder %s221, %s235
    %p237 = scmp.eq.s32.totalorder %s33, 0
    %p238 = por %p236, %p237
    %s240 = sadd.s32 %s239, 1
    %p243 = scmp.eq.s32.totalorder %s27, 1
    %p244 = scmp.ne.s32.totalorder %s239, %s241
    %p245 = scmp.eq.s32.totalorder %s27, 0
    %p246 = por %p244, %p245
    %p247 = scmp.ne.s32.totalorder %s239, %s241
    %p248 = scmp.eq.s32.totalorder %s32, 1
    %p249 = por %p247, %p248
    %p250 = scmp.ne.s32.totalorder %s241, %s242
    %p251 = scmp.eq.s32.totalorder %s32, 0
    %p252 = por %p250, %p251
    %p253 = scmp.ne.s32.totalorder %s241, %s242
    %p254 = scmp.eq.s32.totalorder %s33, 1
    %p255 = por %p253, %p254
    %p257 = scmp.ne.s32.totalorder %s242, %s256
    %p258 = scmp.eq.s32.totalorder %s33, 0
    %p259 = por %p257, %p258
    %s261 = sadd.s32 %s260, 1
    %p264 = scmp.eq.s32.totalorder %s27, 1
    %p265 = scmp.ne.s32.totalorder %s260, %s262
    %p266 = scmp.eq.s32.totalorder %s27, 0
    %p267 = por %p265, %p266
    %p268 = scmp.ne.s32.totalorder %s260, %s262
    %p269 = scmp.eq.s32.totalorder %s32, 1
    %p270 = por %p268, %p269
    %p271 = scmp.ne.s32.totalorder %s262, %s263
    %p272 = scmp.eq.s32.totalorder %s32, 0
    %p273 = por %p271, %p272
    %p274 = scmp.ne.s32.totalorder %s262, %s263
    %p275 = scmp.eq.s32.totalorder %s33, 1
    %p276 = por %p274, %p275
    %p278 = scmp.ne.s32.totalorder %s263, %s277
    %p279 = scmp.eq.s32.totalorder %s33, 0
    %p280 = por %p278, %p279
    %s282 = sadd.s32 %s281, 1
    %p285 = scmp.eq.s32.totalorder %s27, 1
    %p286 = scmp.ne.s32.totalorder %s281, %s283
    %p287 = scmp.eq.s32.totalorder %s27, 0
    %p288 = por %p286, %p287
    %p289 = scmp.ne.s32.totalorder %s281, %s283
    %p290 = scmp.eq.s32.totalorder %s32, 1
    %p291 = por %p289, %p290
    %p292 = scmp.ne.s32.totalorder %s283, %s284
    %p293 = scmp.eq.s32.totalorder %s32, 0
    %p294 = por %p292, %p293
    %p295 = scmp.ne.s32.totalorder %s283, %s284
    %p296 = scmp.eq.s32.totalorder %s33, 1
    %p297 = por %p295, %p296
    %p299 = scmp.ne.s32.totalorder %s284, %s298
    %p300 = scmp.eq.s32.totalorder %s33, 0
    %p301 = por %p299, %p300
    %s303 = sadd.s32 %s302, 1
    %p306 = scmp.eq.s32.totalorder %s27, 1
    %p307 = scmp.ne.s32.totalorder %s302, %s304
    %p308 = scmp.eq.s32.totalorder %s27, 0
    %p309 = por %p307, %p308
    %p310 = scmp.ne.s32.totalorder %s302, %s304
    %p311 = scmp.eq.s32.totalorder %s32, 1
    %p312 = por %p310, %p311
    %p313 = scmp.ne.s32.totalorder %s304, %s305
    %p314 = scmp.eq.s32.totalorder %s32, 0
    %p315 = por %p313, %p314
    %p316 = scmp.ne.s32.totalorder %s304, %s305
    %p317 = scmp.eq.s32.totalorder %s33, 1
    %p318 = por %p316, %p317
    %p320 = scmp.ne.s32.totalorder %s305, %s319
    %p321 = scmp.eq.s32.totalorder %s33, 0
    %p322 = por %p320, %p321
    %s324 = sadd.s32 %s323, 1
    %p327 = scmp.eq.s32.totalorder %s27, 1
    %p328 = scmp.ne.s32.totalorder %s323, %s325
    %p329 = scmp.eq.s32.totalorder %s27, 0
    %p330 = por %p328, %p329
    %p331 = scmp.ne.s32.totalorder %s323, %s325
    %p332 = scmp.eq.s32.totalorder %s32, 1
    %p333 = por %p331, %p332
    %p334 = scmp.ne.s32.totalorder %s325, %s326
    %p335 = scmp.eq.s32.totalorder %s32, 0
    %p336 = por %p334, %p335
    %p337 = scmp.ne.s32.totalorder %s325, %s326
    %p338 = scmp.eq.s32.totalorder %s33, 1
    %p339 = por %p337, %p338
    %p341 = scmp.ne.s32.totalorder %s326, %s340
    %p342 = scmp.eq.s32.totalorder %s33, 0
    %p343 = por %p341, %p342
    %s345 = sadd.s32 %s344, 1
    %p348 = scmp.eq.s32.totalorder %s27, 1
    %p349 = scmp.ne.s32.totalorder %s344, %s346
    %p350 = scmp.eq.s32.totalorder %s27, 0
    %p351 = por %p349, %p350
    %p352 = scmp.ne.s32.totalorder %s344, %s346
    %p353 = scmp.eq.s32.totalorder %s32, 1
    %p354 = por %p352, %p353
    %p355 = scmp.ne.s32.totalorder %s346, %s347
    %p356 = scmp.eq.s32.totalorder %s32, 0
    %p357 = por %p355, %p356
    %p358 = scmp.ne.s32.totalorder %s346, %s347
    %p359 = scmp.eq.s32.totalorder %s33, 1
    %p360 = por %p358, %p359
    %p362 = scmp.ne.s32.totalorder %s347, %s361
    %p363 = scmp.eq.s32.totalorder %s33, 0
    %p364 = por %p362, %p363
    %s366 = sadd.s32 %s365, 1
    %p369 = scmp.eq.s32.totalorder %s27, 1
    %p370 = scmp.ne.s32.totalorder %s365, %s367
    %p371 = scmp.eq.s32.totalorder %s27, 0
    %p372 = por %p370, %p371
    %p373 = scmp.ne.s32.totalorder %s365, %s367
    %p374 = scmp.eq.s32.totalorder %s32, 1
    %p375 = por %p373, %p374
    %p376 = scmp.ne.s32.totalorder %s367, %s368
    %p377 = scmp.eq.s32.totalorder %s32, 0
    %p378 = por %p376, %p377
    %p379 = scmp.ne.s32.totalorder %s367, %s368
    %p380 = scmp.eq.s32.totalorder %s33, 1
    %p381 = por %p379, %p380
    %p383 = scmp.ne.s32.totalorder %s368, %s382
    %p384 = scmp.eq.s32.totalorder %s33, 0
    %p385 = por %p383, %p384
    %s387 = sadd.s32 %s386, 1
    %p390 = scmp.eq.s32.totalorder %s27, 1
    %p391 = scmp.ne.s32.totalorder %s386, %s388
    %p392 = scmp.eq.s32.totalorder %s27, 0
    %p393 = por %p391, %p392
    %p394 = scmp.ne.s32.totalorder %s386, %s388
    %p395 = scmp.eq.s32.totalorder %s32, 1
    %p396 = por %p394, %p395
    %p397 = scmp.ne.s32.totalorder %s388, %s389
    %p398 = scmp.eq.s32.totalorder %s32, 0
    %p399 = por %p397, %p398
    %p400 = scmp.ne.s32.totalorder %s388, %s389
    %p401 = scmp.eq.s32.totalorder %s33, 1
    %p402 = por %p400, %p401
    %p404 = scmp.ne.s32.totalorder %s389, %s403
    %p405 = scmp.eq.s32.totalorder %s33, 0
    %p406 = por %p404, %p405
    %s408 = sadd.s32 %s407, 1
    %p411 = scmp.eq.s32.totalorder %s27, 1
    %p412 = scmp.ne.s32.totalorder %s407, %s409
    %p413 = scmp.eq.s32.totalorder %s27, 0
    %p414 = por %p412, %p413
    %p415 = scmp.ne.s32.totalorder %s407, %s409
    %p416 = scmp.eq.s32.totalorder %s32, 1
    %p417 = por %p415, %p416
    %p418 = scmp.ne.s32.totalorder %s409, %s410
    %p419 = scmp.eq.s32.totalorder %s32, 0
    %p420 = por %p418, %p419
    %p421 = scmp.ne.s32.totalorder %s409, %s410
    %p422 = scmp.eq.s32.totalorder %s33, 1
    %p423 = por %p421, %p422
    %p425 = scmp.ne.s32.totalorder %s410, %s424
    %p426 = scmp.eq.s32.totalorder %s33, 0
    %p427 = por %p425, %p426
    %s429 = sadd.s32 %s428, 1
    %p432 = scmp.eq.s32.totalorder %s27, 1
    %p433 = scmp.ne.s32.totalorder %s428, %s430
    %p434 = scmp.eq.s32.totalorder %s27, 0
    %p435 = por %p433, %p434
    %p436 = scmp.ne.s32.totalorder %s428, %s430
    %p437 = scmp.eq.s32.totalorder %s32, 1
    %p438 = por %p436, %p437
    %p439 = scmp.ne.s32.totalorder %s430, %s431
    %p440 = scmp.eq.s32.totalorder %s32, 0
    %p441 = por %p439, %p440
    %p442 = scmp.ne.s32.totalorder %s430, %s431
    %p443 = scmp.eq.s32.totalorder %s33, 1
    %p444 = por %p442, %p443
    %p446 = scmp.ne.s32.totalorder %s431, %s445
    %p447 = scmp.eq.s32.totalorder %s33, 0
    %p448 = por %p446, %p447
    %s450 = sadd.s32 %s449, 1
    %p453 = scmp.eq.s32.totalorder %s27, 1
    %p454 = scmp.ne.s32.totalorder %s449, %s451
    %p455 = scmp.eq.s32.totalorder %s27, 0
    %p456 = por %p454, %p455
    %p457 = scmp.ne.s32.totalorder %s449, %s451
    %p458 = scmp.eq.s32.totalorder %s32, 1
    %p459 = por %p457, %p458
    %p460 = scmp.ne.s32.totalorder %s451, %s452
    %p461 = scmp.eq.s32.totalorder %s32, 0
    %p462 = por %p460, %p461
    %p463 = scmp.ne.s32.totalorder %s451, %s452
    %p464 = scmp.eq.s32.totalorder %s33, 1
    %p465 = por %p463, %p464
    %p467 = scmp.ne.s32.totalorder %s452, %s466
    %p468 = scmp.eq.s32.totalorder %s33, 0
    %p469 = por %p467, %p468
    %s471 = sadd.s32 %s470, 1
    %p474 = scmp.eq.s32.totalorder %s27, 1
    %p475 = scmp.ne.s32.totalorder %s470, %s472
    %p476 = scmp.eq.s32.totalorder %s27, 0
    %p477 = por %p475, %p476
    %p478 = scmp.ne.s32.totalorder %s470, %s472
    %p479 = scmp.eq.s32.totalorder %s32, 1
    %p480 = por %p478, %p479
    %p481 = scmp.ne.s32.totalorder %s472, %s473
    %p482 = scmp.eq.s32.totalorder %s32, 0
    %p483 = por %p481, %p482
    %p484 = scmp.ne.s32.totalorder %s472, %s473
    %p485 = scmp.eq.s32.totalorder %s33, 1
    %p486 = por %p484, %p485
    %p488 = scmp.ne.s32.totalorder %s473, %s487
    %p489 = scmp.eq.s32.totalorder %s33, 0
    %p490 = por %p488, %p489
    %s491 = ssub.s32 %s27, %s34
    %p492 = scmp.eq.s32.totalorder %s491, 0
    %s494 = sadd.s32 %s493, 1
    %s495 = scalar_select %p492, %s493, %s494
    %p498 = pneg %p492
    %p499 = scmp.eq.s32.totalorder %s27, 1
    %p500 = por %p498, %p499
    %p501 = scmp.ne.s32.totalorder %s493, %s496
    %p502 = scmp.eq.s32.totalorder %s27, 0
    %p503 = por %p501, %p502
    %p504 = scmp.ne.s32.totalorder %s493, %s496
    %p505 = scmp.eq.s32.totalorder %s32, 1
    %p506 = por %p504, %p505
    %p507 = scmp.ne.s32.totalorder %s496, %s497
    %p508 = scmp.eq.s32.totalorder %s32, 0
    %p509 = por %p507, %p508
    %p510 = scmp.ne.s32.totalorder %s496, %s497
    %p511 = scmp.eq.s32.totalorder %s33, 1
    %p512 = por %p510, %p511
    %p514 = scmp.ne.s32.totalorder %s497, %s513
    %p515 = scmp.eq.s32.totalorder %s33, 0
    %p516 = por %p514, %p515
    %p517 = scmp.le.s32.totalorder 1, %s27
    %p518 = scmp.lt.s32.totalorder %s27, 3
    %p519 = pnand %p517, %p518
    %p520 = pneg %p519
    // Predicated region
    $region9: #{cfm_forward_pallas.1} parent=5 // pred_check
      _
    $region10: #{cfm_forward_pallas.1} parent=5 // pred_check_branch
      %522 = sbr.rel (%p519) target = $region12
    $region11: #{cfm_forward_pallas.1} parent=5 // pred_region
      %s523 = ssub.s32 %s27, 1
      // Predicated region
      $region13: #{cfm_forward_pallas.1} parent=11 // pred_check
        %p524 = pneg %p126
      $region14: #{cfm_forward_pallas.1} parent=11 // pred_check_branch
        %526 = sbr.rel (%p524) target = $region16
      $region15: #{cfm_forward_pallas.1} parent=11 // pred_region
        _
      $region16: #{cfm_forward_pallas.1} parent=11 // pred_fallthru
        _
      // Predicated region
      $region17: #{cfm_forward_pallas.1} parent=11 // pred_check
        %p527 = pneg %p147
      $region18: #{cfm_forward_pallas.1} parent=11 // pred_check_branch
        %529 = sbr.rel (%p527) target = $region20
      $region19: #{cfm_forward_pallas.1} parent=11 // pred_region
        _
      $region20: #{cfm_forward_pallas.1} parent=11 // pred_fallthru
        _
      // Predicated region
      $region21: #{cfm_forward_pallas.1} parent=11 // pred_check
        %p530 = pneg %p168
      $region22: #{cfm_forward_pallas.1} parent=11 // pred_check_branch
        %532 = sbr.rel (%p530) target = $region24
      $region23: #{cfm_forward_pallas.1} parent=11 // pred_region
        _
      $region24: #{cfm_forward_pallas.1} parent=11 // pred_fallthru
        _
      // Predicated region
      $region25: #{cfm_forward_pallas.1} parent=11 // pred_check
        %p533 = pneg %p189
      $region26: #{cfm_forward_pallas.1} parent=11 // pred_check_branch
        %535 = sbr.rel (%p533) target = $region28
      $region27: #{cfm_forward_pallas.1} parent=11 // pred_region
        _
      $region28: #{cfm_forward_pallas.1} parent=11 // pred_fallthru
        _
      // Predicated region
      $region29: #{cfm_forward_pallas.1} parent=11 // pred_check
        %p536 = pneg %p210
      $region30: #{cfm_forward_pallas.1} parent=11 // pred_check_branch
        %538 = sbr.rel (%p536) target = $region32
      $region31: #{cfm_forward_pallas.1} parent=11 // pred_region
        _
      $region32: #{cfm_forward_pallas.1} parent=11 // pred_fallthru
        _
      // Predicated region
      $region33: #{cfm_forward_pallas.1} parent=11 // pred_check
        %p539 = pneg %p231
      $region34: #{cfm_forward_pallas.1} parent=11 // pred_check_branch
        %541 = sbr.rel (%p539) target = $region36
      $region35: #{cfm_forward_pallas.1} parent=11 // pred_region
        _
      $region36: #{cfm_forward_pallas.1} parent=11 // pred_fallthru
        _
      // Predicated region
      $region37: #{cfm_forward_pallas.1} parent=11 // pred_check
        %p542 = pneg %p252
      $region38: #{cfm_forward_pallas.1} parent=11 // pred_check_branch
        %544 = sbr.rel (%p542) target = $region40
      $region39: #{cfm_forward_pallas.1} parent=11 // pred_region
        _
      $region40: #{cfm_forward_pallas.1} parent=11 // pred_fallthru
        _
      // Predicated region
      $region41: #{cfm_forward_pallas.1} parent=11 // pred_check
        %p545 = pneg %p273
      $region42: #{cfm_forward_pallas.1} parent=11 // pred_check_branch
        %547 = sbr.rel (%p545) target = $region44
      $region43: #{cfm_forward_pallas.1} parent=11 // pred_region
        _
      $region44: #{cfm_forward_pallas.1} parent=11 // pred_fallthru
        _
      // Predicated region
      $region45: #{cfm_forward_pallas.1} parent=11 // pred_check
        %p548 = pneg %p294
      $region46: #{cfm_forward_pallas.1} parent=11 // pred_check_branch
        %550 = sbr.rel (%p548) target = $region48
      $region47: #{cfm_forward_pallas.1} parent=11 // pred_region
        _
      $region48: #{cfm_forward_pallas.1} parent=11 // pred_fallthru
        _
      // Predicated region
      $region49: #{cfm_forward_pallas.1} parent=11 // pred_check
        %p551 = pneg %p315
      $region50: #{cfm_forward_pallas.1} parent=11 // pred_check_branch
        %553 = sbr.rel (%p551) target = $region52
      $region51: #{cfm_forward_pallas.1} parent=11 // pred_region
        _
      $region52: #{cfm_forward_pallas.1} parent=11 // pred_fallthru
        _
      // Predicated region
      $region53: #{cfm_forward_pallas.1} parent=11 // pred_check
        %p554 = pneg %p336
      $region54: #{cfm_forward_pallas.1} parent=11 // pred_check_branch
        %556 = sbr.rel (%p554) target = $region56
      $region55: #{cfm_forward_pallas.1} parent=11 // pred_region
        _
      $region56: #{cfm_forward_pallas.1} parent=11 // pred_fallthru
        _
      // Predicated region
      $region57: #{cfm_forward_pallas.1} parent=11 // pred_check
        %p557 = pneg %p357
      $region58: #{cfm_forward_pallas.1} parent=11 // pred_check_branch
        %559 = sbr.rel (%p557) target = $region60
      $region59: #{cfm_forward_pallas.1} parent=11 // pred_region
        _
      $region60: #{cfm_forward_pallas.1} parent=11 // pred_fallthru
        _
      // Predicated region
      $region61: #{cfm_forward_pallas.1} parent=11 // pred_check
        %p560 = pneg %p378
      $region62: #{cfm_forward_pallas.1} parent=11 // pred_check_branch
        %562 = sbr.rel (%p560) target = $region64
      $region63: #{cfm_forward_pallas.1} parent=11 // pred_region
        _
      $region64: #{cfm_forward_pallas.1} parent=11 // pred_fallthru
        _
      // Predicated region
      $region65: #{cfm_forward_pallas.1} parent=11 // pred_check
        %p563 = pneg %p399
      $region66: #{cfm_forward_pallas.1} parent=11 // pred_check_branch
        %565 = sbr.rel (%p563) target = $region68
      $region67: #{cfm_forward_pallas.1} parent=11 // pred_region
        _
      $region68: #{cfm_forward_pallas.1} parent=11 // pred_fallthru
        _
      // Predicated region
      $region69: #{cfm_forward_pallas.1} parent=11 // pred_check
        %p566 = pneg %p420
      $region70: #{cfm_forward_pallas.1} parent=11 // pred_check_branch
        %568 = sbr.rel (%p566) target = $region72
      $region71: #{cfm_forward_pallas.1} parent=11 // pred_region
        _
      $region72: #{cfm_forward_pallas.1} parent=11 // pred_fallthru
        _
      // Predicated region
      $region73: #{cfm_forward_pallas.1} parent=11 // pred_check
        %p569 = pneg %p441
      $region74: #{cfm_forward_pallas.1} parent=11 // pred_check_branch
        %571 = sbr.rel (%p569) target = $region76
      $region75: #{cfm_forward_pallas.1} parent=11 // pred_region
        _
      $region76: #{cfm_forward_pallas.1} parent=11 // pred_fallthru
        _
      // Predicated region
      $region77: #{cfm_forward_pallas.1} parent=11 // pred_check
        %p572 = pneg %p462
      $region78: #{cfm_forward_pallas.1} parent=11 // pred_check_branch
        %574 = sbr.rel (%p572) target = $region80
      $region79: #{cfm_forward_pallas.1} parent=11 // pred_region
        _
      $region80: #{cfm_forward_pallas.1} parent=11 // pred_fallthru
        _
      // Predicated region
      $region81: #{cfm_forward_pallas.1} parent=11 // pred_check
        %p575 = pneg %p483
      $region82: #{cfm_forward_pallas.1} parent=11 // pred_check_branch
        %577 = sbr.rel (%p575) target = $region84
      $region83: #{cfm_forward_pallas.1} parent=11 // pred_region
        _
      $region84: #{cfm_forward_pallas.1} parent=11 // pred_fallthru
        _
    $region12: #{cfm_forward_pallas.1} parent=5 // pred_fallthru
      _
    %p578 = scmp.lt.s32.totalorder %s27, 2
    // Predicated region
    $region85: #{cfm_forward_pallas.1} parent=5 // pred_check
      %p579 = pneg %p578
    $region86: #{cfm_forward_pallas.1} parent=5 // pred_check_branch
      %581 = sbr.rel (%p579) target = $region88
    $region87: #{cfm_forward_pallas.1} parent=5 // pred_region
      // Predicated region
      $region89: #{cfm_forward_pallas.1} parent=87 // pred_check
        %p582 = pneg %p47
      $region90: #{cfm_forward_pallas.1} parent=87 // pred_check_branch
        %584 = sbr.rel (%p582) target = $region92
      $region91: #{cfm_forward_pallas.1} parent=87 // pred_region
        %p585 = scmp.lt.s32.totalorder %s27, 1
        %s586 = scalar_select %p585, %s27, 1
        %s587 = smul.addr %s586, 8
        %s588 = scalar_lea.vmem %s0, %s587
      $region92: #{cfm_forward_pallas.1} parent=87 // pred_fallthru
        _
      // Predicated region
      $region93: #{cfm_forward_pallas.1} parent=87 // pred_check
        %p589 = pneg %p73
      $region94: #{cfm_forward_pallas.1} parent=87 // pred_check_branch
        %591 = sbr.rel (%p589) target = $region96
      $region95: #{cfm_forward_pallas.1} parent=87 // pred_region
        %p592 = scmp.lt.s32.totalorder %s27, 1
        %s593 = scalar_select %p592, %s27, 1
        %s594 = smul.addr %s593, 2
        %s595 = smul.addr %s594, 8
        %s596 = scalar_lea.vmem %s1, %s595
      $region96: #{cfm_forward_pallas.1} parent=87 // pred_fallthru
        _
      // Predicated region
      $region97: #{cfm_forward_pallas.1} parent=87 // pred_check
        %p597 = pneg %p99
      $region98: #{cfm_forward_pallas.1} parent=87 // pred_check_branch
        %599 = sbr.rel (%p597) target = $region100
      $region99: #{cfm_forward_pallas.1} parent=87 // pred_region
        %p600 = scmp.lt.s32.totalorder %s27, 1
        %s601 = scalar_select %p600, %s27, 1
        %s602 = smul.addr %s601, 8
        %s603 = smul.addr %s602, 8
        %s604 = scalar_lea.vmem %s2, %s603
      $region100: #{cfm_forward_pallas.1} parent=87 // pred_fallthru
        _
    $region88: #{cfm_forward_pallas.1} parent=5 // pred_fallthru
      _
    %p605 = scmp.le.s32.totalorder 1, %s27
    %p606 = scmp.lt.s32.totalorder %s27, 3
    %p607 = pnand %p605, %p606
    %p608 = pneg %p607
    // Predicated region
    $region101: #{cfm_forward_pallas.1} parent=5 // pred_check
      _
    $region102: #{cfm_forward_pallas.1} parent=5 // pred_check_branch
      %610 = sbr.rel (%p607) target = $region104
    $region103: #{cfm_forward_pallas.1} parent=5 // pred_region
      %s611 = ssub.s32 %s27, 1
      %p612 = scmp.lt.s32.totalorder %s32, 1
      %s613 = scalar_select %p612, %s32, 1
      %s614 = smul.addr %s613, 8
      %s615 = scalar_lea.vmem %s0, %s614
      %p616 = pneg %p53
      %p617 = pneg %p50
      %p618 = scmp.lt.s32.totalorder %s32, 1
      %s619 = scalar_select %p618, %s32, 1
      %s620 = smul.addr %s619, 2
      %s621 = smul.addr %s620, 8
      %s622 = scalar_lea.vmem %s1, %s621
      %p623 = pneg %p79
      %p624 = pneg %p76
      %p625 = scmp.lt.s32.totalorder %s32, 1
      %s626 = scalar_select %p625, %s32, 1
      %s627 = smul.addr %s626, 8
      %s628 = smul.addr %s627, 8
      %s629 = scalar_lea.vmem %s2, %s628
      %p630 = pneg %p105
      %p631 = pneg %p102
      %p632 = pneg %p126
      %p633 = pneg %p123
      %p634 = pneg %p147
      %p635 = pneg %p144
      %p636 = pneg %p168
      %p637 = pneg %p165
      %p638 = pneg %p189
      %p639 = pneg %p186
      %p640 = pneg %p210
      %p641 = pneg %p207
      %p642 = pneg %p231
      %p643 = pneg %p228
      %p644 = pneg %p252
      %p645 = pneg %p249
      %p646 = pneg %p273
      %p647 = pneg %p270
      %p648 = pneg %p294
      %p649 = pneg %p291
      %p650 = pneg %p315
      %p651 = pneg %p312
      %p652 = pneg %p336
      %p653 = pneg %p333
      %p654 = pneg %p357
      %p655 = pneg %p354
      %p656 = pneg %p378
      %p657 = pneg %p375
      %p658 = pneg %p399
      %p659 = pneg %p396
      %p660 = pneg %p420
      %p661 = pneg %p417
      %p662 = pneg %p441
      %p663 = pneg %p438
      %p664 = pneg %p462
      %p665 = pneg %p459
      %p666 = pneg %p483
      %p667 = pneg %p480
      %p668 = pneg %p509
      %p669 = pneg %p506
      %p670 = scmp.lt.s32.totalorder %s32, 1
      %s671 = scalar_select %p670, %s32, 1
      %s672 = smul.addr %s671, 8
      %s673 = smul.addr %s672, 8
      %s674 = scalar_lea.vmem %s21, %s673
      %p675 = scmp.lt.s32.totalorder %s32, 1
      %s676 = scalar_select %p675, %s32, 1
      %s677 = smul.addr %s676, 8
      %s678 = scalar_lea.vmem %s0, %s677
      %p679 = scmp.lt.s32.totalorder %s32, 1
      %s680 = scalar_select %p679, %s32, 1
      %s681 = smul.addr %s680, 2
      %s682 = smul.addr %s681, 8
      %s683 = scalar_lea.vmem %s1, %s682
      %p684 = scmp.lt.s32.totalorder %s32, 1
      %s685 = scalar_select %p684, %s32, 1
      %s686 = smul.addr %s685, 8
      %s687 = smul.addr %s686, 8
      %s688 = scalar_lea.vmem %s2, %s687
      %p689 = scmp.lt.s32.totalorder %s32, 1
      %s690 = scalar_select %p689, %s32, 1
      %s691 = smul.addr %s690, 8
      %s692 = smul.addr %s691, 8
      %s693 = scalar_lea.vmem %s21, %s692
      %v694 = vld [vmem:[%s678] sm:$0xff]
      %v695 = vld [vmem:[%s683] sm:$0xff]
      %v696 = vld [vmem:[%s683 + $0x8] sm:$0xff]
      %v697 = vld [vmem:[%s688] sm:$0xff]
      %v698 = vld [vmem:[%s688 + $0x8] sm:$0xff]
      %v699 = vld [vmem:[%s688 + $0x10] sm:$0xff]
      %v700 = vld [vmem:[%s688 + $0x18] sm:$0xff]
      %v701 = vld [vmem:[%s688 + $0x20] sm:$0xff]
      %v702 = vld [vmem:[%s688 + $0x28] sm:$0xff]
      %v703 = vld [vmem:[%s688 + $0x30] sm:$0xff]
      %v704 = vld [vmem:[%s688 + $0x38] sm:$0xff]
      %v705 = vld [vmem:[%s3] sm:$0xff]
      %v706 = vld [vmem:[%s3 + $0x8] sm:$0xff]
      %v707 = vld [vmem:[%s3 + $0x10] sm:$0xff]
      %v708 = vld [vmem:[%s3 + $0x18] sm:$0xff]
      %v709 = vld [vmem:[%s3 + $0x20] sm:$0xff]
      %v710 = vld [vmem:[%s3 + $0x28] sm:$0xff]
      %v711 = vld [vmem:[%s3 + $0x30] sm:$0xff]
      %v712 = vld [vmem:[%s3 + $0x38] sm:$0xff]
      %v713 = vld [vmem:[%s3 + $0x40] sm:$0xff]
      %v714 = vld [vmem:[%s3 + $0x48] sm:$0xff]
      %v715 = vld [vmem:[%s3 + $0x50] sm:$0xff]
      %v716 = vld [vmem:[%s3 + $0x58] sm:$0xff]
      %v717 = vld [vmem:[%s3 + $0x60] sm:$0xff]
      %v718 = vld [vmem:[%s3 + $0x68] sm:$0xff]
      %v719 = vld [vmem:[%s3 + $0x70] sm:$0xff]
      %v720 = vld [vmem:[%s3 + $0x78] sm:$0xff]
      %v721 = vld [vmem:[%s4] sm:$0xff]
      %v722 = vld [vmem:[%s4 + $0x8] sm:$0xff]
      %v723 = vld [vmem:[%s4 + $0x10] sm:$0xff]
      %v724 = vld [vmem:[%s4 + $0x18] sm:$0xff]
      %v725 = vld [vmem:[%s4 + $0x20] sm:$0xff]
      %v726 = vld [vmem:[%s4 + $0x28] sm:$0xff]
      %v727 = vld [vmem:[%s4 + $0x30] sm:$0xff]
      %v728 = vld [vmem:[%s4 + $0x38] sm:$0xff]
      %v729 = vld [vmem:[%s4 + $0x40] sm:$0xff]
      %v730 = vld [vmem:[%s4 + $0x48] sm:$0xff]
      %v731 = vld [vmem:[%s4 + $0x50] sm:$0xff]
      %v732 = vld [vmem:[%s4 + $0x58] sm:$0xff]
      %v733 = vld [vmem:[%s4 + $0x60] sm:$0xff]
      %v734 = vld [vmem:[%s4 + $0x68] sm:$0xff]
      %v735 = vld [vmem:[%s4 + $0x70] sm:$0xff]
      %v736 = vld [vmem:[%s4 + $0x78] sm:$0xff]
      %v737 = vld [vmem:[%s4 + $0x80] sm:$0xff]
      %v738 = vld [vmem:[%s4 + $0x88] sm:$0xff]
      %v739 = vld [vmem:[%s4 + $0x90] sm:$0xff]
      %v740 = vld [vmem:[%s4 + $0x98] sm:$0xff]
      %v741 = vld [vmem:[%s4 + $0xa0] sm:$0xff]
      %v742 = vld [vmem:[%s4 + $0xa8] sm:$0xff]
      %v743 = vld [vmem:[%s4 + $0xb0] sm:$0xff]
      %v744 = vld [vmem:[%s4 + $0xb8] sm:$0xff]
      %v745 = vld [vmem:[%s4 + $0xc0] sm:$0xff]
      %v746 = vld [vmem:[%s4 + $0xc8] sm:$0xff]
      %v747 = vld [vmem:[%s4 + $0xd0] sm:$0xff]
      %v748 = vld [vmem:[%s4 + $0xd8] sm:$0xff]
      %v749 = vld [vmem:[%s4 + $0xe0] sm:$0xff]
      %v750 = vld [vmem:[%s4 + $0xe8] sm:$0xff]
      %v751 = vld [vmem:[%s4 + $0xf0] sm:$0xff]
      %v752 = vld [vmem:[%s4 + $0xf8] sm:$0xff]
      %v753 = vld [vmem:[%s4 + $0x100] sm:$0xff]
      %v754 = vld [vmem:[%s4 + $0x108] sm:$0xff]
      %v755 = vld [vmem:[%s4 + $0x110] sm:$0xff]
      %v756 = vld [vmem:[%s4 + $0x118] sm:$0xff]
      %v757 = vld [vmem:[%s4 + $0x120] sm:$0xff]
      %v758 = vld [vmem:[%s4 + $0x128] sm:$0xff]
      %v759 = vld [vmem:[%s4 + $0x130] sm:$0xff]
      %v760 = vld [vmem:[%s4 + $0x138] sm:$0xff]
      %v761 = vld [vmem:[%s4 + $0x140] sm:$0xff]
      %v762 = vld [vmem:[%s4 + $0x148] sm:$0xff]
      %v763 = vld [vmem:[%s4 + $0x150] sm:$0xff]
      %v764 = vld [vmem:[%s4 + $0x158] sm:$0xff]
      %v765 = vld [vmem:[%s4 + $0x160] sm:$0xff]
      %v766 = vld [vmem:[%s4 + $0x168] sm:$0xff]
      %v767 = vld [vmem:[%s4 + $0x170] sm:$0xff]
      %v768 = vld [vmem:[%s4 + $0x178] sm:$0xff]
      %v769 = vld [vmem:[%s4 + $0x180] sm:$0xff]
      %v770 = vld [vmem:[%s4 + $0x188] sm:$0xff]
      %v771 = vld [vmem:[%s4 + $0x190] sm:$0xff]
      %v772 = vld [vmem:[%s4 + $0x198] sm:$0xff]
      %v773 = vld [vmem:[%s4 + $0x1a0] sm:$0xff]
      %v774 = vld [vmem:[%s4 + $0x1a8] sm:$0xff]
      %v775 = vld [vmem:[%s4 + $0x1b0] sm:$0xff]
      %v776 = vld [vmem:[%s4 + $0x1b8] sm:$0xff]
      %v777 = vld [vmem:[%s4 + $0x1c0] sm:$0xff]
      %v778 = vld [vmem:[%s4 + $0x1c8] sm:$0xff]
      %v779 = vld [vmem:[%s4 + $0x1d0] sm:$0xff]
      %v780 = vld [vmem:[%s4 + $0x1d8] sm:$0xff]
      %v781 = vld [vmem:[%s4 + $0x1e0] sm:$0xff]
      %v782 = vld [vmem:[%s4 + $0x1e8] sm:$0xff]
      %v783 = vld [vmem:[%s4 + $0x1f0] sm:$0xff]
      %v784 = vld [vmem:[%s4 + $0x1f8] sm:$0xff]
      %v785 = vld [vmem:[%s4 + $0x200] sm:$0xff]
      %v786 = vld [vmem:[%s4 + $0x208] sm:$0xff]
      %v787 = vld [vmem:[%s4 + $0x210] sm:$0xff]
      %v788 = vld [vmem:[%s4 + $0x218] sm:$0xff]
      %v789 = vld [vmem:[%s4 + $0x220] sm:$0xff]
      %v790 = vld [vmem:[%s4 + $0x228] sm:$0xff]
      %v791 = vld [vmem:[%s4 + $0x230] sm:$0xff]
      %v792 = vld [vmem:[%s4 + $0x238] sm:$0xff]
      %v793 = vld [vmem:[%s4 + $0x240] sm:$0xff]
      %v794 = vld [vmem:[%s4 + $0x248] sm:$0xff]
      %v795 = vld [vmem:[%s4 + $0x250] sm:$0xff]
      %v796 = vld [vmem:[%s4 + $0x258] sm:$0xff]
      %v797 = vld [vmem:[%s4 + $0x260] sm:$0xff]
      %v798 = vld [vmem:[%s4 + $0x268] sm:$0xff]
      %v799 = vld [vmem:[%s4 + $0x270] sm:$0xff]
      %v800 = vld [vmem:[%s4 + $0x278] sm:$0xff]
      %v801 = vld [vmem:[%s4 + $0x280] sm:$0xff]
      %v802 = vld [vmem:[%s4 + $0x288] sm:$0xff]
      %v803 = vld [vmem:[%s4 + $0x290] sm:$0xff]
      %v804 = vld [vmem:[%s4 + $0x298] sm:$0xff]
      %v805 = vld [vmem:[%s4 + $0x2a0] sm:$0xff]
      %v806 = vld [vmem:[%s4 + $0x2a8] sm:$0xff]
      %v807 = vld [vmem:[%s4 + $0x2b0] sm:$0xff]
      %v808 = vld [vmem:[%s4 + $0x2b8] sm:$0xff]
      %v809 = vld [vmem:[%s4 + $0x2c0] sm:$0xff]
      %v810 = vld [vmem:[%s4 + $0x2c8] sm:$0xff]
      %v811 = vld [vmem:[%s4 + $0x2d0] sm:$0xff]
      %v812 = vld [vmem:[%s4 + $0x2d8] sm:$0xff]
      %v813 = vld [vmem:[%s4 + $0x2e0] sm:$0xff]
      %v814 = vld [vmem:[%s4 + $0x2e8] sm:$0xff]
      %v815 = vld [vmem:[%s4 + $0x2f0] sm:$0xff]
      %v816 = vld [vmem:[%s4 + $0x2f8] sm:$0xff]
      %v817 = vld [vmem:[%s4 + $0x300] sm:$0xff]
      %v818 = vld [vmem:[%s4 + $0x308] sm:$0xff]
      %v819 = vld [vmem:[%s4 + $0x310] sm:$0xff]
      %v820 = vld [vmem:[%s4 + $0x318] sm:$0xff]
      %v821 = vld [vmem:[%s4 + $0x320] sm:$0xff]
      %v822 = vld [vmem:[%s4 + $0x328] sm:$0xff]
      %v823 = vld [vmem:[%s4 + $0x330] sm:$0xff]
      %v824 = vld [vmem:[%s4 + $0x338] sm:$0xff]
      %v825 = vld [vmem:[%s4 + $0x340] sm:$0xff]
      %v826 = vld [vmem:[%s4 + $0x348] sm:$0xff]
      %v827 = vld [vmem:[%s4 + $0x350] sm:$0xff]
      %v828 = vld [vmem:[%s4 + $0x358] sm:$0xff]
      %v829 = vld [vmem:[%s4 + $0x360] sm:$0xff]
      %v830 = vld [vmem:[%s4 + $0x368] sm:$0xff]
      %v831 = vld [vmem:[%s4 + $0x370] sm:$0xff]
      %v832 = vld [vmem:[%s4 + $0x378] sm:$0xff]
      %v833 = vld [vmem:[%s4 + $0x380] sm:$0xff]
      %v834 = vld [vmem:[%s4 + $0x388] sm:$0xff]
      %v835 = vld [vmem:[%s4 + $0x390] sm:$0xff]
      %v836 = vld [vmem:[%s4 + $0x398] sm:$0xff]
      %v837 = vld [vmem:[%s4 + $0x3a0] sm:$0xff]
      %v838 = vld [vmem:[%s4 + $0x3a8] sm:$0xff]
      %v839 = vld [vmem:[%s4 + $0x3b0] sm:$0xff]
      %v840 = vld [vmem:[%s4 + $0x3b8] sm:$0xff]
      %v841 = vld [vmem:[%s4 + $0x3c0] sm:$0xff]
      %v842 = vld [vmem:[%s4 + $0x3c8] sm:$0xff]
      %v843 = vld [vmem:[%s4 + $0x3d0] sm:$0xff]
      %v844 = vld [vmem:[%s4 + $0x3d8] sm:$0xff]
      %v845 = vld [vmem:[%s4 + $0x3e0] sm:$0xff]
      %v846 = vld [vmem:[%s4 + $0x3e8] sm:$0xff]
      %v847 = vld [vmem:[%s4 + $0x3f0] sm:$0xff]
      %v848 = vld [vmem:[%s4 + $0x3f8] sm:$0xff]
      %v849 = vld [vmem:[%s4 + $0x400] sm:$0xff]
      %v850 = vld [vmem:[%s4 + $0x408] sm:$0xff]
      %v851 = vld [vmem:[%s4 + $0x410] sm:$0xff]
      %v852 = vld [vmem:[%s4 + $0x418] sm:$0xff]
      %v853 = vld [vmem:[%s4 + $0x420] sm:$0xff]
      %v854 = vld [vmem:[%s4 + $0x428] sm:$0xff]
      %v855 = vld [vmem:[%s4 + $0x430] sm:$0xff]
      %v856 = vld [vmem:[%s4 + $0x438] sm:$0xff]
      %v857 = vld [vmem:[%s4 + $0x440] sm:$0xff]
      %v858 = vld [vmem:[%s4 + $0x448] sm:$0xff]
      %v859 = vld [vmem:[%s4 + $0x450] sm:$0xff]
      %v860 = vld [vmem:[%s4 + $0x458] sm:$0xff]
      %v861 = vld [vmem:[%s4 + $0x460] sm:$0xff]
      %v862 = vld [vmem:[%s4 + $0x468] sm:$0xff]
      %v863 = vld [vmem:[%s4 + $0x470] sm:$0xff]
      %v864 = vld [vmem:[%s4 + $0x478] sm:$0xff]
      %v865 = vld [vmem:[%s4 + $0x480] sm:$0xff]
      %v866 = vld [vmem:[%s4 + $0x488] sm:$0xff]
      %v867 = vld [vmem:[%s4 + $0x490] sm:$0xff]
      %v868 = vld [vmem:[%s4 + $0x498] sm:$0xff]
      %v869 = vld [vmem:[%s4 + $0x4a0] sm:$0xff]
      %v870 = vld [vmem:[%s4 + $0x4a8] sm:$0xff]
      %v871 = vld [vmem:[%s4 + $0x4b0] sm:$0xff]
      %v872 = vld [vmem:[%s4 + $0x4b8] sm:$0xff]
      %v873 = vld [vmem:[%s4 + $0x4c0] sm:$0xff]
      %v874 = vld [vmem:[%s4 + $0x4c8] sm:$0xff]
      %v875 = vld [vmem:[%s4 + $0x4d0] sm:$0xff]
      %v876 = vld [vmem:[%s4 + $0x4d8] sm:$0xff]
      %v877 = vld [vmem:[%s4 + $0x4e0] sm:$0xff]
      %v878 = vld [vmem:[%s4 + $0x4e8] sm:$0xff]
      %v879 = vld [vmem:[%s4 + $0x4f0] sm:$0xff]
      %v880 = vld [vmem:[%s4 + $0x4f8] sm:$0xff]
      %v881 = vld [vmem:[%s4 + $0x500] sm:$0xff]
      %v882 = vld [vmem:[%s4 + $0x508] sm:$0xff]
      %v883 = vld [vmem:[%s4 + $0x510] sm:$0xff]
      %v884 = vld [vmem:[%s4 + $0x518] sm:$0xff]
      %v885 = vld [vmem:[%s4 + $0x520] sm:$0xff]
      %v886 = vld [vmem:[%s4 + $0x528] sm:$0xff]
      %v887 = vld [vmem:[%s4 + $0x530] sm:$0xff]
      %v888 = vld [vmem:[%s4 + $0x538] sm:$0xff]
      %v889 = vld [vmem:[%s4 + $0x540] sm:$0xff]
      %v890 = vld [vmem:[%s4 + $0x548] sm:$0xff]
      %v891 = vld [vmem:[%s4 + $0x550] sm:$0xff]
      %v892 = vld [vmem:[%s4 + $0x558] sm:$0xff]
      %v893 = vld [vmem:[%s4 + $0x560] sm:$0xff]
      %v894 = vld [vmem:[%s4 + $0x568] sm:$0xff]
      %v895 = vld [vmem:[%s4 + $0x570] sm:$0xff]
      %v896 = vld [vmem:[%s4 + $0x578] sm:$0xff]
      %v897 = vld [vmem:[%s4 + $0x580] sm:$0xff]
      %v898 = vld [vmem:[%s4 + $0x588] sm:$0xff]
      %v899 = vld [vmem:[%s4 + $0x590] sm:$0xff]
      %v900 = vld [vmem:[%s4 + $0x598] sm:$0xff]
      %v901 = vld [vmem:[%s4 + $0x5a0] sm:$0xff]
      %v902 = vld [vmem:[%s4 + $0x5a8] sm:$0xff]
      %v903 = vld [vmem:[%s4 + $0x5b0] sm:$0xff]
      %v904 = vld [vmem:[%s4 + $0x5b8] sm:$0xff]
      %v905 = vld [vmem:[%s4 + $0x5c0] sm:$0xff]
      %v906 = vld [vmem:[%s4 + $0x5c8] sm:$0xff]
      %v907 = vld [vmem:[%s4 + $0x5d0] sm:$0xff]
      %v908 = vld [vmem:[%s4 + $0x5d8] sm:$0xff]
      %v909 = vld [vmem:[%s4 + $0x5e0] sm:$0xff]
      %v910 = vld [vmem:[%s4 + $0x5e8] sm:$0xff]
      %v911 = vld [vmem:[%s4 + $0x5f0] sm:$0xff]
      %v912 = vld [vmem:[%s4 + $0x5f8] sm:$0xff]
      %v913 = vld [vmem:[%s4 + $0x600] sm:$0xff]
      %v914 = vld [vmem:[%s4 + $0x608] sm:$0xff]
      %v915 = vld [vmem:[%s4 + $0x610] sm:$0xff]
      %v916 = vld [vmem:[%s4 + $0x618] sm:$0xff]
      %v917 = vld [vmem:[%s4 + $0x620] sm:$0xff]
      %v918 = vld [vmem:[%s4 + $0x628] sm:$0xff]
      %v919 = vld [vmem:[%s4 + $0x630] sm:$0xff]
      %v920 = vld [vmem:[%s4 + $0x638] sm:$0xff]
      %v921 = vld [vmem:[%s4 + $0x640] sm:$0xff]
      %v922 = vld [vmem:[%s4 + $0x648] sm:$0xff]
      %v923 = vld [vmem:[%s4 + $0x650] sm:$0xff]
      %v924 = vld [vmem:[%s4 + $0x658] sm:$0xff]
      %v925 = vld [vmem:[%s4 + $0x660] sm:$0xff]
      %v926 = vld [vmem:[%s4 + $0x668] sm:$0xff]
      %v927 = vld [vmem:[%s4 + $0x670] sm:$0xff]
      %v928 = vld [vmem:[%s4 + $0x678] sm:$0xff]
      %v929 = vld [vmem:[%s4 + $0x680] sm:$0xff]
      %v930 = vld [vmem:[%s4 + $0x688] sm:$0xff]
      %v931 = vld [vmem:[%s4 + $0x690] sm:$0xff]
      %v932 = vld [vmem:[%s4 + $0x698] sm:$0xff]
      %v933 = vld [vmem:[%s4 + $0x6a0] sm:$0xff]
      %v934 = vld [vmem:[%s4 + $0x6a8] sm:$0xff]
      %v935 = vld [vmem:[%s4 + $0x6b0] sm:$0xff]
      %v936 = vld [vmem:[%s4 + $0x6b8] sm:$0xff]
      %v937 = vld [vmem:[%s4 + $0x6c0] sm:$0xff]
      %v938 = vld [vmem:[%s4 + $0x6c8] sm:$0xff]
      %v939 = vld [vmem:[%s4 + $0x6d0] sm:$0xff]
      %v940 = vld [vmem:[%s4 + $0x6d8] sm:$0xff]
      %v941 = vld [vmem:[%s4 + $0x6e0] sm:$0xff]
      %v942 = vld [vmem:[%s4 + $0x6e8] sm:$0xff]
      %v943 = vld [vmem:[%s4 + $0x6f0] sm:$0xff]
      %v944 = vld [vmem:[%s4 + $0x6f8] sm:$0xff]
      %v945 = vld [vmem:[%s4 + $0x700] sm:$0xff]
      %v946 = vld [vmem:[%s4 + $0x708] sm:$0xff]
      %v947 = vld [vmem:[%s4 + $0x710] sm:$0xff]
      %v948 = vld [vmem:[%s4 + $0x718] sm:$0xff]
      %v949 = vld [vmem:[%s4 + $0x720] sm:$0xff]
      %v950 = vld [vmem:[%s4 + $0x728] sm:$0xff]
      %v951 = vld [vmem:[%s4 + $0x730] sm:$0xff]
      %v952 = vld [vmem:[%s4 + $0x738] sm:$0xff]
      %v953 = vld [vmem:[%s4 + $0x740] sm:$0xff]
      %v954 = vld [vmem:[%s4 + $0x748] sm:$0xff]
      %v955 = vld [vmem:[%s4 + $0x750] sm:$0xff]
      %v956 = vld [vmem:[%s4 + $0x758] sm:$0xff]
      %v957 = vld [vmem:[%s4 + $0x760] sm:$0xff]
      %v958 = vld [vmem:[%s4 + $0x768] sm:$0xff]
      %v959 = vld [vmem:[%s4 + $0x770] sm:$0xff]
      %v960 = vld [vmem:[%s4 + $0x778] sm:$0xff]
      %v961 = vld [vmem:[%s4 + $0x780] sm:$0xff]
      %v962 = vld [vmem:[%s4 + $0x788] sm:$0xff]
      %v963 = vld [vmem:[%s4 + $0x790] sm:$0xff]
      %v964 = vld [vmem:[%s4 + $0x798] sm:$0xff]
      %v965 = vld [vmem:[%s4 + $0x7a0] sm:$0xff]
      %v966 = vld [vmem:[%s4 + $0x7a8] sm:$0xff]
      %v967 = vld [vmem:[%s4 + $0x7b0] sm:$0xff]
      %v968 = vld [vmem:[%s4 + $0x7b8] sm:$0xff]
      %v969 = vld [vmem:[%s4 + $0x7c0] sm:$0xff]
      %v970 = vld [vmem:[%s4 + $0x7c8] sm:$0xff]
      %v971 = vld [vmem:[%s4 + $0x7d0] sm:$0xff]
      %v972 = vld [vmem:[%s4 + $0x7d8] sm:$0xff]
      %v973 = vld [vmem:[%s4 + $0x7e0] sm:$0xff]
      %v974 = vld [vmem:[%s4 + $0x7e8] sm:$0xff]
      %v975 = vld [vmem:[%s4 + $0x7f0] sm:$0xff]
      %v976 = vld [vmem:[%s4 + $0x7f8] sm:$0xff]
      %v977 = vld [vmem:[%s5] sm:$0x3]
      %s978 = scalar_lea.vmem %s5, 2
      %v979 = vld [vmem:[%s978] sm:$0x3]
      %s980 = scalar_lea.vmem %s5, 4
      %v981 = vld [vmem:[%s980] sm:$0x3]
      %s982 = scalar_lea.vmem %s5, 6
      %v983 = vld [vmem:[%s982] sm:$0x3]
      %s984 = scalar_lea.vmem %s5, 10
      %v985 = vld [vmem:[%s984] sm:$0x3]
      %s986 = scalar_lea.vmem %s5, 12
      %v987 = vld [vmem:[%s986] sm:$0x3]
      %s988 = scalar_lea.vmem %s5, 14
      %v989 = vld [vmem:[%s988] sm:$0x3]
      %s990 = scalar_lea.vmem %s5, 16
      %v991 = vld [vmem:[%s990] sm:$0x3]
      %v992 = vld [vmem:[%s6] sm:$0xff]
      %s993 = scalar_lea.vmem %s6, 8
      %v994 = vld [vmem:[%s993] sm:$0xff]
      %s995 = scalar_lea.vmem %s6, 16
      %v996 = vld [vmem:[%s995] sm:$0xff]
      %s997 = scalar_lea.vmem %s6, 24
      %v998 = vld [vmem:[%s997] sm:$0xff]
      %s999 = scalar_lea.vmem %s6, 40
      %v1000 = vld [vmem:[%s999] sm:$0xff]
      %s1001 = scalar_lea.vmem %s6, 48
      %v1002 = vld [vmem:[%s1001] sm:$0xff]
      %s1003 = scalar_lea.vmem %s6, 56
      %v1004 = vld [vmem:[%s1003] sm:$0xff]
      %s1005 = scalar_lea.vmem %s6, 64
      %v1006 = vld [vmem:[%s1005] sm:$0xff]
      %vm1007 = vcmask 523264
      %v1009 = vsel %vm1007, %v694, 0
      %1011 = vmatprep.subr.mxu0 %v706
      %1012 = vmatpush1.msra.mxu0 %v705
      %1013 = vmatprep.subr.mxu0 %v708
      %1014 = vmatpush1.msra.mxu0 %v707
      %1015 = vmatprep.subr.mxu0 %v710
      %1016 = vmatpush1.msra.mxu0 %v709
      %1017 = vmatprep.subr.mxu0 %v712
      %1018 = vmatpush1.msra.mxu0 %v711
      %1019 = vmatprep.subr.mxu0 %v714
      %1020 = vmatpush1.msra.mxu0 %v713
      %1021 = vmatprep.subr.mxu0 %v716
      %1022 = vmatpush1.msra.mxu0 %v715
      %1023 = vmatprep.subr.mxu0 %v718
      %1024 = vmatpush1.msra.mxu0 %v717
      %1025 = vmatprep.subr.mxu0 %v720
      %1026 = vmatpush1.msra.mxu0 %v719
      %1027 = vmatprep.subr.mxu0 0.0
      %1028 = vmatpush1.msra.mxu0 0.0
      %1029 = vmatprep.subr.mxu0 0.0
      %1030 = vmatpush1.msra.mxu0 0.0
      %1031 = vmatprep.subr.mxu0 0.0
      %1032 = vmatpush1.msra.mxu0 0.0
      %1033 = vmatprep.subr.mxu0 0.0
      %1034 = vmatpush1.msra.mxu0 0.0
      %1035 = vmatprep.subr.mxu0 0.0
      %1036 = vmatpush1.msra.mxu0 0.0
      %1037 = vmatprep.subr.mxu0 0.0
      %1038 = vmatpush1.msra.mxu0 0.0
      %1039 = vmatprep.subr.mxu0 0.0
      %1040 = vmatpush1.msra.mxu0 0.0
      %1041 = vmatprep.subr.mxu0 0.0
      %1042 = vmatpush1.msra.mxu0 0.0
      %1043 = vmatprep.subr.mxu0 0.0
      %1044 = vmatpush1.msra.mxu0 0.0
      %1045 = vmatprep.subr.mxu0 0.0
      %1046 = vmatpush1.msra.mxu0 0.0
      %1047 = vmatprep.subr.mxu0 0.0
      %1048 = vmatpush1.msra.mxu0 0.0
      %1049 = vmatprep.subr.mxu0 0.0
      %1050 = vmatpush1.msra.mxu0 0.0
      %1051 = vmatprep.subr.mxu0 0.0
      %1052 = vmatpush1.msra.mxu0 0.0
      %1053 = vmatprep.subr.mxu0 0.0
      %1054 = vmatpush1.msra.mxu0 0.0
      %1055 = vmatprep.subr.mxu0 0.0
      %1056 = vmatpush1.msra.mxu0 0.0
      %1057 = vmatprep.subr.mxu0 0.0
      %1058 = vmatpush1.msra.mxu0 0.0
      %1059 = vmatprep.subr.mxu0 0.0
      %1060 = vmatpush1.msra.mxu0 0.0
      %1061 = vmatprep.subr.mxu0 0.0
      %1062 = vmatpush1.msra.mxu0 0.0
      %1063 = vmatprep.subr.mxu0 0.0
      %1064 = vmatpush1.msra.mxu0 0.0
      %1065 = vmatprep.subr.mxu0 0.0
      %1066 = vmatpush1.msra.mxu0 0.0
      %1067 = vmatprep.subr.mxu0 0.0
      %1068 = vmatpush1.msra.mxu0 0.0
      %1069 = vmatprep.subr.mxu0 0.0
      %1070 = vmatpush1.msra.mxu0 0.0
      %1071 = vmatprep.subr.mxu0 0.0
      %1072 = vmatpush1.msra.mxu0 0.0
      %1073 = vmatprep.subr.mxu0 0.0
      %1074 = vmatpush1.msra.mxu0 0.0
      %1075 = vmatprep.mubr.f32.mxu0 0.0
      %1076 = vmatmul.mubr.f32.gmra.mrb[0].mxu0 %v1009
      %v1077 = vpop.f32.mrb[0].mxu0
      %v1078 = vadd.f32 0.0, %v1077
      %v1079 = vpop.f32.mrb[0].mxu0
      %v1080 = vadd.f32 0.0, %v1079
      %1081 = vdwg.mxu0
      %1082 = vmatprep.subr.mxu0 %v722
      %1083 = vmatpush1.msra.mxu0 %v721
      %1084 = vmatprep.subr.mxu0 %v730
      %1085 = vmatpush1.msra.mxu0 %v729
      %1086 = vmatprep.subr.mxu0 %v738
      %1087 = vmatpush1.msra.mxu0 %v737
      %1088 = vmatprep.subr.mxu0 %v746
      %1089 = vmatpush1.msra.mxu0 %v745
      %1090 = vmatprep.subr.mxu0 %v754
      %1091 = vmatpush1.msra.mxu0 %v753
      %1092 = vmatprep.subr.mxu0 %v762
      %1093 = vmatpush1.msra.mxu0 %v761
      %1094 = vmatprep.subr.mxu0 %v770
      %1095 = vmatpush1.msra.mxu0 %v769
      %1096 = vmatprep.subr.mxu0 %v778
      %1097 = vmatpush1.msra.mxu0 %v777
      %1098 = vmatprep.subr.mxu0 %v786
      %1099 = vmatpush1.msra.mxu0 %v785
      %1100 = vmatprep.subr.mxu0 %v794
      %1101 = vmatpush1.msra.mxu0 %v793
      %1102 = vmatprep.subr.mxu0 %v802
      %1103 = vmatpush1.msra.mxu0 %v801
      %1104 = vmatprep.subr.mxu0 %v810
      %1105 = vmatpush1.msra.mxu0 %v809
      %1106 = vmatprep.subr.mxu0 %v818
      %1107 = vmatpush1.msra.mxu0 %v817
      %1108 = vmatprep.subr.mxu0 %v826
      %1109 = vmatpush1.msra.mxu0 %v825
      %1110 = vmatprep.subr.mxu0 %v834
      %1111 = vmatpush1.msra.mxu0 %v833
      %1112 = vmatprep.subr.mxu0 %v842
      %1113 = vmatpush1.msra.mxu0 %v841
      %1114 = vmatprep.subr.mxu0 %v850
      %1115 = vmatpush1.msra.mxu0 %v849
      %1116 = vmatprep.subr.mxu0 %v858
      %1117 = vmatpush1.msra.mxu0 %v857
      %1118 = vmatprep.subr.mxu0 %v866
      %1119 = vmatpush1.msra.mxu0 %v865
      %1120 = vmatprep.subr.mxu0 %v874
      %1121 = vmatpush1.msra.mxu0 %v873
      %1122 = vmatprep.subr.mxu0 %v882
      %1123 = vmatpush1.msra.mxu0 %v881
      %1124 = vmatprep.subr.mxu0 %v890
      %1125 = vmatpush1.msra.mxu0 %v889
      %1126 = vmatprep.subr.mxu0 %v898
      %1127 = vmatpush1.msra.mxu0 %v897
      %1128 = vmatprep.subr.mxu0 %v906
      %1129 = vmatpush1.msra.mxu0 %v905
      %1130 = vmatprep.subr.mxu0 %v914
      %1131 = vmatpush1.msra.mxu0 %v913
      %1132 = vmatprep.subr.mxu0 %v922
      %1133 = vmatpush1.msra.mxu0 %v921
      %1134 = vmatprep.subr.mxu0 %v930
      %1135 = vmatpush1.msra.mxu0 %v929
      %1136 = vmatprep.subr.mxu0 %v938
      %1137 = vmatpush1.msra.mxu0 %v937
      %1138 = vmatprep.subr.mxu0 %v946
      %1139 = vmatpush1.msra.mxu0 %v945
      %1140 = vmatprep.subr.mxu0 %v954
      %1141 = vmatpush1.msra.mxu0 %v953
      %1142 = vmatprep.subr.mxu0 %v962
      %1143 = vmatpush1.msra.mxu0 %v961
      %1144 = vmatprep.subr.mxu0 %v970
      %1145 = vmatpush1.msra.mxu0 %v969
      %1146 = vmatprep.mubr.f32.mxu0 %v1080
      %1147 = vmatmul.mubr.f32.gmra.mrb[0].mxu0 %v1078
      %v1148 = vpop.f32.mrb[0].mxu0
      %v1149 = vadd.f32 0.0, %v1148
      %v1150 = vpop.f32.mrb[0].mxu0
      %v1151 = vadd.f32 0.0, %v1150
      %1152 = vdwg.mxu0
      %1153 = vmatprep.subr.mxu0 %v724
      %1154 = vmatpush1.msra.mxu0 %v723
      %1155 = vmatprep.subr.mxu0 %v732
      %1156 = vmatpush1.msra.mxu0 %v731
      %1157 = vmatprep.subr.mxu0 %v740
      %1158 = vmatpush1.msra.mxu0 %v739
      %1159 = vmatprep.subr.mxu0 %v748
      %1160 = vmatpush1.msra.mxu0 %v747
      %1161 = vmatprep.subr.mxu0 %v756
      %1162 = vmatpush1.msra.mxu0 %v755
      %1163 = vmatprep.subr.mxu0 %v764
      %1164 = vmatpush1.msra.mxu0 %v763
      %1165 = vmatprep.subr.mxu0 %v772
      %1166 = vmatpush1.msra.mxu0 %v771
      %1167 = vmatprep.subr.mxu0 %v780
      %1168 = vmatpush1.msra.mxu0 %v779
      %1169 = vmatprep.subr.mxu0 %v788
      %1170 = vmatpush1.msra.mxu0 %v787
      %1171 = vmatprep.subr.mxu0 %v796
      %1172 = vmatpush1.msra.mxu0 %v795
      %1173 = vmatprep.subr.mxu0 %v804
      %1174 = vmatpush1.msra.mxu0 %v803
      %1175 = vmatprep.subr.mxu0 %v812
      %1176 = vmatpush1.msra.mxu0 %v811
      %1177 = vmatprep.subr.mxu0 %v820
      %1178 = vmatpush1.msra.mxu0 %v819
      %1179 = vmatprep.subr.mxu0 %v828
      %1180 = vmatpush1.msra.mxu0 %v827
      %1181 = vmatprep.subr.mxu0 %v836
      %1182 = vmatpush1.msra.mxu0 %v835
      %1183 = vmatprep.subr.mxu0 %v844
      %1184 = vmatpush1.msra.mxu0 %v843
      %1185 = vmatprep.subr.mxu0 %v852
      %1186 = vmatpush1.msra.mxu0 %v851
      %1187 = vmatprep.subr.mxu0 %v860
      %1188 = vmatpush1.msra.mxu0 %v859
      %1189 = vmatprep.subr.mxu0 %v868
      %1190 = vmatpush1.msra.mxu0 %v867
      %1191 = vmatprep.subr.mxu0 %v876
      %1192 = vmatpush1.msra.mxu0 %v875
      %1193 = vmatprep.subr.mxu0 %v884
      %1194 = vmatpush1.msra.mxu0 %v883
      %1195 = vmatprep.subr.mxu0 %v892
      %1196 = vmatpush1.msra.mxu0 %v891
      %1197 = vmatprep.subr.mxu0 %v900
      %1198 = vmatpush1.msra.mxu0 %v899
      %1199 = vmatprep.subr.mxu0 %v908
      %1200 = vmatpush1.msra.mxu0 %v907
      %1201 = vmatprep.subr.mxu0 %v916
      %1202 = vmatpush1.msra.mxu0 %v915
      %1203 = vmatprep.subr.mxu0 %v924
      %1204 = vmatpush1.msra.mxu0 %v923
      %1205 = vmatprep.subr.mxu0 %v932
      %1206 = vmatpush1.msra.mxu0 %v931
      %1207 = vmatprep.subr.mxu0 %v940
      %1208 = vmatpush1.msra.mxu0 %v939
      %1209 = vmatprep.subr.mxu0 %v948
      %1210 = vmatpush1.msra.mxu0 %v947
      %1211 = vmatprep.subr.mxu0 %v956
      %1212 = vmatpush1.msra.mxu0 %v955
      %1213 = vmatprep.subr.mxu0 %v964
      %1214 = vmatpush1.msra.mxu0 %v963
      %1215 = vmatprep.subr.mxu0 %v972
      %1216 = vmatpush1.msra.mxu0 %v971
      %1217 = vmatprep.mubr.f32.mxu0 %v1080
      %1218 = vmatmul.mubr.f32.gmra.mrb[0].mxu0 %v1078
      %v1219 = vpop.f32.mrb[0].mxu0
      %v1220 = vadd.f32 0.0, %v1219
      %v1221 = vpop.f32.mrb[0].mxu0
      %v1222 = vadd.f32 0.0, %v1221
      %1223 = vdwg.mxu0
      %1224 = vmatprep.subr.mxu0 %v726
      %1225 = vmatpush1.msra.mxu0 %v725
      %1226 = vmatprep.subr.mxu0 %v734
      %1227 = vmatpush1.msra.mxu0 %v733
      %1228 = vmatprep.subr.mxu0 %v742
      %1229 = vmatpush1.msra.mxu0 %v741
      %1230 = vmatprep.subr.mxu0 %v750
      %1231 = vmatpush1.msra.mxu0 %v749
      %1232 = vmatprep.subr.mxu0 %v758
      %1233 = vmatpush1.msra.mxu0 %v757
      %1234 = vmatprep.subr.mxu0 %v766
      %1235 = vmatpush1.msra.mxu0 %v765
      %1236 = vmatprep.subr.mxu0 %v774
      %1237 = vmatpush1.msra.mxu0 %v773
      %1238 = vmatprep.subr.mxu0 %v782
      %1239 = vmatpush1.msra.mxu0 %v781
      %1240 = vmatprep.subr.mxu0 %v790
      %1241 = vmatpush1.msra.mxu0 %v789
      %1242 = vmatprep.subr.mxu0 %v798
      %1243 = vmatpush1.msra.mxu0 %v797
      %1244 = vmatprep.subr.mxu0 %v806
      %1245 = vmatpush1.msra.mxu0 %v805
      %1246 = vmatprep.subr.mxu0 %v814
      %1247 = vmatpush1.msra.mxu0 %v813
      %1248 = vmatprep.subr.mxu0 %v822
      %1249 = vmatpush1.msra.mxu0 %v821
      %1250 = vmatprep.subr.mxu0 %v830
      %1251 = vmatpush1.msra.mxu0 %v829
      %1252 = vmatprep.subr.mxu0 %v838
      %1253 = vmatpush1.msra.mxu0 %v837
      %1254 = vmatprep.subr.mxu0 %v846
      %1255 = vmatpush1.msra.mxu0 %v845
      %1256 = vmatprep.subr.mxu0 %v854
      %1257 = vmatpush1.msra.mxu0 %v853
      %1258 = vmatprep.subr.mxu0 %v862
      %1259 = vmatpush1.msra.mxu0 %v861
      %1260 = vmatprep.subr.mxu0 %v870
      %1261 = vmatpush1.msra.mxu0 %v869
      %1262 = vmatprep.subr.mxu0 %v878
      %1263 = vmatpush1.msra.mxu0 %v877
      %1264 = vmatprep.subr.mxu0 %v886
      %1265 = vmatpush1.msra.mxu0 %v885
      %1266 = vmatprep.subr.mxu0 %v894
      %1267 = vmatpush1.msra.mxu0 %v893
      %1268 = vmatprep.subr.mxu0 %v902
      %1269 = vmatpush1.msra.mxu0 %v901
      %1270 = vmatprep.subr.mxu0 %v910
      %1271 = vmatpush1.msra.mxu0 %v909
      %1272 = vmatprep.subr.mxu0 %v918
      %1273 = vmatpush1.msra.mxu0 %v917
      %1274 = vmatprep.subr.mxu0 %v926
      %1275 = vmatpush1.msra.mxu0 %v925
      %1276 = vmatprep.subr.mxu0 %v934
      %1277 = vmatpush1.msra.mxu0 %v933
      %1278 = vmatprep.subr.mxu0 %v942
      %1279 = vmatpush1.msra.mxu0 %v941
      %1280 = vmatprep.subr.mxu0 %v950
      %1281 = vmatpush1.msra.mxu0 %v949
      %1282 = vmatprep.subr.mxu0 %v958
      %1283 = vmatpush1.msra.mxu0 %v957
      %1284 = vmatprep.subr.mxu0 %v966
      %1285 = vmatpush1.msra.mxu0 %v965
      %1286 = vmatprep.subr.mxu0 %v974
      %1287 = vmatpush1.msra.mxu0 %v973
      %1288 = vmatprep.mubr.f32.mxu0 %v1080
      %1289 = vmatmul.mubr.f32.gmra.mrb[0].mxu0 %v1078
      %v1290 = vpop.f32.mrb[0].mxu0
      %v1291 = vadd.f32 0.0, %v1290
      %v1292 = vpop.f32.mrb[0].mxu0
      %v1293 = vadd.f32 0.0, %v1292
      %1294 = vdwg.mxu0
      %1295 = vmatprep.subr.mxu0 %v728
      %1296 = vmatpush1.msra.mxu0 %v727
      %1297 = vmatprep.subr.mxu0 %v736
      %1298 = vmatpush1.msra.mxu0 %v735
      %1299 = vmatprep.subr.mxu0 %v744
      %1300 = vmatpush1.msra.mxu0 %v743
      %1301 = vmatprep.subr.mxu0 %v752
      %1302 = vmatpush1.msra.mxu0 %v751
      %1303 = vmatprep.subr.mxu0 %v760
      %1304 = vmatpush1.msra.mxu0 %v759
      %1305 = vmatprep.subr.mxu0 %v768
      %1306 = vmatpush1.msra.mxu0 %v767
      %1307 = vmatprep.subr.mxu0 %v776
      %1308 = vmatpush1.msra.mxu0 %v775
      %1309 = vmatprep.subr.mxu0 %v784
      %1310 = vmatpush1.msra.mxu0 %v783
      %1311 = vmatprep.subr.mxu0 %v792
      %1312 = vmatpush1.msra.mxu0 %v791
      %1313 = vmatprep.subr.mxu0 %v800
      %1314 = vmatpush1.msra.mxu0 %v799
      %1315 = vmatprep.subr.mxu0 %v808
      %1316 = vmatpush1.msra.mxu0 %v807
      %1317 = vmatprep.subr.mxu0 %v816
      %1318 = vmatpush1.msra.mxu0 %v815
      %1319 = vmatprep.subr.mxu0 %v824
      %1320 = vmatpush1.msra.mxu0 %v823
      %1321 = vmatprep.subr.mxu0 %v832
      %1322 = vmatpush1.msra.mxu0 %v831
      %1323 = vmatprep.subr.mxu0 %v840
      %1324 = vmatpush1.msra.mxu0 %v839
      %1325 = vmatprep.subr.mxu0 %v848
      %1326 = vmatpush1.msra.mxu0 %v847
      %1327 = vmatprep.subr.mxu0 %v856
      %1328 = vmatpush1.msra.mxu0 %v855
      %1329 = vmatprep.subr.mxu0 %v864
      %1330 = vmatpush1.msra.mxu0 %v863
      %1331 = vmatprep.subr.mxu0 %v872
      %1332 = vmatpush1.msra.mxu0 %v871
      %1333 = vmatprep.subr.mxu0 %v880
      %1334 = vmatpush1.msra.mxu0 %v879
      %1335 = vmatprep.subr.mxu0 %v888
      %1336 = vmatpush1.msra.mxu0 %v887
      %1337 = vmatprep.subr.mxu0 %v896
      %1338 = vmatpush1.msra.mxu0 %v895
      %1339 = vmatprep.subr.mxu0 %v904
      %1340 = vmatpush1.msra.mxu0 %v903
      %1341 = vmatprep.subr.mxu0 %v912
      %1342 = vmatpush1.msra.mxu0 %v911
      %1343 = vmatprep.subr.mxu0 %v920
      %1344 = vmatpush1.msra.mxu0 %v919
      %1345 = vmatprep.subr.mxu0 %v928
      %1346 = vmatpush1.msra.mxu0 %v927
      %1347 = vmatprep.subr.mxu0 %v936
      %1348 = vmatpush1.msra.mxu0 %v935
      %1349 = vmatprep.subr.mxu0 %v944
      %1350 = vmatpush1.msra.mxu0 %v943
      %1351 = vmatprep.subr.mxu0 %v952
      %1352 = vmatpush1.msra.mxu0 %v951
      %1353 = vmatprep.subr.mxu0 %v960
      %1354 = vmatpush1.msra.mxu0 %v959
      %1355 = vmatprep.subr.mxu0 %v968
      %1356 = vmatpush1.msra.mxu0 %v967
      %1357 = vmatprep.subr.mxu0 %v976
      %1358 = vmatpush1.msra.mxu0 %v975
      %1359 = vmatprep.mubr.f32.mxu0 %v1080
      %1360 = vmatmul.mubr.f32.gmra.mrb[0].mxu0 %v1078
      %v1361 = vpop.f32.mrb[0].mxu0
      %v1362 = vadd.f32 0.0, %v1361
      %v1363 = vpop.f32.mrb[0].mxu0
      %v1364 = vadd.f32 0.0, %v1363
      %1365 = vdwg.mxu0
      %1366 = vmatprep.subr.mxu0 %v722
      %1367 = vmatpush1.msra.mxu0 %v721
      %1368 = vmatprep.subr.mxu0 %v730
      %1369 = vmatpush1.msra.mxu0 %v729
      %1370 = vmatprep.subr.mxu0 %v738
      %1371 = vmatpush1.msra.mxu0 %v737
      %1372 = vmatprep.subr.mxu0 %v746
      %1373 = vmatpush1.msra.mxu0 %v745
      %1374 = vmatprep.subr.mxu0 %v754
      %1375 = vmatpush1.msra.mxu0 %v753
      %1376 = vmatprep.subr.mxu0 %v762
      %1377 = vmatpush1.msra.mxu0 %v761
      %1378 = vmatprep.subr.mxu0 %v770
      %1379 = vmatpush1.msra.mxu0 %v769
      %1380 = vmatprep.subr.mxu0 %v778
      %1381 = vmatpush1.msra.mxu0 %v777
      %1382 = vmatprep.subr.mxu0 %v786
      %1383 = vmatpush1.msra.mxu0 %v785
      %1384 = vmatprep.subr.mxu0 %v794
      %1385 = vmatpush1.msra.mxu0 %v793
      %1386 = vmatprep.subr.mxu0 %v802
      %1387 = vmatpush1.msra.mxu0 %v801
      %1388 = vmatprep.subr.mxu0 %v810
      %1389 = vmatpush1.msra.mxu0 %v809
      %1390 = vmatprep.subr.mxu0 %v818
      %1391 = vmatpush1.msra.mxu0 %v817
      %1392 = vmatprep.subr.mxu0 %v826
      %1393 = vmatpush1.msra.mxu0 %v825
      %1394 = vmatprep.subr.mxu0 %v834
      %1395 = vmatpush1.msra.mxu0 %v833
      %1396 = vmatprep.subr.mxu0 %v842
      %1397 = vmatpush1.msra.mxu0 %v841
      %1398 = vmatprep.subr.mxu0 %v850
      %1399 = vmatpush1.msra.mxu0 %v849
      %1400 = vmatprep.subr.mxu0 %v858
      %1401 = vmatpush1.msra.mxu0 %v857
      %1402 = vmatprep.subr.mxu0 %v866
      %1403 = vmatpush1.msra.mxu0 %v865
      %1404 = vmatprep.subr.mxu0 %v874
      %1405 = vmatpush1.msra.mxu0 %v873
      %1406 = vmatprep.subr.mxu0 %v882
      %1407 = vmatpush1.msra.mxu0 %v881
      %1408 = vmatprep.subr.mxu0 %v890
      %1409 = vmatpush1.msra.mxu0 %v889
      %1410 = vmatprep.subr.mxu0 %v898
      %1411 = vmatpush1.msra.mxu0 %v897
      %1412 = vmatprep.subr.mxu0 %v906
      %1413 = vmatpush1.msra.mxu0 %v905
      %1414 = vmatprep.subr.mxu0 %v914
      %1415 = vmatpush1.msra.mxu0 %v913
      %1416 = vmatprep.subr.mxu0 %v922
      %1417 = vmatpush1.msra.mxu0 %v921
      %1418 = vmatprep.subr.mxu0 %v930
      %1419 = vmatpush1.msra.mxu0 %v929
      %1420 = vmatprep.subr.mxu0 %v938
      %1421 = vmatpush1.msra.mxu0 %v937
      %1422 = vmatprep.subr.mxu0 %v946
      %1423 = vmatpush1.msra.mxu0 %v945
      %1424 = vmatprep.subr.mxu0 %v954
      %1425 = vmatpush1.msra.mxu0 %v953
      %1426 = vmatprep.subr.mxu0 %v962
      %1427 = vmatpush1.msra.mxu0 %v961
      %1428 = vmatprep.subr.mxu0 %v970
      %1429 = vmatpush1.msra.mxu0 %v969
      %1430 = vmatprep.mubr.f32.mxu0 %v696
      %1431 = vmatmul.mubr.f32.gmra.mrb[0].mxu0 %v695
      %v1432 = vpop.f32.mrb[0].mxu0
      %v1433 = vadd.f32 0.0, %v1432
      %v1434 = vpop.f32.mrb[0].mxu0
      %v1435 = vadd.f32 0.0, %v1434
      %1436 = vdwg.mxu0
      %1437 = vmatprep.subr.mxu0 %v724
      %1438 = vmatpush1.msra.mxu0 %v723
      %1439 = vmatprep.subr.mxu0 %v732
      %1440 = vmatpush1.msra.mxu0 %v731
      %1441 = vmatprep.subr.mxu0 %v740
      %1442 = vmatpush1.msra.mxu0 %v739
      %1443 = vmatprep.subr.mxu0 %v748
      %1444 = vmatpush1.msra.mxu0 %v747
      %1445 = vmatprep.subr.mxu0 %v756
      %1446 = vmatpush1.msra.mxu0 %v755
      %1447 = vmatprep.subr.mxu0 %v764
      %1448 = vmatpush1.msra.mxu0 %v763
      %1449 = vmatprep.subr.mxu0 %v772
      %1450 = vmatpush1.msra.mxu0 %v771
      %1451 = vmatprep.subr.mxu0 %v780
      %1452 = vmatpush1.msra.mxu0 %v779
      %1453 = vmatprep.subr.mxu0 %v788
      %1454 = vmatpush1.msra.mxu0 %v787
      %1455 = vmatprep.subr.mxu0 %v796
      %1456 = vmatpush1.msra.mxu0 %v795
      %1457 = vmatprep.subr.mxu0 %v804
      %1458 = vmatpush1.msra.mxu0 %v803
      %1459 = vmatprep.subr.mxu0 %v812
      %1460 = vmatpush1.msra.mxu0 %v811
      %1461 = vmatprep.subr.mxu0 %v820
      %1462 = vmatpush1.msra.mxu0 %v819
      %1463 = vmatprep.subr.mxu0 %v828
      %1464 = vmatpush1.msra.mxu0 %v827
      %1465 = vmatprep.subr.mxu0 %v836
      %1466 = vmatpush1.msra.mxu0 %v835
      %1467 = vmatprep.subr.mxu0 %v844
      %1468 = vmatpush1.msra.mxu0 %v843
      %1469 = vmatprep.subr.mxu0 %v852
      %1470 = vmatpush1.msra.mxu0 %v851
      %1471 = vmatprep.subr.mxu0 %v860
      %1472 = vmatpush1.msra.mxu0 %v859
      %1473 = vmatprep.subr.mxu0 %v868
      %1474 = vmatpush1.msra.mxu0 %v867
      %1475 = vmatprep.subr.mxu0 %v876
      %1476 = vmatpush1.msra.mxu0 %v875
      %1477 = vmatprep.subr.mxu0 %v884
      %1478 = vmatpush1.msra.mxu0 %v883
      %1479 = vmatprep.subr.mxu0 %v892
      %1480 = vmatpush1.msra.mxu0 %v891
      %1481 = vmatprep.subr.mxu0 %v900
      %1482 = vmatpush1.msra.mxu0 %v899
      %1483 = vmatprep.subr.mxu0 %v908
      %1484 = vmatpush1.msra.mxu0 %v907
      %1485 = vmatprep.subr.mxu0 %v916
      %1486 = vmatpush1.msra.mxu0 %v915
      %1487 = vmatprep.subr.mxu0 %v924
      %1488 = vmatpush1.msra.mxu0 %v923
      %1489 = vmatprep.subr.mxu0 %v932
      %1490 = vmatpush1.msra.mxu0 %v931
      %1491 = vmatprep.subr.mxu0 %v940
      %1492 = vmatpush1.msra.mxu0 %v939
      %1493 = vmatprep.subr.mxu0 %v948
      %1494 = vmatpush1.msra.mxu0 %v947
      %1495 = vmatprep.subr.mxu0 %v956
      %1496 = vmatpush1.msra.mxu0 %v955
      %1497 = vmatprep.subr.mxu0 %v964
      %1498 = vmatpush1.msra.mxu0 %v963
      %1499 = vmatprep.subr.mxu0 %v972
      %1500 = vmatpush1.msra.mxu0 %v971
      %1501 = vmatprep.mubr.f32.mxu0 %v696
      %1502 = vmatmul.mubr.f32.gmra.mrb[0].mxu0 %v695
      %v1503 = vpop.f32.mrb[0].mxu0
      %v1504 = vadd.f32 0.0, %v1503
      %v1505 = vpop.f32.mrb[0].mxu0
      %v1506 = vadd.f32 0.0, %v1505
      %1507 = vdwg.mxu0
      %1508 = vmatprep.subr.mxu0 %v726
      %1509 = vmatpush1.msra.mxu0 %v725
      %1510 = vmatprep.subr.mxu0 %v734
      %1511 = vmatpush1.msra.mxu0 %v733
      %1512 = vmatprep.subr.mxu0 %v742
      %1513 = vmatpush1.msra.mxu0 %v741
      %1514 = vmatprep.subr.mxu0 %v750
      %1515 = vmatpush1.msra.mxu0 %v749
      %1516 = vmatprep.subr.mxu0 %v758
      %1517 = vmatpush1.msra.mxu0 %v757
      %1518 = vmatprep.subr.mxu0 %v766
      %1519 = vmatpush1.msra.mxu0 %v765
      %1520 = vmatprep.subr.mxu0 %v774
      %1521 = vmatpush1.msra.mxu0 %v773
      %1522 = vmatprep.subr.mxu0 %v782
      %1523 = vmatpush1.msra.mxu0 %v781
      %1524 = vmatprep.subr.mxu0 %v790
      %1525 = vmatpush1.msra.mxu0 %v789
      %1526 = vmatprep.subr.mxu0 %v798
      %1527 = vmatpush1.msra.mxu0 %v797
      %1528 = vmatprep.subr.mxu0 %v806
      %1529 = vmatpush1.msra.mxu0 %v805
      %1530 = vmatprep.subr.mxu0 %v814
      %1531 = vmatpush1.msra.mxu0 %v813
      %1532 = vmatprep.subr.mxu0 %v822
      %1533 = vmatpush1.msra.mxu0 %v821
      %1534 = vmatprep.subr.mxu0 %v830
      %1535 = vmatpush1.msra.mxu0 %v829
      %1536 = vmatprep.subr.mxu0 %v838
      %1537 = vmatpush1.msra.mxu0 %v837
      %1538 = vmatprep.subr.mxu0 %v846
      %1539 = vmatpush1.msra.mxu0 %v845
      %1540 = vmatprep.subr.mxu0 %v854
      %1541 = vmatpush1.msra.mxu0 %v853
      %1542 = vmatprep.subr.mxu0 %v862
      %1543 = vmatpush1.msra.mxu0 %v861
      %1544 = vmatprep.subr.mxu0 %v870
      %1545 = vmatpush1.msra.mxu0 %v869
      %1546 = vmatprep.subr.mxu0 %v878
      %1547 = vmatpush1.msra.mxu0 %v877
      %1548 = vmatprep.subr.mxu0 %v886
      %1549 = vmatpush1.msra.mxu0 %v885
      %1550 = vmatprep.subr.mxu0 %v894
      %1551 = vmatpush1.msra.mxu0 %v893
      %1552 = vmatprep.subr.mxu0 %v902
      %1553 = vmatpush1.msra.mxu0 %v901
      %1554 = vmatprep.subr.mxu0 %v910
      %1555 = vmatpush1.msra.mxu0 %v909
      %1556 = vmatprep.subr.mxu0 %v918
      %1557 = vmatpush1.msra.mxu0 %v917
      %1558 = vmatprep.subr.mxu0 %v926
      %1559 = vmatpush1.msra.mxu0 %v925
      %1560 = vmatprep.subr.mxu0 %v934
      %1561 = vmatpush1.msra.mxu0 %v933
      %1562 = vmatprep.subr.mxu0 %v942
      %1563 = vmatpush1.msra.mxu0 %v941
      %1564 = vmatprep.subr.mxu0 %v950
      %1565 = vmatpush1.msra.mxu0 %v949
      %1566 = vmatprep.subr.mxu0 %v958
      %1567 = vmatpush1.msra.mxu0 %v957
      %1568 = vmatprep.subr.mxu0 %v966
      %1569 = vmatpush1.msra.mxu0 %v965
      %1570 = vmatprep.subr.mxu0 %v974
      %1571 = vmatpush1.msra.mxu0 %v973
      %1572 = vmatprep.mubr.f32.mxu0 %v696
      %1573 = vmatmul.mubr.f32.gmra.mrb[0].mxu0 %v695
      %v1574 = vpop.f32.mrb[0].mxu0
      %v1575 = vadd.f32 0.0, %v1574
      %v1576 = vpop.f32.mrb[0].mxu0
      %v1577 = vadd.f32 0.0, %v1576
      %1578 = vdwg.mxu0
      %1579 = vmatprep.subr.mxu0 %v728
      %1580 = vmatpush1.msra.mxu0 %v727
      %1581 = vmatprep.subr.mxu0 %v736
      %1582 = vmatpush1.msra.mxu0 %v735
      %1583 = vmatprep.subr.mxu0 %v744
      %1584 = vmatpush1.msra.mxu0 %v743
      %1585 = vmatprep.subr.mxu0 %v752
      %1586 = vmatpush1.msra.mxu0 %v751
      %1587 = vmatprep.subr.mxu0 %v760
      %1588 = vmatpush1.msra.mxu0 %v759
      %1589 = vmatprep.subr.mxu0 %v768
      %1590 = vmatpush1.msra.mxu0 %v767
      %1591 = vmatprep.subr.mxu0 %v776
      %1592 = vmatpush1.msra.mxu0 %v775
      %1593 = vmatprep.subr.mxu0 %v784
      %1594 = vmatpush1.msra.mxu0 %v783
      %1595 = vmatprep.subr.mxu0 %v792
      %1596 = vmatpush1.msra.mxu0 %v791
      %1597 = vmatprep.subr.mxu0 %v800
      %1598 = vmatpush1.msra.mxu0 %v799
      %1599 = vmatprep.subr.mxu0 %v808
      %1600 = vmatpush1.msra.mxu0 %v807
      %1601 = vmatprep.subr.mxu0 %v816
      %1602 = vmatpush1.msra.mxu0 %v815
      %1603 = vmatprep.subr.mxu0 %v824
      %1604 = vmatpush1.msra.mxu0 %v823
      %1605 = vmatprep.subr.mxu0 %v832
      %1606 = vmatpush1.msra.mxu0 %v831
      %1607 = vmatprep.subr.mxu0 %v840
      %1608 = vmatpush1.msra.mxu0 %v839
      %1609 = vmatprep.subr.mxu0 %v848
      %1610 = vmatpush1.msra.mxu0 %v847
      %1611 = vmatprep.subr.mxu0 %v856
      %1612 = vmatpush1.msra.mxu0 %v855
      %1613 = vmatprep.subr.mxu0 %v864
      %1614 = vmatpush1.msra.mxu0 %v863
      %1615 = vmatprep.subr.mxu0 %v872
      %1616 = vmatpush1.msra.mxu0 %v871
      %1617 = vmatprep.subr.mxu0 %v880
      %1618 = vmatpush1.msra.mxu0 %v879
      %1619 = vmatprep.subr.mxu0 %v888
      %1620 = vmatpush1.msra.mxu0 %v887
      %1621 = vmatprep.subr.mxu0 %v896
      %1622 = vmatpush1.msra.mxu0 %v895
      %1623 = vmatprep.subr.mxu0 %v904
      %1624 = vmatpush1.msra.mxu0 %v903
      %1625 = vmatprep.subr.mxu0 %v912
      %1626 = vmatpush1.msra.mxu0 %v911
      %1627 = vmatprep.subr.mxu0 %v920
      %1628 = vmatpush1.msra.mxu0 %v919
      %1629 = vmatprep.subr.mxu0 %v928
      %1630 = vmatpush1.msra.mxu0 %v927
      %1631 = vmatprep.subr.mxu0 %v936
      %1632 = vmatpush1.msra.mxu0 %v935
      %1633 = vmatprep.subr.mxu0 %v944
      %1634 = vmatpush1.msra.mxu0 %v943
      %1635 = vmatprep.subr.mxu0 %v952
      %1636 = vmatpush1.msra.mxu0 %v951
      %1637 = vmatprep.subr.mxu0 %v960
      %1638 = vmatpush1.msra.mxu0 %v959
      %1639 = vmatprep.subr.mxu0 %v968
      %1640 = vmatpush1.msra.mxu0 %v967
      %1641 = vmatprep.subr.mxu0 %v976
      %1642 = vmatpush1.msra.mxu0 %v975
      %1643 = vmatprep.mubr.f32.mxu0 %v696
      %1644 = vmatmul.mubr.f32.gmra.mrb[0].mxu0 %v695
      %v1645 = vpop.f32.mrb[0].mxu0
      %v1646 = vadd.f32 0.0, %v1645
      %v1647 = vpop.f32.mrb[0].mxu0
      %v1648 = vadd.f32 0.0, %v1647
      %1649 = vdwg.mxu0
      %v1650 = vld [vmem:[%s7] sm:$0xff]
      %v1651 = vld [vmem:[%s7 + $0x8] sm:$0xff]
      %v1652 = vld [vmem:[%s8] sm:$0xff]
      %v1653 = vld [vmem:[%s8 + $0x8] sm:$0xff]
      %1655 = vrot.lane.b32.xlu0 %v1080, 17
      %v1656 = vpop.permute.xlu0 %1655
      %1659 = vrot.lane.b32.xlu0 %v1078, 17
      %v1660 = vpop.permute.xlu0 %1659
      %vm1661 = vcmask 138240
      %v1662 = vsel %vm1661, %v1660, %v1656
      %v1665 = vsel %vm1661, %v1656, %v1660
      %v1667 = vlaneseq
      %v1668 = vshrl.u32 %v1667, 7
      %v1669 = vsub.s32 0, %v1668
      %v1670 = vrot.slane %v977, %v1669
      %v1671 = vlaneseq
      %v1672 = vshrl.u32 %v1671, 7
      %v1673 = vsub.s32 1, %v1672
      %v1674 = vrot.slane %v977, %v1673
      %v1677 = vmul.f32 %v1665, %v1670
      %v1678 = vmul.f32 %v1662, %v1674
      %1679 = vst [vmem:[#allocation2] sm:$0xff] %v1677
      %1680 = vst [vmem:[#allocation2 + $0x8] sm:$0xff] %v1678
      %1681 = vrot.lane.b32.xlu0 %v1080, 16
      %v1682 = vpop.permute.xlu0 %1681
      %1684 = vrot.lane.b32.xlu0 %v1078, 16
      %v1685 = vpop.permute.xlu0 %1684
      %vm1686 = vcmask 130048
      %v1687 = vsel %vm1686, %v1685, %v1682
      %v1690 = vsel %vm1686, %v1682, %v1685
      %v1692 = vlaneseq
      %v1693 = vshrl.u32 %v1692, 7
      %v1694 = vsub.s32 0, %v1693
      %v1695 = vrot.slane %v979, %v1694
      %v1696 = vlaneseq
      %v1697 = vshrl.u32 %v1696, 7
      %v1698 = vsub.s32 1, %v1697
      %v1699 = vrot.slane %v979, %v1698
      %v1702 = vmul.f32 %v1690, %v1695
      %v1703 = vmul.f32 %v1687, %v1699
      %1704 = vst [vmem:[#allocation2 + $0x10] sm:$0xff] %v1702
      %1705 = vst [vmem:[#allocation2 + $0x18] sm:$0xff] %v1703
      %1706 = vrot.lane.b32.xlu0 %v1080, 15
      %v1707 = vpop.permute.xlu0 %1706
      %1709 = vrot.lane.b32.xlu0 %v1078, 15
      %v1710 = vpop.permute.xlu0 %1709
      %vm1711 = vcmask 121856
      %v1712 = vsel %vm1711, %v1710, %v1707
      %v1715 = vsel %vm1711, %v1707, %v1710
      %v1717 = vlaneseq
      %v1718 = vshrl.u32 %v1717, 7
      %v1719 = vsub.s32 0, %v1718
      %v1720 = vrot.slane %v981, %v1719
      %v1721 = vlaneseq
      %v1722 = vshrl.u32 %v1721, 7
      %v1723 = vsub.s32 1, %v1722
      %v1724 = vrot.slane %v981, %v1723
      %v1727 = vmul.f32 %v1715, %v1720
      %v1728 = vmul.f32 %v1712, %v1724
      %1729 = vst [vmem:[#allocation2 + $0x20] sm:$0xff] %v1727
      %1730 = vst [vmem:[#allocation2 + $0x28] sm:$0xff] %v1728
      %1731 = vrot.lane.b32.xlu0 %v1080, 1
      %v1732 = vpop.permute.xlu0 %1731
      %1734 = vrot.lane.b32.xlu0 %v1078, 1
      %v1735 = vpop.permute.xlu0 %1734
      %vm1736 = vcmask 7168
      %v1737 = vsel %vm1736, %v1735, %v1732
      %v1740 = vsel %vm1736, %v1732, %v1735
      %v1742 = vlaneseq
      %v1743 = vshrl.u32 %v1742, 7
      %v1744 = vsub.s32 0, %v1743
      %v1745 = vrot.slane %v983, %v1744
      %v1746 = vlaneseq
      %v1747 = vshrl.u32 %v1746, 7
      %v1748 = vsub.s32 1, %v1747
      %v1749 = vrot.slane %v983, %v1748
      %v1752 = vmul.f32 %v1740, %v1745
      %v1753 = vmul.f32 %v1737, %v1749
      %1754 = vst [vmem:[#allocation2 + $0x30] sm:$0xff] %v1752
      %1755 = vst [vmem:[#allocation2 + $0x38] sm:$0xff] %v1753
      %1756 = vst [vmem:[#allocation2 + $0x40] sm:$0xff] %v1078
      %1757 = vst [vmem:[#allocation2 + $0x48] sm:$0xff] %v1080
      %1758 = vrot.lane.b32.xlu0 %v1078, 127
      %v1759 = vpop.permute.xlu0 %1758
      %1760 = vrot.lane.b32.xlu0 %v1080, 127
      %v1761 = vpop.permute.xlu0 %1760
      %vm1762 = vcmask 1039360
      %v1763 = vsel %vm1762, %v1759, %v1761
      %v1767 = vsel %vm1762, %v1761, %v1759
      %v1769 = vlaneseq
      %v1770 = vshrl.u32 %v1769, 7
      %v1771 = vsub.s32 0, %v1770
      %v1772 = vrot.slane %v985, %v1771
      %v1773 = vlaneseq
      %v1774 = vshrl.u32 %v1773, 7
      %v1775 = vsub.s32 1, %v1774
      %v1776 = vrot.slane %v985, %v1775
      %v1779 = vmul.f32 %v1763, %v1772
      %v1780 = vmul.f32 %v1767, %v1776
      %1781 = vst [vmem:[#allocation2 + $0x50] sm:$0xff] %v1779
      %1782 = vst [vmem:[#allocation2 + $0x58] sm:$0xff] %v1780
      %1783 = vrot.lane.b32.xlu0 %v1078, 113
      %v1784 = vpop.permute.xlu0 %1783
      %1785 = vrot.lane.b32.xlu0 %v1080, 113
      %v1786 = vpop.permute.xlu0 %1785
      %vm1787 = vcmask 924672
      %v1788 = vsel %vm1787, %v1784, %v1786
      %v1792 = vsel %vm1787, %v1786, %v1784
      %v1794 = vlaneseq
      %v1795 = vshrl.u32 %v1794, 7
      %v1796 = vsub.s32 0, %v1795
      %v1797 = vrot.slane %v987, %v1796
      %v1798 = vlaneseq
      %v1799 = vshrl.u32 %v1798, 7
      %v1800 = vsub.s32 1, %v1799
      %v1801 = vrot.slane %v987, %v1800
      %v1804 = vmul.f32 %v1788, %v1797
      %v1805 = vmul.f32 %v1792, %v1801
      %1806 = vst [vmem:[#allocation2 + $0x60] sm:$0xff] %v1804
      %1807 = vst [vmem:[#allocation2 + $0x68] sm:$0xff] %v1805
      %1808 = vrot.lane.b32.xlu0 %v1078, 112
      %v1809 = vpop.permute.xlu0 %1808
      %1810 = vrot.lane.b32.xlu0 %v1080, 112
      %v1811 = vpop.permute.xlu0 %1810
      %vm1812 = vcmask 916480
      %v1813 = vsel %vm1812, %v1809, %v1811
      %v1817 = vsel %vm1812, %v1811, %v1809
      %v1819 = vlaneseq
      %v1820 = vshrl.u32 %v1819, 7
      %v1821 = vsub.s32 0, %v1820
      %v1822 = vrot.slane %v989, %v1821
      %v1823 = vlaneseq
      %v1824 = vshrl.u32 %v1823, 7
      %v1825 = vsub.s32 1, %v1824
      %v1826 = vrot.slane %v989, %v1825
      %v1829 = vmul.f32 %v1813, %v1822
      %v1830 = vmul.f32 %v1817, %v1826
      %1831 = vst [vmem:[#allocation2 + $0x70] sm:$0xff] %v1829
      %1832 = vst [vmem:[#allocation2 + $0x78] sm:$0xff] %v1830
      %1833 = vrot.lane.b32.xlu0 %v1078, 111
      %v1834 = vpop.permute.xlu0 %1833
      %1835 = vrot.lane.b32.xlu0 %v1080, 111
      %v1836 = vpop.permute.xlu0 %1835
      %vm1837 = vcmask 908288
      %v1838 = vsel %vm1837, %v1834, %v1836
      %v1842 = vsel %vm1837, %v1836, %v1834
      %v1844 = vlaneseq
      %v1845 = vshrl.u32 %v1844, 7
      %v1846 = vsub.s32 0, %v1845
      %v1847 = vrot.slane %v991, %v1846
      %v1848 = vlaneseq
      %v1849 = vshrl.u32 %v1848, 7
      %v1850 = vsub.s32 1, %v1849
      %v1851 = vrot.slane %v991, %v1850
      %v1854 = vmul.f32 %v1838, %v1847
      %v1855 = vmul.f32 %v1842, %v1851
      %1856 = vst [vmem:[#allocation2 + $0x80] sm:$0xff] %v1854
      %1857 = vst [vmem:[#allocation2 + $0x88] sm:$0xff] %v1855
      %v1858 = vld [vmem:[#allocation2] sm:$0xff]
      %v1859 = vld [vmem:[#allocation2 + $0x8] sm:$0xff]
      %v1860 = vld [vmem:[#allocation2 + $0x10] sm:$0xff]
      %v1861 = vld [vmem:[#allocation2 + $0x18] sm:$0xff]
      %v1862 = vld [vmem:[#allocation2 + $0x20] sm:$0xff]
      %v1863 = vld [vmem:[#allocation2 + $0x28] sm:$0xff]
      %v1864 = vld [vmem:[#allocation2 + $0x30] sm:$0xff]
      %v1865 = vld [vmem:[#allocation2 + $0x38] sm:$0xff]
      %v1866 = vld [vmem:[#allocation2 + $0x40] sm:$0xff]
      %v1867 = vld [vmem:[#allocation2 + $0x48] sm:$0xff]
      %v1868 = vld [vmem:[#allocation2 + $0x50] sm:$0xff]
      %v1869 = vld [vmem:[#allocation2 + $0x58] sm:$0xff]
      %v1870 = vld [vmem:[#allocation2 + $0x60] sm:$0xff]
      %v1871 = vld [vmem:[#allocation2 + $0x68] sm:$0xff]
      %v1872 = vld [vmem:[#allocation2 + $0x70] sm:$0xff]
      %v1873 = vld [vmem:[#allocation2 + $0x78] sm:$0xff]
      %v1874 = vld [vmem:[#allocation2 + $0x80] sm:$0xff]
      %v1875 = vld [vmem:[#allocation2 + $0x88] sm:$0xff]
      %1877 = vset.pattern.permute.xlu0 0
      %1878 = vperm.xlu0 %1877, %v1652
      %v1879 = vpop.permute.xlu0 %1878
      %1882 = vset.pattern.permute.xlu0 0
      %1883 = vperm.xlu0 %1882, %v1653
      %v1884 = vpop.permute.xlu0 %1883
      %vm1886 = vcmask 588800
      %v1888 = vsel %vm1886, %v1650, 0
      %v1891 = vsel %vm1886, %v1651, 0
      %1893 = vmatprep.subr.mxu0 %v1859
      %1894 = vmatpush1.msra.mxu0 %v1858
      %1895 = vmatprep.subr.mxu0 %v1861
      %1896 = vmatpush1.msra.mxu0 %v1860
      %1897 = vmatprep.subr.mxu0 %v1863
      %1898 = vmatpush1.msra.mxu0 %v1862
      %1899 = vmatprep.subr.mxu0 %v1865
      %1900 = vmatpush1.msra.mxu0 %v1864
      %1901 = vmatprep.subr.mxu0 %v1867
      %1902 = vmatpush1.msra.mxu0 %v1866
      %1903 = vmatprep.subr.mxu0 %v1869
      %1904 = vmatpush1.msra.mxu0 %v1868
      %1905 = vmatprep.subr.mxu0 %v1871
      %1906 = vmatpush1.msra.mxu0 %v1870
      %1907 = vmatprep.subr.mxu0 %v1873
      %1908 = vmatpush1.msra.mxu0 %v1872
      %1909 = vmatprep.subr.mxu0 %v1875
      %1910 = vmatpush1.msra.mxu0 %v1874
      %1911 = vmatprep.subr.mxu0 0.0
      %1912 = vmatpush1.msra.mxu0 0.0
      %1913 = vmatprep.subr.mxu0 0.0
      %1914 = vmatpush1.msra.mxu0 0.0
      %1915 = vmatprep.subr.mxu0 0.0
      %1916 = vmatpush1.msra.mxu0 0.0
      %1917 = vmatprep.subr.mxu0 0.0
      %1918 = vmatpush1.msra.mxu0 0.0
      %1919 = vmatprep.subr.mxu0 0.0
      %1920 = vmatpush1.msra.mxu0 0.0
      %1921 = vmatprep.subr.mxu0 0.0
      %1922 = vmatpush1.msra.mxu0 0.0
      %1923 = vmatprep.subr.mxu0 0.0
      %1924 = vmatpush1.msra.mxu0 0.0
      %1925 = vmatprep.subr.mxu0 0.0
      %1926 = vmatpush1.msra.mxu0 0.0
      %1927 = vmatprep.subr.mxu0 0.0
      %1928 = vmatpush1.msra.mxu0 0.0
      %1929 = vmatprep.subr.mxu0 0.0
      %1930 = vmatpush1.msra.mxu0 0.0
      %1931 = vmatprep.subr.mxu0 0.0
      %1932 = vmatpush1.msra.mxu0 0.0
      %1933 = vmatprep.subr.mxu0 0.0
      %1934 = vmatpush1.msra.mxu0 0.0
      %1935 = vmatprep.subr.mxu0 0.0
      %1936 = vmatpush1.msra.mxu0 0.0
      %1937 = vmatprep.subr.mxu0 0.0
      %1938 = vmatpush1.msra.mxu0 0.0
      %1939 = vmatprep.subr.mxu0 0.0
      %1940 = vmatpush1.msra.mxu0 0.0
      %1941 = vmatprep.subr.mxu0 0.0
      %1942 = vmatpush1.msra.mxu0 0.0
      %1943 = vmatprep.subr.mxu0 0.0
      %1944 = vmatpush1.msra.mxu0 0.0
      %1945 = vmatprep.subr.mxu0 0.0
      %1946 = vmatpush1.msra.mxu0 0.0
      %1947 = vmatprep.subr.mxu0 0.0
      %1948 = vmatpush1.msra.mxu0 0.0
      %1949 = vmatprep.subr.mxu0 0.0
      %1950 = vmatpush1.msra.mxu0 0.0
      %1951 = vmatprep.subr.mxu0 0.0
      %1952 = vmatpush1.msra.mxu0 0.0
      %1953 = vmatprep.subr.mxu0 0.0
      %1954 = vmatpush1.msra.mxu0 0.0
      %1955 = vmatprep.subr.mxu0 0.0
      %1956 = vmatpush1.msra.mxu0 0.0
      %1957 = vmatprep.mubr.f32.mxu0 0.0
      %1958 = vmatmul.mubr.f32.gmra.mrb[0].mxu0 %v1888
      %v1959 = vpop.f32.mrb[0].mxu0
      %v1960 = vadd.f32 %v1879, %v1959
      %v1961 = vpop.f32.mrb[0].mxu0
      %v1962 = vadd.f32 %v1879, %v1961
      %1963 = vmatprep.mubr.f32.mxu0 0.0
      %1964 = vmatmul.mubr.f32.gmra.mrb[0].mxu0 %v1891
      %v1965 = vpop.f32.mrb[0].mxu0
      %v1966 = vadd.f32 %v1884, %v1965
      %v1967 = vpop.f32.mrb[0].mxu0
      %v1968 = vadd.f32 %v1884, %v1967
      %1969 = vdwg.mxu0
      %v1970 = vmul.f32 %v1960, %v695
      %v1971 = vmul.f32 %v1962, %v696
      %v1972 = vld [vmem:[%s11] sm:$0xff]
      %v1973 = vld [vmem:[%s12] sm:$0xff]
      %1975 = vrot.lane.b32.xlu0 %v1648, 33
      %v1976 = vpop.permute.xlu0 %1975
      %1985 = vrot.lane.b32.xlu0 %v1433, 33
      %v1986 = vpop.permute.xlu0 %1985
      %1987 = vrot.lane.b32.xlu0 %v1435, 33
      %v1988 = vpop.permute.xlu0 %1987
      %1989 = vrot.lane.b32.xlu0 %v1504, 33
      %v1990 = vpop.permute.xlu0 %1989
      %1991 = vrot.lane.b32.xlu0 %v1506, 33
      %v1992 = vpop.permute.xlu0 %1991
      %1993 = vrot.lane.b32.xlu0 %v1575, 33
      %v1994 = vpop.permute.xlu0 %1993
      %1995 = vrot.lane.b32.xlu0 %v1577, 33
      %v1996 = vpop.permute.xlu0 %1995
      %1997 = vrot.lane.b32.xlu0 %v1646, 33
      %v1998 = vpop.permute.xlu0 %1997
      %vm1999 = vcmask 269312
      %v2000 = vsel %vm1999, %v1986, %v1988
      %v2001 = vsel %vm1999, %v1988, %v1990
      %v2002 = vsel %vm1999, %v1990, %v1992
      %v2003 = vsel %vm1999, %v1992, %v1994
      %v2004 = vsel %vm1999, %v1994, %v1996
      %v2005 = vsel %vm1999, %v1996, %v1998
      %v2006 = vsel %vm1999, %v1998, %v1976
      %v2015 = vsel %vm1999, %v1976, %v1986
      %v2017 = vlaneseq
      %v2018 = vshrl.u32 %v2017, 7
      %v2019 = vsub.s32 0, %v2018
      %v2020 = vrot.slane %v992, %v2019
      %v2021 = vlaneseq
      %v2022 = vshrl.u32 %v2021, 7
      %v2023 = vsub.s32 1, %v2022
      %v2024 = vrot.slane %v992, %v2023
      %v2025 = vlaneseq
      %v2026 = vshrl.u32 %v2025, 7
      %v2027 = vsub.s32 2, %v2026
      %v2028 = vrot.slane %v992, %v2027
      %v2029 = vlaneseq
      %v2030 = vshrl.u32 %v2029, 7
      %v2031 = vsub.s32 3, %v2030
      %v2032 = vrot.slane %v992, %v2031
      %v2033 = vlaneseq
      %v2034 = vshrl.u32 %v2033, 7
      %v2035 = vsub.s32 4, %v2034
      %v2036 = vrot.slane %v992, %v2035
      %v2037 = vlaneseq
      %v2038 = vshrl.u32 %v2037, 7
      %v2039 = vsub.s32 5, %v2038
      %v2040 = vrot.slane %v992, %v2039
      %v2041 = vlaneseq
      %v2042 = vshrl.u32 %v2041, 7
      %v2043 = vsub.s32 6, %v2042
      %v2044 = vrot.slane %v992, %v2043
      %v2045 = vlaneseq
      %v2046 = vshrl.u32 %v2045, 7
      %v2047 = vsub.s32 7, %v2046
      %v2048 = vrot.slane %v992, %v2047
      %v2057 = vmul.f32 %v2015, %v2020
      %v2058 = vmul.f32 %v2000, %v2024
      %v2059 = vmul.f32 %v2001, %v2028
      %v2060 = vmul.f32 %v2002, %v2032
      %v2061 = vmul.f32 %v2003, %v2036
      %v2062 = vmul.f32 %v2004, %v2040
      %v2063 = vmul.f32 %v2005, %v2044
      %v2064 = vmul.f32 %v2006, %v2048
      %2065 = vst [vmem:[#allocation3] sm:$0xff] %v2057
      %2066 = vst [vmem:[#allocation3 + $0x8] sm:$0xff] %v2058
      %2067 = vst [vmem:[#allocation3 + $0x10] sm:$0xff] %v2059
      %2068 = vst [vmem:[#allocation3 + $0x18] sm:$0xff] %v2060
      %2069 = vst [vmem:[#allocation3 + $0x20] sm:$0xff] %v2061
      %2070 = vst [vmem:[#allocation3 + $0x28] sm:$0xff] %v2062
      %2071 = vst [vmem:[#allocation3 + $0x30] sm:$0xff] %v2063
      %2072 = vst [vmem:[#allocation3 + $0x38] sm:$0xff] %v2064
      %2073 = vrot.lane.b32.xlu0 %v1648, 32
      %v2074 = vpop.permute.xlu0 %2073
      %2076 = vrot.lane.b32.xlu0 %v1433, 32
      %v2077 = vpop.permute.xlu0 %2076
      %2078 = vrot.lane.b32.xlu0 %v1435, 32
      %v2079 = vpop.permute.xlu0 %2078
      %2080 = vrot.lane.b32.xlu0 %v1504, 32
      %v2081 = vpop.permute.xlu0 %2080
      %2082 = vrot.lane.b32.xlu0 %v1506, 32
      %v2083 = vpop.permute.xlu0 %2082
      %2084 = vrot.lane.b32.xlu0 %v1575, 32
      %v2085 = vpop.permute.xlu0 %2084
      %2086 = vrot.lane.b32.xlu0 %v1577, 32
      %v2087 = vpop.permute.xlu0 %2086
      %2088 = vrot.lane.b32.xlu0 %v1646, 32
      %v2089 = vpop.permute.xlu0 %2088
      %vm2090 = vcmask 261120
      %v2091 = vsel %vm2090, %v2077, %v2079
      %v2092 = vsel %vm2090, %v2079, %v2081
      %v2093 = vsel %vm2090, %v2081, %v2083
      %v2094 = vsel %vm2090, %v2083, %v2085
      %v2095 = vsel %vm2090, %v2085, %v2087
      %v2096 = vsel %vm2090, %v2087, %v2089
      %v2097 = vsel %vm2090, %v2089, %v2074
      %v2106 = vsel %vm2090, %v2074, %v2077
      %v2108 = vlaneseq
      %v2109 = vshrl.u32 %v2108, 7
      %v2110 = vsub.s32 0, %v2109
      %v2111 = vrot.slane %v994, %v2110
      %v2112 = vlaneseq
      %v2113 = vshrl.u32 %v2112, 7
      %v2114 = vsub.s32 1, %v2113
      %v2115 = vrot.slane %v994, %v2114
      %v2116 = vlaneseq
      %v2117 = vshrl.u32 %v2116, 7
      %v2118 = vsub.s32 2, %v2117
      %v2119 = vrot.slane %v994, %v2118
      %v2120 = vlaneseq
      %v2121 = vshrl.u32 %v2120, 7
      %v2122 = vsub.s32 3, %v2121
      %v2123 = vrot.slane %v994, %v2122
      %v2124 = vlaneseq
      %v2125 = vshrl.u32 %v2124, 7
      %v2126 = vsub.s32 4, %v2125
      %v2127 = vrot.slane %v994, %v2126
      %v2128 = vlaneseq
      %v2129 = vshrl.u32 %v2128, 7
      %v2130 = vsub.s32 5, %v2129
      %v2131 = vrot.slane %v994, %v2130
      %v2132 = vlaneseq
      %v2133 = vshrl.u32 %v2132, 7
      %v2134 = vsub.s32 6, %v2133
      %v2135 = vrot.slane %v994, %v2134
      %v2136 = vlaneseq
      %v2137 = vshrl.u32 %v2136, 7
      %v2138 = vsub.s32 7, %v2137
      %v2139 = vrot.slane %v994, %v2138
      %v2148 = vmul.f32 %v2106, %v2111
      %v2149 = vmul.f32 %v2091, %v2115
      %v2150 = vmul.f32 %v2092, %v2119
      %v2151 = vmul.f32 %v2093, %v2123
      %v2152 = vmul.f32 %v2094, %v2127
      %v2153 = vmul.f32 %v2095, %v2131
      %v2154 = vmul.f32 %v2096, %v2135
      %v2155 = vmul.f32 %v2097, %v2139
      %2156 = vst [vmem:[#allocation3 + $0x40] sm:$0xff] %v2148
      %2157 = vst [vmem:[#allocation3 + $0x48] sm:$0xff] %v2149
      %2158 = vst [vmem:[#allocation3 + $0x50] sm:$0xff] %v2150
      %2159 = vst [vmem:[#allocation3 + $0x58] sm:$0xff] %v2151
      %2160 = vst [vmem:[#allocation3 + $0x60] sm:$0xff] %v2152
      %2161 = vst [vmem:[#allocation3 + $0x68] sm:$0xff] %v2153
      %2162 = vst [vmem:[#allocation3 + $0x70] sm:$0xff] %v2154
      %2163 = vst [vmem:[#allocation3 + $0x78] sm:$0xff] %v2155
      %2164 = vrot.lane.b32.xlu0 %v1648, 31
      %v2165 = vpop.permute.xlu0 %2164
      %2167 = vrot.lane.b32.xlu0 %v1433, 31
      %v2168 = vpop.permute.xlu0 %2167
      %2169 = vrot.lane.b32.xlu0 %v1435, 31
      %v2170 = vpop.permute.xlu0 %2169
      %2171 = vrot.lane.b32.xlu0 %v1504, 31
      %v2172 = vpop.permute.xlu0 %2171
      %2173 = vrot.lane.b32.xlu0 %v1506, 31
      %v2174 = vpop.permute.xlu0 %2173
      %2175 = vrot.lane.b32.xlu0 %v1575, 31
      %v2176 = vpop.permute.xlu0 %2175
      %2177 = vrot.lane.b32.xlu0 %v1577, 31
      %v2178 = vpop.permute.xlu0 %2177
      %2179 = vrot.lane.b32.xlu0 %v1646, 31
      %v2180 = vpop.permute.xlu0 %2179
      %vm2181 = vcmask 252928
      %v2182 = vsel %vm2181, %v2168, %v2170
      %v2183 = vsel %vm2181, %v2170, %v2172
      %v2184 = vsel %vm2181, %v2172, %v2174
      %v2185 = vsel %vm2181, %v2174, %v2176
      %v2186 = vsel %vm2181, %v2176, %v2178
      %v2187 = vsel %vm2181, %v2178, %v2180
      %v2188 = vsel %vm2181, %v2180, %v2165
      %v2197 = vsel %vm2181, %v2165, %v2168
      %v2199 = vlaneseq
      %v2200 = vshrl.u32 %v2199, 7
      %v2201 = vsub.s32 0, %v2200
      %v2202 = vrot.slane %v996, %v2201
      %v2203 = vlaneseq
      %v2204 = vshrl.u32 %v2203, 7
      %v2205 = vsub.s32 1, %v2204
      %v2206 = vrot.slane %v996, %v2205
      %v2207 = vlaneseq
      %v2208 = vshrl.u32 %v2207, 7
      %v2209 = vsub.s32 2, %v2208
      %v2210 = vrot.slane %v996, %v2209
      %v2211 = vlaneseq
      %v2212 = vshrl.u32 %v2211, 7
      %v2213 = vsub.s32 3, %v2212
      %v2214 = vrot.slane %v996, %v2213
      %v2215 = vlaneseq
      %v2216 = vshrl.u32 %v2215, 7
      %v2217 = vsub.s32 4, %v2216
      %v2218 = vrot.slane %v996, %v2217
      %v2219 = vlaneseq
      %v2220 = vshrl.u32 %v2219, 7
      %v2221 = vsub.s32 5, %v2220
      %v2222 = vrot.slane %v996, %v2221
      %v2223 = vlaneseq
      %v2224 = vshrl.u32 %v2223, 7
      %v2225 = vsub.s32 6, %v2224
      %v2226 = vrot.slane %v996, %v2225
      %v2227 = vlaneseq
      %v2228 = vshrl.u32 %v2227, 7
      %v2229 = vsub.s32 7, %v2228
      %v2230 = vrot.slane %v996, %v2229
      %v2239 = vmul.f32 %v2197, %v2202
      %v2240 = vmul.f32 %v2182, %v2206
      %v2241 = vmul.f32 %v2183, %v2210
      %v2242 = vmul.f32 %v2184, %v2214
      %v2243 = vmul.f32 %v2185, %v2218
      %v2244 = vmul.f32 %v2186, %v2222
      %v2245 = vmul.f32 %v2187, %v2226
      %v2246 = vmul.f32 %v2188, %v2230
      %2247 = vst [vmem:[#allocation3 + $0x80] sm:$0xff] %v2239
      %2248 = vst [vmem:[#allocation3 + $0x88] sm:$0xff] %v2240
      %2249 = vst [vmem:[#allocation3 + $0x90] sm:$0xff] %v2241
      %2250 = vst [vmem:[#allocation3 + $0x98] sm:$0xff] %v2242
      %2251 = vst [vmem:[#allocation3 + $0xa0] sm:$0xff] %v2243
      %2252 = vst [vmem:[#allocation3 + $0xa8] sm:$0xff] %v2244
      %2253 = vst [vmem:[#allocation3 + $0xb0] sm:$0xff] %v2245
      %2254 = vst [vmem:[#allocation3 + $0xb8] sm:$0xff] %v2246
      %2255 = vrot.lane.b32.xlu0 %v1648, 1
      %v2256 = vpop.permute.xlu0 %2255
      %2258 = vrot.lane.b32.xlu0 %v1433, 1
      %v2259 = vpop.permute.xlu0 %2258
      %2260 = vrot.lane.b32.xlu0 %v1435, 1
      %v2261 = vpop.permute.xlu0 %2260
      %2262 = vrot.lane.b32.xlu0 %v1504, 1
      %v2263 = vpop.permute.xlu0 %2262
      %2264 = vrot.lane.b32.xlu0 %v1506, 1
      %v2265 = vpop.permute.xlu0 %2264
      %2266 = vrot.lane.b32.xlu0 %v1575, 1
      %v2267 = vpop.permute.xlu0 %2266
      %2268 = vrot.lane.b32.xlu0 %v1577, 1
      %v2269 = vpop.permute.xlu0 %2268
      %2270 = vrot.lane.b32.xlu0 %v1646, 1
      %v2271 = vpop.permute.xlu0 %2270
      %v2272 = vsel %vm1736, %v2259, %v2261
      %v2273 = vsel %vm1736, %v2261, %v2263
      %v2274 = vsel %vm1736, %v2263, %v2265
      %v2275 = vsel %vm1736, %v2265, %v2267
      %v2276 = vsel %vm1736, %v2267, %v2269
      %v2277 = vsel %vm1736, %v2269, %v2271
      %v2278 = vsel %vm1736, %v2271, %v2256
      %v2287 = vsel %vm1736, %v2256, %v2259
      %v2289 = vlaneseq
      %v2290 = vshrl.u32 %v2289, 7
      %v2291 = vsub.s32 0, %v2290
      %v2292 = vrot.slane %v998, %v2291
      %v2293 = vlaneseq
      %v2294 = vshrl.u32 %v2293, 7
      %v2295 = vsub.s32 1, %v2294
      %v2296 = vrot.slane %v998, %v2295
      %v2297 = vlaneseq
      %v2298 = vshrl.u32 %v2297, 7
      %v2299 = vsub.s32 2, %v2298
      %v2300 = vrot.slane %v998, %v2299
      %v2301 = vlaneseq
      %v2302 = vshrl.u32 %v2301, 7
      %v2303 = vsub.s32 3, %v2302
      %v2304 = vrot.slane %v998, %v2303
      %v2305 = vlaneseq
      %v2306 = vshrl.u32 %v2305, 7
      %v2307 = vsub.s32 4, %v2306
      %v2308 = vrot.slane %v998, %v2307
      %v2309 = vlaneseq
      %v2310 = vshrl.u32 %v2309, 7
      %v2311 = vsub.s32 5, %v2310
      %v2312 = vrot.slane %v998, %v2311
      %v2313 = vlaneseq
      %v2314 = vshrl.u32 %v2313, 7
      %v2315 = vsub.s32 6, %v2314
      %v2316 = vrot.slane %v998, %v2315
      %v2317 = vlaneseq
      %v2318 = vshrl.u32 %v2317, 7
      %v2319 = vsub.s32 7, %v2318
      %v2320 = vrot.slane %v998, %v2319
      %v2329 = vmul.f32 %v2287, %v2292
      %v2330 = vmul.f32 %v2272, %v2296
      %v2331 = vmul.f32 %v2273, %v2300
      %v2332 = vmul.f32 %v2274, %v2304
      %v2333 = vmul.f32 %v2275, %v2308
      %v2334 = vmul.f32 %v2276, %v2312
      %v2335 = vmul.f32 %v2277, %v2316
      %v2336 = vmul.f32 %v2278, %v2320
      %2337 = vst [vmem:[#allocation3 + $0xc0] sm:$0xff] %v2329
      %2338 = vst [vmem:[#allocation3 + $0xc8] sm:$0xff] %v2330
      %2339 = vst [vmem:[#allocation3 + $0xd0] sm:$0xff] %v2331
      %2340 = vst [vmem:[#allocation3 + $0xd8] sm:$0xff] %v2332
      %2341 = vst [vmem:[#allocation3 + $0xe0] sm:$0xff] %v2333
      %2342 = vst [vmem:[#allocation3 + $0xe8] sm:$0xff] %v2334
      %2343 = vst [vmem:[#allocation3 + $0xf0] sm:$0xff] %v2335
      %2344 = vst [vmem:[#allocation3 + $0xf8] sm:$0xff] %v2336
      %2345 = vst [vmem:[#allocation3 + $0x100] sm:$0xff] %v1433
      %2346 = vst [vmem:[#allocation3 + $0x108] sm:$0xff] %v1435
      %2347 = vst [vmem:[#allocation3 + $0x110] sm:$0xff] %v1504
      %2348 = vst [vmem:[#allocation3 + $0x118] sm:$0xff] %v1506
      %2349 = vst [vmem:[#allocation3 + $0x120] sm:$0xff] %v1575
      %2350 = vst [vmem:[#allocation3 + $0x128] sm:$0xff] %v1577
      %2351 = vst [vmem:[#allocation3 + $0x130] sm:$0xff] %v1646
      %2352 = vst [vmem:[#allocation3 + $0x138] sm:$0xff] %v1648
      %2353 = vrot.lane.b32.xlu0 %v1433, 127
      %v2354 = vpop.permute.xlu0 %2353
      %2355 = vrot.lane.b32.xlu0 %v1435, 127
      %v2356 = vpop.permute.xlu0 %2355
      %2357 = vrot.lane.b32.xlu0 %v1504, 127
      %v2358 = vpop.permute.xlu0 %2357
      %2359 = vrot.lane.b32.xlu0 %v1506, 127
      %v2360 = vpop.permute.xlu0 %2359
      %2361 = vrot.lane.b32.xlu0 %v1575, 127
      %v2362 = vpop.permute.xlu0 %2361
      %2363 = vrot.lane.b32.xlu0 %v1577, 127
      %v2364 = vpop.permute.xlu0 %2363
      %2365 = vrot.lane.b32.xlu0 %v1646, 127
      %v2366 = vpop.permute.xlu0 %2365
      %2367 = vrot.lane.b32.xlu0 %v1648, 127
      %v2368 = vpop.permute.xlu0 %2367
      %v2369 = vsel %vm1762, %v2354, %v2356
      %v2370 = vsel %vm1762, %v2356, %v2358
      %v2371 = vsel %vm1762, %v2358, %v2360
      %v2372 = vsel %vm1762, %v2360, %v2362
      %v2373 = vsel %vm1762, %v2362, %v2364
      %v2374 = vsel %vm1762, %v2364, %v2366
      %v2375 = vsel %vm1762, %v2366, %v2368
      %v2385 = vsel %vm1762, %v2368, %v2354
      %v2387 = vlaneseq
      %v2388 = vshrl.u32 %v2387, 7
      %v2389 = vsub.s32 0, %v2388
      %v2390 = vrot.slane %v1000, %v2389
      %v2391 = vlaneseq
      %v2392 = vshrl.u32 %v2391, 7
      %v2393 = vsub.s32 1, %v2392
      %v2394 = vrot.slane %v1000, %v2393
      %v2395 = vlaneseq
      %v2396 = vshrl.u32 %v2395, 7
      %v2397 = vsub.s32 2, %v2396
      %v2398 = vrot.slane %v1000, %v2397
      %v2399 = vlaneseq
      %v2400 = vshrl.u32 %v2399, 7
      %v2401 = vsub.s32 3, %v2400
      %v2402 = vrot.slane %v1000, %v2401
      %v2403 = vlaneseq
      %v2404 = vshrl.u32 %v2403, 7
      %v2405 = vsub.s32 4, %v2404
      %v2406 = vrot.slane %v1000, %v2405
      %v2407 = vlaneseq
      %v2408 = vshrl.u32 %v2407, 7
      %v2409 = vsub.s32 5, %v2408
      %v2410 = vrot.slane %v1000, %v2409
      %v2411 = vlaneseq
      %v2412 = vshrl.u32 %v2411, 7
      %v2413 = vsub.s32 6, %v2412
      %v2414 = vrot.slane %v1000, %v2413
      %v2415 = vlaneseq
      %v2416 = vshrl.u32 %v2415, 7
      %v2417 = vsub.s32 7, %v2416
      %v2418 = vrot.slane %v1000, %v2417
      %v2427 = vmul.f32 %v2369, %v2390
      %v2428 = vmul.f32 %v2370, %v2394
      %v2429 = vmul.f32 %v2371, %v2398
      %v2430 = vmul.f32 %v2372, %v2402
      %v2431 = vmul.f32 %v2373, %v2406
      %v2432 = vmul.f32 %v2374, %v2410
      %v2433 = vmul.f32 %v2375, %v2414
      %v2434 = vmul.f32 %v2385, %v2418
      %2435 = vst [vmem:[#allocation3 + $0x140] sm:$0xff] %v2427
      %2436 = vst [vmem:[#allocation3 + $0x148] sm:$0xff] %v2428
      %2437 = vst [vmem:[#allocation3 + $0x150] sm:$0xff] %v2429
      %2438 = vst [vmem:[#allocation3 + $0x158] sm:$0xff] %v2430
      %2439 = vst [vmem:[#allocation3 + $0x160] sm:$0xff] %v2431
      %2440 = vst [vmem:[#allocation3 + $0x168] sm:$0xff] %v2432
      %2441 = vst [vmem:[#allocation3 + $0x170] sm:$0xff] %v2433
      %2442 = vst [vmem:[#allocation3 + $0x178] sm:$0xff] %v2434
      %2443 = vrot.lane.b32.xlu0 %v1433, 97
      %v2444 = vpop.permute.xlu0 %2443
      %2445 = vrot.lane.b32.xlu0 %v1435, 97
      %v2446 = vpop.permute.xlu0 %2445
      %2447 = vrot.lane.b32.xlu0 %v1504, 97
      %v2448 = vpop.permute.xlu0 %2447
      %2449 = vrot.lane.b32.xlu0 %v1506, 97
      %v2450 = vpop.permute.xlu0 %2449
      %2451 = vrot.lane.b32.xlu0 %v1575, 97
      %v2452 = vpop.permute.xlu0 %2451
      %2453 = vrot.lane.b32.xlu0 %v1577, 97
      %v2454 = vpop.permute.xlu0 %2453
      %2455 = vrot.lane.b32.xlu0 %v1646, 97
      %v2456 = vpop.permute.xlu0 %2455
      %2457 = vrot.lane.b32.xlu0 %v1648, 97
      %v2458 = vpop.permute.xlu0 %2457
      %vm2459 = vcmask 793600
      %v2460 = vsel %vm2459, %v2444, %v2446
      %v2461 = vsel %vm2459, %v2446, %v2448
      %v2462 = vsel %vm2459, %v2448, %v2450
      %v2463 = vsel %vm2459, %v2450, %v2452
      %v2464 = vsel %vm2459, %v2452, %v2454
      %v2465 = vsel %vm2459, %v2454, %v2456
      %v2466 = vsel %vm2459, %v2456, %v2458
      %v2476 = vsel %vm2459, %v2458, %v2444
      %v2478 = vlaneseq
      %v2479 = vshrl.u32 %v2478, 7
      %v2480 = vsub.s32 0, %v2479
      %v2481 = vrot.slane %v1002, %v2480
      %v2482 = vlaneseq
      %v2483 = vshrl.u32 %v2482, 7
      %v2484 = vsub.s32 1, %v2483
      %v2485 = vrot.slane %v1002, %v2484
      %v2486 = vlaneseq
      %v2487 = vshrl.u32 %v2486, 7
      %v2488 = vsub.s32 2, %v2487
      %v2489 = vrot.slane %v1002, %v2488
      %v2490 = vlaneseq
      %v2491 = vshrl.u32 %v2490, 7
      %v2492 = vsub.s32 3, %v2491
      %v2493 = vrot.slane %v1002, %v2492
      %v2494 = vlaneseq
      %v2495 = vshrl.u32 %v2494, 7
      %v2496 = vsub.s32 4, %v2495
      %v2497 = vrot.slane %v1002, %v2496
      %v2498 = vlaneseq
      %v2499 = vshrl.u32 %v2498, 7
      %v2500 = vsub.s32 5, %v2499
      %v2501 = vrot.slane %v1002, %v2500
      %v2502 = vlaneseq
      %v2503 = vshrl.u32 %v2502, 7
      %v2504 = vsub.s32 6, %v2503
      %v2505 = vrot.slane %v1002, %v2504
      %v2506 = vlaneseq
      %v2507 = vshrl.u32 %v2506, 7
      %v2508 = vsub.s32 7, %v2507
      %v2509 = vrot.slane %v1002, %v2508
      %v2518 = vmul.f32 %v2460, %v2481
      %v2519 = vmul.f32 %v2461, %v2485
      %v2520 = vmul.f32 %v2462, %v2489
      %v2521 = vmul.f32 %v2463, %v2493
      %v2522 = vmul.f32 %v2464, %v2497
      %v2523 = vmul.f32 %v2465, %v2501
      %v2524 = vmul.f32 %v2466, %v2505
      %v2525 = vmul.f32 %v2476, %v2509
      %2526 = vst [vmem:[#allocation3 + $0x180] sm:$0xff] %v2518
      %2527 = vst [vmem:[#allocation3 + $0x188] sm:$0xff] %v2519
      %2528 = vst [vmem:[#allocation3 + $0x190] sm:$0xff] %v2520
      %2529 = vst [vmem:[#allocation3 + $0x198] sm:$0xff] %v2521
      %2530 = vst [vmem:[#allocation3 + $0x1a0] sm:$0xff] %v2522
      %2531 = vst [vmem:[#allocation3 + $0x1a8] sm:$0xff] %v2523
      %2532 = vst [vmem:[#allocation3 + $0x1b0] sm:$0xff] %v2524
      %2533 = vst [vmem:[#allocation3 + $0x1b8] sm:$0xff] %v2525
      %2534 = vrot.lane.b32.xlu0 %v1433, 96
      %v2535 = vpop.permute.xlu0 %2534
      %2536 = vrot.lane.b32.xlu0 %v1435, 96
      %v2537 = vpop.permute.xlu0 %2536
      %2538 = vrot.lane.b32.xlu0 %v1504, 96
      %v2539 = vpop.permute.xlu0 %2538
      %2540 = vrot.lane.b32.xlu0 %v1506, 96
      %v2541 = vpop.permute.xlu0 %2540
      %2542 = vrot.lane.b32.xlu0 %v1575, 96
      %v2543 = vpop.permute.xlu0 %2542
      %2544 = vrot.lane.b32.xlu0 %v1577, 96
      %v2545 = vpop.permute.xlu0 %2544
      %2546 = vrot.lane.b32.xlu0 %v1646, 96
      %v2547 = vpop.permute.xlu0 %2546
      %2548 = vrot.lane.b32.xlu0 %v1648, 96
      %v2549 = vpop.permute.xlu0 %2548
      %vm2550 = vcmask 785408
      %v2551 = vsel %vm2550, %v2535, %v2537
      %v2552 = vsel %vm2550, %v2537, %v2539
      %v2553 = vsel %vm2550, %v2539, %v2541
      %v2554 = vsel %vm2550, %v2541, %v2543
      %v2555 = vsel %vm2550, %v2543, %v2545
      %v2556 = vsel %vm2550, %v2545, %v2547
      %v2557 = vsel %vm2550, %v2547, %v2549
      %v2567 = vsel %vm2550, %v2549, %v2535
      %v2569 = vlaneseq
      %v2570 = vshrl.u32 %v2569, 7
      %v2571 = vsub.s32 0, %v2570
      %v2572 = vrot.slane %v1004, %v2571
      %v2573 = vlaneseq
      %v2574 = vshrl.u32 %v2573, 7
      %v2575 = vsub.s32 1, %v2574
      %v2576 = vrot.slane %v1004, %v2575
      %v2577 = vlaneseq
      %v2578 = vshrl.u32 %v2577, 7
      %v2579 = vsub.s32 2, %v2578
      %v2580 = vrot.slane %v1004, %v2579
      %v2581 = vlaneseq
      %v2582 = vshrl.u32 %v2581, 7
      %v2583 = vsub.s32 3, %v2582
      %v2584 = vrot.slane %v1004, %v2583
      %v2585 = vlaneseq
      %v2586 = vshrl.u32 %v2585, 7
      %v2587 = vsub.s32 4, %v2586
      %v2588 = vrot.slane %v1004, %v2587
      %v2589 = vlaneseq
      %v2590 = vshrl.u32 %v2589, 7
      %v2591 = vsub.s32 5, %v2590
      %v2592 = vrot.slane %v1004, %v2591
      %v2593 = vlaneseq
      %v2594 = vshrl.u32 %v2593, 7
      %v2595 = vsub.s32 6, %v2594
      %v2596 = vrot.slane %v1004, %v2595
      %v2597 = vlaneseq
      %v2598 = vshrl.u32 %v2597, 7
      %v2599 = vsub.s32 7, %v2598
      %v2600 = vrot.slane %v1004, %v2599
      %v2609 = vmul.f32 %v2551, %v2572
      %v2610 = vmul.f32 %v2552, %v2576
      %v2611 = vmul.f32 %v2553, %v2580
      %v2612 = vmul.f32 %v2554, %v2584
      %v2613 = vmul.f32 %v2555, %v2588
      %v2614 = vmul.f32 %v2556, %v2592
      %v2615 = vmul.f32 %v2557, %v2596
      %v2616 = vmul.f32 %v2567, %v2600
      %2617 = vst [vmem:[#allocation3 + $0x1c0] sm:$0xff] %v2609
      %2618 = vst [vmem:[#allocation3 + $0x1c8] sm:$0xff] %v2610
      %2619 = vst [vmem:[#allocation3 + $0x1d0] sm:$0xff] %v2611
      %2620 = vst [vmem:[#allocation3 + $0x1d8] sm:$0xff] %v2612
      %2621 = vst [vmem:[#allocation3 + $0x1e0] sm:$0xff] %v2613
      %2622 = vst [vmem:[#allocation3 + $0x1e8] sm:$0xff] %v2614
      %2623 = vst [vmem:[#allocation3 + $0x1f0] sm:$0xff] %v2615
      %2624 = vst [vmem:[#allocation3 + $0x1f8] sm:$0xff] %v2616
      %2625 = vrot.lane.b32.xlu0 %v1433, 95
      %v2626 = vpop.permute.xlu0 %2625
      %2627 = vrot.lane.b32.xlu0 %v1435, 95
      %v2628 = vpop.permute.xlu0 %2627
      %2629 = vrot.lane.b32.xlu0 %v1504, 95
      %v2630 = vpop.permute.xlu0 %2629
      %2631 = vrot.lane.b32.xlu0 %v1506, 95
      %v2632 = vpop.permute.xlu0 %2631
      %2633 = vrot.lane.b32.xlu0 %v1575, 95
      %v2634 = vpop.permute.xlu0 %2633
      %2635 = vrot.lane.b32.xlu0 %v1577, 95
      %v2636 = vpop.permute.xlu0 %2635
      %2637 = vrot.lane.b32.xlu0 %v1646, 95
      %v2638 = vpop.permute.xlu0 %2637
      %2639 = vrot.lane.b32.xlu0 %v1648, 95
      %v2640 = vpop.permute.xlu0 %2639
      %vm2641 = vcmask 777216
      %v2642 = vsel %vm2641, %v2626, %v2628
      %v2643 = vsel %vm2641, %v2628, %v2630
      %v2644 = vsel %vm2641, %v2630, %v2632
      %v2645 = vsel %vm2641, %v2632, %v2634
      %v2646 = vsel %vm2641, %v2634, %v2636
      %v2647 = vsel %vm2641, %v2636, %v2638
      %v2648 = vsel %vm2641, %v2638, %v2640
      %v2658 = vsel %vm2641, %v2640, %v2626
      %v2660 = vlaneseq
      %v2661 = vshrl.u32 %v2660, 7
      %v2662 = vsub.s32 0, %v2661
      %v2663 = vrot.slane %v1006, %v2662
      %v2664 = vlaneseq
      %v2665 = vshrl.u32 %v2664, 7
      %v2666 = vsub.s32 1, %v2665
      %v2667 = vrot.slane %v1006, %v2666
      %v2668 = vlaneseq
      %v2669 = vshrl.u32 %v2668, 7
      %v2670 = vsub.s32 2, %v2669
      %v2671 = vrot.slane %v1006, %v2670
      %v2672 = vlaneseq
      %v2673 = vshrl.u32 %v2672, 7
      %v2674 = vsub.s32 3, %v2673
      %v2675 = vrot.slane %v1006, %v2674
      %v2676 = vlaneseq
      %v2677 = vshrl.u32 %v2676, 7
      %v2678 = vsub.s32 4, %v2677
      %v2679 = vrot.slane %v1006, %v2678
      %v2680 = vlaneseq
      %v2681 = vshrl.u32 %v2680, 7
      %v2682 = vsub.s32 5, %v2681
      %v2683 = vrot.slane %v1006, %v2682
      %v2684 = vlaneseq
      %v2685 = vshrl.u32 %v2684, 7
      %v2686 = vsub.s32 6, %v2685
      %v2687 = vrot.slane %v1006, %v2686
      %v2688 = vlaneseq
      %v2689 = vshrl.u32 %v2688, 7
      %v2690 = vsub.s32 7, %v2689
      %v2691 = vrot.slane %v1006, %v2690
      %v2700 = vmul.f32 %v2642, %v2663
      %v2701 = vmul.f32 %v2643, %v2667
      %v2702 = vmul.f32 %v2644, %v2671
      %v2703 = vmul.f32 %v2645, %v2675
      %v2704 = vmul.f32 %v2646, %v2679
      %v2705 = vmul.f32 %v2647, %v2683
      %v2706 = vmul.f32 %v2648, %v2687
      %v2707 = vmul.f32 %v2658, %v2691
      %2708 = vst [vmem:[#allocation3 + $0x200] sm:$0xff] %v2700
      %2709 = vst [vmem:[#allocation3 + $0x208] sm:$0xff] %v2701
      %2710 = vst [vmem:[#allocation3 + $0x210] sm:$0xff] %v2702
      %2711 = vst [vmem:[#allocation3 + $0x218] sm:$0xff] %v2703
      %2712 = vst [vmem:[#allocation3 + $0x220] sm:$0xff] %v2704
      %2713 = vst [vmem:[#allocation3 + $0x228] sm:$0xff] %v2705
      %2714 = vst [vmem:[#allocation3 + $0x230] sm:$0xff] %v2706
      %2715 = vst [vmem:[#allocation3 + $0x238] sm:$0xff] %v2707
      %v2716 = vld [vmem:[#allocation3] sm:$0xff]
      %v2717 = vld [vmem:[#allocation3 + $0x8] sm:$0xff]
      %v2718 = vld [vmem:[#allocation3 + $0x10] sm:$0xff]
      %v2719 = vld [vmem:[#allocation3 + $0x18] sm:$0xff]
      %v2720 = vld [vmem:[#allocation3 + $0x20] sm:$0xff]
      %v2721 = vld [vmem:[#allocation3 + $0x28] sm:$0xff]
      %v2722 = vld [vmem:[#allocation3 + $0x30] sm:$0xff]
      %v2723 = vld [vmem:[#allocation3 + $0x38] sm:$0xff]
      %v2724 = vld [vmem:[#allocation3 + $0x40] sm:$0xff]
      %v2725 = vld [vmem:[#allocation3 + $0x48] sm:$0xff]
      %v2726 = vld [vmem:[#allocation3 + $0x50] sm:$0xff]
      %v2727 = vld [vmem:[#allocation3 + $0x58] sm:$0xff]
      %v2728 = vld [vmem:[#allocation3 + $0x60] sm:$0xff]
      %v2729 = vld [vmem:[#allocation3 + $0x68] sm:$0xff]
      %v2730 = vld [vmem:[#allocation3 + $0x70] sm:$0xff]
      %v2731 = vld [vmem:[#allocation3 + $0x78] sm:$0xff]
      %v2732 = vld [vmem:[#allocation3 + $0x80] sm:$0xff]
      %v2733 = vld [vmem:[#allocation3 + $0x88] sm:$0xff]
      %v2734 = vld [vmem:[#allocation3 + $0x90] sm:$0xff]
      %v2735 = vld [vmem:[#allocation3 + $0x98] sm:$0xff]
      %v2736 = vld [vmem:[#allocation3 + $0xa0] sm:$0xff]
      %v2737 = vld [vmem:[#allocation3 + $0xa8] sm:$0xff]
      %v2738 = vld [vmem:[#allocation3 + $0xb0] sm:$0xff]
      %v2739 = vld [vmem:[#allocation3 + $0xb8] sm:$0xff]
      %v2740 = vld [vmem:[#allocation3 + $0xc0] sm:$0xff]
      %v2741 = vld [vmem:[#allocation3 + $0xc8] sm:$0xff]
      %v2742 = vld [vmem:[#allocation3 + $0xd0] sm:$0xff]
      %v2743 = vld [vmem:[#allocation3 + $0xd8] sm:$0xff]
      %v2744 = vld [vmem:[#allocation3 + $0xe0] sm:$0xff]
      %v2745 = vld [vmem:[#allocation3 + $0xe8] sm:$0xff]
      %v2746 = vld [vmem:[#allocation3 + $0xf0] sm:$0xff]
      %v2747 = vld [vmem:[#allocation3 + $0xf8] sm:$0xff]
      %v2748 = vld [vmem:[#allocation3 + $0x100] sm:$0xff]
      %v2749 = vld [vmem:[#allocation3 + $0x108] sm:$0xff]
      %v2750 = vld [vmem:[#allocation3 + $0x110] sm:$0xff]
      %v2751 = vld [vmem:[#allocation3 + $0x118] sm:$0xff]
      %v2752 = vld [vmem:[#allocation3 + $0x120] sm:$0xff]
      %v2753 = vld [vmem:[#allocation3 + $0x128] sm:$0xff]
      %v2754 = vld [vmem:[#allocation3 + $0x130] sm:$0xff]
      %v2755 = vld [vmem:[#allocation3 + $0x138] sm:$0xff]
      %v2756 = vld [vmem:[#allocation3 + $0x140] sm:$0xff]
      %v2757 = vld [vmem:[#allocation3 + $0x148] sm:$0xff]
      %v2758 = vld [vmem:[#allocation3 + $0x150] sm:$0xff]
      %v2759 = vld [vmem:[#allocation3 + $0x158] sm:$0xff]
      %v2760 = vld [vmem:[#allocation3 + $0x160] sm:$0xff]
      %v2761 = vld [vmem:[#allocation3 + $0x168] sm:$0xff]
      %v2762 = vld [vmem:[#allocation3 + $0x170] sm:$0xff]
      %v2763 = vld [vmem:[#allocation3 + $0x178] sm:$0xff]
      %v2764 = vld [vmem:[#allocation3 + $0x180] sm:$0xff]
      %v2765 = vld [vmem:[#allocation3 + $0x188] sm:$0xff]
      %v2766 = vld [vmem:[#allocation3 + $0x190] sm:$0xff]
      %v2767 = vld [vmem:[#allocation3 + $0x198] sm:$0xff]
      %v2768 = vld [vmem:[#allocation3 + $0x1a0] sm:$0xff]
      %v2769 = vld [vmem:[#allocation3 + $0x1a8] sm:$0xff]
      %v2770 = vld [vmem:[#allocation3 + $0x1b0] sm:$0xff]
      %v2771 = vld [vmem:[#allocation3 + $0x1b8] sm:$0xff]
      %v2772 = vld [vmem:[#allocation3 + $0x1c0] sm:$0xff]
      %v2773 = vld [vmem:[#allocation3 + $0x1c8] sm:$0xff]
      %v2774 = vld [vmem:[#allocation3 + $0x1d0] sm:$0xff]
      %v2775 = vld [vmem:[#allocation3 + $0x1d8] sm:$0xff]
      %v2776 = vld [vmem:[#allocation3 + $0x1e0] sm:$0xff]
      %v2777 = vld [vmem:[#allocation3 + $0x1e8] sm:$0xff]
      %v2778 = vld [vmem:[#allocation3 + $0x1f0] sm:$0xff]
      %v2779 = vld [vmem:[#allocation3 + $0x1f8] sm:$0xff]
      %v2780 = vld [vmem:[#allocation3 + $0x200] sm:$0xff]
      %v2781 = vld [vmem:[#allocation3 + $0x208] sm:$0xff]
      %v2782 = vld [vmem:[#allocation3 + $0x210] sm:$0xff]
      %v2783 = vld [vmem:[#allocation3 + $0x218] sm:$0xff]
      %v2784 = vld [vmem:[#allocation3 + $0x220] sm:$0xff]
      %v2785 = vld [vmem:[#allocation3 + $0x228] sm:$0xff]
      %v2786 = vld [vmem:[#allocation3 + $0x230] sm:$0xff]
      %v2787 = vld [vmem:[#allocation3 + $0x238] sm:$0xff]
      %2789 = vset.pattern.permute.xlu0 0
      %2790 = vperm.xlu0 %2789, %v1973
      %v2791 = vpop.permute.xlu0 %2790
      %v2794 = vsel %vm1886, %v1972, 0
      %2796 = vmatprep.subr.mxu0 %v2717
      %2797 = vmatpush1.msra.mxu0 %v2716
      %2798 = vmatprep.subr.mxu0 %v2725
      %2799 = vmatpush1.msra.mxu0 %v2724
      %2800 = vmatprep.subr.mxu0 %v2733
      %2801 = vmatpush1.msra.mxu0 %v2732
      %2802 = vmatprep.subr.mxu0 %v2741
      %2803 = vmatpush1.msra.mxu0 %v2740
      %2804 = vmatprep.subr.mxu0 %v2749
      %2805 = vmatpush1.msra.mxu0 %v2748
      %2806 = vmatprep.subr.mxu0 %v2757
      %2807 = vmatpush1.msra.mxu0 %v2756
      %2808 = vmatprep.subr.mxu0 %v2765
      %2809 = vmatpush1.msra.mxu0 %v2764
      %2810 = vmatprep.subr.mxu0 %v2773
      %2811 = vmatpush1.msra.mxu0 %v2772
      %2812 = vmatprep.subr.mxu0 %v2781
      %2813 = vmatpush1.msra.mxu0 %v2780
      %2814 = vmatprep.subr.mxu0 0.0
      %2815 = vmatpush1.msra.mxu0 0.0
      %2816 = vmatprep.subr.mxu0 0.0
      %2817 = vmatpush1.msra.mxu0 0.0
      %2818 = vmatprep.subr.mxu0 0.0
      %2819 = vmatpush1.msra.mxu0 0.0
      %2820 = vmatprep.subr.mxu0 0.0
      %2821 = vmatpush1.msra.mxu0 0.0
      %2822 = vmatprep.subr.mxu0 0.0
      %2823 = vmatpush1.msra.mxu0 0.0
      %2824 = vmatprep.subr.mxu0 0.0
      %2825 = vmatpush1.msra.mxu0 0.0
      %2826 = vmatprep.subr.mxu0 0.0
      %2827 = vmatpush1.msra.mxu0 0.0
      %2828 = vmatprep.subr.mxu0 0.0
      %2829 = vmatpush1.msra.mxu0 0.0
      %2830 = vmatprep.subr.mxu0 0.0
      %2831 = vmatpush1.msra.mxu0 0.0
      %2832 = vmatprep.subr.mxu0 0.0
      %2833 = vmatpush1.msra.mxu0 0.0
      %2834 = vmatprep.subr.mxu0 0.0
      %2835 = vmatpush1.msra.mxu0 0.0
      %2836 = vmatprep.subr.mxu0 0.0
      %2837 = vmatpush1.msra.mxu0 0.0
      %2838 = vmatprep.subr.mxu0 0.0
      %2839 = vmatpush1.msra.mxu0 0.0
      %2840 = vmatprep.subr.mxu0 0.0
      %2841 = vmatpush1.msra.mxu0 0.0
      %2842 = vmatprep.subr.mxu0 0.0
      %2843 = vmatpush1.msra.mxu0 0.0
      %2844 = vmatprep.subr.mxu0 0.0
      %2845 = vmatpush1.msra.mxu0 0.0
      %2846 = vmatprep.subr.mxu0 0.0
      %2847 = vmatpush1.msra.mxu0 0.0
      %2848 = vmatprep.subr.mxu0 0.0
      %2849 = vmatpush1.msra.mxu0 0.0
      %2850 = vmatprep.subr.mxu0 0.0
      %2851 = vmatpush1.msra.mxu0 0.0
      %2852 = vmatprep.subr.mxu0 0.0
      %2853 = vmatpush1.msra.mxu0 0.0
      %2854 = vmatprep.subr.mxu0 0.0
      %2855 = vmatpush1.msra.mxu0 0.0
      %2856 = vmatprep.subr.mxu0 0.0
      %2857 = vmatpush1.msra.mxu0 0.0
      %2858 = vmatprep.subr.mxu0 0.0
      %2859 = vmatpush1.msra.mxu0 0.0
      %2860 = vmatprep.mubr.f32.mxu0 0.0
      %2861 = vmatmul.mubr.f32.gmra.mrb[0].mxu0 %v2794
      %v2862 = vpop.f32.mrb[0].mxu0
      %v2863 = vadd.f32 %v2791, %v2862
      %v2864 = vpop.f32.mrb[0].mxu0
      %v2865 = vadd.f32 %v2791, %v2864
      %2866 = vdwg.mxu0
      %2867 = vmatprep.subr.mxu0 %v2719
      %2868 = vmatpush1.msra.mxu0 %v2718
      %2869 = vmatprep.subr.mxu0 %v2727
      %2870 = vmatpush1.msra.mxu0 %v2726
      %2871 = vmatprep.subr.mxu0 %v2735
      %2872 = vmatpush1.msra.mxu0 %v2734
      %2873 = vmatprep.subr.mxu0 %v2743
      %2874 = vmatpush1.msra.mxu0 %v2742
      %2875 = vmatprep.subr.mxu0 %v2751
      %2876 = vmatpush1.msra.mxu0 %v2750
      %2877 = vmatprep.subr.mxu0 %v2759
      %2878 = vmatpush1.msra.mxu0 %v2758
      %2879 = vmatprep.subr.mxu0 %v2767
      %2880 = vmatpush1.msra.mxu0 %v2766
      %2881 = vmatprep.subr.mxu0 %v2775
      %2882 = vmatpush1.msra.mxu0 %v2774
      %2883 = vmatprep.subr.mxu0 %v2783
      %2884 = vmatpush1.msra.mxu0 %v2782
      %2885 = vmatprep.subr.mxu0 0.0
      %2886 = vmatpush1.msra.mxu0 0.0
      %2887 = vmatprep.subr.mxu0 0.0
      %2888 = vmatpush1.msra.mxu0 0.0
      %2889 = vmatprep.subr.mxu0 0.0
      %2890 = vmatpush1.msra.mxu0 0.0
      %2891 = vmatprep.subr.mxu0 0.0
      %2892 = vmatpush1.msra.mxu0 0.0
      %2893 = vmatprep.subr.mxu0 0.0
      %2894 = vmatpush1.msra.mxu0 0.0
      %2895 = vmatprep.subr.mxu0 0.0
      %2896 = vmatpush1.msra.mxu0 0.0
      %2897 = vmatprep.subr.mxu0 0.0
      %2898 = vmatpush1.msra.mxu0 0.0
      %2899 = vmatprep.subr.mxu0 0.0
      %2900 = vmatpush1.msra.mxu0 0.0
      %2901 = vmatprep.subr.mxu0 0.0
      %2902 = vmatpush1.msra.mxu0 0.0
      %2903 = vmatprep.subr.mxu0 0.0
      %2904 = vmatpush1.msra.mxu0 0.0
      %2905 = vmatprep.subr.mxu0 0.0
      %2906 = vmatpush1.msra.mxu0 0.0
      %2907 = vmatprep.subr.mxu0 0.0
      %2908 = vmatpush1.msra.mxu0 0.0
      %2909 = vmatprep.subr.mxu0 0.0
      %2910 = vmatpush1.msra.mxu0 0.0
      %2911 = vmatprep.subr.mxu0 0.0
      %2912 = vmatpush1.msra.mxu0 0.0
      %2913 = vmatprep.subr.mxu0 0.0
      %2914 = vmatpush1.msra.mxu0 0.0
      %2915 = vmatprep.subr.mxu0 0.0
      %2916 = vmatpush1.msra.mxu0 0.0
      %2917 = vmatprep.subr.mxu0 0.0
      %2918 = vmatpush1.msra.mxu0 0.0
      %2919 = vmatprep.subr.mxu0 0.0
      %2920 = vmatpush1.msra.mxu0 0.0
      %2921 = vmatprep.subr.mxu0 0.0
      %2922 = vmatpush1.msra.mxu0 0.0
      %2923 = vmatprep.subr.mxu0 0.0
      %2924 = vmatpush1.msra.mxu0 0.0
      %2925 = vmatprep.subr.mxu0 0.0
      %2926 = vmatpush1.msra.mxu0 0.0
      %2927 = vmatprep.subr.mxu0 0.0
      %2928 = vmatpush1.msra.mxu0 0.0
      %2929 = vmatprep.subr.mxu0 0.0
      %2930 = vmatpush1.msra.mxu0 0.0
      %2931 = vmatprep.mubr.f32.mxu0 0.0
      %2932 = vmatmul.mubr.f32.gmra.mrb[0].mxu0 %v2794
      %v2933 = vpop.f32.mrb[0].mxu0
      %v2934 = vadd.f32 %v2791, %v2933
      %v2935 = vpop.f32.mrb[0].mxu0
      %v2936 = vadd.f32 %v2791, %v2935
      %2937 = vdwg.mxu0
      %2938 = vmatprep.subr.mxu0 %v2721
      %2939 = vmatpush1.msra.mxu0 %v2720
      %2940 = vmatprep.subr.mxu0 %v2729
      %2941 = vmatpush1.msra.mxu0 %v2728
      %2942 = vmatprep.subr.mxu0 %v2737
      %2943 = vmatpush1.msra.mxu0 %v2736
      %2944 = vmatprep.subr.mxu0 %v2745
      %2945 = vmatpush1.msra.mxu0 %v2744
      %2946 = vmatprep.subr.mxu0 %v2753
      %2947 = vmatpush1.msra.mxu0 %v2752
      %2948 = vmatprep.subr.mxu0 %v2761
      %2949 = vmatpush1.msra.mxu0 %v2760
      %2950 = vmatprep.subr.mxu0 %v2769
      %2951 = vmatpush1.msra.mxu0 %v2768
      %2952 = vmatprep.subr.mxu0 %v2777
      %2953 = vmatpush1.msra.mxu0 %v2776
      %2954 = vmatprep.subr.mxu0 %v2785
      %2955 = vmatpush1.msra.mxu0 %v2784
      %2956 = vmatprep.subr.mxu0 0.0
      %2957 = vmatpush1.msra.mxu0 0.0
      %2958 = vmatprep.subr.mxu0 0.0
      %2959 = vmatpush1.msra.mxu0 0.0
      %2960 = vmatprep.subr.mxu0 0.0
      %2961 = vmatpush1.msra.mxu0 0.0
      %2962 = vmatprep.subr.mxu0 0.0
      %2963 = vmatpush1.msra.mxu0 0.0
      %2964 = vmatprep.subr.mxu0 0.0
      %2965 = vmatpush1.msra.mxu0 0.0
      %2966 = vmatprep.subr.mxu0 0.0
      %2967 = vmatpush1.msra.mxu0 0.0
      %2968 = vmatprep.subr.mxu0 0.0
      %2969 = vmatpush1.msra.mxu0 0.0
      %2970 = vmatprep.subr.mxu0 0.0
      %2971 = vmatpush1.msra.mxu0 0.0
      %2972 = vmatprep.subr.mxu0 0.0
      %2973 = vmatpush1.msra.mxu0 0.0
      %2974 = vmatprep.subr.mxu0 0.0
      %2975 = vmatpush1.msra.mxu0 0.0
      %2976 = vmatprep.subr.mxu0 0.0
      %2977 = vmatpush1.msra.mxu0 0.0
      %2978 = vmatprep.subr.mxu0 0.0
      %2979 = vmatpush1.msra.mxu0 0.0
      %2980 = vmatprep.subr.mxu0 0.0
      %2981 = vmatpush1.msra.mxu0 0.0
      %2982 = vmatprep.subr.mxu0 0.0
      %2983 = vmatpush1.msra.mxu0 0.0
      %2984 = vmatprep.subr.mxu0 0.0
      %2985 = vmatpush1.msra.mxu0 0.0
      %2986 = vmatprep.subr.mxu0 0.0
      %2987 = vmatpush1.msra.mxu0 0.0
      %2988 = vmatprep.subr.mxu0 0.0
      %2989 = vmatpush1.msra.mxu0 0.0
      %2990 = vmatprep.subr.mxu0 0.0
      %2991 = vmatpush1.msra.mxu0 0.0
      %2992 = vmatprep.subr.mxu0 0.0
      %2993 = vmatpush1.msra.mxu0 0.0
      %2994 = vmatprep.subr.mxu0 0.0
      %2995 = vmatpush1.msra.mxu0 0.0
      %2996 = vmatprep.subr.mxu0 0.0
      %2997 = vmatpush1.msra.mxu0 0.0
      %2998 = vmatprep.subr.mxu0 0.0
      %2999 = vmatpush1.msra.mxu0 0.0
      %3000 = vmatprep.subr.mxu0 0.0
      %3001 = vmatpush1.msra.mxu0 0.0
      %3002 = vmatprep.mubr.f32.mxu0 0.0
      %3003 = vmatmul.mubr.f32.gmra.mrb[0].mxu0 %v2794
      %v3004 = vpop.f32.mrb[0].mxu0
      %v3005 = vadd.f32 %v2791, %v3004
      %v3006 = vpop.f32.mrb[0].mxu0
      %v3007 = vadd.f32 %v2791, %v3006
      %3008 = vdwg.mxu0
      %3009 = vmatprep.subr.mxu0 %v2723
      %3010 = vmatpush1.msra.mxu0 %v2722
      %3011 = vmatprep.subr.mxu0 %v2731
      %3012 = vmatpush1.msra.mxu0 %v2730
      %3013 = vmatprep.subr.mxu0 %v2739
      %3014 = vmatpush1.msra.mxu0 %v2738
      %3015 = vmatprep.subr.mxu0 %v2747
      %3016 = vmatpush1.msra.mxu0 %v2746
      %3017 = vmatprep.subr.mxu0 %v2755
      %3018 = vmatpush1.msra.mxu0 %v2754
      %3019 = vmatprep.subr.mxu0 %v2763
      %3020 = vmatpush1.msra.mxu0 %v2762
      %3021 = vmatprep.subr.mxu0 %v2771
      %3022 = vmatpush1.msra.mxu0 %v2770
      %3023 = vmatprep.subr.mxu0 %v2779
      %3024 = vmatpush1.msra.mxu0 %v2778
      %3025 = vmatprep.subr.mxu0 %v2787
      %3026 = vmatpush1.msra.mxu0 %v2786
      %3027 = vmatprep.subr.mxu0 0.0
      %3028 = vmatpush1.msra.mxu0 0.0
      %3029 = vmatprep.subr.mxu0 0.0
      %3030 = vmatpush1.msra.mxu0 0.0
      %3031 = vmatprep.subr.mxu0 0.0
      %3032 = vmatpush1.msra.mxu0 0.0
      %3033 = vmatprep.subr.mxu0 0.0
      %3034 = vmatpush1.msra.mxu0 0.0
      %3035 = vmatprep.subr.mxu0 0.0
      %3036 = vmatpush1.msra.mxu0 0.0
      %3037 = vmatprep.subr.mxu0 0.0
      %3038 = vmatpush1.msra.mxu0 0.0
      %3039 = vmatprep.subr.mxu0 0.0
      %3040 = vmatpush1.msra.mxu0 0.0
      %3041 = vmatprep.subr.mxu0 0.0
      %3042 = vmatpush1.msra.mxu0 0.0
      %3043 = vmatprep.subr.mxu0 0.0
      %3044 = vmatpush1.msra.mxu0 0.0
      %3045 = vmatprep.subr.mxu0 0.0
      %3046 = vmatpush1.msra.mxu0 0.0
      %3047 = vmatprep.subr.mxu0 0.0
      %3048 = vmatpush1.msra.mxu0 0.0
      %3049 = vmatprep.subr.mxu0 0.0
      %3050 = vmatpush1.msra.mxu0 0.0
      %3051 = vmatprep.subr.mxu0 0.0
      %3052 = vmatpush1.msra.mxu0 0.0
      %3053 = vmatprep.subr.mxu0 0.0
      %3054 = vmatpush1.msra.mxu0 0.0
      %3055 = vmatprep.subr.mxu0 0.0
      %3056 = vmatpush1.msra.mxu0 0.0
      %3057 = vmatprep.subr.mxu0 0.0
      %3058 = vmatpush1.msra.mxu0 0.0
      %3059 = vmatprep.subr.mxu0 0.0
      %3060 = vmatpush1.msra.mxu0 0.0
      %3061 = vmatprep.subr.mxu0 0.0
      %3062 = vmatpush1.msra.mxu0 0.0
      %3063 = vmatprep.subr.mxu0 0.0
      %3064 = vmatpush1.msra.mxu0 0.0
      %3065 = vmatprep.subr.mxu0 0.0
      %3066 = vmatpush1.msra.mxu0 0.0
      %3067 = vmatprep.subr.mxu0 0.0
      %3068 = vmatpush1.msra.mxu0 0.0
      %3069 = vmatprep.subr.mxu0 0.0
      %3070 = vmatpush1.msra.mxu0 0.0
      %3071 = vmatprep.subr.mxu0 0.0
      %3072 = vmatpush1.msra.mxu0 0.0
      %3073 = vmatprep.mubr.f32.mxu0 0.0
      %3074 = vmatmul.mubr.f32.gmra.mrb[0].mxu0 %v2794
      %v3075 = vpop.f32.mrb[0].mxu0
      %v3076 = vadd.f32 %v2791, %v3075
      %v3077 = vpop.f32.mrb[0].mxu0
      %v3078 = vadd.f32 %v2791, %v3077
      %3079 = vdwg.mxu0
      %v3080 = vld [vmem:[%s9] sm:$0xff]
      %v3081 = vld [vmem:[%s10] sm:$0xff]
      %3083 = vrot.lane.b32.xlu0 %v1364, 33
      %v3084 = vpop.permute.xlu0 %3083
      %3093 = vrot.lane.b32.xlu0 %v1149, 33
      %v3094 = vpop.permute.xlu0 %3093
      %3095 = vrot.lane.b32.xlu0 %v1151, 33
      %v3096 = vpop.permute.xlu0 %3095
      %3097 = vrot.lane.b32.xlu0 %v1220, 33
      %v3098 = vpop.permute.xlu0 %3097
      %3099 = vrot.lane.b32.xlu0 %v1222, 33
      %v3100 = vpop.permute.xlu0 %3099
      %3101 = vrot.lane.b32.xlu0 %v1291, 33
      %v3102 = vpop.permute.xlu0 %3101
      %3103 = vrot.lane.b32.xlu0 %v1293, 33
      %v3104 = vpop.permute.xlu0 %3103
      %3105 = vrot.lane.b32.xlu0 %v1362, 33
      %v3106 = vpop.permute.xlu0 %3105
      %v3107 = vsel %vm1999, %v3094, %v3096
      %v3108 = vsel %vm1999, %v3096, %v3098
      %v3109 = vsel %vm1999, %v3098, %v3100
      %v3110 = vsel %vm1999, %v3100, %v3102
      %v3111 = vsel %vm1999, %v3102, %v3104
      %v3112 = vsel %vm1999, %v3104, %v3106
      %v3113 = vsel %vm1999, %v3106, %v3084
      %v3122 = vsel %vm1999, %v3084, %v3094
      %v3123 = vmul.f32 %v3122, %v2020
      %v3124 = vmul.f32 %v3107, %v2024
      %v3125 = vmul.f32 %v3108, %v2028
      %v3126 = vmul.f32 %v3109, %v2032
      %v3127 = vmul.f32 %v3110, %v2036
      %v3128 = vmul.f32 %v3111, %v2040
      %v3129 = vmul.f32 %v3112, %v2044
      %v3130 = vmul.f32 %v3113, %v2048
      %3131 = vst [vmem:[#allocation3] sm:$0xff] %v3123
      %3132 = vst [vmem:[#allocation3 + $0x8] sm:$0xff] %v3124
      %3133 = vst [vmem:[#allocation3 + $0x10] sm:$0xff] %v3125
      %3134 = vst [vmem:[#allocation3 + $0x18] sm:$0xff] %v3126
      %3135 = vst [vmem:[#allocation3 + $0x20] sm:$0xff] %v3127
      %3136 = vst [vmem:[#allocation3 + $0x28] sm:$0xff] %v3128
      %3137 = vst [vmem:[#allocation3 + $0x30] sm:$0xff] %v3129
      %3138 = vst [vmem:[#allocation3 + $0x38] sm:$0xff] %v3130
      %3139 = vrot.lane.b32.xlu0 %v1364, 32
      %v3140 = vpop.permute.xlu0 %3139
      %3142 = vrot.lane.b32.xlu0 %v1149, 32
      %v3143 = vpop.permute.xlu0 %3142
      %3144 = vrot.lane.b32.xlu0 %v1151, 32
      %v3145 = vpop.permute.xlu0 %3144
      %3146 = vrot.lane.b32.xlu0 %v1220, 32
      %v3147 = vpop.permute.xlu0 %3146
      %3148 = vrot.lane.b32.xlu0 %v1222, 32
      %v3149 = vpop.permute.xlu0 %3148
      %3150 = vrot.lane.b32.xlu0 %v1291, 32
      %v3151 = vpop.permute.xlu0 %3150
      %3152 = vrot.lane.b32.xlu0 %v1293, 32
      %v3153 = vpop.permute.xlu0 %3152
      %3154 = vrot.lane.b32.xlu0 %v1362, 32
      %v3155 = vpop.permute.xlu0 %3154
      %v3156 = vsel %vm2090, %v3143, %v3145
      %v3157 = vsel %vm2090, %v3145, %v3147
      %v3158 = vsel %vm2090, %v3147, %v3149
      %v3159 = vsel %vm2090, %v3149, %v3151
      %v3160 = vsel %vm2090, %v3151, %v3153
      %v3161 = vsel %vm2090, %v3153, %v3155
      %v3162 = vsel %vm2090, %v3155, %v3140
      %v3171 = vsel %vm2090, %v3140, %v3143
      %v3172 = vmul.f32 %v3171, %v2111
      %v3173 = vmul.f32 %v3156, %v2115
      %v3174 = vmul.f32 %v3157, %v2119
      %v3175 = vmul.f32 %v3158, %v2123
      %v3176 = vmul.f32 %v3159, %v2127
      %v3177 = vmul.f32 %v3160, %v2131
      %v3178 = vmul.f32 %v3161, %v2135
      %v3179 = vmul.f32 %v3162, %v2139
      %3180 = vst [vmem:[#allocation3 + $0x40] sm:$0xff] %v3172
      %3181 = vst [vmem:[#allocation3 + $0x48] sm:$0xff] %v3173
      %3182 = vst [vmem:[#allocation3 + $0x50] sm:$0xff] %v3174
      %3183 = vst [vmem:[#allocation3 + $0x58] sm:$0xff] %v3175
      %3184 = vst [vmem:[#allocation3 + $0x60] sm:$0xff] %v3176
      %3185 = vst [vmem:[#allocation3 + $0x68] sm:$0xff] %v3177
      %3186 = vst [vmem:[#allocation3 + $0x70] sm:$0xff] %v3178
      %3187 = vst [vmem:[#allocation3 + $0x78] sm:$0xff] %v3179
      %3188 = vrot.lane.b32.xlu0 %v1364, 31
      %v3189 = vpop.permute.xlu0 %3188
      %3191 = vrot.lane.b32.xlu0 %v1149, 31
      %v3192 = vpop.permute.xlu0 %3191
      %3193 = vrot.lane.b32.xlu0 %v1151, 31
      %v3194 = vpop.permute.xlu0 %3193
      %3195 = vrot.lane.b32.xlu0 %v1220, 31
      %v3196 = vpop.permute.xlu0 %3195
      %3197 = vrot.lane.b32.xlu0 %v1222, 31
      %v3198 = vpop.permute.xlu0 %3197
      %3199 = vrot.lane.b32.xlu0 %v1291, 31
      %v3200 = vpop.permute.xlu0 %3199
      %3201 = vrot.lane.b32.xlu0 %v1293, 31
      %v3202 = vpop.permute.xlu0 %3201
      %3203 = vrot.lane.b32.xlu0 %v1362, 31
      %v3204 = vpop.permute.xlu0 %3203
      %v3205 = vsel %vm2181, %v3192, %v3194
      %v3206 = vsel %vm2181, %v3194, %v3196
      %v3207 = vsel %vm2181, %v3196, %v3198
      %v3208 = vsel %vm2181, %v3198, %v3200
      %v3209 = vsel %vm2181, %v3200, %v3202
      %v3210 = vsel %vm2181, %v3202, %v3204
      %v3211 = vsel %vm2181, %v3204, %v3189
      %v3220 = vsel %vm2181, %v3189, %v3192
      %v3221 = vmul.f32 %v3220, %v2202
      %v3222 = vmul.f32 %v3205, %v2206
      %v3223 = vmul.f32 %v3206, %v2210
      %v3224 = vmul.f32 %v3207, %v2214
      %v3225 = vmul.f32 %v3208, %v2218
      %v3226 = vmul.f32 %v3209, %v2222
      %v3227 = vmul.f32 %v3210, %v2226
      %v3228 = vmul.f32 %v3211, %v2230
      %3229 = vst [vmem:[#allocation3 + $0x80] sm:$0xff] %v3221
      %3230 = vst [vmem:[#allocation3 + $0x88] sm:$0xff] %v3222
      %3231 = vst [vmem:[#allocation3 + $0x90] sm:$0xff] %v3223
      %3232 = vst [vmem:[#allocation3 + $0x98] sm:$0xff] %v3224
      %3233 = vst [vmem:[#allocation3 + $0xa0] sm:$0xff] %v3225
      %3234 = vst [vmem:[#allocation3 + $0xa8] sm:$0xff] %v3226
      %3235 = vst [vmem:[#allocation3 + $0xb0] sm:$0xff] %v3227
      %3236 = vst [vmem:[#allocation3 + $0xb8] sm:$0xff] %v3228
      %3237 = vrot.lane.b32.xlu0 %v1364, 1
      %v3238 = vpop.permute.xlu0 %3237
      %3240 = vrot.lane.b32.xlu0 %v1149, 1
      %v3241 = vpop.permute.xlu0 %3240
      %3242 = vrot.lane.b32.xlu0 %v1151, 1
      %v3243 = vpop.permute.xlu0 %3242
      %3244 = vrot.lane.b32.xlu0 %v1220, 1
      %v3245 = vpop.permute.xlu0 %3244
      %3246 = vrot.lane.b32.xlu0 %v1222, 1
      %v3247 = vpop.permute.xlu0 %3246
      %3248 = vrot.lane.b32.xlu0 %v1291, 1
      %v3249 = vpop.permute.xlu0 %3248
      %3250 = vrot.lane.b32.xlu0 %v1293, 1
      %v3251 = vpop.permute.xlu0 %3250
      %3252 = vrot.lane.b32.xlu0 %v1362, 1
      %v3253 = vpop.permute.xlu0 %3252
      %v3254 = vsel %vm1736, %v3241, %v3243
      %v3255 = vsel %vm1736, %v3243, %v3245
      %v3256 = vsel %vm1736, %v3245, %v3247
      %v3257 = vsel %vm1736, %v3247, %v3249
      %v3258 = vsel %vm1736, %v3249, %v3251
      %v3259 = vsel %vm1736, %v3251, %v3253
      %v3260 = vsel %vm1736, %v3253, %v3238
      %v3269 = vsel %vm1736, %v3238, %v3241
      %v3270 = vmul.f32 %v3269, %v2292
      %v3271 = vmul.f32 %v3254, %v2296
      %v3272 = vmul.f32 %v3255, %v2300
      %v3273 = vmul.f32 %v3256, %v2304
      %v3274 = vmul.f32 %v3257, %v2308
      %v3275 = vmul.f32 %v3258, %v2312
      %v3276 = vmul.f32 %v3259, %v2316
      %v3277 = vmul.f32 %v3260, %v2320
      %3278 = vst [vmem:[#allocation3 + $0xc0] sm:$0xff] %v3270
      %3279 = vst [vmem:[#allocation3 + $0xc8] sm:$0xff] %v3271
      %3280 = vst [vmem:[#allocation3 + $0xd0] sm:$0xff] %v3272
      %3281 = vst [vmem:[#allocation3 + $0xd8] sm:$0xff] %v3273
      %3282 = vst [vmem:[#allocation3 + $0xe0] sm:$0xff] %v3274
      %3283 = vst [vmem:[#allocation3 + $0xe8] sm:$0xff] %v3275
      %3284 = vst [vmem:[#allocation3 + $0xf0] sm:$0xff] %v3276
      %3285 = vst [vmem:[#allocation3 + $0xf8] sm:$0xff] %v3277
      %3286 = vst [vmem:[#allocation3 + $0x100] sm:$0xff] %v1149
      %3287 = vst [vmem:[#allocation3 + $0x108] sm:$0xff] %v1151
      %3288 = vst [vmem:[#allocation3 + $0x110] sm:$0xff] %v1220
      %3289 = vst [vmem:[#allocation3 + $0x118] sm:$0xff] %v1222
      %3290 = vst [vmem:[#allocation3 + $0x120] sm:$0xff] %v1291
      %3291 = vst [vmem:[#allocation3 + $0x128] sm:$0xff] %v1293
      %3292 = vst [vmem:[#allocation3 + $0x130] sm:$0xff] %v1362
      %3293 = vst [vmem:[#allocation3 + $0x138] sm:$0xff] %v1364
      %3294 = vrot.lane.b32.xlu0 %v1149, 127
      %v3295 = vpop.permute.xlu0 %3294
      %3296 = vrot.lane.b32.xlu0 %v1151, 127
      %v3297 = vpop.permute.xlu0 %3296
      %3298 = vrot.lane.b32.xlu0 %v1220, 127
      %v3299 = vpop.permute.xlu0 %3298
      %3300 = vrot.lane.b32.xlu0 %v1222, 127
      %v3301 = vpop.permute.xlu0 %3300
      %3302 = vrot.lane.b32.xlu0 %v1291, 127
      %v3303 = vpop.permute.xlu0 %3302
      %3304 = vrot.lane.b32.xlu0 %v1293, 127
      %v3305 = vpop.permute.xlu0 %3304
      %3306 = vrot.lane.b32.xlu0 %v1362, 127
      %v3307 = vpop.permute.xlu0 %3306
      %3308 = vrot.lane.b32.xlu0 %v1364, 127
      %v3309 = vpop.permute.xlu0 %3308
      %v3310 = vsel %vm1762, %v3295, %v3297
      %v3311 = vsel %vm1762, %v3297, %v3299
      %v3312 = vsel %vm1762, %v3299, %v3301
      %v3313 = vsel %vm1762, %v3301, %v3303
      %v3314 = vsel %vm1762, %v3303, %v3305
      %v3315 = vsel %vm1762, %v3305, %v3307
      %v3316 = vsel %vm1762, %v3307, %v3309
      %v3326 = vsel %vm1762, %v3309, %v3295
      %v3327 = vmul.f32 %v3310, %v2390
      %v3328 = vmul.f32 %v3311, %v2394
      %v3329 = vmul.f32 %v3312, %v2398
      %v3330 = vmul.f32 %v3313, %v2402
      %v3331 = vmul.f32 %v3314, %v2406
      %v3332 = vmul.f32 %v3315, %v2410
      %v3333 = vmul.f32 %v3316, %v2414
      %v3334 = vmul.f32 %v3326, %v2418
      %3335 = vst [vmem:[#allocation3 + $0x140] sm:$0xff] %v3327
      %3336 = vst [vmem:[#allocation3 + $0x148] sm:$0xff] %v3328
      %3337 = vst [vmem:[#allocation3 + $0x150] sm:$0xff] %v3329
      %3338 = vst [vmem:[#allocation3 + $0x158] sm:$0xff] %v3330
      %3339 = vst [vmem:[#allocation3 + $0x160] sm:$0xff] %v3331
      %3340 = vst [vmem:[#allocation3 + $0x168] sm:$0xff] %v3332
      %3341 = vst [vmem:[#allocation3 + $0x170] sm:$0xff] %v3333
      %3342 = vst [vmem:[#allocation3 + $0x178] sm:$0xff] %v3334
      %3343 = vrot.lane.b32.xlu0 %v1149, 97
      %v3344 = vpop.permute.xlu0 %3343
      %3345 = vrot.lane.b32.xlu0 %v1151, 97
      %v3346 = vpop.permute.xlu0 %3345
      %3347 = vrot.lane.b32.xlu0 %v1220, 97
      %v3348 = vpop.permute.xlu0 %3347
      %3349 = vrot.lane.b32.xlu0 %v1222, 97
      %v3350 = vpop.permute.xlu0 %3349
      %3351 = vrot.lane.b32.xlu0 %v1291, 97
      %v3352 = vpop.permute.xlu0 %3351
      %3353 = vrot.lane.b32.xlu0 %v1293, 97
      %v3354 = vpop.permute.xlu0 %3353
      %3355 = vrot.lane.b32.xlu0 %v1362, 97
      %v3356 = vpop.permute.xlu0 %3355
      %3357 = vrot.lane.b32.xlu0 %v1364, 97
      %v3358 = vpop.permute.xlu0 %3357
      %v3359 = vsel %vm2459, %v3344, %v3346
      %v3360 = vsel %vm2459, %v3346, %v3348
      %v3361 = vsel %vm2459, %v3348, %v3350
      %v3362 = vsel %vm2459, %v3350, %v3352
      %v3363 = vsel %vm2459, %v3352, %v3354
      %v3364 = vsel %vm2459, %v3354, %v3356
      %v3365 = vsel %vm2459, %v3356, %v3358
      %v3375 = vsel %vm2459, %v3358, %v3344
      %v3376 = vmul.f32 %v3359, %v2481
      %v3377 = vmul.f32 %v3360, %v2485
      %v3378 = vmul.f32 %v3361, %v2489
      %v3379 = vmul.f32 %v3362, %v2493
      %v3380 = vmul.f32 %v3363, %v2497
      %v3381 = vmul.f32 %v3364, %v2501
      %v3382 = vmul.f32 %v3365, %v2505
      %v3383 = vmul.f32 %v3375, %v2509
      %3384 = vst [vmem:[#allocation3 + $0x180] sm:$0xff] %v3376
      %3385 = vst [vmem:[#allocation3 + $0x188] sm:$0xff] %v3377
      %3386 = vst [vmem:[#allocation3 + $0x190] sm:$0xff] %v3378
      %3387 = vst [vmem:[#allocation3 + $0x198] sm:$0xff] %v3379
      %3388 = vst [vmem:[#allocation3 + $0x1a0] sm:$0xff] %v3380
      %3389 = vst [vmem:[#allocation3 + $0x1a8] sm:$0xff] %v3381
      %3390 = vst [vmem:[#allocation3 + $0x1b0] sm:$0xff] %v3382
      %3391 = vst [vmem:[#allocation3 + $0x1b8] sm:$0xff] %v3383
      %3392 = vrot.lane.b32.xlu0 %v1149, 96
      %v3393 = vpop.permute.xlu0 %3392
      %3394 = vrot.lane.b32.xlu0 %v1151, 96
      %v3395 = vpop.permute.xlu0 %3394
      %3396 = vrot.lane.b32.xlu0 %v1220, 96
      %v3397 = vpop.permute.xlu0 %3396
      %3398 = vrot.lane.b32.xlu0 %v1222, 96
      %v3399 = vpop.permute.xlu0 %3398
      %3400 = vrot.lane.b32.xlu0 %v1291, 96
      %v3401 = vpop.permute.xlu0 %3400
      %3402 = vrot.lane.b32.xlu0 %v1293, 96
      %v3403 = vpop.permute.xlu0 %3402
      %3404 = vrot.lane.b32.xlu0 %v1362, 96
      %v3405 = vpop.permute.xlu0 %3404
      %3406 = vrot.lane.b32.xlu0 %v1364, 96
      %v3407 = vpop.permute.xlu0 %3406
      %v3408 = vsel %vm2550, %v3393, %v3395
      %v3409 = vsel %vm2550, %v3395, %v3397
      %v3410 = vsel %vm2550, %v3397, %v3399
      %v3411 = vsel %vm2550, %v3399, %v3401
      %v3412 = vsel %vm2550, %v3401, %v3403
      %v3413 = vsel %vm2550, %v3403, %v3405
      %v3414 = vsel %vm2550, %v3405, %v3407
      %v3424 = vsel %vm2550, %v3407, %v3393
      %v3425 = vmul.f32 %v3408, %v2572
      %v3426 = vmul.f32 %v3409, %v2576
      %v3427 = vmul.f32 %v3410, %v2580
      %v3428 = vmul.f32 %v3411, %v2584
      %v3429 = vmul.f32 %v3412, %v2588
      %v3430 = vmul.f32 %v3413, %v2592
      %v3431 = vmul.f32 %v3414, %v2596
      %v3432 = vmul.f32 %v3424, %v2600
      %3433 = vst [vmem:[#allocation3 + $0x1c0] sm:$0xff] %v3425
      %3434 = vst [vmem:[#allocation3 + $0x1c8] sm:$0xff] %v3426
      %3435 = vst [vmem:[#allocation3 + $0x1d0] sm:$0xff] %v3427
      %3436 = vst [vmem:[#allocation3 + $0x1d8] sm:$0xff] %v3428
      %3437 = vst [vmem:[#allocation3 + $0x1e0] sm:$0xff] %v3429
      %3438 = vst [vmem:[#allocation3 + $0x1e8] sm:$0xff] %v3430
      %3439 = vst [vmem:[#allocation3 + $0x1f0] sm:$0xff] %v3431
      %3440 = vst [vmem:[#allocation3 + $0x1f8] sm:$0xff] %v3432
      %3441 = vrot.lane.b32.xlu0 %v1149, 95
      %v3442 = vpop.permute.xlu0 %3441
      %3443 = vrot.lane.b32.xlu0 %v1151, 95
      %v3444 = vpop.permute.xlu0 %3443
      %3445 = vrot.lane.b32.xlu0 %v1220, 95
      %v3446 = vpop.permute.xlu0 %3445
      %3447 = vrot.lane.b32.xlu0 %v1222, 95
      %v3448 = vpop.permute.xlu0 %3447
      %3449 = vrot.lane.b32.xlu0 %v1291, 95
      %v3450 = vpop.permute.xlu0 %3449
      %3451 = vrot.lane.b32.xlu0 %v1293, 95
      %v3452 = vpop.permute.xlu0 %3451
      %3453 = vrot.lane.b32.xlu0 %v1362, 95
      %v3454 = vpop.permute.xlu0 %3453
      %3455 = vrot.lane.b32.xlu0 %v1364, 95
      %v3456 = vpop.permute.xlu0 %3455
      %v3457 = vsel %vm2641, %v3442, %v3444
      %v3458 = vsel %vm2641, %v3444, %v3446
      %v3459 = vsel %vm2641, %v3446, %v3448
      %v3460 = vsel %vm2641, %v3448, %v3450
      %v3461 = vsel %vm2641, %v3450, %v3452
      %v3462 = vsel %vm2641, %v3452, %v3454
      %v3463 = vsel %vm2641, %v3454, %v3456
      %v3473 = vsel %vm2641, %v3456, %v3442
      %v3474 = vmul.f32 %v3457, %v2663
      %v3475 = vmul.f32 %v3458, %v2667
      %v3476 = vmul.f32 %v3459, %v2671
      %v3477 = vmul.f32 %v3460, %v2675
      %v3478 = vmul.f32 %v3461, %v2679
      %v3479 = vmul.f32 %v3462, %v2683
      %v3480 = vmul.f32 %v3463, %v2687
      %v3481 = vmul.f32 %v3473, %v2691
      %3482 = vst [vmem:[#allocation3 + $0x200] sm:$0xff] %v3474
      %3483 = vst [vmem:[#allocation3 + $0x208] sm:$0xff] %v3475
      %3484 = vst [vmem:[#allocation3 + $0x210] sm:$0xff] %v3476
      %3485 = vst [vmem:[#allocation3 + $0x218] sm:$0xff] %v3477
      %3486 = vst [vmem:[#allocation3 + $0x220] sm:$0xff] %v3478
      %3487 = vst [vmem:[#allocation3 + $0x228] sm:$0xff] %v3479
      %3488 = vst [vmem:[#allocation3 + $0x230] sm:$0xff] %v3480
      %3489 = vst [vmem:[#allocation3 + $0x238] sm:$0xff] %v3481
      %v3490 = vld [vmem:[#allocation3] sm:$0xff]
      %v3491 = vld [vmem:[#allocation3 + $0x8] sm:$0xff]
      %v3492 = vld [vmem:[#allocation3 + $0x10] sm:$0xff]
      %v3493 = vld [vmem:[#allocation3 + $0x18] sm:$0xff]
      %v3494 = vld [vmem:[#allocation3 + $0x20] sm:$0xff]
      %v3495 = vld [vmem:[#allocation3 + $0x28] sm:$0xff]
      %v3496 = vld [vmem:[#allocation3 + $0x30] sm:$0xff]
      %v3497 = vld [vmem:[#allocation3 + $0x38] sm:$0xff]
      %v3498 = vld [vmem:[#allocation3 + $0x40] sm:$0xff]
      %v3499 = vld [vmem:[#allocation3 + $0x48] sm:$0xff]
      %v3500 = vld [vmem:[#allocation3 + $0x50] sm:$0xff]
      %v3501 = vld [vmem:[#allocation3 + $0x58] sm:$0xff]
      %v3502 = vld [vmem:[#allocation3 + $0x60] sm:$0xff]
      %v3503 = vld [vmem:[#allocation3 + $0x68] sm:$0xff]
      %v3504 = vld [vmem:[#allocation3 + $0x70] sm:$0xff]
      %v3505 = vld [vmem:[#allocation3 + $0x78] sm:$0xff]
      %v3506 = vld [vmem:[#allocation3 + $0x80] sm:$0xff]
      %v3507 = vld [vmem:[#allocation3 + $0x88] sm:$0xff]
      %v3508 = vld [vmem:[#allocation3 + $0x90] sm:$0xff]
      %v3509 = vld [vmem:[#allocation3 + $0x98] sm:$0xff]
      %v3510 = vld [vmem:[#allocation3 + $0xa0] sm:$0xff]
      %v3511 = vld [vmem:[#allocation3 + $0xa8] sm:$0xff]
      %v3512 = vld [vmem:[#allocation3 + $0xb0] sm:$0xff]
      %v3513 = vld [vmem:[#allocation3 + $0xb8] sm:$0xff]
      %v3514 = vld [vmem:[#allocation3 + $0xc0] sm:$0xff]
      %v3515 = vld [vmem:[#allocation3 + $0xc8] sm:$0xff]
      %v3516 = vld [vmem:[#allocation3 + $0xd0] sm:$0xff]
      %v3517 = vld [vmem:[#allocation3 + $0xd8] sm:$0xff]
      %v3518 = vld [vmem:[#allocation3 + $0xe0] sm:$0xff]
      %v3519 = vld [vmem:[#allocation3 + $0xe8] sm:$0xff]
      %v3520 = vld [vmem:[#allocation3 + $0xf0] sm:$0xff]
      %v3521 = vld [vmem:[#allocation3 + $0xf8] sm:$0xff]
      %v3522 = vld [vmem:[#allocation3 + $0x100] sm:$0xff]
      %v3523 = vld [vmem:[#allocation3 + $0x108] sm:$0xff]
      %v3524 = vld [vmem:[#allocation3 + $0x110] sm:$0xff]
      %v3525 = vld [vmem:[#allocation3 + $0x118] sm:$0xff]
      %v3526 = vld [vmem:[#allocation3 + $0x120] sm:$0xff]
      %v3527 = vld [vmem:[#allocation3 + $0x128] sm:$0xff]
      %v3528 = vld [vmem:[#allocation3 + $0x130] sm:$0xff]
      %v3529 = vld [vmem:[#allocation3 + $0x138] sm:$0xff]
      %v3530 = vld [vmem:[#allocation3 + $0x140] sm:$0xff]
      %v3531 = vld [vmem:[#allocation3 + $0x148] sm:$0xff]
      %v3532 = vld [vmem:[#allocation3 + $0x150] sm:$0xff]
      %v3533 = vld [vmem:[#allocation3 + $0x158] sm:$0xff]
      %v3534 = vld [vmem:[#allocation3 + $0x160] sm:$0xff]
      %v3535 = vld [vmem:[#allocation3 + $0x168] sm:$0xff]
      %v3536 = vld [vmem:[#allocation3 + $0x170] sm:$0xff]
      %v3537 = vld [vmem:[#allocation3 + $0x178] sm:$0xff]
      %v3538 = vld [vmem:[#allocation3 + $0x180] sm:$0xff]
      %v3539 = vld [vmem:[#allocation3 + $0x188] sm:$0xff]
      %v3540 = vld [vmem:[#allocation3 + $0x190] sm:$0xff]
      %v3541 = vld [vmem:[#allocation3 + $0x198] sm:$0xff]
      %v3542 = vld [vmem:[#allocation3 + $0x1a0] sm:$0xff]
      %v3543 = vld [vmem:[#allocation3 + $0x1a8] sm:$0xff]
      %v3544 = vld [vmem:[#allocation3 + $0x1b0] sm:$0xff]
      %v3545 = vld [vmem:[#allocation3 + $0x1b8] sm:$0xff]
      %v3546 = vld [vmem:[#allocation3 + $0x1c0] sm:$0xff]
      %v3547 = vld [vmem:[#allocation3 + $0x1c8] sm:$0xff]
      %v3548 = vld [vmem:[#allocation3 + $0x1d0] sm:$0xff]
      %v3549 = vld [vmem:[#allocation3 + $0x1d8] sm:$0xff]
      %v3550 = vld [vmem:[#allocation3 + $0x1e0] sm:$0xff]
      %v3551 = vld [vmem:[#allocation3 + $0x1e8] sm:$0xff]
      %v3552 = vld [vmem:[#allocation3 + $0x1f0] sm:$0xff]
      %v3553 = vld [vmem:[#allocation3 + $0x1f8] sm:$0xff]
      %v3554 = vld [vmem:[#allocation3 + $0x200] sm:$0xff]
      %v3555 = vld [vmem:[#allocation3 + $0x208] sm:$0xff]
      %v3556 = vld [vmem:[#allocation3 + $0x210] sm:$0xff]
      %v3557 = vld [vmem:[#allocation3 + $0x218] sm:$0xff]
      %v3558 = vld [vmem:[#allocation3 + $0x220] sm:$0xff]
      %v3559 = vld [vmem:[#allocation3 + $0x228] sm:$0xff]
      %v3560 = vld [vmem:[#allocation3 + $0x230] sm:$0xff]
      %v3561 = vld [vmem:[#allocation3 + $0x238] sm:$0xff]
      %3563 = vset.pattern.permute.xlu0 0
      %3564 = vperm.xlu0 %3563, %v3081
      %v3565 = vpop.permute.xlu0 %3564
      %v3568 = vsel %vm1886, %v3080, 0
      %3570 = vmatprep.subr.mxu0 %v3491
      %3571 = vmatpush1.msra.mxu0 %v3490
      %3572 = vmatprep.subr.mxu0 %v3499
      %3573 = vmatpush1.msra.mxu0 %v3498
      %3574 = vmatprep.subr.mxu0 %v3507
      %3575 = vmatpush1.msra.mxu0 %v3506
      %3576 = vmatprep.subr.mxu0 %v3515
      %3577 = vmatpush1.msra.mxu0 %v3514
      %3578 = vmatprep.subr.mxu0 %v3523
      %3579 = vmatpush1.msra.mxu0 %v3522
      %3580 = vmatprep.subr.mxu0 %v3531
      %3581 = vmatpush1.msra.mxu0 %v3530
      %3582 = vmatprep.subr.mxu0 %v3539
      %3583 = vmatpush1.msra.mxu0 %v3538
      %3584 = vmatprep.subr.mxu0 %v3547
      %3585 = vmatpush1.msra.mxu0 %v3546
      %3586 = vmatprep.subr.mxu0 %v3555
      %3587 = vmatpush1.msra.mxu0 %v3554
      %3588 = vmatprep.subr.mxu0 0.0
      %3589 = vmatpush1.msra.mxu0 0.0
      %3590 = vmatprep.subr.mxu0 0.0
      %3591 = vmatpush1.msra.mxu0 0.0
      %3592 = vmatprep.subr.mxu0 0.0
      %3593 = vmatpush1.msra.mxu0 0.0
      %3594 = vmatprep.subr.mxu0 0.0
      %3595 = vmatpush1.msra.mxu0 0.0
      %3596 = vmatprep.subr.mxu0 0.0
      %3597 = vmatpush1.msra.mxu0 0.0
      %3598 = vmatprep.subr.mxu0 0.0
      %3599 = vmatpush1.msra.mxu0 0.0
      %3600 = vmatprep.subr.mxu0 0.0
      %3601 = vmatpush1.msra.mxu0 0.0
      %3602 = vmatprep.subr.mxu0 0.0
      %3603 = vmatpush1.msra.mxu0 0.0
      %3604 = vmatprep.subr.mxu0 0.0
      %3605 = vmatpush1.msra.mxu0 0.0
      %3606 = vmatprep.subr.mxu0 0.0
      %3607 = vmatpush1.msra.mxu0 0.0
      %3608 = vmatprep.subr.mxu0 0.0
      %3609 = vmatpush1.msra.mxu0 0.0
      %3610 = vmatprep.subr.mxu0 0.0
      %3611 = vmatpush1.msra.mxu0 0.0
      %3612 = vmatprep.subr.mxu0 0.0
      %3613 = vmatpush1.msra.mxu0 0.0
      %3614 = vmatprep.subr.mxu0 0.0
      %3615 = vmatpush1.msra.mxu0 0.0
      %3616 = vmatprep.subr.mxu0 0.0
      %3617 = vmatpush1.msra.mxu0 0.0
      %3618 = vmatprep.subr.mxu0 0.0
      %3619 = vmatpush1.msra.mxu0 0.0
      %3620 = vmatprep.subr.mxu0 0.0
      %3621 = vmatpush1.msra.mxu0 0.0
      %3622 = vmatprep.subr.mxu0 0.0
      %3623 = vmatpush1.msra.mxu0 0.0
      %3624 = vmatprep.subr.mxu0 0.0
      %3625 = vmatpush1.msra.mxu0 0.0
      %3626 = vmatprep.subr.mxu0 0.0
      %3627 = vmatpush1.msra.mxu0 0.0
      %3628 = vmatprep.subr.mxu0 0.0
      %3629 = vmatpush1.msra.mxu0 0.0
      %3630 = vmatprep.subr.mxu0 0.0
      %3631 = vmatpush1.msra.mxu0 0.0
      %3632 = vmatprep.subr.mxu0 0.0
      %3633 = vmatpush1.msra.mxu0 0.0
      %3634 = vmatprep.mubr.f32.mxu0 0.0
      %3635 = vmatmul.mubr.f32.gmra.mrb[0].mxu0 %v3568
      %v3636 = vpop.f32.mrb[0].mxu0
      %v3637 = vadd.f32 %v3565, %v3636
      %v3638 = vpop.f32.mrb[0].mxu0
      %v3639 = vadd.f32 %v3565, %v3638
      %3640 = vdwg.mxu0
      %3641 = vmatprep.subr.mxu0 %v3493
      %3642 = vmatpush1.msra.mxu0 %v3492
      %3643 = vmatprep.subr.mxu0 %v3501
      %3644 = vmatpush1.msra.mxu0 %v3500
      %3645 = vmatprep.subr.mxu0 %v3509
      %3646 = vmatpush1.msra.mxu0 %v3508
      %3647 = vmatprep.subr.mxu0 %v3517
      %3648 = vmatpush1.msra.mxu0 %v3516
      %3649 = vmatprep.subr.mxu0 %v3525
      %3650 = vmatpush1.msra.mxu0 %v3524
      %3651 = vmatprep.subr.mxu0 %v3533
      %3652 = vmatpush1.msra.mxu0 %v3532
      %3653 = vmatprep.subr.mxu0 %v3541
      %3654 = vmatpush1.msra.mxu0 %v3540
      %3655 = vmatprep.subr.mxu0 %v3549
      %3656 = vmatpush1.msra.mxu0 %v3548
      %3657 = vmatprep.subr.mxu0 %v3557
      %3658 = vmatpush1.msra.mxu0 %v3556
      %3659 = vmatprep.subr.mxu0 0.0
      %3660 = vmatpush1.msra.mxu0 0.0
      %3661 = vmatprep.subr.mxu0 0.0
      %3662 = vmatpush1.msra.mxu0 0.0
      %3663 = vmatprep.subr.mxu0 0.0
      %3664 = vmatpush1.msra.mxu0 0.0
      %3665 = vmatprep.subr.mxu0 0.0
      %3666 = vmatpush1.msra.mxu0 0.0
      %3667 = vmatprep.subr.mxu0 0.0
      %3668 = vmatpush1.msra.mxu0 0.0
      %3669 = vmatprep.subr.mxu0 0.0
      %3670 = vmatpush1.msra.mxu0 0.0
      %3671 = vmatprep.subr.mxu0 0.0
      %3672 = vmatpush1.msra.mxu0 0.0
      %3673 = vmatprep.subr.mxu0 0.0
      %3674 = vmatpush1.msra.mxu0 0.0
      %3675 = vmatprep.subr.mxu0 0.0
      %3676 = vmatpush1.msra.mxu0 0.0
      %3677 = vmatprep.subr.mxu0 0.0
      %3678 = vmatpush1.msra.mxu0 0.0
      %3679 = vmatprep.subr.mxu0 0.0
      %3680 = vmatpush1.msra.mxu0 0.0
      %3681 = vmatprep.subr.mxu0 0.0
      %3682 = vmatpush1.msra.mxu0 0.0
      %3683 = vmatprep.subr.mxu0 0.0
      %3684 = vmatpush1.msra.mxu0 0.0
      %3685 = vmatprep.subr.mxu0 0.0
      %3686 = vmatpush1.msra.mxu0 0.0
      %3687 = vmatprep.subr.mxu0 0.0
      %3688 = vmatpush1.msra.mxu0 0.0
      %3689 = vmatprep.subr.mxu0 0.0
      %3690 = vmatpush1.msra.mxu0 0.0
      %3691 = vmatprep.subr.mxu0 0.0
      %3692 = vmatpush1.msra.mxu0 0.0
      %3693 = vmatprep.subr.mxu0 0.0
      %3694 = vmatpush1.msra.mxu0 0.0
      %3695 = vmatprep.subr.mxu0 0.0
      %3696 = vmatpush1.msra.mxu0 0.0
      %3697 = vmatprep.subr.mxu0 0.0
      %3698 = vmatpush1.msra.mxu0 0.0
      %3699 = vmatprep.subr.mxu0 0.0
      %3700 = vmatpush1.msra.mxu0 0.0
      %3701 = vmatprep.subr.mxu0 0.0
      %3702 = vmatpush1.msra.mxu0 0.0
      %3703 = vmatprep.subr.mxu0 0.0
      %3704 = vmatpush1.msra.mxu0 0.0
      %3705 = vmatprep.mubr.f32.mxu0 0.0
      %3706 = vmatmul.mubr.f32.gmra.mrb[0].mxu0 %v3568
      %v3707 = vpop.f32.mrb[0].mxu0
      %v3708 = vadd.f32 %v3565, %v3707
      %v3709 = vpop.f32.mrb[0].mxu0
      %v3710 = vadd.f32 %v3565, %v3709
      %3711 = vdwg.mxu0
      %3712 = vmatprep.subr.mxu0 %v3495
      %3713 = vmatpush1.msra.mxu0 %v3494
      %3714 = vmatprep.subr.mxu0 %v3503
      %3715 = vmatpush1.msra.mxu0 %v3502
      %3716 = vmatprep.subr.mxu0 %v3511
      %3717 = vmatpush1.msra.mxu0 %v3510
      %3718 = vmatprep.subr.mxu0 %v3519
      %3719 = vmatpush1.msra.mxu0 %v3518
      %3720 = vmatprep.subr.mxu0 %v3527
      %3721 = vmatpush1.msra.mxu0 %v3526
      %3722 = vmatprep.subr.mxu0 %v3535
      %3723 = vmatpush1.msra.mxu0 %v3534
      %3724 = vmatprep.subr.mxu0 %v3543
      %3725 = vmatpush1.msra.mxu0 %v3542
      %3726 = vmatprep.subr.mxu0 %v3551
      %3727 = vmatpush1.msra.mxu0 %v3550
      %3728 = vmatprep.subr.mxu0 %v3559
      %3729 = vmatpush1.msra.mxu0 %v3558
      %3730 = vmatprep.subr.mxu0 0.0
      %3731 = vmatpush1.msra.mxu0 0.0
      %3732 = vmatprep.subr.mxu0 0.0
      %3733 = vmatpush1.msra.mxu0 0.0
      %3734 = vmatprep.subr.mxu0 0.0
      %3735 = vmatpush1.msra.mxu0 0.0
      %3736 = vmatprep.subr.mxu0 0.0
      %3737 = vmatpush1.msra.mxu0 0.0
      %3738 = vmatprep.subr.mxu0 0.0
      %3739 = vmatpush1.msra.mxu0 0.0
      %3740 = vmatprep.subr.mxu0 0.0
      %3741 = vmatpush1.msra.mxu0 0.0
      %3742 = vmatprep.subr.mxu0 0.0
      %3743 = vmatpush1.msra.mxu0 0.0
      %3744 = vmatprep.subr.mxu0 0.0
      %3745 = vmatpush1.msra.mxu0 0.0
      %3746 = vmatprep.subr.mxu0 0.0
      %3747 = vmatpush1.msra.mxu0 0.0
      %3748 = vmatprep.subr.mxu0 0.0
      %3749 = vmatpush1.msra.mxu0 0.0
      %3750 = vmatprep.subr.mxu0 0.0
      %3751 = vmatpush1.msra.mxu0 0.0
      %3752 = vmatprep.subr.mxu0 0.0
      %3753 = vmatpush1.msra.mxu0 0.0
      %3754 = vmatprep.subr.mxu0 0.0
      %3755 = vmatpush1.msra.mxu0 0.0
      %3756 = vmatprep.subr.mxu0 0.0
      %3757 = vmatpush1.msra.mxu0 0.0
      %3758 = vmatprep.subr.mxu0 0.0
      %3759 = vmatpush1.msra.mxu0 0.0
      %3760 = vmatprep.subr.mxu0 0.0
      %3761 = vmatpush1.msra.mxu0 0.0
      %3762 = vmatprep.subr.mxu0 0.0
      %3763 = vmatpush1.msra.mxu0 0.0
      %3764 = vmatprep.subr.mxu0 0.0
      %3765 = vmatpush1.msra.mxu0 0.0
      %3766 = vmatprep.subr.mxu0 0.0
      %3767 = vmatpush1.msra.mxu0 0.0
      %3768 = vmatprep.subr.mxu0 0.0
      %3769 = vmatpush1.msra.mxu0 0.0
      %3770 = vmatprep.subr.mxu0 0.0
      %3771 = vmatpush1.msra.mxu0 0.0
      %3772 = vmatprep.subr.mxu0 0.0
      %3773 = vmatpush1.msra.mxu0 0.0
      %3774 = vmatprep.subr.mxu0 0.0
      %3775 = vmatpush1.msra.mxu0 0.0
      %3776 = vmatprep.mubr.f32.mxu0 0.0
      %3777 = vmatmul.mubr.f32.gmra.mrb[0].mxu0 %v3568
      %v3778 = vpop.f32.mrb[0].mxu0
      %v3779 = vadd.f32 %v3565, %v3778
      %v3780 = vpop.f32.mrb[0].mxu0
      %v3781 = vadd.f32 %v3565, %v3780
      %3782 = vdwg.mxu0
      %3783 = vmatprep.subr.mxu0 %v3497
      %3784 = vmatpush1.msra.mxu0 %v3496
      %3785 = vmatprep.subr.mxu0 %v3505
      %3786 = vmatpush1.msra.mxu0 %v3504
      %3787 = vmatprep.subr.mxu0 %v3513
      %3788 = vmatpush1.msra.mxu0 %v3512
      %3789 = vmatprep.subr.mxu0 %v3521
      %3790 = vmatpush1.msra.mxu0 %v3520
      %3791 = vmatprep.subr.mxu0 %v3529
      %3792 = vmatpush1.msra.mxu0 %v3528
      %3793 = vmatprep.subr.mxu0 %v3537
      %3794 = vmatpush1.msra.mxu0 %v3536
      %3795 = vmatprep.subr.mxu0 %v3545
      %3796 = vmatpush1.msra.mxu0 %v3544
      %3797 = vmatprep.subr.mxu0 %v3553
      %3798 = vmatpush1.msra.mxu0 %v3552
      %3799 = vmatprep.subr.mxu0 %v3561
      %3800 = vmatpush1.msra.mxu0 %v3560
      %3801 = vmatprep.subr.mxu0 0.0
      %3802 = vmatpush1.msra.mxu0 0.0
      %3803 = vmatprep.subr.mxu0 0.0
      %3804 = vmatpush1.msra.mxu0 0.0
      %3805 = vmatprep.subr.mxu0 0.0
      %3806 = vmatpush1.msra.mxu0 0.0
      %3807 = vmatprep.subr.mxu0 0.0
      %3808 = vmatpush1.msra.mxu0 0.0
      %3809 = vmatprep.subr.mxu0 0.0
      %3810 = vmatpush1.msra.mxu0 0.0
      %3811 = vmatprep.subr.mxu0 0.0
      %3812 = vmatpush1.msra.mxu0 0.0
      %3813 = vmatprep.subr.mxu0 0.0
      %3814 = vmatpush1.msra.mxu0 0.0
      %3815 = vmatprep.subr.mxu0 0.0
      %3816 = vmatpush1.msra.mxu0 0.0
      %3817 = vmatprep.subr.mxu0 0.0
      %3818 = vmatpush1.msra.mxu0 0.0
      %3819 = vmatprep.subr.mxu0 0.0
      %3820 = vmatpush1.msra.mxu0 0.0
      %3821 = vmatprep.subr.mxu0 0.0
      %3822 = vmatpush1.msra.mxu0 0.0
      %3823 = vmatprep.subr.mxu0 0.0
      %3824 = vmatpush1.msra.mxu0 0.0
      %3825 = vmatprep.subr.mxu0 0.0
      %3826 = vmatpush1.msra.mxu0 0.0
      %3827 = vmatprep.subr.mxu0 0.0
      %3828 = vmatpush1.msra.mxu0 0.0
      %3829 = vmatprep.subr.mxu0 0.0
      %3830 = vmatpush1.msra.mxu0 0.0
      %3831 = vmatprep.subr.mxu0 0.0
      %3832 = vmatpush1.msra.mxu0 0.0
      %3833 = vmatprep.subr.mxu0 0.0
      %3834 = vmatpush1.msra.mxu0 0.0
      %3835 = vmatprep.subr.mxu0 0.0
      %3836 = vmatpush1.msra.mxu0 0.0
      %3837 = vmatprep.subr.mxu0 0.0
      %3838 = vmatpush1.msra.mxu0 0.0
      %3839 = vmatprep.subr.mxu0 0.0
      %3840 = vmatpush1.msra.mxu0 0.0
      %3841 = vmatprep.subr.mxu0 0.0
      %3842 = vmatpush1.msra.mxu0 0.0
      %3843 = vmatprep.subr.mxu0 0.0
      %3844 = vmatpush1.msra.mxu0 0.0
      %3845 = vmatprep.subr.mxu0 0.0
      %3846 = vmatpush1.msra.mxu0 0.0
      %3847 = vmatprep.mubr.f32.mxu0 0.0
      %3848 = vmatmul.mubr.f32.gmra.mrb[0].mxu0 %v3568
      %v3849 = vpop.f32.mrb[0].mxu0
      %v3850 = vadd.f32 %v3565, %v3849
      %v3851 = vpop.f32.mrb[0].mxu0
      %v3852 = vadd.f32 %v3565, %v3851
      %3853 = vdwg.mxu0
      %v3854 = vmul.f32 %v3637, %v2863
      %v3855 = vmul.f32 %v3639, %v2865
      %v3856 = vmul.f32 %v3708, %v2934
      %v3857 = vmul.f32 %v3710, %v2936
      %v3858 = vmul.f32 %v3779, %v3005
      %v3859 = vmul.f32 %v3781, %v3007
      %v3860 = vmul.f32 %v3850, %v3076
      %v3861 = vmul.f32 %v3852, %v3078
      %v3862 = vmul.f32 %v3854, %v697
      %v3863 = vmul.f32 %v3855, %v698
      %v3864 = vmul.f32 %v3856, %v699
      %v3865 = vmul.f32 %v3857, %v700
      %v3866 = vmul.f32 %v3858, %v701
      %v3867 = vmul.f32 %v3859, %v702
      %v3868 = vmul.f32 %v3860, %v703
      %v3869 = vmul.f32 %v3861, %v704
      %v3870 = vld [vmem:[%s13] sm:$0xff]
      %v3871 = vld [vmem:[%s13 + $0x8] sm:$0xff]
      %v3872 = vld [vmem:[%s13 + $0x10] sm:$0xff]
      %v3873 = vld [vmem:[%s13 + $0x18] sm:$0xff]
      %v3874 = vld [vmem:[%s14] sm:$0xff]
      %v3875 = vld [vmem:[%s14 + $0x8] sm:$0xff]
      %3878 = vrot.lane.b32.xlu0 %v1971, 17
      %v3879 = vpop.permute.xlu0 %3878
      %3880 = vrot.lane.b32.xlu0 %v1968, 17
      %v3881 = vpop.permute.xlu0 %3880
      %3886 = vrot.lane.b32.xlu0 %v1970, 17
      %v3887 = vpop.permute.xlu0 %3886
      %3888 = vrot.lane.b32.xlu0 %v1966, 17
      %v3889 = vpop.permute.xlu0 %3888
      %v3890 = vsel %vm1661, %v3887, %v3879
      %v3891 = vsel %vm1661, %v3889, %v3881
      %v3896 = vsel %vm1661, %v3879, %v3887
      %v3897 = vsel %vm1661, %v3881, %v3889
      %v3898 = vmul.f32 %v3896, %v1670
      %v3899 = vmul.f32 %v3890, %v1674
      %v3900 = vmul.f32 %v3897, %v1670
      %v3901 = vmul.f32 %v3891, %v1674
      %3902 = vst [vmem:[#allocation2] sm:$0xff] %v3898
      %3903 = vst [vmem:[#allocation2 + $0x8] sm:$0xff] %v3899
      %3904 = vst [vmem:[#allocation2 + $0x10] sm:$0xff] %v3900
      %3905 = vst [vmem:[#allocation2 + $0x18] sm:$0xff] %v3901
      %3906 = vrot.lane.b32.xlu0 %v1971, 16
      %v3907 = vpop.permute.xlu0 %3906
      %3908 = vrot.lane.b32.xlu0 %v1968, 16
      %v3909 = vpop.permute.xlu0 %3908
      %3912 = vrot.lane.b32.xlu0 %v1970, 16
      %v3913 = vpop.permute.xlu0 %3912
      %3914 = vrot.lane.b32.xlu0 %v1966, 16
      %v3915 = vpop.permute.xlu0 %3914
      %v3916 = vsel %vm1686, %v3913, %v3907
      %v3917 = vsel %vm1686, %v3915, %v3909
      %v3922 = vsel %vm1686, %v3907, %v3913
      %v3923 = vsel %vm1686, %v3909, %v3915
      %v3924 = vmul.f32 %v3922, %v1695
      %v3925 = vmul.f32 %v3916, %v1699
      %v3926 = vmul.f32 %v3923, %v1695
      %v3927 = vmul.f32 %v3917, %v1699
      %3928 = vst [vmem:[#allocation2 + $0x20] sm:$0xff] %v3924
      %3929 = vst [vmem:[#allocation2 + $0x28] sm:$0xff] %v3925
      %3930 = vst [vmem:[#allocation2 + $0x30] sm:$0xff] %v3926
      %3931 = vst [vmem:[#allocation2 + $0x38] sm:$0xff] %v3927
      %3932 = vrot.lane.b32.xlu0 %v1971, 15
      %v3933 = vpop.permute.xlu0 %3932
      %3934 = vrot.lane.b32.xlu0 %v1968, 15
      %v3935 = vpop.permute.xlu0 %3934
      %3938 = vrot.lane.b32.xlu0 %v1970, 15
      %v3939 = vpop.permute.xlu0 %3938
      %3940 = vrot.lane.b32.xlu0 %v1966, 15
      %v3941 = vpop.permute.xlu0 %3940
      %v3942 = vsel %vm1711, %v3939, %v3933
      %v3943 = vsel %vm1711, %v3941, %v3935
      %v3948 = vsel %vm1711, %v3933, %v3939
      %v3949 = vsel %vm1711, %v3935, %v3941
      %v3950 = vmul.f32 %v3948, %v1720
      %v3951 = vmul.f32 %v3942, %v1724
      %v3952 = vmul.f32 %v3949, %v1720
      %v3953 = vmul.f32 %v3943, %v1724
      %3954 = vst [vmem:[#allocation2 + $0x40] sm:$0xff] %v3950
      %3955 = vst [vmem:[#allocation2 + $0x48] sm:$0xff] %v3951
      %3956 = vst [vmem:[#allocation2 + $0x50] sm:$0xff] %v3952
      %3957 = vst [vmem:[#allocation2 + $0x58] sm:$0xff] %v3953
      %3958 = vrot.lane.b32.xlu0 %v1971, 1
      %v3959 = vpop.permute.xlu0 %3958
      %3960 = vrot.lane.b32.xlu0 %v1968, 1
      %v3961 = vpop.permute.xlu0 %3960
      %3964 = vrot.lane.b32.xlu0 %v1970, 1
      %v3965 = vpop.permute.xlu0 %3964
      %3966 = vrot.lane.b32.xlu0 %v1966, 1
      %v3967 = vpop.permute.xlu0 %3966
      %v3968 = vsel %vm1736, %v3965, %v3959
      %v3969 = vsel %vm1736, %v3967, %v3961
      %v3974 = vsel %vm1736, %v3959, %v3965
      %v3975 = vsel %vm1736, %v3961, %v3967
      %v3976 = vmul.f32 %v3974, %v1745
      %v3977 = vmul.f32 %v3968, %v1749
      %v3978 = vmul.f32 %v3975, %v1745
      %v3979 = vmul.f32 %v3969, %v1749
      %3980 = vst [vmem:[#allocation2 + $0x60] sm:$0xff] %v3976
      %3981 = vst [vmem:[#allocation2 + $0x68] sm:$0xff] %v3977
      %3982 = vst [vmem:[#allocation2 + $0x70] sm:$0xff] %v3978
      %3983 = vst [vmem:[#allocation2 + $0x78] sm:$0xff] %v3979
      %3984 = vst [vmem:[#allocation2 + $0x80] sm:$0xff] %v1970
      %3985 = vst [vmem:[#allocation2 + $0x88] sm:$0xff] %v1971
      %3986 = vst [vmem:[#allocation2 + $0x90] sm:$0xff] %v1966
      %3987 = vst [vmem:[#allocation2 + $0x98] sm:$0xff] %v1968
      %3988 = vrot.lane.b32.xlu0 %v1970, 127
      %v3989 = vpop.permute.xlu0 %3988
      %3990 = vrot.lane.b32.xlu0 %v1971, 127
      %v3991 = vpop.permute.xlu0 %3990
      %3992 = vrot.lane.b32.xlu0 %v1966, 127
      %v3993 = vpop.permute.xlu0 %3992
      %3994 = vrot.lane.b32.xlu0 %v1968, 127
      %v3995 = vpop.permute.xlu0 %3994
      %v3996 = vsel %vm1762, %v3989, %v3991
      %v3997 = vsel %vm1762, %v3993, %v3995
      %v4004 = vsel %vm1762, %v3991, %v3989
      %v4005 = vsel %vm1762, %v3995, %v3993
      %v4006 = vmul.f32 %v3996, %v1772
      %v4007 = vmul.f32 %v4004, %v1776
      %v4008 = vmul.f32 %v3997, %v1772
      %v4009 = vmul.f32 %v4005, %v1776
      %4010 = vst [vmem:[#allocation2 + $0xa0] sm:$0xff] %v4006
      %4011 = vst [vmem:[#allocation2 + $0xa8] sm:$0xff] %v4007
      %4012 = vst [vmem:[#allocation2 + $0xb0] sm:$0xff] %v4008
      %4013 = vst [vmem:[#allocation2 + $0xb8] sm:$0xff] %v4009
      %4014 = vrot.lane.b32.xlu0 %v1970, 113
      %v4015 = vpop.permute.xlu0 %4014
      %4016 = vrot.lane.b32.xlu0 %v1971, 113
      %v4017 = vpop.permute.xlu0 %4016
      %4018 = vrot.lane.b32.xlu0 %v1966, 113
      %v4019 = vpop.permute.xlu0 %4018
      %4020 = vrot.lane.b32.xlu0 %v1968, 113
      %v4021 = vpop.permute.xlu0 %4020
      %v4022 = vsel %vm1787, %v4015, %v4017
      %v4023 = vsel %vm1787, %v4019, %v4021
      %v4030 = vsel %vm1787, %v4017, %v4015
      %v4031 = vsel %vm1787, %v4021, %v4019
      %v4032 = vmul.f32 %v4022, %v1797
      %v4033 = vmul.f32 %v4030, %v1801
      %v4034 = vmul.f32 %v4023, %v1797
      %v4035 = vmul.f32 %v4031, %v1801
      %4036 = vst [vmem:[#allocation2 + $0xc0] sm:$0xff] %v4032
      %4037 = vst [vmem:[#allocation2 + $0xc8] sm:$0xff] %v4033
      %4038 = vst [vmem:[#allocation2 + $0xd0] sm:$0xff] %v4034
      %4039 = vst [vmem:[#allocation2 + $0xd8] sm:$0xff] %v4035
      %4040 = vrot.lane.b32.xlu0 %v1970, 112
      %v4041 = vpop.permute.xlu0 %4040
      %4042 = vrot.lane.b32.xlu0 %v1971, 112
      %v4043 = vpop.permute.xlu0 %4042
      %4044 = vrot.lane.b32.xlu0 %v1966, 112
      %v4045 = vpop.permute.xlu0 %4044
      %4046 = vrot.lane.b32.xlu0 %v1968, 112
      %v4047 = vpop.permute.xlu0 %4046
      %v4048 = vsel %vm1812, %v4041, %v4043
      %v4049 = vsel %vm1812, %v4045, %v4047
      %v4056 = vsel %vm1812, %v4043, %v4041
      %v4057 = vsel %vm1812, %v4047, %v4045
      %v4058 = vmul.f32 %v4048, %v1822
      %v4059 = vmul.f32 %v4056, %v1826
      %v4060 = vmul.f32 %v4049, %v1822
      %v4061 = vmul.f32 %v4057, %v1826
      %4062 = vst [vmem:[#allocation2 + $0xe0] sm:$0xff] %v4058
      %4063 = vst [vmem:[#allocation2 + $0xe8] sm:$0xff] %v4059
      %4064 = vst [vmem:[#allocation2 + $0xf0] sm:$0xff] %v4060
      %4065 = vst [vmem:[#allocation2 + $0xf8] sm:$0xff] %v4061
      %4066 = vrot.lane.b32.xlu0 %v1970, 111
      %v4067 = vpop.permute.xlu0 %4066
      %4068 = vrot.lane.b32.xlu0 %v1971, 111
      %v4069 = vpop.permute.xlu0 %4068
      %4070 = vrot.lane.b32.xlu0 %v1966, 111
      %v4071 = vpop.permute.xlu0 %4070
      %4072 = vrot.lane.b32.xlu0 %v1968, 111
      %v4073 = vpop.permute.xlu0 %4072
      %v4074 = vsel %vm1837, %v4067, %v4069
      %v4075 = vsel %vm1837, %v4071, %v4073
      %v4082 = vsel %vm1837, %v4069, %v4067
      %v4083 = vsel %vm1837, %v4073, %v4071
      %v4084 = vmul.f32 %v4074, %v1847
      %v4085 = vmul.f32 %v4082, %v1851
      %v4086 = vmul.f32 %v4075, %v1847
      %v4087 = vmul.f32 %v4083, %v1851
      %4088 = vst [vmem:[#allocation2 + $0x100] sm:$0xff] %v4084
      %4089 = vst [vmem:[#allocation2 + $0x108] sm:$0xff] %v4085
      %4090 = vst [vmem:[#allocation2 + $0x110] sm:$0xff] %v4086
      %4091 = vst [vmem:[#allocation2 + $0x118] sm:$0xff] %v4087
      %v4092 = vld [vmem:[#allocation2] sm:$0xff]
      %v4093 = vld [vmem:[#allocation2 + $0x8] sm:$0xff]
      %v4094 = vld [vmem:[#allocation2 + $0x10] sm:$0xff]
      %v4095 = vld [vmem:[#allocation2 + $0x18] sm:$0xff]
      %v4096 = vld [vmem:[#allocation2 + $0x20] sm:$0xff]
      %v4097 = vld [vmem:[#allocation2 + $0x28] sm:$0xff]
      %v4098 = vld [vmem:[#allocation2 + $0x30] sm:$0xff]
      %v4099 = vld [vmem:[#allocation2 + $0x38] sm:$0xff]
      %v4100 = vld [vmem:[#allocation2 + $0x40] sm:$0xff]
      %v4101 = vld [vmem:[#allocation2 + $0x48] sm:$0xff]
      %v4102 = vld [vmem:[#allocation2 + $0x50] sm:$0xff]
      %v4103 = vld [vmem:[#allocation2 + $0x58] sm:$0xff]
      %v4104 = vld [vmem:[#allocation2 + $0x60] sm:$0xff]
      %v4105 = vld [vmem:[#allocation2 + $0x68] sm:$0xff]
      %v4106 = vld [vmem:[#allocation2 + $0x70] sm:$0xff]
      %v4107 = vld [vmem:[#allocation2 + $0x78] sm:$0xff]
      %v4108 = vld [vmem:[#allocation2 + $0x80] sm:$0xff]
      %v4109 = vld [vmem:[#allocation2 + $0x88] sm:$0xff]
      %v4110 = vld [vmem:[#allocation2 + $0x90] sm:$0xff]
      %v4111 = vld [vmem:[#allocation2 + $0x98] sm:$0xff]
      %v4112 = vld [vmem:[#allocation2 + $0xa0] sm:$0xff]
      %v4113 = vld [vmem:[#allocation2 + $0xa8] sm:$0xff]
      %v4114 = vld [vmem:[#allocation2 + $0xb0] sm:$0xff]
      %v4115 = vld [vmem:[#allocation2 + $0xb8] sm:$0xff]
      %v4116 = vld [vmem:[#allocation2 + $0xc0] sm:$0xff]
      %v4117 = vld [vmem:[#allocation2 + $0xc8] sm:$0xff]
      %v4118 = vld [vmem:[#allocation2 + $0xd0] sm:$0xff]
      %v4119 = vld [vmem:[#allocation2 + $0xd8] sm:$0xff]
      %v4120 = vld [vmem:[#allocation2 + $0xe0] sm:$0xff]
      %v4121 = vld [vmem:[#allocation2 + $0xe8] sm:$0xff]
      %v4122 = vld [vmem:[#allocation2 + $0xf0] sm:$0xff]
      %v4123 = vld [vmem:[#allocation2 + $0xf8] sm:$0xff]
      %v4124 = vld [vmem:[#allocation2 + $0x100] sm:$0xff]
      %v4125 = vld [vmem:[#allocation2 + $0x108] sm:$0xff]
      %v4126 = vld [vmem:[#allocation2 + $0x110] sm:$0xff]
      %v4127 = vld [vmem:[#allocation2 + $0x118] sm:$0xff]
      %4129 = vset.pattern.permute.xlu0 0
      %4130 = vperm.xlu0 %4129, %v3874
      %v4131 = vpop.permute.xlu0 %4130
      %4134 = vset.pattern.permute.xlu0 0
      %4135 = vperm.xlu0 %4134, %v3875
      %v4136 = vpop.permute.xlu0 %4135
      %v4139 = vsel %vm1686, %v3871, 0
      %v4142 = vsel %vm1686, %v3873, 0
      %4144 = vmatprep.subr.mxu0 %v4093
      %4145 = vmatpush1.msra.mxu0 %v4092
      %4146 = vmatprep.subr.mxu0 %v4095
      %4147 = vmatpush1.msra.mxu0 %v4094
      %4148 = vmatprep.subr.mxu0 %v4097
      %4149 = vmatpush1.msra.mxu0 %v4096
      %4150 = vmatprep.subr.mxu0 %v4099
      %4151 = vmatpush1.msra.mxu0 %v4098
      %4152 = vmatprep.subr.mxu0 %v4101
      %4153 = vmatpush1.msra.mxu0 %v4100
      %4154 = vmatprep.subr.mxu0 %v4103
      %4155 = vmatpush1.msra.mxu0 %v4102
      %4156 = vmatprep.subr.mxu0 %v4105
      %4157 = vmatpush1.msra.mxu0 %v4104
      %4158 = vmatprep.subr.mxu0 %v4107
      %4159 = vmatpush1.msra.mxu0 %v4106
      %4160 = vmatprep.subr.mxu0 %v4109
      %4161 = vmatpush1.msra.mxu0 %v4108
      %4162 = vmatprep.subr.mxu0 %v4111
      %4163 = vmatpush1.msra.mxu0 %v4110
      %4164 = vmatprep.subr.mxu0 %v4113
      %4165 = vmatpush1.msra.mxu0 %v4112
      %4166 = vmatprep.subr.mxu0 %v4115
      %4167 = vmatpush1.msra.mxu0 %v4114
      %4168 = vmatprep.subr.mxu0 %v4117
      %4169 = vmatpush1.msra.mxu0 %v4116
      %4170 = vmatprep.subr.mxu0 %v4119
      %4171 = vmatpush1.msra.mxu0 %v4118
      %4172 = vmatprep.subr.mxu0 %v4121
      %4173 = vmatpush1.msra.mxu0 %v4120
      %4174 = vmatprep.subr.mxu0 %v4123
      %4175 = vmatpush1.msra.mxu0 %v4122
      %4176 = vmatprep.subr.mxu0 %v4125
      %4177 = vmatpush1.msra.mxu0 %v4124
      %4178 = vmatprep.subr.mxu0 %v4127
      %4179 = vmatpush1.msra.mxu0 %v4126
      %4180 = vmatprep.subr.mxu0 0.0
      %4181 = vmatpush1.msra.mxu0 0.0
      %4182 = vmatprep.subr.mxu0 0.0
      %4183 = vmatpush1.msra.mxu0 0.0
      %4184 = vmatprep.subr.mxu0 0.0
      %4185 = vmatpush1.msra.mxu0 0.0
      %4186 = vmatprep.subr.mxu0 0.0
      %4187 = vmatpush1.msra.mxu0 0.0
      %4188 = vmatprep.subr.mxu0 0.0
      %4189 = vmatpush1.msra.mxu0 0.0
      %4190 = vmatprep.subr.mxu0 0.0
      %4191 = vmatpush1.msra.mxu0 0.0
      %4192 = vmatprep.subr.mxu0 0.0
      %4193 = vmatpush1.msra.mxu0 0.0
      %4194 = vmatprep.subr.mxu0 0.0
      %4195 = vmatpush1.msra.mxu0 0.0
      %4196 = vmatprep.subr.mxu0 0.0
      %4197 = vmatpush1.msra.mxu0 0.0
      %4198 = vmatprep.subr.mxu0 0.0
      %4199 = vmatpush1.msra.mxu0 0.0
      %4200 = vmatprep.subr.mxu0 0.0
      %4201 = vmatpush1.msra.mxu0 0.0
      %4202 = vmatprep.subr.mxu0 0.0
      %4203 = vmatpush1.msra.mxu0 0.0
      %4204 = vmatprep.subr.mxu0 0.0
      %4205 = vmatpush1.msra.mxu0 0.0
      %4206 = vmatprep.subr.mxu0 0.0
      %4207 = vmatpush1.msra.mxu0 0.0
      %4208 = vmatprep.mubr.f32.mxu0 %v4139
      %4209 = vmatmul.mubr.f32.gmra.mrb[0].mxu0 %v3870
      %v4210 = vpop.f32.mrb[0].mxu0
      %v4211 = vadd.f32 %v4131, %v4210
      %v4212 = vpop.f32.mrb[0].mxu0
      %v4213 = vadd.f32 %v4131, %v4212
      %4214 = vmatprep.mubr.f32.mxu0 %v4142
      %4215 = vmatmul.mubr.f32.gmra.mrb[0].mxu0 %v3872
      %v4216 = vpop.f32.mrb[0].mxu0
      %v4217 = vadd.f32 %v4136, %v4216
      %v4218 = vpop.f32.mrb[0].mxu0
      %v4219 = vadd.f32 %v4136, %v4218
      %4220 = vdwg.mxu0
      %4221 = vmatprep.subr.mxu0 %v722
      %4222 = vmatpush1.msra.mxu0 %v721
      %4223 = vmatprep.subr.mxu0 %v730
      %4224 = vmatpush1.msra.mxu0 %v729
      %4225 = vmatprep.subr.mxu0 %v738
      %4226 = vmatpush1.msra.mxu0 %v737
      %4227 = vmatprep.subr.mxu0 %v746
      %4228 = vmatpush1.msra.mxu0 %v745
      %4229 = vmatprep.subr.mxu0 %v754
      %4230 = vmatpush1.msra.mxu0 %v753
      %4231 = vmatprep.subr.mxu0 %v762
      %4232 = vmatpush1.msra.mxu0 %v761
      %4233 = vmatprep.subr.mxu0 %v770
      %4234 = vmatpush1.msra.mxu0 %v769
      %4235 = vmatprep.subr.mxu0 %v778
      %4236 = vmatpush1.msra.mxu0 %v777
      %4237 = vmatprep.subr.mxu0 %v786
      %4238 = vmatpush1.msra.mxu0 %v785
      %4239 = vmatprep.subr.mxu0 %v794
      %4240 = vmatpush1.msra.mxu0 %v793
      %4241 = vmatprep.subr.mxu0 %v802
      %4242 = vmatpush1.msra.mxu0 %v801
      %4243 = vmatprep.subr.mxu0 %v810
      %4244 = vmatpush1.msra.mxu0 %v809
      %4245 = vmatprep.subr.mxu0 %v818
      %4246 = vmatpush1.msra.mxu0 %v817
      %4247 = vmatprep.subr.mxu0 %v826
      %4248 = vmatpush1.msra.mxu0 %v825
      %4249 = vmatprep.subr.mxu0 %v834
      %4250 = vmatpush1.msra.mxu0 %v833
      %4251 = vmatprep.subr.mxu0 %v842
      %4252 = vmatpush1.msra.mxu0 %v841
      %4253 = vmatprep.subr.mxu0 %v850
      %4254 = vmatpush1.msra.mxu0 %v849
      %4255 = vmatprep.subr.mxu0 %v858
      %4256 = vmatpush1.msra.mxu0 %v857
      %4257 = vmatprep.subr.mxu0 %v866
      %4258 = vmatpush1.msra.mxu0 %v865
      %4259 = vmatprep.subr.mxu0 %v874
      %4260 = vmatpush1.msra.mxu0 %v873
      %4261 = vmatprep.subr.mxu0 %v882
      %4262 = vmatpush1.msra.mxu0 %v881
      %4263 = vmatprep.subr.mxu0 %v890
      %4264 = vmatpush1.msra.mxu0 %v889
      %4265 = vmatprep.subr.mxu0 %v898
      %4266 = vmatpush1.msra.mxu0 %v897
      %4267 = vmatprep.subr.mxu0 %v906
      %4268 = vmatpush1.msra.mxu0 %v905
      %4269 = vmatprep.subr.mxu0 %v914
      %4270 = vmatpush1.msra.mxu0 %v913
      %4271 = vmatprep.subr.mxu0 %v922
      %4272 = vmatpush1.msra.mxu0 %v921
      %4273 = vmatprep.subr.mxu0 %v930
      %4274 = vmatpush1.msra.mxu0 %v929
      %4275 = vmatprep.subr.mxu0 %v938
      %4276 = vmatpush1.msra.mxu0 %v937
      %4277 = vmatprep.subr.mxu0 %v946
      %4278 = vmatpush1.msra.mxu0 %v945
      %4279 = vmatprep.subr.mxu0 %v954
      %4280 = vmatpush1.msra.mxu0 %v953
      %4281 = vmatprep.subr.mxu0 %v962
      %4282 = vmatpush1.msra.mxu0 %v961
      %4283 = vmatprep.subr.mxu0 %v970
      %4284 = vmatpush1.msra.mxu0 %v969
      %4285 = vmatprep.mubr.f32.mxu0 %v4213
      %4286 = vmatmul.mubr.f32.gmra.mrb[0].mxu0 %v4211
      %v4287 = vpop.f32.mrb[0].mxu0
      %v4288 = vadd.f32 0.0, %v4287
      %v4289 = vpop.f32.mrb[0].mxu0
      %v4290 = vadd.f32 0.0, %v4289
      %4291 = vmatprep.mubr.f32.mxu0 %v4219
      %4292 = vmatmul.mubr.f32.gmra.mrb[0].mxu0 %v4217
      %v4293 = vpop.f32.mrb[0].mxu0
      %v4294 = vadd.f32 0.0, %v4293
      %v4295 = vpop.f32.mrb[0].mxu0
      %v4296 = vadd.f32 0.0, %v4295
      %4297 = vdwg.mxu0
      %4298 = vmatprep.subr.mxu0 %v724
      %4299 = vmatpush1.msra.mxu0 %v723
      %4300 = vmatprep.subr.mxu0 %v732
      %4301 = vmatpush1.msra.mxu0 %v731
      %4302 = vmatprep.subr.mxu0 %v740
      %4303 = vmatpush1.msra.mxu0 %v739
      %4304 = vmatprep.subr.mxu0 %v748
      %4305 = vmatpush1.msra.mxu0 %v747
      %4306 = vmatprep.subr.mxu0 %v756
      %4307 = vmatpush1.msra.mxu0 %v755
      %4308 = vmatprep.subr.mxu0 %v764
      %4309 = vmatpush1.msra.mxu0 %v763
      %4310 = vmatprep.subr.mxu0 %v772
      %4311 = vmatpush1.msra.mxu0 %v771
      %4312 = vmatprep.subr.mxu0 %v780
      %4313 = vmatpush1.msra.mxu0 %v779
      %4314 = vmatprep.subr.mxu0 %v788
      %4315 = vmatpush1.msra.mxu0 %v787
      %4316 = vmatprep.subr.mxu0 %v796
      %4317 = vmatpush1.msra.mxu0 %v795
      %4318 = vmatprep.subr.mxu0 %v804
      %4319 = vmatpush1.msra.mxu0 %v803
      %4320 = vmatprep.subr.mxu0 %v812
      %4321 = vmatpush1.msra.mxu0 %v811
      %4322 = vmatprep.subr.mxu0 %v820
      %4323 = vmatpush1.msra.mxu0 %v819
      %4324 = vmatprep.subr.mxu0 %v828
      %4325 = vmatpush1.msra.mxu0 %v827
      %4326 = vmatprep.subr.mxu0 %v836
      %4327 = vmatpush1.msra.mxu0 %v835
      %4328 = vmatprep.subr.mxu0 %v844
      %4329 = vmatpush1.msra.mxu0 %v843
      %4330 = vmatprep.subr.mxu0 %v852
      %4331 = vmatpush1.msra.mxu0 %v851
      %4332 = vmatprep.subr.mxu0 %v860
      %4333 = vmatpush1.msra.mxu0 %v859
      %4334 = vmatprep.subr.mxu0 %v868
      %4335 = vmatpush1.msra.mxu0 %v867
      %4336 = vmatprep.subr.mxu0 %v876
      %4337 = vmatpush1.msra.mxu0 %v875
      %4338 = vmatprep.subr.mxu0 %v884
      %4339 = vmatpush1.msra.mxu0 %v883
      %4340 = vmatprep.subr.mxu0 %v892
      %4341 = vmatpush1.msra.mxu0 %v891
      %4342 = vmatprep.subr.mxu0 %v900
      %4343 = vmatpush1.msra.mxu0 %v899
      %4344 = vmatprep.subr.mxu0 %v908
      %4345 = vmatpush1.msra.mxu0 %v907
      %4346 = vmatprep.subr.mxu0 %v916
      %4347 = vmatpush1.msra.mxu0 %v915
      %4348 = vmatprep.subr.mxu0 %v924
      %4349 = vmatpush1.msra.mxu0 %v923
      %4350 = vmatprep.subr.mxu0 %v932
      %4351 = vmatpush1.msra.mxu0 %v931
      %4352 = vmatprep.subr.mxu0 %v940
      %4353 = vmatpush1.msra.mxu0 %v939
      %4354 = vmatprep.subr.mxu0 %v948
      %4355 = vmatpush1.msra.mxu0 %v947
      %4356 = vmatprep.subr.mxu0 %v956
      %4357 = vmatpush1.msra.mxu0 %v955
      %4358 = vmatprep.subr.mxu0 %v964
      %4359 = vmatpush1.msra.mxu0 %v963
      %4360 = vmatprep.subr.mxu0 %v972
      %4361 = vmatpush1.msra.mxu0 %v971
      %4362 = vmatprep.mubr.f32.mxu0 %v4213
      %4363 = vmatmul.mubr.f32.gmra.mrb[0].mxu0 %v4211
      %v4364 = vpop.f32.mrb[0].mxu0
      %v4365 = vadd.f32 0.0, %v4364
      %v4366 = vpop.f32.mrb[0].mxu0
      %v4367 = vadd.f32 0.0, %v4366
      %4368 = vmatprep.mubr.f32.mxu0 %v4219
      %4369 = vmatmul.mubr.f32.gmra.mrb[0].mxu0 %v4217
      %v4370 = vpop.f32.mrb[0].mxu0
      %v4371 = vadd.f32 0.0, %v4370
      %v4372 = vpop.f32.mrb[0].mxu0
      %v4373 = vadd.f32 0.0, %v4372
      %4374 = vdwg.mxu0
      %4375 = vmatprep.subr.mxu0 %v726
      %4376 = vmatpush1.msra.mxu0 %v725
      %4377 = vmatprep.subr.mxu0 %v734
      %4378 = vmatpush1.msra.mxu0 %v733
      %4379 = vmatprep.subr.mxu0 %v742
      %4380 = vmatpush1.msra.mxu0 %v741
      %4381 = vmatprep.subr.mxu0 %v750
      %4382 = vmatpush1.msra.mxu0 %v749
      %4383 = vmatprep.subr.mxu0 %v758
      %4384 = vmatpush1.msra.mxu0 %v757
      %4385 = vmatprep.subr.mxu0 %v766
      %4386 = vmatpush1.msra.mxu0 %v765
      %4387 = vmatprep.subr.mxu0 %v774
      %4388 = vmatpush1.msra.mxu0 %v773
      %4389 = vmatprep.subr.mxu0 %v782
      %4390 = vmatpush1.msra.mxu0 %v781
      %4391 = vmatprep.subr.mxu0 %v790
      %4392 = vmatpush1.msra.mxu0 %v789
      %4393 = vmatprep.subr.mxu0 %v798
      %4394 = vmatpush1.msra.mxu0 %v797
      %4395 = vmatprep.subr.mxu0 %v806
      %4396 = vmatpush1.msra.mxu0 %v805
      %4397 = vmatprep.subr.mxu0 %v814
      %4398 = vmatpush1.msra.mxu0 %v813
      %4399 = vmatprep.subr.mxu0 %v822
      %4400 = vmatpush1.msra.mxu0 %v821
      %4401 = vmatprep.subr.mxu0 %v830
      %4402 = vmatpush1.msra.mxu0 %v829
      %4403 = vmatprep.subr.mxu0 %v838
      %4404 = vmatpush1.msra.mxu0 %v837
      %4405 = vmatprep.subr.mxu0 %v846
      %4406 = vmatpush1.msra.mxu0 %v845
      %4407 = vmatprep.subr.mxu0 %v854
      %4408 = vmatpush1.msra.mxu0 %v853
      %4409 = vmatprep.subr.mxu0 %v862
      %4410 = vmatpush1.msra.mxu0 %v861
      %4411 = vmatprep.subr.mxu0 %v870
      %4412 = vmatpush1.msra.mxu0 %v869
      %4413 = vmatprep.subr.mxu0 %v878
      %4414 = vmatpush1.msra.mxu0 %v877
      %4415 = vmatprep.subr.mxu0 %v886
      %4416 = vmatpush1.msra.mxu0 %v885
      %4417 = vmatprep.subr.mxu0 %v894
      %4418 = vmatpush1.msra.mxu0 %v893
      %4419 = vmatprep.subr.mxu0 %v902
      %4420 = vmatpush1.msra.mxu0 %v901
      %4421 = vmatprep.subr.mxu0 %v910
      %4422 = vmatpush1.msra.mxu0 %v909
      %4423 = vmatprep.subr.mxu0 %v918
      %4424 = vmatpush1.msra.mxu0 %v917
      %4425 = vmatprep.subr.mxu0 %v926
      %4426 = vmatpush1.msra.mxu0 %v925
      %4427 = vmatprep.subr.mxu0 %v934
      %4428 = vmatpush1.msra.mxu0 %v933
      %4429 = vmatprep.subr.mxu0 %v942
      %4430 = vmatpush1.msra.mxu0 %v941
      %4431 = vmatprep.subr.mxu0 %v950
      %4432 = vmatpush1.msra.mxu0 %v949
      %4433 = vmatprep.subr.mxu0 %v958
      %4434 = vmatpush1.msra.mxu0 %v957
      %4435 = vmatprep.subr.mxu0 %v966
      %4436 = vmatpush1.msra.mxu0 %v965
      %4437 = vmatprep.subr.mxu0 %v974
      %4438 = vmatpush1.msra.mxu0 %v973
      %4439 = vmatprep.mubr.f32.mxu0 %v4213
      %4440 = vmatmul.mubr.f32.gmra.mrb[0].mxu0 %v4211
      %v4441 = vpop.f32.mrb[0].mxu0
      %v4442 = vadd.f32 0.0, %v4441
      %v4443 = vpop.f32.mrb[0].mxu0
      %v4444 = vadd.f32 0.0, %v4443
      %4445 = vmatprep.mubr.f32.mxu0 %v4219
      %4446 = vmatmul.mubr.f32.gmra.mrb[0].mxu0 %v4217
      %v4447 = vpop.f32.mrb[0].mxu0
      %v4448 = vadd.f32 0.0, %v4447
      %v4449 = vpop.f32.mrb[0].mxu0
      %v4450 = vadd.f32 0.0, %v4449
      %4451 = vdwg.mxu0
      %4452 = vmatprep.subr.mxu0 %v728
      %4453 = vmatpush1.msra.mxu0 %v727
      %4454 = vmatprep.subr.mxu0 %v736
      %4455 = vmatpush1.msra.mxu0 %v735
      %4456 = vmatprep.subr.mxu0 %v744
      %4457 = vmatpush1.msra.mxu0 %v743
      %4458 = vmatprep.subr.mxu0 %v752
      %4459 = vmatpush1.msra.mxu0 %v751
      %4460 = vmatprep.subr.mxu0 %v760
      %4461 = vmatpush1.msra.mxu0 %v759
      %4462 = vmatprep.subr.mxu0 %v768
      %4463 = vmatpush1.msra.mxu0 %v767
      %4464 = vmatprep.subr.mxu0 %v776
      %4465 = vmatpush1.msra.mxu0 %v775
      %4466 = vmatprep.subr.mxu0 %v784
      %4467 = vmatpush1.msra.mxu0 %v783
      %4468 = vmatprep.subr.mxu0 %v792
      %4469 = vmatpush1.msra.mxu0 %v791
      %4470 = vmatprep.subr.mxu0 %v800
      %4471 = vmatpush1.msra.mxu0 %v799
      %4472 = vmatprep.subr.mxu0 %v808
      %4473 = vmatpush1.msra.mxu0 %v807
      %4474 = vmatprep.subr.mxu0 %v816
      %4475 = vmatpush1.msra.mxu0 %v815
      %4476 = vmatprep.subr.mxu0 %v824
      %4477 = vmatpush1.msra.mxu0 %v823
      %4478 = vmatprep.subr.mxu0 %v832
      %4479 = vmatpush1.msra.mxu0 %v831
      %4480 = vmatprep.subr.mxu0 %v840
      %4481 = vmatpush1.msra.mxu0 %v839
      %4482 = vmatprep.subr.mxu0 %v848
      %4483 = vmatpush1.msra.mxu0 %v847
      %4484 = vmatprep.subr.mxu0 %v856
      %4485 = vmatpush1.msra.mxu0 %v855
      %4486 = vmatprep.subr.mxu0 %v864
      %4487 = vmatpush1.msra.mxu0 %v863
      %4488 = vmatprep.subr.mxu0 %v872
      %4489 = vmatpush1.msra.mxu0 %v871
      %4490 = vmatprep.subr.mxu0 %v880
      %4491 = vmatpush1.msra.mxu0 %v879
      %4492 = vmatprep.subr.mxu0 %v888
      %4493 = vmatpush1.msra.mxu0 %v887
      %4494 = vmatprep.subr.mxu0 %v896
      %4495 = vmatpush1.msra.mxu0 %v895
      %4496 = vmatprep.subr.mxu0 %v904
      %4497 = vmatpush1.msra.mxu0 %v903
      %4498 = vmatprep.subr.mxu0 %v912
      %4499 = vmatpush1.msra.mxu0 %v911
      %4500 = vmatprep.subr.mxu0 %v920
      %4501 = vmatpush1.msra.mxu0 %v919
      %4502 = vmatprep.subr.mxu0 %v928
      %4503 = vmatpush1.msra.mxu0 %v927
      %4504 = vmatprep.subr.mxu0 %v936
      %4505 = vmatpush1.msra.mxu0 %v935
      %4506 = vmatprep.subr.mxu0 %v944
      %4507 = vmatpush1.msra.mxu0 %v943
      %4508 = vmatprep.subr.mxu0 %v952
      %4509 = vmatpush1.msra.mxu0 %v951
      %4510 = vmatprep.subr.mxu0 %v960
      %4511 = vmatpush1.msra.mxu0 %v959
      %4512 = vmatprep.subr.mxu0 %v968
      %4513 = vmatpush1.msra.mxu0 %v967
      %4514 = vmatprep.subr.mxu0 %v976
      %4515 = vmatpush1.msra.mxu0 %v975
      %4516 = vmatprep.mubr.f32.mxu0 %v4213
      %4517 = vmatmul.mubr.f32.gmra.mrb[0].mxu0 %v4211
      %v4518 = vpop.f32.mrb[0].mxu0
      %v4519 = vadd.f32 0.0, %v4518
      %v4520 = vpop.f32.mrb[0].mxu0
      %v4521 = vadd.f32 0.0, %v4520
      %4522 = vmatprep.mubr.f32.mxu0 %v4219
      %4523 = vmatmul.mubr.f32.gmra.mrb[0].mxu0 %v4217
      %v4524 = vpop.f32.mrb[0].mxu0
      %v4525 = vadd.f32 0.0, %v4524
      %v4526 = vpop.f32.mrb[0].mxu0
      %v4527 = vadd.f32 0.0, %v4526
      %4528 = vdwg.mxu0
      %v4529 = vld [vmem:[%s15] sm:$0xff]
      %v4530 = vld [vmem:[%s15 + $0x8] sm:$0xff]
      %v4531 = vld [vmem:[%s15 + $0x10] sm:$0xff]
      %v4532 = vld [vmem:[%s15 + $0x18] sm:$0xff]
      %v4533 = vld [vmem:[%s16] sm:$0xff]
      %v4534 = vld [vmem:[%s16 + $0x8] sm:$0xff]
      %4537 = vrot.lane.b32.xlu0 %v4521, 33
      %v4538 = vpop.permute.xlu0 %4537
      %4539 = vrot.lane.b32.xlu0 %v4527, 33
      %v4540 = vpop.permute.xlu0 %4539
      %4557 = vrot.lane.b32.xlu0 %v4288, 33
      %v4558 = vpop.permute.xlu0 %4557
      %4559 = vrot.lane.b32.xlu0 %v4290, 33
      %v4560 = vpop.permute.xlu0 %4559
      %4561 = vrot.lane.b32.xlu0 %v4365, 33
      %v4562 = vpop.permute.xlu0 %4561
      %4563 = vrot.lane.b32.xlu0 %v4367, 33
      %v4564 = vpop.permute.xlu0 %4563
      %4565 = vrot.lane.b32.xlu0 %v4442, 33
      %v4566 = vpop.permute.xlu0 %4565
      %4567 = vrot.lane.b32.xlu0 %v4444, 33
      %v4568 = vpop.permute.xlu0 %4567
      %4569 = vrot.lane.b32.xlu0 %v4519, 33
      %v4570 = vpop.permute.xlu0 %4569
      %4571 = vrot.lane.b32.xlu0 %v4294, 33
      %v4572 = vpop.permute.xlu0 %4571
      %4573 = vrot.lane.b32.xlu0 %v4296, 33
      %v4574 = vpop.permute.xlu0 %4573
      %4575 = vrot.lane.b32.xlu0 %v4371, 33
      %v4576 = vpop.permute.xlu0 %4575
      %4577 = vrot.lane.b32.xlu0 %v4373, 33
      %v4578 = vpop.permute.xlu0 %4577
      %4579 = vrot.lane.b32.xlu0 %v4448, 33
      %v4580 = vpop.permute.xlu0 %4579
      %4581 = vrot.lane.b32.xlu0 %v4450, 33
      %v4582 = vpop.permute.xlu0 %4581
      %4583 = vrot.lane.b32.xlu0 %v4525, 33
      %v4584 = vpop.permute.xlu0 %4583
      %v4585 = vsel %vm1999, %v4558, %v4560
      %v4586 = vsel %vm1999, %v4560, %v4562
      %v4587 = vsel %vm1999, %v4562, %v4564
      %v4588 = vsel %vm1999, %v4564, %v4566
      %v4589 = vsel %vm1999, %v4566, %v4568
      %v4590 = vsel %vm1999, %v4568, %v4570
      %v4591 = vsel %vm1999, %v4570, %v4538
      %v4592 = vsel %vm1999, %v4572, %v4574
      %v4593 = vsel %vm1999, %v4574, %v4576
      %v4594 = vsel %vm1999, %v4576, %v4578
      %v4595 = vsel %vm1999, %v4578, %v4580
      %v4596 = vsel %vm1999, %v4580, %v4582
      %v4597 = vsel %vm1999, %v4582, %v4584
      %v4598 = vsel %vm1999, %v4584, %v4540
      %v4615 = vsel %vm1999, %v4538, %v4558
      %v4616 = vsel %vm1999, %v4540, %v4572
      %v4617 = vmul.f32 %v4615, %v2020
      %v4618 = vmul.f32 %v4585, %v2024
      %v4619 = vmul.f32 %v4586, %v2028
      %v4620 = vmul.f32 %v4587, %v2032
      %v4621 = vmul.f32 %v4588, %v2036
      %v4622 = vmul.f32 %v4589, %v2040
      %v4623 = vmul.f32 %v4590, %v2044
      %v4624 = vmul.f32 %v4591, %v2048
      %v4625 = vmul.f32 %v4616, %v2020
      %v4626 = vmul.f32 %v4592, %v2024
      %v4627 = vmul.f32 %v4593, %v2028
      %v4628 = vmul.f32 %v4594, %v2032
      %v4629 = vmul.f32 %v4595, %v2036
      %v4630 = vmul.f32 %v4596, %v2040
      %v4631 = vmul.f32 %v4597, %v2044
      %v4632 = vmul.f32 %v4598, %v2048
      %4633 = vst [vmem:[#allocation3] sm:$0xff] %v4617
      %4634 = vst [vmem:[#allocation3 + $0x8] sm:$0xff] %v4618
      %4635 = vst [vmem:[#allocation3 + $0x10] sm:$0xff] %v4619
      %4636 = vst [vmem:[#allocation3 + $0x18] sm:$0xff] %v4620
      %4637 = vst [vmem:[#allocation3 + $0x20] sm:$0xff] %v4621
      %4638 = vst [vmem:[#allocation3 + $0x28] sm:$0xff] %v4622
      %4639 = vst [vmem:[#allocation3 + $0x30] sm:$0xff] %v4623
      %4640 = vst [vmem:[#allocation3 + $0x38] sm:$0xff] %v4624
      %4641 = vst [vmem:[#allocation3 + $0x40] sm:$0xff] %v4625
      %4642 = vst [vmem:[#allocation3 + $0x48] sm:$0xff] %v4626
      %4643 = vst [vmem:[#allocation3 + $0x50] sm:$0xff] %v4627
      %4644 = vst [vmem:[#allocation3 + $0x58] sm:$0xff] %v4628
      %4645 = vst [vmem:[#allocation3 + $0x60] sm:$0xff] %v4629
      %4646 = vst [vmem:[#allocation3 + $0x68] sm:$0xff] %v4630
      %4647 = vst [vmem:[#allocation3 + $0x70] sm:$0xff] %v4631
      %4648 = vst [vmem:[#allocation3 + $0x78] sm:$0xff] %v4632
      %4649 = vrot.lane.b32.xlu0 %v4521, 32
      %v4650 = vpop.permute.xlu0 %4649
      %4651 = vrot.lane.b32.xlu0 %v4527, 32
      %v4652 = vpop.permute.xlu0 %4651
      %4655 = vrot.lane.b32.xlu0 %v4288, 32
      %v4656 = vpop.permute.xlu0 %4655
      %4657 = vrot.lane.b32.xlu0 %v4290, 32
      %v4658 = vpop.permute.xlu0 %4657
      %4659 = vrot.lane.b32.xlu0 %v4365, 32
      %v4660 = vpop.permute.xlu0 %4659
      %4661 = vrot.lane.b32.xlu0 %v4367, 32
      %v4662 = vpop.permute.xlu0 %4661
      %4663 = vrot.lane.b32.xlu0 %v4442, 32
      %v4664 = vpop.permute.xlu0 %4663
      %4665 = vrot.lane.b32.xlu0 %v4444, 32
      %v4666 = vpop.permute.xlu0 %4665
      %4667 = vrot.lane.b32.xlu0 %v4519, 32
      %v4668 = vpop.permute.xlu0 %4667
      %4669 = vrot.lane.b32.xlu0 %v4294, 32
      %v4670 = vpop.permute.xlu0 %4669
      %4671 = vrot.lane.b32.xlu0 %v4296, 32
      %v4672 = vpop.permute.xlu0 %4671
      %4673 = vrot.lane.b32.xlu0 %v4371, 32
      %v4674 = vpop.permute.xlu0 %4673
      %4675 = vrot.lane.b32.xlu0 %v4373, 32
      %v4676 = vpop.permute.xlu0 %4675
      %4677 = vrot.lane.b32.xlu0 %v4448, 32
      %v4678 = vpop.permute.xlu0 %4677
      %4679 = vrot.lane.b32.xlu0 %v4450, 32
      %v4680 = vpop.permute.xlu0 %4679
      %4681 = vrot.lane.b32.xlu0 %v4525, 32
      %v4682 = vpop.permute.xlu0 %4681
      %v4683 = vsel %vm2090, %v4656, %v4658
      %v4684 = vsel %vm2090, %v4658, %v4660
      %v4685 = vsel %vm2090, %v4660, %v4662
      %v4686 = vsel %vm2090, %v4662, %v4664
      %v4687 = vsel %vm2090, %v4664, %v4666
      %v4688 = vsel %vm2090, %v4666, %v4668
      %v4689 = vsel %vm2090, %v4668, %v4650
      %v4690 = vsel %vm2090, %v4670, %v4672
      %v4691 = vsel %vm2090, %v4672, %v4674
      %v4692 = vsel %vm2090, %v4674, %v4676
      %v4693 = vsel %vm2090, %v4676, %v4678
      %v4694 = vsel %vm2090, %v4678, %v4680
      %v4695 = vsel %vm2090, %v4680, %v4682
      %v4696 = vsel %vm2090, %v4682, %v4652
      %v4713 = vsel %vm2090, %v4650, %v4656
      %v4714 = vsel %vm2090, %v4652, %v4670
      %v4715 = vmul.f32 %v4713, %v2111
      %v4716 = vmul.f32 %v4683, %v2115
      %v4717 = vmul.f32 %v4684, %v2119
      %v4718 = vmul.f32 %v4685, %v2123
      %v4719 = vmul.f32 %v4686, %v2127
      %v4720 = vmul.f32 %v4687, %v2131
      %v4721 = vmul.f32 %v4688, %v2135
      %v4722 = vmul.f32 %v4689, %v2139
      %v4723 = vmul.f32 %v4714, %v2111
      %v4724 = vmul.f32 %v4690, %v2115
      %v4725 = vmul.f32 %v4691, %v2119
      %v4726 = vmul.f32 %v4692, %v2123
      %v4727 = vmul.f32 %v4693, %v2127
      %v4728 = vmul.f32 %v4694, %v2131
      %v4729 = vmul.f32 %v4695, %v2135
      %v4730 = vmul.f32 %v4696, %v2139
      %4731 = vst [vmem:[#allocation3 + $0x80] sm:$0xff] %v4715
      %4732 = vst [vmem:[#allocation3 + $0x88] sm:$0xff] %v4716
      %4733 = vst [vmem:[#allocation3 + $0x90] sm:$0xff] %v4717
      %4734 = vst [vmem:[#allocation3 + $0x98] sm:$0xff] %v4718
      %4735 = vst [vmem:[#allocation3 + $0xa0] sm:$0xff] %v4719
      %4736 = vst [vmem:[#allocation3 + $0xa8] sm:$0xff] %v4720
      %4737 = vst [vmem:[#allocation3 + $0xb0] sm:$0xff] %v4721
      %4738 = vst [vmem:[#allocation3 + $0xb8] sm:$0xff] %v4722
      %4739 = vst [vmem:[#allocation3 + $0xc0] sm:$0xff] %v4723
      %4740 = vst [vmem:[#allocation3 + $0xc8] sm:$0xff] %v4724
      %4741 = vst [vmem:[#allocation3 + $0xd0] sm:$0xff] %v4725
      %4742 = vst [vmem:[#allocation3 + $0xd8] sm:$0xff] %v4726
      %4743 = vst [vmem:[#allocation3 + $0xe0] sm:$0xff] %v4727
      %4744 = vst [vmem:[#allocation3 + $0xe8] sm:$0xff] %v4728
      %4745 = vst [vmem:[#allocation3 + $0xf0] sm:$0xff] %v4729
      %4746 = vst [vmem:[#allocation3 + $0xf8] sm:$0xff] %v4730
      %4747 = vrot.lane.b32.xlu0 %v4521, 31
      %v4748 = vpop.permute.xlu0 %4747
      %4749 = vrot.lane.b32.xlu0 %v4527, 31
      %v4750 = vpop.permute.xlu0 %4749
      %4753 = vrot.lane.b32.xlu0 %v4288, 31
      %v4754 = vpop.permute.xlu0 %4753
      %4755 = vrot.lane.b32.xlu0 %v4290, 31
      %v4756 = vpop.permute.xlu0 %4755
      %4757 = vrot.lane.b32.xlu0 %v4365, 31
      %v4758 = vpop.permute.xlu0 %4757
      %4759 = vrot.lane.b32.xlu0 %v4367, 31
      %v4760 = vpop.permute.xlu0 %4759
      %4761 = vrot.lane.b32.xlu0 %v4442, 31
      %v4762 = vpop.permute.xlu0 %4761
      %4763 = vrot.lane.b32.xlu0 %v4444, 31
      %v4764 = vpop.permute.xlu0 %4763
      %4765 = vrot.lane.b32.xlu0 %v4519, 31
      %v4766 = vpop.permute.xlu0 %4765
      %4767 = vrot.lane.b32.xlu0 %v4294, 31
      %v4768 = vpop.permute.xlu0 %4767
      %4769 = vrot.lane.b32.xlu0 %v4296, 31
      %v4770 = vpop.permute.xlu0 %4769
      %4771 = vrot.lane.b32.xlu0 %v4371, 31
      %v4772 = vpop.permute.xlu0 %4771
      %4773 = vrot.lane.b32.xlu0 %v4373, 31
      %v4774 = vpop.permute.xlu0 %4773
      %4775 = vrot.lane.b32.xlu0 %v4448, 31
      %v4776 = vpop.permute.xlu0 %4775
      %4777 = vrot.lane.b32.xlu0 %v4450, 31
      %v4778 = vpop.permute.xlu0 %4777
      %4779 = vrot.lane.b32.xlu0 %v4525, 31
      %v4780 = vpop.permute.xlu0 %4779
      %v4781 = vsel %vm2181, %v4754, %v4756
      %v4782 = vsel %vm2181, %v4756, %v4758
      %v4783 = vsel %vm2181, %v4758, %v4760
      %v4784 = vsel %vm2181, %v4760, %v4762
      %v4785 = vsel %vm2181, %v4762, %v4764
      %v4786 = vsel %vm2181, %v4764, %v4766
      %v4787 = vsel %vm2181, %v4766, %v4748
      %v4788 = vsel %vm2181, %v4768, %v4770
      %v4789 = vsel %vm2181, %v4770, %v4772
      %v4790 = vsel %vm2181, %v4772, %v4774
      %v4791 = vsel %vm2181, %v4774, %v4776
      %v4792 = vsel %vm2181, %v4776, %v4778
      %v4793 = vsel %vm2181, %v4778, %v4780
      %v4794 = vsel %vm2181, %v4780, %v4750
      %v4811 = vsel %vm2181, %v4748, %v4754
      %v4812 = vsel %vm2181, %v4750, %v4768
      %v4813 = vmul.f32 %v4811, %v2202
      %v4814 = vmul.f32 %v4781, %v2206
      %v4815 = vmul.f32 %v4782, %v2210
      %v4816 = vmul.f32 %v4783, %v2214
      %v4817 = vmul.f32 %v4784, %v2218
      %v4818 = vmul.f32 %v4785, %v2222
      %v4819 = vmul.f32 %v4786, %v2226
      %v4820 = vmul.f32 %v4787, %v2230
      %v4821 = vmul.f32 %v4812, %v2202
      %v4822 = vmul.f32 %v4788, %v2206
      %v4823 = vmul.f32 %v4789, %v2210
      %v4824 = vmul.f32 %v4790, %v2214
      %v4825 = vmul.f32 %v4791, %v2218
      %v4826 = vmul.f32 %v4792, %v2222
      %v4827 = vmul.f32 %v4793, %v2226
      %v4828 = vmul.f32 %v4794, %v2230
      %4829 = vst [vmem:[#allocation3 + $0x100] sm:$0xff] %v4813
      %4830 = vst [vmem:[#allocation3 + $0x108] sm:$0xff] %v4814
      %4831 = vst [vmem:[#allocation3 + $0x110] sm:$0xff] %v4815
      %4832 = vst [vmem:[#allocation3 + $0x118] sm:$0xff] %v4816
      %4833 = vst [vmem:[#allocation3 + $0x120] sm:$0xff] %v4817
      %4834 = vst [vmem:[#allocation3 + $0x128] sm:$0xff] %v4818
      %4835 = vst [vmem:[#allocation3 + $0x130] sm:$0xff] %v4819
      %4836 = vst [vmem:[#allocation3 + $0x138] sm:$0xff] %v4820
      %4837 = vst [vmem:[#allocation3 + $0x140] sm:$0xff] %v4821
      %4838 = vst [vmem:[#allocation3 + $0x148] sm:$0xff] %v4822
      %4839 = vst [vmem:[#allocation3 + $0x150] sm:$0xff] %v4823
      %4840 = vst [vmem:[#allocation3 + $0x158] sm:$0xff] %v4824
      %4841 = vst [vmem:[#allocation3 + $0x160] sm:$0xff] %v4825
      %4842 = vst [vmem:[#allocation3 + $0x168] sm:$0xff] %v4826
      %4843 = vst [vmem:[#allocation3 + $0x170] sm:$0xff] %v4827
      %4844 = vst [vmem:[#allocation3 + $0x178] sm:$0xff] %v4828
      %4845 = vrot.lane.b32.xlu0 %v4521, 1
      %v4846 = vpop.permute.xlu0 %4845
      %4847 = vrot.lane.b32.xlu0 %v4527, 1
      %v4848 = vpop.permute.xlu0 %4847
      %4851 = vrot.lane.b32.xlu0 %v4288, 1
      %v4852 = vpop.permute.xlu0 %4851
      %4853 = vrot.lane.b32.xlu0 %v4290, 1
      %v4854 = vpop.permute.xlu0 %4853
      %4855 = vrot.lane.b32.xlu0 %v4365, 1
      %v4856 = vpop.permute.xlu0 %4855
      %4857 = vrot.lane.b32.xlu0 %v4367, 1
      %v4858 = vpop.permute.xlu0 %4857
      %4859 = vrot.lane.b32.xlu0 %v4442, 1
      %v4860 = vpop.permute.xlu0 %4859
      %4861 = vrot.lane.b32.xlu0 %v4444, 1
      %v4862 = vpop.permute.xlu0 %4861
      %4863 = vrot.lane.b32.xlu0 %v4519, 1
      %v4864 = vpop.permute.xlu0 %4863
      %4865 = vrot.lane.b32.xlu0 %v4294, 1
      %v4866 = vpop.permute.xlu0 %4865
      %4867 = vrot.lane.b32.xlu0 %v4296, 1
      %v4868 = vpop.permute.xlu0 %4867
      %4869 = vrot.lane.b32.xlu0 %v4371, 1
      %v4870 = vpop.permute.xlu0 %4869
      %4871 = vrot.lane.b32.xlu0 %v4373, 1
      %v4872 = vpop.permute.xlu0 %4871
      %4873 = vrot.lane.b32.xlu0 %v4448, 1
      %v4874 = vpop.permute.xlu0 %4873
      %4875 = vrot.lane.b32.xlu0 %v4450, 1
      %v4876 = vpop.permute.xlu0 %4875
      %4877 = vrot.lane.b32.xlu0 %v4525, 1
      %v4878 = vpop.permute.xlu0 %4877
      %v4879 = vsel %vm1736, %v4852, %v4854
      %v4880 = vsel %vm1736, %v4854, %v4856
      %v4881 = vsel %vm1736, %v4856, %v4858
      %v4882 = vsel %vm1736, %v4858, %v4860
      %v4883 = vsel %vm1736, %v4860, %v4862
      %v4884 = vsel %vm1736, %v4862, %v4864
      %v4885 = vsel %vm1736, %v4864, %v4846
      %v4886 = vsel %vm1736, %v4866, %v4868
      %v4887 = vsel %vm1736, %v4868, %v4870
      %v4888 = vsel %vm1736, %v4870, %v4872
      %v4889 = vsel %vm1736, %v4872, %v4874
      %v4890 = vsel %vm1736, %v4874, %v4876
      %v4891 = vsel %vm1736, %v4876, %v4878
      %v4892 = vsel %vm1736, %v4878, %v4848
      %v4909 = vsel %vm1736, %v4846, %v4852
      %v4910 = vsel %vm1736, %v4848, %v4866
      %v4911 = vmul.f32 %v4909, %v2292
      %v4912 = vmul.f32 %v4879, %v2296
      %v4913 = vmul.f32 %v4880, %v2300
      %v4914 = vmul.f32 %v4881, %v2304
      %v4915 = vmul.f32 %v4882, %v2308
      %v4916 = vmul.f32 %v4883, %v2312
      %v4917 = vmul.f32 %v4884, %v2316
      %v4918 = vmul.f32 %v4885, %v2320
      %v4919 = vmul.f32 %v4910, %v2292
      %v4920 = vmul.f32 %v4886, %v2296
      %v4921 = vmul.f32 %v4887, %v2300
      %v4922 = vmul.f32 %v4888, %v2304
      %v4923 = vmul.f32 %v4889, %v2308
      %v4924 = vmul.f32 %v4890, %v2312
      %v4925 = vmul.f32 %v4891, %v2316
      %v4926 = vmul.f32 %v4892, %v2320
      %4927 = vst [vmem:[#allocation3 + $0x180] sm:$0xff] %v4911
      %4928 = vst [vmem:[#allocation3 + $0x188] sm:$0xff] %v4912
      %4929 = vst [vmem:[#allocation3 + $0x190] sm:$0xff] %v4913
      %4930 = vst [vmem:[#allocation3 + $0x198] sm:$0xff] %v4914
      %4931 = vst [vmem:[#allocation3 + $0x1a0] sm:$0xff] %v4915
      %4932 = vst [vmem:[#allocation3 + $0x1a8] sm:$0xff] %v4916
      %4933 = vst [vmem:[#allocation3 + $0x1b0] sm:$0xff] %v4917
      %4934 = vst [vmem:[#allocation3 + $0x1b8] sm:$0xff] %v4918
      %4935 = vst [vmem:[#allocation3 + $0x1c0] sm:$0xff] %v4919
      %4936 = vst [vmem:[#allocation3 + $0x1c8] sm:$0xff] %v4920
      %4937 = vst [vmem:[#allocation3 + $0x1d0] sm:$0xff] %v4921
      %4938 = vst [vmem:[#allocation3 + $0x1d8] sm:$0xff] %v4922
      %4939 = vst [vmem:[#allocation3 + $0x1e0] sm:$0xff] %v4923
      %4940 = vst [vmem:[#allocation3 + $0x1e8] sm:$0xff] %v4924
      %4941 = vst [vmem:[#allocation3 + $0x1f0] sm:$0xff] %v4925
      %4942 = vst [vmem:[#allocation3 + $0x1f8] sm:$0xff] %v4926
      %4943 = vst [vmem:[#allocation3 + $0x200] sm:$0xff] %v4288
      %4944 = vst [vmem:[#allocation3 + $0x208] sm:$0xff] %v4290
      %4945 = vst [vmem:[#allocation3 + $0x210] sm:$0xff] %v4365
      %4946 = vst [vmem:[#allocation3 + $0x218] sm:$0xff] %v4367
      %4947 = vst [vmem:[#allocation3 + $0x220] sm:$0xff] %v4442
      %4948 = vst [vmem:[#allocation3 + $0x228] sm:$0xff] %v4444
      %4949 = vst [vmem:[#allocation3 + $0x230] sm:$0xff] %v4519
      %4950 = vst [vmem:[#allocation3 + $0x238] sm:$0xff] %v4521
      %4951 = vst [vmem:[#allocation3 + $0x240] sm:$0xff] %v4294
      %4952 = vst [vmem:[#allocation3 + $0x248] sm:$0xff] %v4296
      %4953 = vst [vmem:[#allocation3 + $0x250] sm:$0xff] %v4371
      %4954 = vst [vmem:[#allocation3 + $0x258] sm:$0xff] %v4373
      %4955 = vst [vmem:[#allocation3 + $0x260] sm:$0xff] %v4448
      %4956 = vst [vmem:[#allocation3 + $0x268] sm:$0xff] %v4450
      %4957 = vst [vmem:[#allocation3 + $0x270] sm:$0xff] %v4525
      %4958 = vst [vmem:[#allocation3 + $0x278] sm:$0xff] %v4527
      %4959 = vrot.lane.b32.xlu0 %v4288, 127
      %v4960 = vpop.permute.xlu0 %4959
      %4961 = vrot.lane.b32.xlu0 %v4290, 127
      %v4962 = vpop.permute.xlu0 %4961
      %4963 = vrot.lane.b32.xlu0 %v4365, 127
      %v4964 = vpop.permute.xlu0 %4963
      %4965 = vrot.lane.b32.xlu0 %v4367, 127
      %v4966 = vpop.permute.xlu0 %4965
      %4967 = vrot.lane.b32.xlu0 %v4442, 127
      %v4968 = vpop.permute.xlu0 %4967
      %4969 = vrot.lane.b32.xlu0 %v4444, 127
      %v4970 = vpop.permute.xlu0 %4969
      %4971 = vrot.lane.b32.xlu0 %v4519, 127
      %v4972 = vpop.permute.xlu0 %4971
      %4973 = vrot.lane.b32.xlu0 %v4521, 127
      %v4974 = vpop.permute.xlu0 %4973
      %4975 = vrot.lane.b32.xlu0 %v4294, 127
      %v4976 = vpop.permute.xlu0 %4975
      %4977 = vrot.lane.b32.xlu0 %v4296, 127
      %v4978 = vpop.permute.xlu0 %4977
      %4979 = vrot.lane.b32.xlu0 %v4371, 127
      %v4980 = vpop.permute.xlu0 %4979
      %4981 = vrot.lane.b32.xlu0 %v4373, 127
      %v4982 = vpop.permute.xlu0 %4981
      %4983 = vrot.lane.b32.xlu0 %v4448, 127
      %v4984 = vpop.permute.xlu0 %4983
      %4985 = vrot.lane.b32.xlu0 %v4450, 127
      %v4986 = vpop.permute.xlu0 %4985
      %4987 = vrot.lane.b32.xlu0 %v4525, 127
      %v4988 = vpop.permute.xlu0 %4987
      %4989 = vrot.lane.b32.xlu0 %v4527, 127
      %v4990 = vpop.permute.xlu0 %4989
      %v4991 = vsel %vm1762, %v4960, %v4962
      %v4992 = vsel %vm1762, %v4962, %v4964
      %v4993 = vsel %vm1762, %v4964, %v4966
      %v4994 = vsel %vm1762, %v4966, %v4968
      %v4995 = vsel %vm1762, %v4968, %v4970
      %v4996 = vsel %vm1762, %v4970, %v4972
      %v4997 = vsel %vm1762, %v4972, %v4974
      %v4998 = vsel %vm1762, %v4976, %v4978
      %v4999 = vsel %vm1762, %v4978, %v4980
      %v5000 = vsel %vm1762, %v4980, %v4982
      %v5001 = vsel %vm1762, %v4982, %v4984
      %v5002 = vsel %vm1762, %v4984, %v4986
      %v5003 = vsel %vm1762, %v4986, %v4988
      %v5004 = vsel %vm1762, %v4988, %v4990
      %v5023 = vsel %vm1762, %v4974, %v4960
      %v5024 = vsel %vm1762, %v4990, %v4976
      %v5025 = vmul.f32 %v4991, %v2390
      %v5026 = vmul.f32 %v4992, %v2394
      %v5027 = vmul.f32 %v4993, %v2398
      %v5028 = vmul.f32 %v4994, %v2402
      %v5029 = vmul.f32 %v4995, %v2406
      %v5030 = vmul.f32 %v4996, %v2410
      %v5031 = vmul.f32 %v4997, %v2414
      %v5032 = vmul.f32 %v5023, %v2418
      %v5033 = vmul.f32 %v4998, %v2390
      %v5034 = vmul.f32 %v4999, %v2394
      %v5035 = vmul.f32 %v5000, %v2398
      %v5036 = vmul.f32 %v5001, %v2402
      %v5037 = vmul.f32 %v5002, %v2406
      %v5038 = vmul.f32 %v5003, %v2410
      %v5039 = vmul.f32 %v5004, %v2414
      %v5040 = vmul.f32 %v5024, %v2418
      %5041 = vst [vmem:[#allocation3 + $0x280] sm:$0xff] %v5025
      %5042 = vst [vmem:[#allocation3 + $0x288] sm:$0xff] %v5026
      %5043 = vst [vmem:[#allocation3 + $0x290] sm:$0xff] %v5027
      %5044 = vst [vmem:[#allocation3 + $0x298] sm:$0xff] %v5028
      %5045 = vst [vmem:[#allocation3 + $0x2a0] sm:$0xff] %v5029
      %5046 = vst [vmem:[#allocation3 + $0x2a8] sm:$0xff] %v5030
      %5047 = vst [vmem:[#allocation3 + $0x2b0] sm:$0xff] %v5031
      %5048 = vst [vmem:[#allocation3 + $0x2b8] sm:$0xff] %v5032
      %5049 = vst [vmem:[#allocation3 + $0x2c0] sm:$0xff] %v5033
      %5050 = vst [vmem:[#allocation3 + $0x2c8] sm:$0xff] %v5034
      %5051 = vst [vmem:[#allocation3 + $0x2d0] sm:$0xff] %v5035
      %5052 = vst [vmem:[#allocation3 + $0x2d8] sm:$0xff] %v5036
      %5053 = vst [vmem:[#allocation3 + $0x2e0] sm:$0xff] %v5037
      %5054 = vst [vmem:[#allocation3 + $0x2e8] sm:$0xff] %v5038
      %5055 = vst [vmem:[#allocation3 + $0x2f0] sm:$0xff] %v5039
      %5056 = vst [vmem:[#allocation3 + $0x2f8] sm:$0xff] %v5040
      %5057 = vrot.lane.b32.xlu0 %v4288, 97
      %v5058 = vpop.permute.xlu0 %5057
      %5059 = vrot.lane.b32.xlu0 %v4290, 97
      %v5060 = vpop.permute.xlu0 %5059
      %5061 = vrot.lane.b32.xlu0 %v4365, 97
      %v5062 = vpop.permute.xlu0 %5061
      %5063 = vrot.lane.b32.xlu0 %v4367, 97
      %v5064 = vpop.permute.xlu0 %5063
      %5065 = vrot.lane.b32.xlu0 %v4442, 97
      %v5066 = vpop.permute.xlu0 %5065
      %5067 = vrot.lane.b32.xlu0 %v4444, 97
      %v5068 = vpop.permute.xlu0 %5067
      %5069 = vrot.lane.b32.xlu0 %v4519, 97
      %v5070 = vpop.permute.xlu0 %5069
      %5071 = vrot.lane.b32.xlu0 %v4521, 97
      %v5072 = vpop.permute.xlu0 %5071
      %5073 = vrot.lane.b32.xlu0 %v4294, 97
      %v5074 = vpop.permute.xlu0 %5073
      %5075 = vrot.lane.b32.xlu0 %v4296, 97
      %v5076 = vpop.permute.xlu0 %5075
      %5077 = vrot.lane.b32.xlu0 %v4371, 97
      %v5078 = vpop.permute.xlu0 %5077
      %5079 = vrot.lane.b32.xlu0 %v4373, 97
      %v5080 = vpop.permute.xlu0 %5079
      %5081 = vrot.lane.b32.xlu0 %v4448, 97
      %v5082 = vpop.permute.xlu0 %5081
      %5083 = vrot.lane.b32.xlu0 %v4450, 97
      %v5084 = vpop.permute.xlu0 %5083
      %5085 = vrot.lane.b32.xlu0 %v4525, 97
      %v5086 = vpop.permute.xlu0 %5085
      %5087 = vrot.lane.b32.xlu0 %v4527, 97
      %v5088 = vpop.permute.xlu0 %5087
      %v5089 = vsel %vm2459, %v5058, %v5060
      %v5090 = vsel %vm2459, %v5060, %v5062
      %v5091 = vsel %vm2459, %v5062, %v5064
      %v5092 = vsel %vm2459, %v5064, %v5066
      %v5093 = vsel %vm2459, %v5066, %v5068
      %v5094 = vsel %vm2459, %v5068, %v5070
      %v5095 = vsel %vm2459, %v5070, %v5072
      %v5096 = vsel %vm2459, %v5074, %v5076
      %v5097 = vsel %vm2459, %v5076, %v5078
      %v5098 = vsel %vm2459, %v5078, %v5080
      %v5099 = vsel %vm2459, %v5080, %v5082
      %v5100 = vsel %vm2459, %v5082, %v5084
      %v5101 = vsel %vm2459, %v5084, %v5086
      %v5102 = vsel %vm2459, %v5086, %v5088
      %v5121 = vsel %vm2459, %v5072, %v5058
      %v5122 = vsel %vm2459, %v5088, %v5074
      %v5123 = vmul.f32 %v5089, %v2481
      %v5124 = vmul.f32 %v5090, %v2485
      %v5125 = vmul.f32 %v5091, %v2489
      %v5126 = vmul.f32 %v5092, %v2493
      %v5127 = vmul.f32 %v5093, %v2497
      %v5128 = vmul.f32 %v5094, %v2501
      %v5129 = vmul.f32 %v5095, %v2505
      %v5130 = vmul.f32 %v5121, %v2509
      %v5131 = vmul.f32 %v5096, %v2481
      %v5132 = vmul.f32 %v5097, %v2485
      %v5133 = vmul.f32 %v5098, %v2489
      %v5134 = vmul.f32 %v5099, %v2493
      %v5135 = vmul.f32 %v5100, %v2497
      %v5136 = vmul.f32 %v5101, %v2501
      %v5137 = vmul.f32 %v5102, %v2505
      %v5138 = vmul.f32 %v5122, %v2509
      %5139 = vst [vmem:[#allocation3 + $0x300] sm:$0xff] %v5123
      %5140 = vst [vmem:[#allocation3 + $0x308] sm:$0xff] %v5124
      %5141 = vst [vmem:[#allocation3 + $0x310] sm:$0xff] %v5125
      %5142 = vst [vmem:[#allocation3 + $0x318] sm:$0xff] %v5126
      %5143 = vst [vmem:[#allocation3 + $0x320] sm:$0xff] %v5127
      %5144 = vst [vmem:[#allocation3 + $0x328] sm:$0xff] %v5128
      %5145 = vst [vmem:[#allocation3 + $0x330] sm:$0xff] %v5129
      %5146 = vst [vmem:[#allocation3 + $0x338] sm:$0xff] %v5130
      %5147 = vst [vmem:[#allocation3 + $0x340] sm:$0xff] %v5131
      %5148 = vst [vmem:[#allocation3 + $0x348] sm:$0xff] %v5132
      %5149 = vst [vmem:[#allocation3 + $0x350] sm:$0xff] %v5133
      %5150 = vst [vmem:[#allocation3 + $0x358] sm:$0xff] %v5134
      %5151 = vst [vmem:[#allocation3 + $0x360] sm:$0xff] %v5135
      %5152 = vst [vmem:[#allocation3 + $0x368] sm:$0xff] %v5136
      %5153 = vst [vmem:[#allocation3 + $0x370] sm:$0xff] %v5137
      %5154 = vst [vmem:[#allocation3 + $0x378] sm:$0xff] %v5138
      %5155 = vrot.lane.b32.xlu0 %v4288, 96
      %v5156 = vpop.permute.xlu0 %5155
      %5157 = vrot.lane.b32.xlu0 %v4290, 96
      %v5158 = vpop.permute.xlu0 %5157
      %5159 = vrot.lane.b32.xlu0 %v4365, 96
      %v5160 = vpop.permute.xlu0 %5159
      %5161 = vrot.lane.b32.xlu0 %v4367, 96
      %v5162 = vpop.permute.xlu0 %5161
      %5163 = vrot.lane.b32.xlu0 %v4442, 96
      %v5164 = vpop.permute.xlu0 %5163
      %5165 = vrot.lane.b32.xlu0 %v4444, 96
      %v5166 = vpop.permute.xlu0 %5165
      %5167 = vrot.lane.b32.xlu0 %v4519, 96
      %v5168 = vpop.permute.xlu0 %5167
      %5169 = vrot.lane.b32.xlu0 %v4521, 96
      %v5170 = vpop.permute.xlu0 %5169
      %5171 = vrot.lane.b32.xlu0 %v4294, 96
      %v5172 = vpop.permute.xlu0 %5171
      %5173 = vrot.lane.b32.xlu0 %v4296, 96
      %v5174 = vpop.permute.xlu0 %5173
      %5175 = vrot.lane.b32.xlu0 %v4371, 96
      %v5176 = vpop.permute.xlu0 %5175
      %5177 = vrot.lane.b32.xlu0 %v4373, 96
      %v5178 = vpop.permute.xlu0 %5177
      %5179 = vrot.lane.b32.xlu0 %v4448, 96
      %v5180 = vpop.permute.xlu0 %5179
      %5181 = vrot.lane.b32.xlu0 %v4450, 96
      %v5182 = vpop.permute.xlu0 %5181
      %5183 = vrot.lane.b32.xlu0 %v4525, 96
      %v5184 = vpop.permute.xlu0 %5183
      %5185 = vrot.lane.b32.xlu0 %v4527, 96
      %v5186 = vpop.permute.xlu0 %5185
      %v5187 = vsel %vm2550, %v5156, %v5158
      %v5188 = vsel %vm2550, %v5158, %v5160
      %v5189 = vsel %vm2550, %v5160, %v5162
      %v5190 = vsel %vm2550, %v5162, %v5164
      %v5191 = vsel %vm2550, %v5164, %v5166
      %v5192 = vsel %vm2550, %v5166, %v5168
      %v5193 = vsel %vm2550, %v5168, %v5170
      %v5194 = vsel %vm2550, %v5172, %v5174
      %v5195 = vsel %vm2550, %v5174, %v5176
      %v5196 = vsel %vm2550, %v5176, %v5178
      %v5197 = vsel %vm2550, %v5178, %v5180
      %v5198 = vsel %vm2550, %v5180, %v5182
      %v5199 = vsel %vm2550, %v5182, %v5184
      %v5200 = vsel %vm2550, %v5184, %v5186
      %v5219 = vsel %vm2550, %v5170, %v5156
      %v5220 = vsel %vm2550, %v5186, %v5172
      %v5221 = vmul.f32 %v5187, %v2572
      %v5222 = vmul.f32 %v5188, %v2576
      %v5223 = vmul.f32 %v5189, %v2580
      %v5224 = vmul.f32 %v5190, %v2584
      %v5225 = vmul.f32 %v5191, %v2588
      %v5226 = vmul.f32 %v5192, %v2592
      %v5227 = vmul.f32 %v5193, %v2596
      %v5228 = vmul.f32 %v5219, %v2600
      %v5229 = vmul.f32 %v5194, %v2572
      %v5230 = vmul.f32 %v5195, %v2576
      %v5231 = vmul.f32 %v5196, %v2580
      %v5232 = vmul.f32 %v5197, %v2584
      %v5233 = vmul.f32 %v5198, %v2588
      %v5234 = vmul.f32 %v5199, %v2592
      %v5235 = vmul.f32 %v5200, %v2596
      %v5236 = vmul.f32 %v5220, %v2600
      %5237 = vst [vmem:[#allocation3 + $0x380] sm:$0xff] %v5221
      %5238 = vst [vmem:[#allocation3 + $0x388] sm:$0xff] %v5222
      %5239 = vst [vmem:[#allocation3 + $0x390] sm:$0xff] %v5223
      %5240 = vst [vmem:[#allocation3 + $0x398] sm:$0xff] %v5224
      %5241 = vst [vmem:[#allocation3 + $0x3a0] sm:$0xff] %v5225
      %5242 = vst [vmem:[#allocation3 + $0x3a8] sm:$0xff] %v5226
      %5243 = vst [vmem:[#allocation3 + $0x3b0] sm:$0xff] %v5227
      %5244 = vst [vmem:[#allocation3 + $0x3b8] sm:$0xff] %v5228
      %5245 = vst [vmem:[#allocation3 + $0x3c0] sm:$0xff] %v5229
      %5246 = vst [vmem:[#allocation3 + $0x3c8] sm:$0xff] %v5230
      %5247 = vst [vmem:[#allocation3 + $0x3d0] sm:$0xff] %v5231
      %5248 = vst [vmem:[#allocation3 + $0x3d8] sm:$0xff] %v5232
      %5249 = vst [vmem:[#allocation3 + $0x3e0] sm:$0xff] %v5233
      %5250 = vst [vmem:[#allocation3 + $0x3e8] sm:$0xff] %v5234
      %5251 = vst [vmem:[#allocation3 + $0x3f0] sm:$0xff] %v5235
      %5252 = vst [vmem:[#allocation3 + $0x3f8] sm:$0xff] %v5236
      %5253 = vrot.lane.b32.xlu0 %v4288, 95
      %v5254 = vpop.permute.xlu0 %5253
      %5255 = vrot.lane.b32.xlu0 %v4290, 95
      %v5256 = vpop.permute.xlu0 %5255
      %5257 = vrot.lane.b32.xlu0 %v4365, 95
      %v5258 = vpop.permute.xlu0 %5257
      %5259 = vrot.lane.b32.xlu0 %v4367, 95
      %v5260 = vpop.permute.xlu0 %5259
      %5261 = vrot.lane.b32.xlu0 %v4442, 95
      %v5262 = vpop.permute.xlu0 %5261
      %5263 = vrot.lane.b32.xlu0 %v4444, 95
      %v5264 = vpop.permute.xlu0 %5263
      %5265 = vrot.lane.b32.xlu0 %v4519, 95
      %v5266 = vpop.permute.xlu0 %5265
      %5267 = vrot.lane.b32.xlu0 %v4521, 95
      %v5268 = vpop.permute.xlu0 %5267
      %5269 = vrot.lane.b32.xlu0 %v4294, 95
      %v5270 = vpop.permute.xlu0 %5269
      %5271 = vrot.lane.b32.xlu0 %v4296, 95
      %v5272 = vpop.permute.xlu0 %5271
      %5273 = vrot.lane.b32.xlu0 %v4371, 95
      %v5274 = vpop.permute.xlu0 %5273
      %5275 = vrot.lane.b32.xlu0 %v4373, 95
      %v5276 = vpop.permute.xlu0 %5275
      %5277 = vrot.lane.b32.xlu0 %v4448, 95
      %v5278 = vpop.permute.xlu0 %5277
      %5279 = vrot.lane.b32.xlu0 %v4450, 95
      %v5280 = vpop.permute.xlu0 %5279
      %5281 = vrot.lane.b32.xlu0 %v4525, 95
      %v5282 = vpop.permute.xlu0 %5281
      %5283 = vrot.lane.b32.xlu0 %v4527, 95
      %v5284 = vpop.permute.xlu0 %5283
      %v5285 = vsel %vm2641, %v5254, %v5256
      %v5286 = vsel %vm2641, %v5256, %v5258
      %v5287 = vsel %vm2641, %v5258, %v5260
      %v5288 = vsel %vm2641, %v5260, %v5262
      %v5289 = vsel %vm2641, %v5262, %v5264
      %v5290 = vsel %vm2641, %v5264, %v5266
      %v5291 = vsel %vm2641, %v5266, %v5268
      %v5292 = vsel %vm2641, %v5270, %v5272
      %v5293 = vsel %vm2641, %v5272, %v5274
      %v5294 = vsel %vm2641, %v5274, %v5276
      %v5295 = vsel %vm2641, %v5276, %v5278
      %v5296 = vsel %vm2641, %v5278, %v5280
      %v5297 = vsel %vm2641, %v5280, %v5282
      %v5298 = vsel %vm2641, %v5282, %v5284
      %v5317 = vsel %vm2641, %v5268, %v5254
      %v5318 = vsel %vm2641, %v5284, %v5270
      %v5319 = vmul.f32 %v5285, %v2663
      %v5320 = vmul.f32 %v5286, %v2667
      %v5321 = vmul.f32 %v5287, %v2671
      %v5322 = vmul.f32 %v5288, %v2675
      %v5323 = vmul.f32 %v5289, %v2679
      %v5324 = vmul.f32 %v5290, %v2683
      %v5325 = vmul.f32 %v5291, %v2687
      %v5326 = vmul.f32 %v5317, %v2691
      %v5327 = vmul.f32 %v5292, %v2663
      %v5328 = vmul.f32 %v5293, %v2667
      %v5329 = vmul.f32 %v5294, %v2671
      %v5330 = vmul.f32 %v5295, %v2675
      %v5331 = vmul.f32 %v5296, %v2679
      %v5332 = vmul.f32 %v5297, %v2683
      %v5333 = vmul.f32 %v5298, %v2687
      %v5334 = vmul.f32 %v5318, %v2691
      %5335 = vst [vmem:[#allocation3 + $0x400] sm:$0xff] %v5319
      %5336 = vst [vmem:[#allocation3 + $0x408] sm:$0xff] %v5320
      %5337 = vst [vmem:[#allocation3 + $0x410] sm:$0xff] %v5321
      %5338 = vst [vmem:[#allocation3 + $0x418] sm:$0xff] %v5322
      %5339 = vst [vmem:[#allocation3 + $0x420] sm:$0xff] %v5323
      %5340 = vst [vmem:[#allocation3 + $0x428] sm:$0xff] %v5324
      %5341 = vst [vmem:[#allocation3 + $0x430] sm:$0xff] %v5325
      %5342 = vst [vmem:[#allocation3 + $0x438] sm:$0xff] %v5326
      %5343 = vst [vmem:[#allocation3 + $0x440] sm:$0xff] %v5327
      %5344 = vst [vmem:[#allocation3 + $0x448] sm:$0xff] %v5328
      %5345 = vst [vmem:[#allocation3 + $0x450] sm:$0xff] %v5329
      %5346 = vst [vmem:[#allocation3 + $0x458] sm:$0xff] %v5330
      %5347 = vst [vmem:[#allocation3 + $0x460] sm:$0xff] %v5331
      %5348 = vst [vmem:[#allocation3 + $0x468] sm:$0xff] %v5332
      %5349 = vst [vmem:[#allocation3 + $0x470] sm:$0xff] %v5333
      %5350 = vst [vmem:[#allocation3 + $0x478] sm:$0xff] %v5334
      %v5351 = vld [vmem:[#allocation3] sm:$0xff]
      %v5352 = vld [vmem:[#allocation3 + $0x8] sm:$0xff]
      %v5353 = vld [vmem:[#allocation3 + $0x10] sm:$0xff]
      %v5354 = vld [vmem:[#allocation3 + $0x18] sm:$0xff]
      %v5355 = vld [vmem:[#allocation3 + $0x20] sm:$0xff]
      %v5356 = vld [vmem:[#allocation3 + $0x28] sm:$0xff]
      %v5357 = vld [vmem:[#allocation3 + $0x30] sm:$0xff]
      %v5358 = vld [vmem:[#allocation3 + $0x38] sm:$0xff]
      %v5359 = vld [vmem:[#allocation3 + $0x40] sm:$0xff]
      %v5360 = vld [vmem:[#allocation3 + $0x48] sm:$0xff]
      %v5361 = vld [vmem:[#allocation3 + $0x50] sm:$0xff]
      %v5362 = vld [vmem:[#allocation3 + $0x58] sm:$0xff]
      %v5363 = vld [vmem:[#allocation3 + $0x60] sm:$0xff]
      %v5364 = vld [vmem:[#allocation3 + $0x68] sm:$0xff]
      %v5365 = vld [vmem:[#allocation3 + $0x70] sm:$0xff]
      %v5366 = vld [vmem:[#allocation3 + $0x78] sm:$0xff]
      %v5367 = vld [vmem:[#allocation3 + $0x80] sm:$0xff]
      %v5368 = vld [vmem:[#allocation3 + $0x88] sm:$0xff]
      %v5369 = vld [vmem:[#allocation3 + $0x90] sm:$0xff]
      %v5370 = vld [vmem:[#allocation3 + $0x98] sm:$0xff]
      %v5371 = vld [vmem:[#allocation3 + $0xa0] sm:$0xff]
      %v5372 = vld [vmem:[#allocation3 + $0xa8] sm:$0xff]
      %v5373 = vld [vmem:[#allocation3 + $0xb0] sm:$0xff]
      %v5374 = vld [vmem:[#allocation3 + $0xb8] sm:$0xff]
      %v5375 = vld [vmem:[#allocation3 + $0xc0] sm:$0xff]
      %v5376 = vld [vmem:[#allocation3 + $0xc8] sm:$0xff]
      %v5377 = vld [vmem:[#allocation3 + $0xd0] sm:$0xff]
      %v5378 = vld [vmem:[#allocation3 + $0xd8] sm:$0xff]
      %v5379 = vld [vmem:[#allocation3 + $0xe0] sm:$0xff]
      %v5380 = vld [vmem:[#allocation3 + $0xe8] sm:$0xff]
      %v5381 = vld [vmem:[#allocation3 + $0xf0] sm:$0xff]
      %v5382 = vld [vmem:[#allocation3 + $0xf8] sm:$0xff]
      %v5383 = vld [vmem:[#allocation3 + $0x100] sm:$0xff]
      %v5384 = vld [vmem:[#allocation3 + $0x108] sm:$0xff]
      %v5385 = vld [vmem:[#allocation3 + $0x110] sm:$0xff]
      %v5386 = vld [vmem:[#allocation3 + $0x118] sm:$0xff]
      %v5387 = vld [vmem:[#allocation3 + $0x120] sm:$0xff]
      %v5388 = vld [vmem:[#allocation3 + $0x128] sm:$0xff]
      %v5389 = vld [vmem:[#allocation3 + $0x130] sm:$0xff]
      %v5390 = vld [vmem:[#allocation3 + $0x138] sm:$0xff]
      %v5391 = vld [vmem:[#allocation3 + $0x140] sm:$0xff]
      %v5392 = vld [vmem:[#allocation3 + $0x148] sm:$0xff]
      %v5393 = vld [vmem:[#allocation3 + $0x150] sm:$0xff]
      %v5394 = vld [vmem:[#allocation3 + $0x158] sm:$0xff]
      %v5395 = vld [vmem:[#allocation3 + $0x160] sm:$0xff]
      %v5396 = vld [vmem:[#allocation3 + $0x168] sm:$0xff]
      %v5397 = vld [vmem:[#allocation3 + $0x170] sm:$0xff]
      %v5398 = vld [vmem:[#allocation3 + $0x178] sm:$0xff]
      %v5399 = vld [vmem:[#allocation3 + $0x180] sm:$0xff]
      %v5400 = vld [vmem:[#allocation3 + $0x188] sm:$0xff]
      %v5401 = vld [vmem:[#allocation3 + $0x190] sm:$0xff]
      %v5402 = vld [vmem:[#allocation3 + $0x198] sm:$0xff]
      %v5403 = vld [vmem:[#allocation3 + $0x1a0] sm:$0xff]
      %v5404 = vld [vmem:[#allocation3 + $0x1a8] sm:$0xff]
      %v5405 = vld [vmem:[#allocation3 + $0x1b0] sm:$0xff]
      %v5406 = vld [vmem:[#allocation3 + $0x1b8] sm:$0xff]
      %v5407 = vld [vmem:[#allocation3 + $0x1c0] sm:$0xff]
      %v5408 = vld [vmem:[#allocation3 + $0x1c8] sm:$0xff]
      %v5409 = vld [vmem:[#allocation3 + $0x1d0] sm:$0xff]
      %v5410 = vld [vmem:[#allocation3 + $0x1d8] sm:$0xff]
      %v5411 = vld [vmem:[#allocation3 + $0x1e0] sm:$0xff]
      %v5412 = vld [vmem:[#allocation3 + $0x1e8] sm:$0xff]
      %v5413 = vld [vmem:[#allocation3 + $0x1f0] sm:$0xff]
      %v5414 = vld [vmem:[#allocation3 + $0x1f8] sm:$0xff]
      %v5415 = vld [vmem:[#allocation3 + $0x200] sm:$0xff]
      %v5416 = vld [vmem:[#allocation3 + $0x208] sm:$0xff]
      %v5417 = vld [vmem:[#allocation3 + $0x210] sm:$0xff]
      %v5418 = vld [vmem:[#allocation3 + $0x218] sm:$0xff]
      %v5419 = vld [vmem:[#allocation3 + $0x220] sm:$0xff]
      %v5420 = vld [vmem:[#allocation3 + $0x228] sm:$0xff]
      %v5421 = vld [vmem:[#allocation3 + $0x230] sm:$0xff]
      %v5422 = vld [vmem:[#allocation3 + $0x238] sm:$0xff]
      %v5423 = vld [vmem:[#allocation3 + $0x240] sm:$0xff]
      %v5424 = vld [vmem:[#allocation3 + $0x248] sm:$0xff]
      %v5425 = vld [vmem:[#allocation3 + $0x250] sm:$0xff]
      %v5426 = vld [vmem:[#allocation3 + $0x258] sm:$0xff]
      %v5427 = vld [vmem:[#allocation3 + $0x260] sm:$0xff]
      %v5428 = vld [vmem:[#allocation3 + $0x268] sm:$0xff]
      %v5429 = vld [vmem:[#allocation3 + $0x270] sm:$0xff]
      %v5430 = vld [vmem:[#allocation3 + $0x278] sm:$0xff]
      %v5431 = vld [vmem:[#allocation3 + $0x280] sm:$0xff]
      %v5432 = vld [vmem:[#allocation3 + $0x288] sm:$0xff]
      %v5433 = vld [vmem:[#allocation3 + $0x290] sm:$0xff]
      %v5434 = vld [vmem:[#allocation3 + $0x298] sm:$0xff]
      %v5435 = vld [vmem:[#allocation3 + $0x2a0] sm:$0xff]
      %v5436 = vld [vmem:[#allocation3 + $0x2a8] sm:$0xff]
      %v5437 = vld [vmem:[#allocation3 + $0x2b0] sm:$0xff]
      %v5438 = vld [vmem:[#allocation3 + $0x2b8] sm:$0xff]
      %v5439 = vld [vmem:[#allocation3 + $0x2c0] sm:$0xff]
      %v5440 = vld [vmem:[#allocation3 + $0x2c8] sm:$0xff]
      %v5441 = vld [vmem:[#allocation3 + $0x2d0] sm:$0xff]
      %v5442 = vld [vmem:[#allocation3 + $0x2d8] sm:$0xff]
      %v5443 = vld [vmem:[#allocation3 + $0x2e0] sm:$0xff]
      %v5444 = vld [vmem:[#allocation3 + $0x2e8] sm:$0xff]
      %v5445 = vld [vmem:[#allocation3 + $0x2f0] sm:$0xff]
      %v5446 = vld [vmem:[#allocation3 + $0x2f8] sm:$0xff]
      %v5447 = vld [vmem:[#allocation3 + $0x300] sm:$0xff]
      %v5448 = vld [vmem:[#allocation3 + $0x308] sm:$0xff]
      %v5449 = vld [vmem:[#allocation3 + $0x310] sm:$0xff]
      %v5450 = vld [vmem:[#allocation3 + $0x318] sm:$0xff]
      %v5451 = vld [vmem:[#allocation3 + $0x320] sm:$0xff]
      %v5452 = vld [vmem:[#allocation3 + $0x328] sm:$0xff]
      %v5453 = vld [vmem:[#allocation3 + $0x330] sm:$0xff]
      %v5454 = vld [vmem:[#allocation3 + $0x338] sm:$0xff]
      %v5455 = vld [vmem:[#allocation3 + $0x340] sm:$0xff]
      %v5456 = vld [vmem:[#allocation3 + $0x348] sm:$0xff]
      %v5457 = vld [vmem:[#allocation3 + $0x350] sm:$0xff]
      %v5458 = vld [vmem:[#allocation3 + $0x358] sm:$0xff]
      %v5459 = vld [vmem:[#allocation3 + $0x360] sm:$0xff]
      %v5460 = vld [vmem:[#allocation3 + $0x368] sm:$0xff]
      %v5461 = vld [vmem:[#allocation3 + $0x370] sm:$0xff]
      %v5462 = vld [vmem:[#allocation3 + $0x378] sm:$0xff]
      %v5463 = vld [vmem:[#allocation3 + $0x380] sm:$0xff]
      %v5464 = vld [vmem:[#allocation3 + $0x388] sm:$0xff]
      %v5465 = vld [vmem:[#allocation3 + $0x390] sm:$0xff]
      %v5466 = vld [vmem:[#allocation3 + $0x398] sm:$0xff]
      %v5467 = vld [vmem:[#allocation3 + $0x3a0] sm:$0xff]
      %v5468 = vld [vmem:[#allocation3 + $0x3a8] sm:$0xff]
      %v5469 = vld [vmem:[#allocation3 + $0x3b0] sm:$0xff]
      %v5470 = vld [vmem:[#allocation3 + $0x3b8] sm:$0xff]
      %v5471 = vld [vmem:[#allocation3 + $0x3c0] sm:$0xff]
      %v5472 = vld [vmem:[#allocation3 + $0x3c8] sm:$0xff]
      %v5473 = vld [vmem:[#allocation3 + $0x3d0] sm:$0xff]
      %v5474 = vld [vmem:[#allocation3 + $0x3d8] sm:$0xff]
      %v5475 = vld [vmem:[#allocation3 + $0x3e0] sm:$0xff]
      %v5476 = vld [vmem:[#allocation3 + $0x3e8] sm:$0xff]
      %v5477 = vld [vmem:[#allocation3 + $0x3f0] sm:$0xff]
      %v5478 = vld [vmem:[#allocation3 + $0x3f8] sm:$0xff]
      %v5479 = vld [vmem:[#allocation3 + $0x400] sm:$0xff]
      %v5480 = vld [vmem:[#allocation3 + $0x408] sm:$0xff]
      %v5481 = vld [vmem:[#allocation3 + $0x410] sm:$0xff]
      %v5482 = vld [vmem:[#allocation3 + $0x418] sm:$0xff]
      %v5483 = vld [vmem:[#allocation3 + $0x420] sm:$0xff]
      %v5484 = vld [vmem:[#allocation3 + $0x428] sm:$0xff]
      %v5485 = vld [vmem:[#allocation3 + $0x430] sm:$0xff]
      %v5486 = vld [vmem:[#allocation3 + $0x438] sm:$0xff]
      %v5487 = vld [vmem:[#allocation3 + $0x440] sm:$0xff]
      %v5488 = vld [vmem:[#allocation3 + $0x448] sm:$0xff]
      %v5489 = vld [vmem:[#allocation3 + $0x450] sm:$0xff]
      %v5490 = vld [vmem:[#allocation3 + $0x458] sm:$0xff]
      %v5491 = vld [vmem:[#allocation3 + $0x460] sm:$0xff]
      %v5492 = vld [vmem:[#allocation3 + $0x468] sm:$0xff]
      %v5493 = vld [vmem:[#allocation3 + $0x470] sm:$0xff]
      %v5494 = vld [vmem:[#allocation3 + $0x478] sm:$0xff]
      %5496 = vset.pattern.permute.xlu0 0
      %5497 = vperm.xlu0 %5496, %v4533
      %v5498 = vpop.permute.xlu0 %5497
      %5501 = vset.pattern.permute.xlu0 0
      %5502 = vperm.xlu0 %5501, %v4534
      %v5503 = vpop.permute.xlu0 %5502
      %v5506 = vsel %vm1686, %v4530, 0
      %v5509 = vsel %vm1686, %v4532, 0
      %5511 = vmatprep.subr.mxu0 %v5352
      %5512 = vmatpush1.msra.mxu0 %v5351
      %5513 = vmatprep.subr.mxu0 %v5360
      %5514 = vmatpush1.msra.mxu0 %v5359
      %5515 = vmatprep.subr.mxu0 %v5368
      %5516 = vmatpush1.msra.mxu0 %v5367
      %5517 = vmatprep.subr.mxu0 %v5376
      %5518 = vmatpush1.msra.mxu0 %v5375
      %5519 = vmatprep.subr.mxu0 %v5384
      %5520 = vmatpush1.msra.mxu0 %v5383
      %5521 = vmatprep.subr.mxu0 %v5392
      %5522 = vmatpush1.msra.mxu0 %v5391
      %5523 = vmatprep.subr.mxu0 %v5400
      %5524 = vmatpush1.msra.mxu0 %v5399
      %5525 = vmatprep.subr.mxu0 %v5408
      %5526 = vmatpush1.msra.mxu0 %v5407
      %5527 = vmatprep.subr.mxu0 %v5416
      %5528 = vmatpush1.msra.mxu0 %v5415
      %5529 = vmatprep.subr.mxu0 %v5424
      %5530 = vmatpush1.msra.mxu0 %v5423
      %5531 = vmatprep.subr.mxu0 %v5432
      %5532 = vmatpush1.msra.mxu0 %v5431
      %5533 = vmatprep.subr.mxu0 %v5440
      %5534 = vmatpush1.msra.mxu0 %v5439
      %5535 = vmatprep.subr.mxu0 %v5448
      %5536 = vmatpush1.msra.mxu0 %v5447
      %5537 = vmatprep.subr.mxu0 %v5456
      %5538 = vmatpush1.msra.mxu0 %v5455
      %5539 = vmatprep.subr.mxu0 %v5464
      %5540 = vmatpush1.msra.mxu0 %v5463
      %5541 = vmatprep.subr.mxu0 %v5472
      %5542 = vmatpush1.msra.mxu0 %v5471
      %5543 = vmatprep.subr.mxu0 %v5480
      %5544 = vmatpush1.msra.mxu0 %v5479
      %5545 = vmatprep.subr.mxu0 %v5488
      %5546 = vmatpush1.msra.mxu0 %v5487
      %5547 = vmatprep.subr.mxu0 0.0
      %5548 = vmatpush1.msra.mxu0 0.0
      %5549 = vmatprep.subr.mxu0 0.0
      %5550 = vmatpush1.msra.mxu0 0.0
      %5551 = vmatprep.subr.mxu0 0.0
      %5552 = vmatpush1.msra.mxu0 0.0
      %5553 = vmatprep.subr.mxu0 0.0
      %5554 = vmatpush1.msra.mxu0 0.0
      %5555 = vmatprep.subr.mxu0 0.0
      %5556 = vmatpush1.msra.mxu0 0.0
      %5557 = vmatprep.subr.mxu0 0.0
      %5558 = vmatpush1.msra.mxu0 0.0
      %5559 = vmatprep.subr.mxu0 0.0
      %5560 = vmatpush1.msra.mxu0 0.0
      %5561 = vmatprep.subr.mxu0 0.0
      %5562 = vmatpush1.msra.mxu0 0.0
      %5563 = vmatprep.subr.mxu0 0.0
      %5564 = vmatpush1.msra.mxu0 0.0
      %5565 = vmatprep.subr.mxu0 0.0
      %5566 = vmatpush1.msra.mxu0 0.0
      %5567 = vmatprep.subr.mxu0 0.0
      %5568 = vmatpush1.msra.mxu0 0.0
      %5569 = vmatprep.subr.mxu0 0.0
      %5570 = vmatpush1.msra.mxu0 0.0
      %5571 = vmatprep.subr.mxu0 0.0
      %5572 = vmatpush1.msra.mxu0 0.0
      %5573 = vmatprep.subr.mxu0 0.0
      %5574 = vmatpush1.msra.mxu0 0.0
      %5575 = vmatprep.mubr.f32.mxu0 %v5506
      %5576 = vmatmul.mubr.f32.gmra.mrb[0].mxu0 %v4529
      %v5577 = vpop.f32.mrb[0].mxu0
      %v5578 = vadd.f32 %v5498, %v5577
      %v5579 = vpop.f32.mrb[0].mxu0
      %v5580 = vadd.f32 %v5498, %v5579
      %5581 = vmatprep.mubr.f32.mxu0 %v5509
      %5582 = vmatmul.mubr.f32.gmra.mrb[0].mxu0 %v4531
      %v5583 = vpop.f32.mrb[0].mxu0
      %v5584 = vadd.f32 %v5503, %v5583
      %v5585 = vpop.f32.mrb[0].mxu0
      %v5586 = vadd.f32 %v5503, %v5585
      %5587 = vdwg.mxu0
      %5588 = vmatprep.subr.mxu0 %v5354
      %5589 = vmatpush1.msra.mxu0 %v5353
      %5590 = vmatprep.subr.mxu0 %v5362
      %5591 = vmatpush1.msra.mxu0 %v5361
      %5592 = vmatprep.subr.mxu0 %v5370
      %5593 = vmatpush1.msra.mxu0 %v5369
      %5594 = vmatprep.subr.mxu0 %v5378
      %5595 = vmatpush1.msra.mxu0 %v5377
      %5596 = vmatprep.subr.mxu0 %v5386
      %5597 = vmatpush1.msra.mxu0 %v5385
      %5598 = vmatprep.subr.mxu0 %v5394
      %5599 = vmatpush1.msra.mxu0 %v5393
      %5600 = vmatprep.subr.mxu0 %v5402
      %5601 = vmatpush1.msra.mxu0 %v5401
      %5602 = vmatprep.subr.mxu0 %v5410
      %5603 = vmatpush1.msra.mxu0 %v5409
      %5604 = vmatprep.subr.mxu0 %v5418
      %5605 = vmatpush1.msra.mxu0 %v5417
      %5606 = vmatprep.subr.mxu0 %v5426
      %5607 = vmatpush1.msra.mxu0 %v5425
      %5608 = vmatprep.subr.mxu0 %v5434
      %5609 = vmatpush1.msra.mxu0 %v5433
      %5610 = vmatprep.subr.mxu0 %v5442
      %5611 = vmatpush1.msra.mxu0 %v5441
      %5612 = vmatprep.subr.mxu0 %v5450
      %5613 = vmatpush1.msra.mxu0 %v5449
      %5614 = vmatprep.subr.mxu0 %v5458
      %5615 = vmatpush1.msra.mxu0 %v5457
      %5616 = vmatprep.subr.mxu0 %v5466
      %5617 = vmatpush1.msra.mxu0 %v5465
      %5618 = vmatprep.subr.mxu0 %v5474
      %5619 = vmatpush1.msra.mxu0 %v5473
      %5620 = vmatprep.subr.mxu0 %v5482
      %5621 = vmatpush1.msra.mxu0 %v5481
      %5622 = vmatprep.subr.mxu0 %v5490
      %5623 = vmatpush1.msra.mxu0 %v5489
      %5624 = vmatprep.subr.mxu0 0.0
      %5625 = vmatpush1.msra.mxu0 0.0
      %5626 = vmatprep.subr.mxu0 0.0
      %5627 = vmatpush1.msra.mxu0 0.0
      %5628 = vmatprep.subr.mxu0 0.0
      %5629 = vmatpush1.msra.mxu0 0.0
      %5630 = vmatprep.subr.mxu0 0.0
      %5631 = vmatpush1.msra.mxu0 0.0
      %5632 = vmatprep.subr.mxu0 0.0
      %5633 = vmatpush1.msra.mxu0 0.0
      %5634 = vmatprep.subr.mxu0 0.0
      %5635 = vmatpush1.msra.mxu0 0.0
      %5636 = vmatprep.subr.mxu0 0.0
      %5637 = vmatpush1.msra.mxu0 0.0
      %5638 = vmatprep.subr.mxu0 0.0
      %5639 = vmatpush1.msra.mxu0 0.0
      %5640 = vmatprep.subr.mxu0 0.0
      %5641 = vmatpush1.msra.mxu0 0.0
      %5642 = vmatprep.subr.mxu0 0.0
      %5643 = vmatpush1.msra.mxu0 0.0
      %5644 = vmatprep.subr.mxu0 0.0
      %5645 = vmatpush1.msra.mxu0 0.0
      %5646 = vmatprep.subr.mxu0 0.0
      %5647 = vmatpush1.msra.mxu0 0.0
      %5648 = vmatprep.subr.mxu0 0.0
      %5649 = vmatpush1.msra.mxu0 0.0
      %5650 = vmatprep.subr.mxu0 0.0
      %5651 = vmatpush1.msra.mxu0 0.0
      %5652 = vmatprep.mubr.f32.mxu0 %v5506
      %5653 = vmatmul.mubr.f32.gmra.mrb[0].mxu0 %v4529
      %v5654 = vpop.f32.mrb[0].mxu0
      %v5655 = vadd.f32 %v5498, %v5654
      %v5656 = vpop.f32.mrb[0].mxu0
      %v5657 = vadd.f32 %v5498, %v5656
      %5658 = vmatprep.mubr.f32.mxu0 %v5509
      %5659 = vmatmul.mubr.f32.gmra.mrb[0].mxu0 %v4531
      %v5660 = vpop.f32.mrb[0].mxu0
      %v5661 = vadd.f32 %v5503, %v5660
      %v5662 = vpop.f32.mrb[0].mxu0
      %v5663 = vadd.f32 %v5503, %v5662
      %5664 = vdwg.mxu0
      %5665 = vmatprep.subr.mxu0 %v5356
      %5666 = vmatpush1.msra.mxu0 %v5355
      %5667 = vmatprep.subr.mxu0 %v5364
      %5668 = vmatpush1.msra.mxu0 %v5363
      %5669 = vmatprep.subr.mxu0 %v5372
      %5670 = vmatpush1.msra.mxu0 %v5371
      %5671 = vmatprep.subr.mxu0 %v5380
      %5672 = vmatpush1.msra.mxu0 %v5379
      %5673 = vmatprep.subr.mxu0 %v5388
      %5674 = vmatpush1.msra.mxu0 %v5387
      %5675 = vmatprep.subr.mxu0 %v5396
      %5676 = vmatpush1.msra.mxu0 %v5395
      %5677 = vmatprep.subr.mxu0 %v5404
      %5678 = vmatpush1.msra.mxu0 %v5403
      %5679 = vmatprep.subr.mxu0 %v5412
      %5680 = vmatpush1.msra.mxu0 %v5411
      %5681 = vmatprep.subr.mxu0 %v5420
      %5682 = vmatpush1.msra.mxu0 %v5419
      %5683 = vmatprep.subr.mxu0 %v5428
      %5684 = vmatpush1.msra.mxu0 %v5427
      %5685 = vmatprep.subr.mxu0 %v5436
      %5686 = vmatpush1.msra.mxu0 %v5435
      %5687 = vmatprep.subr.mxu0 %v5444
      %5688 = vmatpush1.msra.mxu0 %v5443
      %5689 = vmatprep.subr.mxu0 %v5452
      %5690 = vmatpush1.msra.mxu0 %v5451
      %5691 = vmatprep.subr.mxu0 %v5460
      %5692 = vmatpush1.msra.mxu0 %v5459
      %5693 = vmatprep.subr.mxu0 %v5468
      %5694 = vmatpush1.msra.mxu0 %v5467
      %5695 = vmatprep.subr.mxu0 %v5476
      %5696 = vmatpush1.msra.mxu0 %v5475
      %5697 = vmatprep.subr.mxu0 %v5484
      %5698 = vmatpush1.msra.mxu0 %v5483
      %5699 = vmatprep.subr.mxu0 %v5492
      %5700 = vmatpush1.msra.mxu0 %v5491
      %5701 = vmatprep.subr.mxu0 0.0
      %5702 = vmatpush1.msra.mxu0 0.0
      %5703 = vmatprep.subr.mxu0 0.0
      %5704 = vmatpush1.msra.mxu0 0.0
      %5705 = vmatprep.subr.mxu0 0.0
      %5706 = vmatpush1.msra.mxu0 0.0
      %5707 = vmatprep.subr.mxu0 0.0
      %5708 = vmatpush1.msra.mxu0 0.0
      %5709 = vmatprep.subr.mxu0 0.0
      %5710 = vmatpush1.msra.mxu0 0.0
      %5711 = vmatprep.subr.mxu0 0.0
      %5712 = vmatpush1.msra.mxu0 0.0
      %5713 = vmatprep.subr.mxu0 0.0
      %5714 = vmatpush1.msra.mxu0 0.0
      %5715 = vmatprep.subr.mxu0 0.0
      %5716 = vmatpush1.msra.mxu0 0.0
      %5717 = vmatprep.subr.mxu0 0.0
      %5718 = vmatpush1.msra.mxu0 0.0
      %5719 = vmatprep.subr.mxu0 0.0
      %5720 = vmatpush1.msra.mxu0 0.0
      %5721 = vmatprep.subr.mxu0 0.0
      %5722 = vmatpush1.msra.mxu0 0.0
      %5723 = vmatprep.subr.mxu0 0.0
      %5724 = vmatpush1.msra.mxu0 0.0
      %5725 = vmatprep.subr.mxu0 0.0
      %5726 = vmatpush1.msra.mxu0 0.0
      %5727 = vmatprep.subr.mxu0 0.0
      %5728 = vmatpush1.msra.mxu0 0.0
      %5729 = vmatprep.mubr.f32.mxu0 %v5506
      %5730 = vmatmul.mubr.f32.gmra.mrb[0].mxu0 %v4529
      %v5731 = vpop.f32.mrb[0].mxu0
      %v5732 = vadd.f32 %v5498, %v5731
      %v5733 = vpop.f32.mrb[0].mxu0
      %v5734 = vadd.f32 %v5498, %v5733
      %5735 = vmatprep.mubr.f32.mxu0 %v5509
      %5736 = vmatmul.mubr.f32.gmra.mrb[0].mxu0 %v4531
      %v5737 = vpop.f32.mrb[0].mxu0
      %v5738 = vadd.f32 %v5503, %v5737
      %v5739 = vpop.f32.mrb[0].mxu0
      %v5740 = vadd.f32 %v5503, %v5739
      %5741 = vdwg.mxu0
      %5742 = vmatprep.subr.mxu0 %v5358
      %5743 = vmatpush1.msra.mxu0 %v5357
      %5744 = vmatprep.subr.mxu0 %v5366
      %5745 = vmatpush1.msra.mxu0 %v5365
      %5746 = vmatprep.subr.mxu0 %v5374
      %5747 = vmatpush1.msra.mxu0 %v5373
      %5748 = vmatprep.subr.mxu0 %v5382
      %5749 = vmatpush1.msra.mxu0 %v5381
      %5750 = vmatprep.subr.mxu0 %v5390
      %5751 = vmatpush1.msra.mxu0 %v5389
      %5752 = vmatprep.subr.mxu0 %v5398
      %5753 = vmatpush1.msra.mxu0 %v5397
      %5754 = vmatprep.subr.mxu0 %v5406
      %5755 = vmatpush1.msra.mxu0 %v5405
      %5756 = vmatprep.subr.mxu0 %v5414
      %5757 = vmatpush1.msra.mxu0 %v5413
      %5758 = vmatprep.subr.mxu0 %v5422
      %5759 = vmatpush1.msra.mxu0 %v5421
      %5760 = vmatprep.subr.mxu0 %v5430
      %5761 = vmatpush1.msra.mxu0 %v5429
      %5762 = vmatprep.subr.mxu0 %v5438
      %5763 = vmatpush1.msra.mxu0 %v5437
      %5764 = vmatprep.subr.mxu0 %v5446
      %5765 = vmatpush1.msra.mxu0 %v5445
      %5766 = vmatprep.subr.mxu0 %v5454
      %5767 = vmatpush1.msra.mxu0 %v5453
      %5768 = vmatprep.subr.mxu0 %v5462
      %5769 = vmatpush1.msra.mxu0 %v5461
      %5770 = vmatprep.subr.mxu0 %v5470
      %5771 = vmatpush1.msra.mxu0 %v5469
      %5772 = vmatprep.subr.mxu0 %v5478
      %5773 = vmatpush1.msra.mxu0 %v5477
      %5774 = vmatprep.subr.mxu0 %v5486
      %5775 = vmatpush1.msra.mxu0 %v5485
      %5776 = vmatprep.subr.mxu0 %v5494
      %5777 = vmatpush1.msra.mxu0 %v5493
      %5778 = vmatprep.subr.mxu0 0.0
      %5779 = vmatpush1.msra.mxu0 0.0
      %5780 = vmatprep.subr.mxu0 0.0
      %5781 = vmatpush1.msra.mxu0 0.0
      %5782 = vmatprep.subr.mxu0 0.0
      %5783 = vmatpush1.msra.mxu0 0.0
      %5784 = vmatprep.subr.mxu0 0.0
      %5785 = vmatpush1.msra.mxu0 0.0
      %5786 = vmatprep.subr.mxu0 0.0
      %5787 = vmatpush1.msra.mxu0 0.0
      %5788 = vmatprep.subr.mxu0 0.0
      %5789 = vmatpush1.msra.mxu0 0.0
      %5790 = vmatprep.subr.mxu0 0.0
      %5791 = vmatpush1.msra.mxu0 0.0
      %5792 = vmatprep.subr.mxu0 0.0
      %5793 = vmatpush1.msra.mxu0 0.0
      %5794 = vmatprep.subr.mxu0 0.0
      %5795 = vmatpush1.msra.mxu0 0.0
      %5796 = vmatprep.subr.mxu0 0.0
      %5797 = vmatpush1.msra.mxu0 0.0
      %5798 = vmatprep.subr.mxu0 0.0
      %5799 = vmatpush1.msra.mxu0 0.0
      %5800 = vmatprep.subr.mxu0 0.0
      %5801 = vmatpush1.msra.mxu0 0.0
      %5802 = vmatprep.subr.mxu0 0.0
      %5803 = vmatpush1.msra.mxu0 0.0
      %5804 = vmatprep.subr.mxu0 0.0
      %5805 = vmatpush1.msra.mxu0 0.0
      %5806 = vmatprep.mubr.f32.mxu0 %v5506
      %5807 = vmatmul.mubr.f32.gmra.mrb[0].mxu0 %v4529
      %v5808 = vpop.f32.mrb[0].mxu0
      %v5809 = vadd.f32 %v5498, %v5808
      %v5810 = vpop.f32.mrb[0].mxu0
      %v5811 = vadd.f32 %v5498, %v5810
      %5812 = vmatprep.mubr.f32.mxu0 %v5509
      %5813 = vmatmul.mubr.f32.gmra.mrb[0].mxu0 %v4531
      %v5814 = vpop.f32.mrb[0].mxu0
      %v5815 = vadd.f32 %v5503, %v5814
      %v5816 = vpop.f32.mrb[0].mxu0
      %v5817 = vadd.f32 %v5503, %v5816
      %5818 = vdwg.mxu0
      %v5819 = vld [vmem:[%s17] sm:$0xff]
      %v5820 = vld [vmem:[%s17 + $0x8] sm:$0xff]
      %v5821 = vld [vmem:[%s17 + $0x10] sm:$0xff]
      %v5822 = vld [vmem:[%s17 + $0x18] sm:$0xff]
      %v5823 = vld [vmem:[%s17 + $0x20] sm:$0xff]
      %v5824 = vld [vmem:[%s17 + $0x28] sm:$0xff]
      %v5825 = vld [vmem:[%s18] sm:$0xff]
      %v5826 = vld [vmem:[%s18 + $0x8] sm:$0xff]
      %v5827 = vld [vmem:[%s18 + $0x10] sm:$0xff]
      %5831 = vrot.lane.b32.xlu0 %v3869, 33
      %v5832 = vpop.permute.xlu0 %5831
      %5833 = vrot.lane.b32.xlu0 %v5811, 33
      %v5834 = vpop.permute.xlu0 %5833
      %5835 = vrot.lane.b32.xlu0 %v5817, 33
      %v5836 = vpop.permute.xlu0 %5835
      %5861 = vrot.lane.b32.xlu0 %v3862, 33
      %v5862 = vpop.permute.xlu0 %5861
      %5863 = vrot.lane.b32.xlu0 %v3863, 33
      %v5864 = vpop.permute.xlu0 %5863
      %5865 = vrot.lane.b32.xlu0 %v3864, 33
      %v5866 = vpop.permute.xlu0 %5865
      %5867 = vrot.lane.b32.xlu0 %v3865, 33
      %v5868 = vpop.permute.xlu0 %5867
      %5869 = vrot.lane.b32.xlu0 %v3866, 33
      %v5870 = vpop.permute.xlu0 %5869
      %5871 = vrot.lane.b32.xlu0 %v3867, 33
      %v5872 = vpop.permute.xlu0 %5871
      %5873 = vrot.lane.b32.xlu0 %v3868, 33
      %v5874 = vpop.permute.xlu0 %5873
      %5875 = vrot.lane.b32.xlu0 %v5578, 33
      %v5876 = vpop.permute.xlu0 %5875
      %5877 = vrot.lane.b32.xlu0 %v5580, 33
      %v5878 = vpop.permute.xlu0 %5877
      %5879 = vrot.lane.b32.xlu0 %v5655, 33
      %v5880 = vpop.permute.xlu0 %5879
      %5881 = vrot.lane.b32.xlu0 %v5657, 33
      %v5882 = vpop.permute.xlu0 %5881
      %5883 = vrot.lane.b32.xlu0 %v5732, 33
      %v5884 = vpop.permute.xlu0 %5883
      %5885 = vrot.lane.b32.xlu0 %v5734, 33
      %v5886 = vpop.permute.xlu0 %5885
      %5887 = vrot.lane.b32.xlu0 %v5809, 33
      %v5888 = vpop.permute.xlu0 %5887
      %5889 = vrot.lane.b32.xlu0 %v5584, 33
      %v5890 = vpop.permute.xlu0 %5889
      %5891 = vrot.lane.b32.xlu0 %v5586, 33
      %v5892 = vpop.permute.xlu0 %5891
      %5893 = vrot.lane.b32.xlu0 %v5661, 33
      %v5894 = vpop.permute.xlu0 %5893
      %5895 = vrot.lane.b32.xlu0 %v5663, 33
      %v5896 = vpop.permute.xlu0 %5895
      %5897 = vrot.lane.b32.xlu0 %v5738, 33
      %v5898 = vpop.permute.xlu0 %5897
      %5899 = vrot.lane.b32.xlu0 %v5740, 33
      %v5900 = vpop.permute.xlu0 %5899
      %5901 = vrot.lane.b32.xlu0 %v5815, 33
      %v5902 = vpop.permute.xlu0 %5901
      %v5903 = vsel %vm1999, %v5862, %v5864
      %v5904 = vsel %vm1999, %v5864, %v5866
      %v5905 = vsel %vm1999, %v5866, %v5868
      %v5906 = vsel %vm1999, %v5868, %v5870
      %v5907 = vsel %vm1999, %v5870, %v5872
      %v5908 = vsel %vm1999, %v5872, %v5874
      %v5909 = vsel %vm1999, %v5874, %v5832
      %v5910 = vsel %vm1999, %v5876, %v5878
      %v5911 = vsel %vm1999, %v5878, %v5880
      %v5912 = vsel %vm1999, %v5880, %v5882
      %v5913 = vsel %vm1999, %v5882, %v5884
      %v5914 = vsel %vm1999, %v5884, %v5886
      %v5915 = vsel %vm1999, %v5886, %v5888
      %v5916 = vsel %vm1999, %v5888, %v5834
      %v5917 = vsel %vm1999, %v5890, %v5892
      %v5918 = vsel %vm1999, %v5892, %v5894
      %v5919 = vsel %vm1999, %v5894, %v5896
      %v5920 = vsel %vm1999, %v5896, %v5898
      %v5921 = vsel %vm1999, %v5898, %v5900
      %v5922 = vsel %vm1999, %v5900, %v5902
      %v5923 = vsel %vm1999, %v5902, %v5836
      %v5948 = vsel %vm1999, %v5832, %v5862
      %v5949 = vsel %vm1999, %v5834, %v5876
      %v5950 = vsel %vm1999, %v5836, %v5890
      %v5951 = vmul.f32 %v5948, %v2020
      %v5952 = vmul.f32 %v5903, %v2024
      %v5953 = vmul.f32 %v5904, %v2028
      %v5954 = vmul.f32 %v5905, %v2032
      %v5955 = vmul.f32 %v5906, %v2036
      %v5956 = vmul.f32 %v5907, %v2040
      %v5957 = vmul.f32 %v5908, %v2044
      %v5958 = vmul.f32 %v5909, %v2048
      %v5959 = vmul.f32 %v5949, %v2020
      %v5960 = vmul.f32 %v5910, %v2024
      %v5961 = vmul.f32 %v5911, %v2028
      %v5962 = vmul.f32 %v5912, %v2032
      %v5963 = vmul.f32 %v5913, %v2036
      %v5964 = vmul.f32 %v5914, %v2040
      %v5965 = vmul.f32 %v5915, %v2044
      %v5966 = vmul.f32 %v5916, %v2048
      %v5967 = vmul.f32 %v5950, %v2020
      %v5968 = vmul.f32 %v5917, %v2024
      %v5969 = vmul.f32 %v5918, %v2028
      %v5970 = vmul.f32 %v5919, %v2032
      %v5971 = vmul.f32 %v5920, %v2036
      %v5972 = vmul.f32 %v5921, %v2040
      %v5973 = vmul.f32 %v5922, %v2044
      %v5974 = vmul.f32 %v5923, %v2048
      %5975 = vst [vmem:[#allocation3] sm:$0xff] %v5951
      %5976 = vst [vmem:[#allocation3 + $0x8] sm:$0xff] %v5952
      %5977 = vst [vmem:[#allocation3 + $0x10] sm:$0xff] %v5953
      %5978 = vst [vmem:[#allocation3 + $0x18] sm:$0xff] %v5954
      %5979 = vst [vmem:[#allocation3 + $0x20] sm:$0xff] %v5955
      %5980 = vst [vmem:[#allocation3 + $0x28] sm:$0xff] %v5956
      %5981 = vst [vmem:[#allocation3 + $0x30] sm:$0xff] %v5957
      %5982 = vst [vmem:[#allocation3 + $0x38] sm:$0xff] %v5958
      %5983 = vst [vmem:[#allocation3 + $0x40] sm:$0xff] %v5959
      %5984 = vst [vmem:[#allocation3 + $0x48] sm:$0xff] %v5960
      %5985 = vst [vmem:[#allocation3 + $0x50] sm:$0xff] %v5961
      %5986 = vst [vmem:[#allocation3 + $0x58] sm:$0xff] %v5962
      %5987 = vst [vmem:[#allocation3 + $0x60] sm:$0xff] %v5963
      %5988 = vst [vmem:[#allocation3 + $0x68] sm:$0xff] %v5964
      %5989 = vst [vmem:[#allocation3 + $0x70] sm:$0xff] %v5965
      %5990 = vst [vmem:[#allocation3 + $0x78] sm:$0xff] %v5966
      %5991 = vst [vmem:[#allocation3 + $0x80] sm:$0xff] %v5967
      %5992 = vst [vmem:[#allocation3 + $0x88] sm:$0xff] %v5968
      %5993 = vst [vmem:[#allocation3 + $0x90] sm:$0xff] %v5969
      %5994 = vst [vmem:[#allocation3 + $0x98] sm:$0xff] %v5970
      %5995 = vst [vmem:[#allocation3 + $0xa0] sm:$0xff] %v5971
      %5996 = vst [vmem:[#allocation3 + $0xa8] sm:$0xff] %v5972
      %5997 = vst [vmem:[#allocation3 + $0xb0] sm:$0xff] %v5973
      %5998 = vst [vmem:[#allocation3 + $0xb8] sm:$0xff] %v5974
      %5999 = vrot.lane.b32.xlu0 %v3869, 32
      %v6000 = vpop.permute.xlu0 %5999
      %6001 = vrot.lane.b32.xlu0 %v5811, 32
      %v6002 = vpop.permute.xlu0 %6001
      %6003 = vrot.lane.b32.xlu0 %v5817, 32
      %v6004 = vpop.permute.xlu0 %6003
      %6008 = vrot.lane.b32.xlu0 %v3862, 32
      %v6009 = vpop.permute.xlu0 %6008
      %6010 = vrot.lane.b32.xlu0 %v3863, 32
      %v6011 = vpop.permute.xlu0 %6010
      %6012 = vrot.lane.b32.xlu0 %v3864, 32
      %v6013 = vpop.permute.xlu0 %6012
      %6014 = vrot.lane.b32.xlu0 %v3865, 32
      %v6015 = vpop.permute.xlu0 %6014
      %6016 = vrot.lane.b32.xlu0 %v3866, 32
      %v6017 = vpop.permute.xlu0 %6016
      %6018 = vrot.lane.b32.xlu0 %v3867, 32
      %v6019 = vpop.permute.xlu0 %6018
      %6020 = vrot.lane.b32.xlu0 %v3868, 32
      %v6021 = vpop.permute.xlu0 %6020
      %6022 = vrot.lane.b32.xlu0 %v5578, 32
      %v6023 = vpop.permute.xlu0 %6022
      %6024 = vrot.lane.b32.xlu0 %v5580, 32
      %v6025 = vpop.permute.xlu0 %6024
      %6026 = vrot.lane.b32.xlu0 %v5655, 32
      %v6027 = vpop.permute.xlu0 %6026
      %6028 = vrot.lane.b32.xlu0 %v5657, 32
      %v6029 = vpop.permute.xlu0 %6028
      %6030 = vrot.lane.b32.xlu0 %v5732, 32
      %v6031 = vpop.permute.xlu0 %6030
      %6032 = vrot.lane.b32.xlu0 %v5734, 32
      %v6033 = vpop.permute.xlu0 %6032
      %6034 = vrot.lane.b32.xlu0 %v5809, 32
      %v6035 = vpop.permute.xlu0 %6034
      %6036 = vrot.lane.b32.xlu0 %v5584, 32
      %v6037 = vpop.permute.xlu0 %6036
      %6038 = vrot.lane.b32.xlu0 %v5586, 32
      %v6039 = vpop.permute.xlu0 %6038
      %6040 = vrot.lane.b32.xlu0 %v5661, 32
      %v6041 = vpop.permute.xlu0 %6040
      %6042 = vrot.lane.b32.xlu0 %v5663, 32
      %v6043 = vpop.permute.xlu0 %6042
      %6044 = vrot.lane.b32.xlu0 %v5738, 32
      %v6045 = vpop.permute.xlu0 %6044
      %6046 = vrot.lane.b32.xlu0 %v5740, 32
      %v6047 = vpop.permute.xlu0 %6046
      %6048 = vrot.lane.b32.xlu0 %v5815, 32
      %v6049 = vpop.permute.xlu0 %6048
      %v6050 = vsel %vm2090, %v6009, %v6011
      %v6051 = vsel %vm2090, %v6011, %v6013
      %v6052 = vsel %vm2090, %v6013, %v6015
      %v6053 = vsel %vm2090, %v6015, %v6017
      %v6054 = vsel %vm2090, %v6017, %v6019
      %v6055 = vsel %vm2090, %v6019, %v6021
      %v6056 = vsel %vm2090, %v6021, %v6000
      %v6057 = vsel %vm2090, %v6023, %v6025
      %v6058 = vsel %vm2090, %v6025, %v6027
      %v6059 = vsel %vm2090, %v6027, %v6029
      %v6060 = vsel %vm2090, %v6029, %v6031
      %v6061 = vsel %vm2090, %v6031, %v6033
      %v6062 = vsel %vm2090, %v6033, %v6035
      %v6063 = vsel %vm2090, %v6035, %v6002
      %v6064 = vsel %vm2090, %v6037, %v6039
      %v6065 = vsel %vm2090, %v6039, %v6041
      %v6066 = vsel %vm2090, %v6041, %v6043
      %v6067 = vsel %vm2090, %v6043, %v6045
      %v6068 = vsel %vm2090, %v6045, %v6047
      %v6069 = vsel %vm2090, %v6047, %v6049
      %v6070 = vsel %vm2090, %v6049, %v6004
      %v6095 = vsel %vm2090, %v6000, %v6009
      %v6096 = vsel %vm2090, %v6002, %v6023
      %v6097 = vsel %vm2090, %v6004, %v6037
      %v6098 = vmul.f32 %v6095, %v2111
      %v6099 = vmul.f32 %v6050, %v2115
      %v6100 = vmul.f32 %v6051, %v2119
      %v6101 = vmul.f32 %v6052, %v2123
      %v6102 = vmul.f32 %v6053, %v2127
      %v6103 = vmul.f32 %v6054, %v2131
      %v6104 = vmul.f32 %v6055, %v2135
      %v6105 = vmul.f32 %v6056, %v2139
      %v6106 = vmul.f32 %v6096, %v2111
      %v6107 = vmul.f32 %v6057, %v2115
      %v6108 = vmul.f32 %v6058, %v2119
      %v6109 = vmul.f32 %v6059, %v2123
      %v6110 = vmul.f32 %v6060, %v2127
      %v6111 = vmul.f32 %v6061, %v2131
      %v6112 = vmul.f32 %v6062, %v2135
      %v6113 = vmul.f32 %v6063, %v2139
      %v6114 = vmul.f32 %v6097, %v2111
      %v6115 = vmul.f32 %v6064, %v2115
      %v6116 = vmul.f32 %v6065, %v2119
      %v6117 = vmul.f32 %v6066, %v2123
      %v6118 = vmul.f32 %v6067, %v2127
      %v6119 = vmul.f32 %v6068, %v2131
      %v6120 = vmul.f32 %v6069, %v2135
      %v6121 = vmul.f32 %v6070, %v2139
      %6122 = vst [vmem:[#allocation3 + $0xc0] sm:$0xff] %v6098
      %6123 = vst [vmem:[#allocation3 + $0xc8] sm:$0xff] %v6099
      %6124 = vst [vmem:[#allocation3 + $0xd0] sm:$0xff] %v6100
      %6125 = vst [vmem:[#allocation3 + $0xd8] sm:$0xff] %v6101
      %6126 = vst [vmem:[#allocation3 + $0xe0] sm:$0xff] %v6102
      %6127 = vst [vmem:[#allocation3 + $0xe8] sm:$0xff] %v6103
      %6128 = vst [vmem:[#allocation3 + $0xf0] sm:$0xff] %v6104
      %6129 = vst [vmem:[#allocation3 + $0xf8] sm:$0xff] %v6105
      %6130 = vst [vmem:[#allocation3 + $0x100] sm:$0xff] %v6106
      %6131 = vst [vmem:[#allocation3 + $0x108] sm:$0xff] %v6107
      %6132 = vst [vmem:[#allocation3 + $0x110] sm:$0xff] %v6108
      %6133 = vst [vmem:[#allocation3 + $0x118] sm:$0xff] %v6109
      %6134 = vst [vmem:[#allocation3 + $0x120] sm:$0xff] %v6110
      %6135 = vst [vmem:[#allocation3 + $0x128] sm:$0xff] %v6111
      %6136 = vst [vmem:[#allocation3 + $0x130] sm:$0xff] %v6112
      %6137 = vst [vmem:[#allocation3 + $0x138] sm:$0xff] %v6113
      %6138 = vst [vmem:[#allocation3 + $0x140] sm:$0xff] %v6114
      %6139 = vst [vmem:[#allocation3 + $0x148] sm:$0xff] %v6115
      %6140 = vst [vmem:[#allocation3 + $0x150] sm:$0xff] %v6116
      %6141 = vst [vmem:[#allocation3 + $0x158] sm:$0xff] %v6117
      %6142 = vst [vmem:[#allocation3 + $0x160] sm:$0xff] %v6118
      %6143 = vst [vmem:[#allocation3 + $0x168] sm:$0xff] %v6119
      %6144 = vst [vmem:[#allocation3 + $0x170] sm:$0xff] %v6120
      %6145 = vst [vmem:[#allocation3 + $0x178] sm:$0xff] %v6121
      %6146 = vrot.lane.b32.xlu0 %v3869, 31
      %v6147 = vpop.permute.xlu0 %6146
      %6148 = vrot.lane.b32.xlu0 %v5811, 31
      %v6149 = vpop.permute.xlu0 %6148
      %6150 = vrot.lane.b32.xlu0 %v5817, 31
      %v6151 = vpop.permute.xlu0 %6150
      %6155 = vrot.lane.b32.xlu0 %v3862, 31
      %v6156 = vpop.permute.xlu0 %6155
      %6157 = vrot.lane.b32.xlu0 %v3863, 31
      %v6158 = vpop.permute.xlu0 %6157
      %6159 = vrot.lane.b32.xlu0 %v3864, 31
      %v6160 = vpop.permute.xlu0 %6159
      %6161 = vrot.lane.b32.xlu0 %v3865, 31
      %v6162 = vpop.permute.xlu0 %6161
      %6163 = vrot.lane.b32.xlu0 %v3866, 31
      %v6164 = vpop.permute.xlu0 %6163
      %6165 = vrot.lane.b32.xlu0 %v3867, 31
      %v6166 = vpop.permute.xlu0 %6165
      %6167 = vrot.lane.b32.xlu0 %v3868, 31
      %v6168 = vpop.permute.xlu0 %6167
      %6169 = vrot.lane.b32.xlu0 %v5578, 31
      %v6170 = vpop.permute.xlu0 %6169
      %6171 = vrot.lane.b32.xlu0 %v5580, 31
      %v6172 = vpop.permute.xlu0 %6171
      %6173 = vrot.lane.b32.xlu0 %v5655, 31
      %v6174 = vpop.permute.xlu0 %6173
      %6175 = vrot.lane.b32.xlu0 %v5657, 31
      %v6176 = vpop.permute.xlu0 %6175
      %6177 = vrot.lane.b32.xlu0 %v5732, 31
      %v6178 = vpop.permute.xlu0 %6177
      %6179 = vrot.lane.b32.xlu0 %v5734, 31
      %v6180 = vpop.permute.xlu0 %6179
      %6181 = vrot.lane.b32.xlu0 %v5809, 31
      %v6182 = vpop.permute.xlu0 %6181
      %6183 = vrot.lane.b32.xlu0 %v5584, 31
      %v6184 = vpop.permute.xlu0 %6183
      %6185 = vrot.lane.b32.xlu0 %v5586, 31
      %v6186 = vpop.permute.xlu0 %6185
      %6187 = vrot.lane.b32.xlu0 %v5661, 31
      %v6188 = vpop.permute.xlu0 %6187
      %6189 = vrot.lane.b32.xlu0 %v5663, 31
      %v6190 = vpop.permute.xlu0 %6189
      %6191 = vrot.lane.b32.xlu0 %v5738, 31
      %v6192 = vpop.permute.xlu0 %6191
      %6193 = vrot.lane.b32.xlu0 %v5740, 31
      %v6194 = vpop.permute.xlu0 %6193
      %6195 = vrot.lane.b32.xlu0 %v5815, 31
      %v6196 = vpop.permute.xlu0 %6195
      %v6197 = vsel %vm2181, %v6156, %v6158
      %v6198 = vsel %vm2181, %v6158, %v6160
      %v6199 = vsel %vm2181, %v6160, %v6162
      %v6200 = vsel %vm2181, %v6162, %v6164
      %v6201 = vsel %vm2181, %v6164, %v6166
      %v6202 = vsel %vm2181, %v6166, %v6168
      %v6203 = vsel %vm2181, %v6168, %v6147
      %v6204 = vsel %vm2181, %v6170, %v6172
      %v6205 = vsel %vm2181, %v6172, %v6174
      %v6206 = vsel %vm2181, %v6174, %v6176
      %v6207 = vsel %vm2181, %v6176, %v6178
      %v6208 = vsel %vm2181, %v6178, %v6180
      %v6209 = vsel %vm2181, %v6180, %v6182
      %v6210 = vsel %vm2181, %v6182, %v6149
      %v6211 = vsel %vm2181, %v6184, %v6186
      %v6212 = vsel %vm2181, %v6186, %v6188
      %v6213 = vsel %vm2181, %v6188, %v6190
      %v6214 = vsel %vm2181, %v6190, %v6192
      %v6215 = vsel %vm2181, %v6192, %v6194
      %v6216 = vsel %vm2181, %v6194, %v6196
      %v6217 = vsel %vm2181, %v6196, %v6151
      %v6242 = vsel %vm2181, %v6147, %v6156
      %v6243 = vsel %vm2181, %v6149, %v6170
      %v6244 = vsel %vm2181, %v6151, %v6184
      %v6245 = vmul.f32 %v6242, %v2202
      %v6246 = vmul.f32 %v6197, %v2206
      %v6247 = vmul.f32 %v6198, %v2210
      %v6248 = vmul.f32 %v6199, %v2214
      %v6249 = vmul.f32 %v6200, %v2218
      %v6250 = vmul.f32 %v6201, %v2222
      %v6251 = vmul.f32 %v6202, %v2226
      %v6252 = vmul.f32 %v6203, %v2230
      %v6253 = vmul.f32 %v6243, %v2202
      %v6254 = vmul.f32 %v6204, %v2206
      %v6255 = vmul.f32 %v6205, %v2210
      %v6256 = vmul.f32 %v6206, %v2214
      %v6257 = vmul.f32 %v6207, %v2218
      %v6258 = vmul.f32 %v6208, %v2222
      %v6259 = vmul.f32 %v6209, %v2226
      %v6260 = vmul.f32 %v6210, %v2230
      %v6261 = vmul.f32 %v6244, %v2202
      %v6262 = vmul.f32 %v6211, %v2206
      %v6263 = vmul.f32 %v6212, %v2210
      %v6264 = vmul.f32 %v6213, %v2214
      %v6265 = vmul.f32 %v6214, %v2218
      %v6266 = vmul.f32 %v6215, %v2222
      %v6267 = vmul.f32 %v6216, %v2226
      %v6268 = vmul.f32 %v6217, %v2230
      %6269 = vst [vmem:[#allocation3 + $0x180] sm:$0xff] %v6245
      %6270 = vst [vmem:[#allocation3 + $0x188] sm:$0xff] %v6246
      %6271 = vst [vmem:[#allocation3 + $0x190] sm:$0xff] %v6247
      %6272 = vst [vmem:[#allocation3 + $0x198] sm:$0xff] %v6248
      %6273 = vst [vmem:[#allocation3 + $0x1a0] sm:$0xff] %v6249
      %6274 = vst [vmem:[#allocation3 + $0x1a8] sm:$0xff] %v6250
      %6275 = vst [vmem:[#allocation3 + $0x1b0] sm:$0xff] %v6251
      %6276 = vst [vmem:[#allocation3 + $0x1b8] sm:$0xff] %v6252
      %6277 = vst [vmem:[#allocation3 + $0x1c0] sm:$0xff] %v6253
      %6278 = vst [vmem:[#allocation3 + $0x1c8] sm:$0xff] %v6254
      %6279 = vst [vmem:[#allocation3 + $0x1d0] sm:$0xff] %v6255
      %6280 = vst [vmem:[#allocation3 + $0x1d8] sm:$0xff] %v6256
      %6281 = vst [vmem:[#allocation3 + $0x1e0] sm:$0xff] %v6257
      %6282 = vst [vmem:[#allocation3 + $0x1e8] sm:$0xff] %v6258
      %6283 = vst [vmem:[#allocation3 + $0x1f0] sm:$0xff] %v6259
      %6284 = vst [vmem:[#allocation3 + $0x1f8] sm:$0xff] %v6260
      %6285 = vst [vmem:[#allocation3 + $0x200] sm:$0xff] %v6261
      %6286 = vst [vmem:[#allocation3 + $0x208] sm:$0xff] %v6262
      %6287 = vst [vmem:[#allocation3 + $0x210] sm:$0xff] %v6263
      %6288 = vst [vmem:[#allocation3 + $0x218] sm:$0xff] %v6264
      %6289 = vst [vmem:[#allocation3 + $0x220] sm:$0xff] %v6265
      %6290 = vst [vmem:[#allocation3 + $0x228] sm:$0xff] %v6266
      %6291 = vst [vmem:[#allocation3 + $0x230] sm:$0xff] %v6267
      %6292 = vst [vmem:[#allocation3 + $0x238] sm:$0xff] %v6268
      %6293 = vrot.lane.b32.xlu0 %v3869, 1
      %v6294 = vpop.permute.xlu0 %6293
      %6295 = vrot.lane.b32.xlu0 %v5811, 1
      %v6296 = vpop.permute.xlu0 %6295
      %6297 = vrot.lane.b32.xlu0 %v5817, 1
      %v6298 = vpop.permute.xlu0 %6297
      %6302 = vrot.lane.b32.xlu0 %v3862, 1
      %v6303 = vpop.permute.xlu0 %6302
      %6304 = vrot.lane.b32.xlu0 %v3863, 1
      %v6305 = vpop.permute.xlu0 %6304
      %6306 = vrot.lane.b32.xlu0 %v3864, 1
      %v6307 = vpop.permute.xlu0 %6306
      %6308 = vrot.lane.b32.xlu0 %v3865, 1
      %v6309 = vpop.permute.xlu0 %6308
      %6310 = vrot.lane.b32.xlu0 %v3866, 1
      %v6311 = vpop.permute.xlu0 %6310
      %6312 = vrot.lane.b32.xlu0 %v3867, 1
      %v6313 = vpop.permute.xlu0 %6312
      %6314 = vrot.lane.b32.xlu0 %v3868, 1
      %v6315 = vpop.permute.xlu0 %6314
      %6316 = vrot.lane.b32.xlu0 %v5578, 1
      %v6317 = vpop.permute.xlu0 %6316
      %6318 = vrot.lane.b32.xlu0 %v5580, 1
      %v6319 = vpop.permute.xlu0 %6318
      %6320 = vrot.lane.b32.xlu0 %v5655, 1
      %v6321 = vpop.permute.xlu0 %6320
      %6322 = vrot.lane.b32.xlu0 %v5657, 1
      %v6323 = vpop.permute.xlu0 %6322
      %6324 = vrot.lane.b32.xlu0 %v5732, 1
      %v6325 = vpop.permute.xlu0 %6324
      %6326 = vrot.lane.b32.xlu0 %v5734, 1
      %v6327 = vpop.permute.xlu0 %6326
      %6328 = vrot.lane.b32.xlu0 %v5809, 1
      %v6329 = vpop.permute.xlu0 %6328
      %6330 = vrot.lane.b32.xlu0 %v5584, 1
      %v6331 = vpop.permute.xlu0 %6330
      %6332 = vrot.lane.b32.xlu0 %v5586, 1
      %v6333 = vpop.permute.xlu0 %6332
      %6334 = vrot.lane.b32.xlu0 %v5661, 1
      %v6335 = vpop.permute.xlu0 %6334
      %6336 = vrot.lane.b32.xlu0 %v5663, 1
      %v6337 = vpop.permute.xlu0 %6336
      %6338 = vrot.lane.b32.xlu0 %v5738, 1
      %v6339 = vpop.permute.xlu0 %6338
      %6340 = vrot.lane.b32.xlu0 %v5740, 1
      %v6341 = vpop.permute.xlu0 %6340
      %6342 = vrot.lane.b32.xlu0 %v5815, 1
      %v6343 = vpop.permute.xlu0 %6342
      %v6344 = vsel %vm1736, %v6303, %v6305
      %v6345 = vsel %vm1736, %v6305, %v6307
      %v6346 = vsel %vm1736, %v6307, %v6309
      %v6347 = vsel %vm1736, %v6309, %v6311
      %v6348 = vsel %vm1736, %v6311, %v6313
      %v6349 = vsel %vm1736, %v6313, %v6315
      %v6350 = vsel %vm1736, %v6315, %v6294
      %v6351 = vsel %vm1736, %v6317, %v6319
      %v6352 = vsel %vm1736, %v6319, %v6321
      %v6353 = vsel %vm1736, %v6321, %v6323
      %v6354 = vsel %vm1736, %v6323, %v6325
      %v6355 = vsel %vm1736, %v6325, %v6327
      %v6356 = vsel %vm1736, %v6327, %v6329
      %v6357 = vsel %vm1736, %v6329, %v6296
      %v6358 = vsel %vm1736, %v6331, %v6333
      %v6359 = vsel %vm1736, %v6333, %v6335
      %v6360 = vsel %vm1736, %v6335, %v6337
      %v6361 = vsel %vm1736, %v6337, %v6339
      %v6362 = vsel %vm1736, %v6339, %v6341
      %v6363 = vsel %vm1736, %v6341, %v6343
      %v6364 = vsel %vm1736, %v6343, %v6298
      %v6389 = vsel %vm1736, %v6294, %v6303
      %v6390 = vsel %vm1736, %v6296, %v6317
      %v6391 = vsel %vm1736, %v6298, %v6331
      %v6392 = vmul.f32 %v6389, %v2292
      %v6393 = vmul.f32 %v6344, %v2296
      %v6394 = vmul.f32 %v6345, %v2300
      %v6395 = vmul.f32 %v6346, %v2304
      %v6396 = vmul.f32 %v6347, %v2308
      %v6397 = vmul.f32 %v6348, %v2312
      %v6398 = vmul.f32 %v6349, %v2316
      %v6399 = vmul.f32 %v6350, %v2320
      %v6400 = vmul.f32 %v6390, %v2292
      %v6401 = vmul.f32 %v6351, %v2296
      %v6402 = vmul.f32 %v6352, %v2300
      %v6403 = vmul.f32 %v6353, %v2304
      %v6404 = vmul.f32 %v6354, %v2308
      %v6405 = vmul.f32 %v6355, %v2312
      %v6406 = vmul.f32 %v6356, %v2316
      %v6407 = vmul.f32 %v6357, %v2320
      %v6408 = vmul.f32 %v6391, %v2292
      %v6409 = vmul.f32 %v6358, %v2296
      %v6410 = vmul.f32 %v6359, %v2300
      %v6411 = vmul.f32 %v6360, %v2304
      %v6412 = vmul.f32 %v6361, %v2308
      %v6413 = vmul.f32 %v6362, %v2312
      %v6414 = vmul.f32 %v6363, %v2316
      %v6415 = vmul.f32 %v6364, %v2320
      %6416 = vst [vmem:[#allocation3 + $0x240] sm:$0xff] %v6392
      %6417 = vst [vmem:[#allocation3 + $0x248] sm:$0xff] %v6393
      %6418 = vst [vmem:[#allocation3 + $0x250] sm:$0xff] %v6394
      %6419 = vst [vmem:[#allocation3 + $0x258] sm:$0xff] %v6395
      %6420 = vst [vmem:[#allocation3 + $0x260] sm:$0xff] %v6396
      %6421 = vst [vmem:[#allocation3 + $0x268] sm:$0xff] %v6397
      %6422 = vst [vmem:[#allocation3 + $0x270] sm:$0xff] %v6398
      %6423 = vst [vmem:[#allocation3 + $0x278] sm:$0xff] %v6399
      %6424 = vst [vmem:[#allocation3 + $0x280] sm:$0xff] %v6400
      %6425 = vst [vmem:[#allocation3 + $0x288] sm:$0xff] %v6401
      %6426 = vst [vmem:[#allocation3 + $0x290] sm:$0xff] %v6402
      %6427 = vst [vmem:[#allocation3 + $0x298] sm:$0xff] %v6403
      %6428 = vst [vmem:[#allocation3 + $0x2a0] sm:$0xff] %v6404
      %6429 = vst [vmem:[#allocation3 + $0x2a8] sm:$0xff] %v6405
      %6430 = vst [vmem:[#allocation3 + $0x2b0] sm:$0xff] %v6406
      %6431 = vst [vmem:[#allocation3 + $0x2b8] sm:$0xff] %v6407
      %6432 = vst [vmem:[#allocation3 + $0x2c0] sm:$0xff] %v6408
      %6433 = vst [vmem:[#allocation3 + $0x2c8] sm:$0xff] %v6409
      %6434 = vst [vmem:[#allocation3 + $0x2d0] sm:$0xff] %v6410
      %6435 = vst [vmem:[#allocation3 + $0x2d8] sm:$0xff] %v6411
      %6436 = vst [vmem:[#allocation3 + $0x2e0] sm:$0xff] %v6412
      %6437 = vst [vmem:[#allocation3 + $0x2e8] sm:$0xff] %v6413
      %6438 = vst [vmem:[#allocation3 + $0x2f0] sm:$0xff] %v6414
      %6439 = vst [vmem:[#allocation3 + $0x2f8] sm:$0xff] %v6415
      %6440 = vst [vmem:[#allocation3 + $0x300] sm:$0xff] %v3862
      %6441 = vst [vmem:[#allocation3 + $0x308] sm:$0xff] %v3863
      %6442 = vst [vmem:[#allocation3 + $0x310] sm:$0xff] %v3864
      %6443 = vst [vmem:[#allocation3 + $0x318] sm:$0xff] %v3865
      %6444 = vst [vmem:[#allocation3 + $0x320] sm:$0xff] %v3866
      %6445 = vst [vmem:[#allocation3 + $0x328] sm:$0xff] %v3867
      %6446 = vst [vmem:[#allocation3 + $0x330] sm:$0xff] %v3868
      %6447 = vst [vmem:[#allocation3 + $0x338] sm:$0xff] %v3869
      %6448 = vst [vmem:[#allocation3 + $0x340] sm:$0xff] %v5578
      %6449 = vst [vmem:[#allocation3 + $0x348] sm:$0xff] %v5580
      %6450 = vst [vmem:[#allocation3 + $0x350] sm:$0xff] %v5655
      %6451 = vst [vmem:[#allocation3 + $0x358] sm:$0xff] %v5657
      %6452 = vst [vmem:[#allocation3 + $0x360] sm:$0xff] %v5732
      %6453 = vst [vmem:[#allocation3 + $0x368] sm:$0xff] %v5734
      %6454 = vst [vmem:[#allocation3 + $0x370] sm:$0xff] %v5809
      %6455 = vst [vmem:[#allocation3 + $0x378] sm:$0xff] %v5811
      %6456 = vst [vmem:[#allocation3 + $0x380] sm:$0xff] %v5584
      %6457 = vst [vmem:[#allocation3 + $0x388] sm:$0xff] %v5586
      %6458 = vst [vmem:[#allocation3 + $0x390] sm:$0xff] %v5661
      %6459 = vst [vmem:[#allocation3 + $0x398] sm:$0xff] %v5663
      %6460 = vst [vmem:[#allocation3 + $0x3a0] sm:$0xff] %v5738
      %6461 = vst [vmem:[#allocation3 + $0x3a8] sm:$0xff] %v5740
      %6462 = vst [vmem:[#allocation3 + $0x3b0] sm:$0xff] %v5815
      %6463 = vst [vmem:[#allocation3 + $0x3b8] sm:$0xff] %v5817
      %6464 = vrot.lane.b32.xlu0 %v3862, 127
      %v6465 = vpop.permute.xlu0 %6464
      %6466 = vrot.lane.b32.xlu0 %v3863, 127
      %v6467 = vpop.permute.xlu0 %6466
      %6468 = vrot.lane.b32.xlu0 %v3864, 127
      %v6469 = vpop.permute.xlu0 %6468
      %6470 = vrot.lane.b32.xlu0 %v3865, 127
      %v6471 = vpop.permute.xlu0 %6470
      %6472 = vrot.lane.b32.xlu0 %v3866, 127
      %v6473 = vpop.permute.xlu0 %6472
      %6474 = vrot.lane.b32.xlu0 %v3867, 127
      %v6475 = vpop.permute.xlu0 %6474
      %6476 = vrot.lane.b32.xlu0 %v3868, 127
      %v6477 = vpop.permute.xlu0 %6476
      %6478 = vrot.lane.b32.xlu0 %v3869, 127
      %v6479 = vpop.permute.xlu0 %6478
      %6480 = vrot.lane.b32.xlu0 %v5578, 127
      %v6481 = vpop.permute.xlu0 %6480
      %6482 = vrot.lane.b32.xlu0 %v5580, 127
      %v6483 = vpop.permute.xlu0 %6482
      %6484 = vrot.lane.b32.xlu0 %v5655, 127
      %v6485 = vpop.permute.xlu0 %6484
      %6486 = vrot.lane.b32.xlu0 %v5657, 127
      %v6487 = vpop.permute.xlu0 %6486
      %6488 = vrot.lane.b32.xlu0 %v5732, 127
      %v6489 = vpop.permute.xlu0 %6488
      %6490 = vrot.lane.b32.xlu0 %v5734, 127
      %v6491 = vpop.permute.xlu0 %6490
      %6492 = vrot.lane.b32.xlu0 %v5809, 127
      %v6493 = vpop.permute.xlu0 %6492
      %6494 = vrot.lane.b32.xlu0 %v5811, 127
      %v6495 = vpop.permute.xlu0 %6494
      %6496 = vrot.lane.b32.xlu0 %v5584, 127
      %v6497 = vpop.permute.xlu0 %6496
      %6498 = vrot.lane.b32.xlu0 %v5586, 127
      %v6499 = vpop.permute.xlu0 %6498
      %6500 = vrot.lane.b32.xlu0 %v5661, 127
      %v6501 = vpop.permute.xlu0 %6500
      %6502 = vrot.lane.b32.xlu0 %v5663, 127
      %v6503 = vpop.permute.xlu0 %6502
      %6504 = vrot.lane.b32.xlu0 %v5738, 127
      %v6505 = vpop.permute.xlu0 %6504
      %6506 = vrot.lane.b32.xlu0 %v5740, 127
      %v6507 = vpop.permute.xlu0 %6506
      %6508 = vrot.lane.b32.xlu0 %v5815, 127
      %v6509 = vpop.permute.xlu0 %6508
      %6510 = vrot.lane.b32.xlu0 %v5817, 127
      %v6511 = vpop.permute.xlu0 %6510
      %v6512 = vsel %vm1762, %v6465, %v6467
      %v6513 = vsel %vm1762, %v6467, %v6469
      %v6514 = vsel %vm1762, %v6469, %v6471
      %v6515 = vsel %vm1762, %v6471, %v6473
      %v6516 = vsel %vm1762, %v6473, %v6475
      %v6517 = vsel %vm1762, %v6475, %v6477
      %v6518 = vsel %vm1762, %v6477, %v6479
      %v6519 = vsel %vm1762, %v6481, %v6483
      %v6520 = vsel %vm1762, %v6483, %v6485
      %v6521 = vsel %vm1762, %v6485, %v6487
      %v6522 = vsel %vm1762, %v6487, %v6489
      %v6523 = vsel %vm1762, %v6489, %v6491
      %v6524 = vsel %vm1762, %v6491, %v6493
      %v6525 = vsel %vm1762, %v6493, %v6495
      %v6526 = vsel %vm1762, %v6497, %v6499
      %v6527 = vsel %vm1762, %v6499, %v6501
      %v6528 = vsel %vm1762, %v6501, %v6503
      %v6529 = vsel %vm1762, %v6503, %v6505
      %v6530 = vsel %vm1762, %v6505, %v6507
      %v6531 = vsel %vm1762, %v6507, %v6509
      %v6532 = vsel %vm1762, %v6509, %v6511
      %v6560 = vsel %vm1762, %v6479, %v6465
      %v6561 = vsel %vm1762, %v6495, %v6481
      %v6562 = vsel %vm1762, %v6511, %v6497
      %v6563 = vmul.f32 %v6512, %v2390
      %v6564 = vmul.f32 %v6513, %v2394
      %v6565 = vmul.f32 %v6514, %v2398
      %v6566 = vmul.f32 %v6515, %v2402
      %v6567 = vmul.f32 %v6516, %v2406
      %v6568 = vmul.f32 %v6517, %v2410
      %v6569 = vmul.f32 %v6518, %v2414
      %v6570 = vmul.f32 %v6560, %v2418
      %v6571 = vmul.f32 %v6519, %v2390
      %v6572 = vmul.f32 %v6520, %v2394
      %v6573 = vmul.f32 %v6521, %v2398
      %v6574 = vmul.f32 %v6522, %v2402
      %v6575 = vmul.f32 %v6523, %v2406
      %v6576 = vmul.f32 %v6524, %v2410
      %v6577 = vmul.f32 %v6525, %v2414
      %v6578 = vmul.f32 %v6561, %v2418
      %v6579 = vmul.f32 %v6526, %v2390
      %v6580 = vmul.f32 %v6527, %v2394
      %v6581 = vmul.f32 %v6528, %v2398
      %v6582 = vmul.f32 %v6529, %v2402
      %v6583 = vmul.f32 %v6530, %v2406
      %v6584 = vmul.f32 %v6531, %v2410
      %v6585 = vmul.f32 %v6532, %v2414
      %v6586 = vmul.f32 %v6562, %v2418
      %6587 = vst [vmem:[#allocation3 + $0x3c0] sm:$0xff] %v6563
      %6588 = vst [vmem:[#allocation3 + $0x3c8] sm:$0xff] %v6564
      %6589 = vst [vmem:[#allocation3 + $0x3d0] sm:$0xff] %v6565
      %6590 = vst [vmem:[#allocation3 + $0x3d8] sm:$0xff] %v6566
      %6591 = vst [vmem:[#allocation3 + $0x3e0] sm:$0xff] %v6567
      %6592 = vst [vmem:[#allocation3 + $0x3e8] sm:$0xff] %v6568
      %6593 = vst [vmem:[#allocation3 + $0x3f0] sm:$0xff] %v6569
      %6594 = vst [vmem:[#allocation3 + $0x3f8] sm:$0xff] %v6570
      %6595 = vst [vmem:[#allocation3 + $0x400] sm:$0xff] %v6571
      %6596 = vst [vmem:[#allocation3 + $0x408] sm:$0xff] %v6572
      %6597 = vst [vmem:[#allocation3 + $0x410] sm:$0xff] %v6573
      %6598 = vst [vmem:[#allocation3 + $0x418] sm:$0xff] %v6574
      %6599 = vst [vmem:[#allocation3 + $0x420] sm:$0xff] %v6575
      %6600 = vst [vmem:[#allocation3 + $0x428] sm:$0xff] %v6576
      %6601 = vst [vmem:[#allocation3 + $0x430] sm:$0xff] %v6577
      %6602 = vst [vmem:[#allocation3 + $0x438] sm:$0xff] %v6578
      %6603 = vst [vmem:[#allocation3 + $0x440] sm:$0xff] %v6579
      %6604 = vst [vmem:[#allocation3 + $0x448] sm:$0xff] %v6580
      %6605 = vst [vmem:[#allocation3 + $0x450] sm:$0xff] %v6581
      %6606 = vst [vmem:[#allocation3 + $0x458] sm:$0xff] %v6582
      %6607 = vst [vmem:[#allocation3 + $0x460] sm:$0xff] %v6583
      %6608 = vst [vmem:[#allocation3 + $0x468] sm:$0xff] %v6584
      %6609 = vst [vmem:[#allocation3 + $0x470] sm:$0xff] %v6585
      %6610 = vst [vmem:[#allocation3 + $0x478] sm:$0xff] %v6586
      %6611 = vrot.lane.b32.xlu0 %v3862, 97
      %v6612 = vpop.permute.xlu0 %6611
      %6613 = vrot.lane.b32.xlu0 %v3863, 97
      %v6614 = vpop.permute.xlu0 %6613
      %6615 = vrot.lane.b32.xlu0 %v3864, 97
      %v6616 = vpop.permute.xlu0 %6615
      %6617 = vrot.lane.b32.xlu0 %v3865, 97
      %v6618 = vpop.permute.xlu0 %6617
      %6619 = vrot.lane.b32.xlu0 %v3866, 97
      %v6620 = vpop.permute.xlu0 %6619
      %6621 = vrot.lane.b32.xlu0 %v3867, 97
      %v6622 = vpop.permute.xlu0 %6621
      %6623 = vrot.lane.b32.xlu0 %v3868, 97
      %v6624 = vpop.permute.xlu0 %6623
      %6625 = vrot.lane.b32.xlu0 %v3869, 97
      %v6626 = vpop.permute.xlu0 %6625
      %6627 = vrot.lane.b32.xlu0 %v5578, 97
      %v6628 = vpop.permute.xlu0 %6627
      %6629 = vrot.lane.b32.xlu0 %v5580, 97
      %v6630 = vpop.permute.xlu0 %6629
      %6631 = vrot.lane.b32.xlu0 %v5655, 97
      %v6632 = vpop.permute.xlu0 %6631
      %6633 = vrot.lane.b32.xlu0 %v5657, 97
      %v6634 = vpop.permute.xlu0 %6633
      %6635 = vrot.lane.b32.xlu0 %v5732, 97
      %v6636 = vpop.permute.xlu0 %6635
      %6637 = vrot.lane.b32.xlu0 %v5734, 97
      %v6638 = vpop.permute.xlu0 %6637
      %6639 = vrot.lane.b32.xlu0 %v5809, 97
      %v6640 = vpop.permute.xlu0 %6639
      %6641 = vrot.lane.b32.xlu0 %v5811, 97
      %v6642 = vpop.permute.xlu0 %6641
      %6643 = vrot.lane.b32.xlu0 %v5584, 97
      %v6644 = vpop.permute.xlu0 %6643
      %6645 = vrot.lane.b32.xlu0 %v5586, 97
      %v6646 = vpop.permute.xlu0 %6645
      %6647 = vrot.lane.b32.xlu0 %v5661, 97
      %v6648 = vpop.permute.xlu0 %6647
      %6649 = vrot.lane.b32.xlu0 %v5663, 97
      %v6650 = vpop.permute.xlu0 %6649
      %6651 = vrot.lane.b32.xlu0 %v5738, 97
      %v6652 = vpop.permute.xlu0 %6651
      %6653 = vrot.lane.b32.xlu0 %v5740, 97
      %v6654 = vpop.permute.xlu0 %6653
      %6655 = vrot.lane.b32.xlu0 %v5815, 97
      %v6656 = vpop.permute.xlu0 %6655
      %6657 = vrot.lane.b32.xlu0 %v5817, 97
      %v6658 = vpop.permute.xlu0 %6657
      %v6659 = vsel %vm2459, %v6612, %v6614
      %v6660 = vsel %vm2459, %v6614, %v6616
      %v6661 = vsel %vm2459, %v6616, %v6618
      %v6662 = vsel %vm2459, %v6618, %v6620
      %v6663 = vsel %vm2459, %v6620, %v6622
      %v6664 = vsel %vm2459, %v6622, %v6624
      %v6665 = vsel %vm2459, %v6624, %v6626
      %v6666 = vsel %vm2459, %v6628, %v6630
      %v6667 = vsel %vm2459, %v6630, %v6632
      %v6668 = vsel %vm2459, %v6632, %v6634
      %v6669 = vsel %vm2459, %v6634, %v6636
      %v6670 = vsel %vm2459, %v6636, %v6638
      %v6671 = vsel %vm2459, %v6638, %v6640
      %v6672 = vsel %vm2459, %v6640, %v6642
      %v6673 = vsel %vm2459, %v6644, %v6646
      %v6674 = vsel %vm2459, %v6646, %v6648
      %v6675 = vsel %vm2459, %v6648, %v6650
      %v6676 = vsel %vm2459, %v6650, %v6652
      %v6677 = vsel %vm2459, %v6652, %v6654
      %v6678 = vsel %vm2459, %v6654, %v6656
      %v6679 = vsel %vm2459, %v6656, %v6658
      %v6707 = vsel %vm2459, %v6626, %v6612
      %v6708 = vsel %vm2459, %v6642, %v6628
      %v6709 = vsel %vm2459, %v6658, %v6644
      %v6710 = vmul.f32 %v6659, %v2481
      %v6711 = vmul.f32 %v6660, %v2485
      %v6712 = vmul.f32 %v6661, %v2489
      %v6713 = vmul.f32 %v6662, %v2493
      %v6714 = vmul.f32 %v6663, %v2497
      %v6715 = vmul.f32 %v6664, %v2501
      %v6716 = vmul.f32 %v6665, %v2505
      %v6717 = vmul.f32 %v6707, %v2509
      %v6718 = vmul.f32 %v6666, %v2481
      %v6719 = vmul.f32 %v6667, %v2485
      %v6720 = vmul.f32 %v6668, %v2489
      %v6721 = vmul.f32 %v6669, %v2493
      %v6722 = vmul.f32 %v6670, %v2497
      %v6723 = vmul.f32 %v6671, %v2501
      %v6724 = vmul.f32 %v6672, %v2505
      %v6725 = vmul.f32 %v6708, %v2509
      %v6726 = vmul.f32 %v6673, %v2481
      %v6727 = vmul.f32 %v6674, %v2485
      %v6728 = vmul.f32 %v6675, %v2489
      %v6729 = vmul.f32 %v6676, %v2493
      %v6730 = vmul.f32 %v6677, %v2497
      %v6731 = vmul.f32 %v6678, %v2501
      %v6732 = vmul.f32 %v6679, %v2505
      %v6733 = vmul.f32 %v6709, %v2509
      %6734 = vst [vmem:[#allocation3 + $0x480] sm:$0xff] %v6710
      %6735 = vst [vmem:[#allocation3 + $0x488] sm:$0xff] %v6711
      %6736 = vst [vmem:[#allocation3 + $0x490] sm:$0xff] %v6712
      %6737 = vst [vmem:[#allocation3 + $0x498] sm:$0xff] %v6713
      %6738 = vst [vmem:[#allocation3 + $0x4a0] sm:$0xff] %v6714
      %6739 = vst [vmem:[#allocation3 + $0x4a8] sm:$0xff] %v6715
      %6740 = vst [vmem:[#allocation3 + $0x4b0] sm:$0xff] %v6716
      %6741 = vst [vmem:[#allocation3 + $0x4b8] sm:$0xff] %v6717
      %6742 = vst [vmem:[#allocation3 + $0x4c0] sm:$0xff] %v6718
      %6743 = vst [vmem:[#allocation3 + $0x4c8] sm:$0xff] %v6719
      %6744 = vst [vmem:[#allocation3 + $0x4d0] sm:$0xff] %v6720
      %6745 = vst [vmem:[#allocation3 + $0x4d8] sm:$0xff] %v6721
      %6746 = vst [vmem:[#allocation3 + $0x4e0] sm:$0xff] %v6722
      %6747 = vst [vmem:[#allocation3 + $0x4e8] sm:$0xff] %v6723
      %6748 = vst [vmem:[#allocation3 + $0x4f0] sm:$0xff] %v6724
      %6749 = vst [vmem:[#allocation3 + $0x4f8] sm:$0xff] %v6725
      %6750 = vst [vmem:[#allocation3 + $0x500] sm:$0xff] %v6726
      %6751 = vst [vmem:[#allocation3 + $0x508] sm:$0xff] %v6727
      %6752 = vst [vmem:[#allocation3 + $0x510] sm:$0xff] %v6728
      %6753 = vst [vmem:[#allocation3 + $0x518] sm:$0xff] %v6729
      %6754 = vst [vmem:[#allocation3 + $0x520] sm:$0xff] %v6730
      %6755 = vst [vmem:[#allocation3 + $0x528] sm:$0xff] %v6731
      %6756 = vst [vmem:[#allocation3 + $0x530] sm:$0xff] %v6732
      %6757 = vst [vmem:[#allocation3 + $0x538] sm:$0xff] %v6733
      %6758 = vrot.lane.b32.xlu0 %v3862, 96
      %v6759 = vpop.permute.xlu0 %6758
      %6760 = vrot.lane.b32.xlu0 %v3863, 96
      %v6761 = vpop.permute.xlu0 %6760
      %6762 = vrot.lane.b32.xlu0 %v3864, 96
      %v6763 = vpop.permute.xlu0 %6762
      %6764 = vrot.lane.b32.xlu0 %v3865, 96
      %v6765 = vpop.permute.xlu0 %6764
      %6766 = vrot.lane.b32.xlu0 %v3866, 96
      %v6767 = vpop.permute.xlu0 %6766
      %6768 = vrot.lane.b32.xlu0 %v3867, 96
      %v6769 = vpop.permute.xlu0 %6768
      %6770 = vrot.lane.b32.xlu0 %v3868, 96
      %v6771 = vpop.permute.xlu0 %6770
      %6772 = vrot.lane.b32.xlu0 %v3869, 96
      %v6773 = vpop.permute.xlu0 %6772
      %6774 = vrot.lane.b32.xlu0 %v5578, 96
      %v6775 = vpop.permute.xlu0 %6774
      %6776 = vrot.lane.b32.xlu0 %v5580, 96
      %v6777 = vpop.permute.xlu0 %6776
      %6778 = vrot.lane.b32.xlu0 %v5655, 96
      %v6779 = vpop.permute.xlu0 %6778
      %6780 = vrot.lane.b32.xlu0 %v5657, 96
      %v6781 = vpop.permute.xlu0 %6780
      %6782 = vrot.lane.b32.xlu0 %v5732, 96
      %v6783 = vpop.permute.xlu0 %6782
      %6784 = vrot.lane.b32.xlu0 %v5734, 96
      %v6785 = vpop.permute.xlu0 %6784
      %6786 = vrot.lane.b32.xlu0 %v5809, 96
      %v6787 = vpop.permute.xlu0 %6786
      %6788 = vrot.lane.b32.xlu0 %v5811, 96
      %v6789 = vpop.permute.xlu0 %6788
      %6790 = vrot.lane.b32.xlu0 %v5584, 96
      %v6791 = vpop.permute.xlu0 %6790
      %6792 = vrot.lane.b32.xlu0 %v5586, 96
      %v6793 = vpop.permute.xlu0 %6792
      %6794 = vrot.lane.b32.xlu0 %v5661, 96
      %v6795 = vpop.permute.xlu0 %6794
      %6796 = vrot.lane.b32.xlu0 %v5663, 96
      %v6797 = vpop.permute.xlu0 %6796
      %6798 = vrot.lane.b32.xlu0 %v5738, 96
      %v6799 = vpop.permute.xlu0 %6798
      %6800 = vrot.lane.b32.xlu0 %v5740, 96
      %v6801 = vpop.permute.xlu0 %6800
      %6802 = vrot.lane.b32.xlu0 %v5815, 96
      %v6803 = vpop.permute.xlu0 %6802
      %6804 = vrot.lane.b32.xlu0 %v5817, 96
      %v6805 = vpop.permute.xlu0 %6804
      %v6806 = vsel %vm2550, %v6759, %v6761
      %v6807 = vsel %vm2550, %v6761, %v6763
      %v6808 = vsel %vm2550, %v6763, %v6765
      %v6809 = vsel %vm2550, %v6765, %v6767
      %v6810 = vsel %vm2550, %v6767, %v6769
      %v6811 = vsel %vm2550, %v6769, %v6771
      %v6812 = vsel %vm2550, %v6771, %v6773
      %v6813 = vsel %vm2550, %v6775, %v6777
      %v6814 = vsel %vm2550, %v6777, %v6779
      %v6815 = vsel %vm2550, %v6779, %v6781
      %v6816 = vsel %vm2550, %v6781, %v6783
      %v6817 = vsel %vm2550, %v6783, %v6785
      %v6818 = vsel %vm2550, %v6785, %v6787
      %v6819 = vsel %vm2550, %v6787, %v6789
      %v6820 = vsel %vm2550, %v6791, %v6793
      %v6821 = vsel %vm2550, %v6793, %v6795
      %v6822 = vsel %vm2550, %v6795, %v6797
      %v6823 = vsel %vm2550, %v6797, %v6799
      %v6824 = vsel %vm2550, %v6799, %v6801
      %v6825 = vsel %vm2550, %v6801, %v6803
      %v6826 = vsel %vm2550, %v6803, %v6805
      %v6854 = vsel %vm2550, %v6773, %v6759
      %v6855 = vsel %vm2550, %v6789, %v6775
      %v6856 = vsel %vm2550, %v6805, %v6791
      %v6857 = vmul.f32 %v6806, %v2572
      %v6858 = vmul.f32 %v6807, %v2576
      %v6859 = vmul.f32 %v6808, %v2580
      %v6860 = vmul.f32 %v6809, %v2584
      %v6861 = vmul.f32 %v6810, %v2588
      %v6862 = vmul.f32 %v6811, %v2592
      %v6863 = vmul.f32 %v6812, %v2596
      %v6864 = vmul.f32 %v6854, %v2600
      %v6865 = vmul.f32 %v6813, %v2572
      %v6866 = vmul.f32 %v6814, %v2576
      %v6867 = vmul.f32 %v6815, %v2580
      %v6868 = vmul.f32 %v6816, %v2584
      %v6869 = vmul.f32 %v6817, %v2588
      %v6870 = vmul.f32 %v6818, %v2592
      %v6871 = vmul.f32 %v6819, %v2596
      %v6872 = vmul.f32 %v6855, %v2600
      %v6873 = vmul.f32 %v6820, %v2572
      %v6874 = vmul.f32 %v6821, %v2576
      %v6875 = vmul.f32 %v6822, %v2580
      %v6876 = vmul.f32 %v6823, %v2584
      %v6877 = vmul.f32 %v6824, %v2588
      %v6878 = vmul.f32 %v6825, %v2592
      %v6879 = vmul.f32 %v6826, %v2596
      %v6880 = vmul.f32 %v6856, %v2600
      %6881 = vst [vmem:[#allocation3 + $0x540] sm:$0xff] %v6857
      %6882 = vst [vmem:[#allocation3 + $0x548] sm:$0xff] %v6858
      %6883 = vst [vmem:[#allocation3 + $0x550] sm:$0xff] %v6859
      %6884 = vst [vmem:[#allocation3 + $0x558] sm:$0xff] %v6860
      %6885 = vst [vmem:[#allocation3 + $0x560] sm:$0xff] %v6861
      %6886 = vst [vmem:[#allocation3 + $0x568] sm:$0xff] %v6862
      %6887 = vst [vmem:[#allocation3 + $0x570] sm:$0xff] %v6863
      %6888 = vst [vmem:[#allocation3 + $0x578] sm:$0xff] %v6864
      %6889 = vst [vmem:[#allocation3 + $0x580] sm:$0xff] %v6865
      %6890 = vst [vmem:[#allocation3 + $0x588] sm:$0xff] %v6866
      %6891 = vst [vmem:[#allocation3 + $0x590] sm:$0xff] %v6867
      %6892 = vst [vmem:[#allocation3 + $0x598] sm:$0xff] %v6868
      %6893 = vst [vmem:[#allocation3 + $0x5a0] sm:$0xff] %v6869
      %6894 = vst [vmem:[#allocation3 + $0x5a8] sm:$0xff] %v6870
      %6895 = vst [vmem:[#allocation3 + $0x5b0] sm:$0xff] %v6871
      %6896 = vst [vmem:[#allocation3 + $0x5b8] sm:$0xff] %v6872
      %6897 = vst [vmem:[#allocation3 + $0x5c0] sm:$0xff] %v6873
      %6898 = vst [vmem:[#allocation3 + $0x5c8] sm:$0xff] %v6874
      %6899 = vst [vmem:[#allocation3 + $0x5d0] sm:$0xff] %v6875
      %6900 = vst [vmem:[#allocation3 + $0x5d8] sm:$0xff] %v6876
      %6901 = vst [vmem:[#allocation3 + $0x5e0] sm:$0xff] %v6877
      %6902 = vst [vmem:[#allocation3 + $0x5e8] sm:$0xff] %v6878
      %6903 = vst [vmem:[#allocation3 + $0x5f0] sm:$0xff] %v6879
      %6904 = vst [vmem:[#allocation3 + $0x5f8] sm:$0xff] %v6880
      %6905 = vrot.lane.b32.xlu0 %v3862, 95
      %v6906 = vpop.permute.xlu0 %6905
      %6907 = vrot.lane.b32.xlu0 %v3863, 95
      %v6908 = vpop.permute.xlu0 %6907
      %6909 = vrot.lane.b32.xlu0 %v3864, 95
      %v6910 = vpop.permute.xlu0 %6909
      %6911 = vrot.lane.b32.xlu0 %v3865, 95
      %v6912 = vpop.permute.xlu0 %6911
      %6913 = vrot.lane.b32.xlu0 %v3866, 95
      %v6914 = vpop.permute.xlu0 %6913
      %6915 = vrot.lane.b32.xlu0 %v3867, 95
      %v6916 = vpop.permute.xlu0 %6915
      %6917 = vrot.lane.b32.xlu0 %v3868, 95
      %v6918 = vpop.permute.xlu0 %6917
      %6919 = vrot.lane.b32.xlu0 %v3869, 95
      %v6920 = vpop.permute.xlu0 %6919
      %6921 = vrot.lane.b32.xlu0 %v5578, 95
      %v6922 = vpop.permute.xlu0 %6921
      %6923 = vrot.lane.b32.xlu0 %v5580, 95
      %v6924 = vpop.permute.xlu0 %6923
      %6925 = vrot.lane.b32.xlu0 %v5655, 95
      %v6926 = vpop.permute.xlu0 %6925
      %6927 = vrot.lane.b32.xlu0 %v5657, 95
      %v6928 = vpop.permute.xlu0 %6927
      %6929 = vrot.lane.b32.xlu0 %v5732, 95
      %v6930 = vpop.permute.xlu0 %6929
      %6931 = vrot.lane.b32.xlu0 %v5734, 95
      %v6932 = vpop.permute.xlu0 %6931
      %6933 = vrot.lane.b32.xlu0 %v5809, 95
      %v6934 = vpop.permute.xlu0 %6933
      %6935 = vrot.lane.b32.xlu0 %v5811, 95
      %v6936 = vpop.permute.xlu0 %6935
      %6937 = vrot.lane.b32.xlu0 %v5584, 95
      %v6938 = vpop.permute.xlu0 %6937
      %6939 = vrot.lane.b32.xlu0 %v5586, 95
      %v6940 = vpop.permute.xlu0 %6939
      %6941 = vrot.lane.b32.xlu0 %v5661, 95
      %v6942 = vpop.permute.xlu0 %6941
      %6943 = vrot.lane.b32.xlu0 %v5663, 95
      %v6944 = vpop.permute.xlu0 %6943
      %6945 = vrot.lane.b32.xlu0 %v5738, 95
      %v6946 = vpop.permute.xlu0 %6945
      %6947 = vrot.lane.b32.xlu0 %v5740, 95
      %v6948 = vpop.permute.xlu0 %6947
      %6949 = vrot.lane.b32.xlu0 %v5815, 95
      %v6950 = vpop.permute.xlu0 %6949
      %6951 = vrot.lane.b32.xlu0 %v5817, 95
      %v6952 = vpop.permute.xlu0 %6951
      %v6953 = vsel %vm2641, %v6906, %v6908
      %v6954 = vsel %vm2641, %v6908, %v6910
      %v6955 = vsel %vm2641, %v6910, %v6912
      %v6956 = vsel %vm2641, %v6912, %v6914
      %v6957 = vsel %vm2641, %v6914, %v6916
      %v6958 = vsel %vm2641, %v6916, %v6918
      %v6959 = vsel %vm2641, %v6918, %v6920
      %v6960 = vsel %vm2641, %v6922, %v6924
      %v6961 = vsel %vm2641, %v6924, %v6926
      %v6962 = vsel %vm2641, %v6926, %v6928
      %v6963 = vsel %vm2641, %v6928, %v6930
      %v6964 = vsel %vm2641, %v6930, %v6932
      %v6965 = vsel %vm2641, %v6932, %v6934
      %v6966 = vsel %vm2641, %v6934, %v6936
      %v6967 = vsel %vm2641, %v6938, %v6940
      %v6968 = vsel %vm2641, %v6940, %v6942
      %v6969 = vsel %vm2641, %v6942, %v6944
      %v6970 = vsel %vm2641, %v6944, %v6946
      %v6971 = vsel %vm2641, %v6946, %v6948
      %v6972 = vsel %vm2641, %v6948, %v6950
      %v6973 = vsel %vm2641, %v6950, %v6952
      %v7001 = vsel %vm2641, %v6920, %v6906
      %v7002 = vsel %vm2641, %v6936, %v6922
      %v7003 = vsel %vm2641, %v6952, %v6938
      %v7004 = vmul.f32 %v6953, %v2663
      %v7005 = vmul.f32 %v6954, %v2667
      %v7006 = vmul.f32 %v6955, %v2671
      %v7007 = vmul.f32 %v6956, %v2675
      %v7008 = vmul.f32 %v6957, %v2679
      %v7009 = vmul.f32 %v6958, %v2683
      %v7010 = vmul.f32 %v6959, %v2687
      %v7011 = vmul.f32 %v7001, %v2691
      %v7012 = vmul.f32 %v6960, %v2663
      %v7013 = vmul.f32 %v6961, %v2667
      %v7014 = vmul.f32 %v6962, %v2671
      %v7015 = vmul.f32 %v6963, %v2675
      %v7016 = vmul.f32 %v6964, %v2679
      %v7017 = vmul.f32 %v6965, %v2683
      %v7018 = vmul.f32 %v6966, %v2687
      %v7019 = vmul.f32 %v7002, %v2691
      %v7020 = vmul.f32 %v6967, %v2663
      %v7021 = vmul.f32 %v6968, %v2667
      %v7022 = vmul.f32 %v6969, %v2671
      %v7023 = vmul.f32 %v6970, %v2675
      %v7024 = vmul.f32 %v6971, %v2679
      %v7025 = vmul.f32 %v6972, %v2683
      %v7026 = vmul.f32 %v6973, %v2687
      %v7027 = vmul.f32 %v7003, %v2691
      %7028 = vst [vmem:[#allocation3 + $0x600] sm:$0xff] %v7004
      %7029 = vst [vmem:[#allocation3 + $0x608] sm:$0xff] %v7005
      %7030 = vst [vmem:[#allocation3 + $0x610] sm:$0xff] %v7006
      %7031 = vst [vmem:[#allocation3 + $0x618] sm:$0xff] %v7007
      %7032 = vst [vmem:[#allocation3 + $0x620] sm:$0xff] %v7008
      %7033 = vst [vmem:[#allocation3 + $0x628] sm:$0xff] %v7009
      %7034 = vst [vmem:[#allocation3 + $0x630] sm:$0xff] %v7010
      %7035 = vst [vmem:[#allocation3 + $0x638] sm:$0xff] %v7011
      %7036 = vst [vmem:[#allocation3 + $0x640] sm:$0xff] %v7012
      %7037 = vst [vmem:[#allocation3 + $0x648] sm:$0xff] %v7013
      %7038 = vst [vmem:[#allocation3 + $0x650] sm:$0xff] %v7014
      %7039 = vst [vmem:[#allocation3 + $0x658] sm:$0xff] %v7015
      %7040 = vst [vmem:[#allocation3 + $0x660] sm:$0xff] %v7016
      %7041 = vst [vmem:[#allocation3 + $0x668] sm:$0xff] %v7017
      %7042 = vst [vmem:[#allocation3 + $0x670] sm:$0xff] %v7018
      %7043 = vst [vmem:[#allocation3 + $0x678] sm:$0xff] %v7019
      %7044 = vst [vmem:[#allocation3 + $0x680] sm:$0xff] %v7020
      %7045 = vst [vmem:[#allocation3 + $0x688] sm:$0xff] %v7021
      %7046 = vst [vmem:[#allocation3 + $0x690] sm:$0xff] %v7022
      %7047 = vst [vmem:[#allocation3 + $0x698] sm:$0xff] %v7023
      %7048 = vst [vmem:[#allocation3 + $0x6a0] sm:$0xff] %v7024
      %7049 = vst [vmem:[#allocation3 + $0x6a8] sm:$0xff] %v7025
      %7050 = vst [vmem:[#allocation3 + $0x6b0] sm:$0xff] %v7026
      %7051 = vst [vmem:[#allocation3 + $0x6b8] sm:$0xff] %v7027
      %v7052 = vld [vmem:[#allocation3] sm:$0xff]
      %v7053 = vld [vmem:[#allocation3 + $0x8] sm:$0xff]
      %v7054 = vld [vmem:[#allocation3 + $0x10] sm:$0xff]
      %v7055 = vld [vmem:[#allocation3 + $0x18] sm:$0xff]
      %v7056 = vld [vmem:[#allocation3 + $0x20] sm:$0xff]
      %v7057 = vld [vmem:[#allocation3 + $0x28] sm:$0xff]
      %v7058 = vld [vmem:[#allocation3 + $0x30] sm:$0xff]
      %v7059 = vld [vmem:[#allocation3 + $0x38] sm:$0xff]
      %v7060 = vld [vmem:[#allocation3 + $0x40] sm:$0xff]
      %v7061 = vld [vmem:[#allocation3 + $0x48] sm:$0xff]
      %v7062 = vld [vmem:[#allocation3 + $0x50] sm:$0xff]
      %v7063 = vld [vmem:[#allocation3 + $0x58] sm:$0xff]
      %v7064 = vld [vmem:[#allocation3 + $0x60] sm:$0xff]
      %v7065 = vld [vmem:[#allocation3 + $0x68] sm:$0xff]
      %v7066 = vld [vmem:[#allocation3 + $0x70] sm:$0xff]
      %v7067 = vld [vmem:[#allocation3 + $0x78] sm:$0xff]
      %v7068 = vld [vmem:[#allocation3 + $0x80] sm:$0xff]
      %v7069 = vld [vmem:[#allocation3 + $0x88] sm:$0xff]
      %v7070 = vld [vmem:[#allocation3 + $0x90] sm:$0xff]
      %v7071 = vld [vmem:[#allocation3 + $0x98] sm:$0xff]
      %v7072 = vld [vmem:[#allocation3 + $0xa0] sm:$0xff]
      %v7073 = vld [vmem:[#allocation3 + $0xa8] sm:$0xff]
      %v7074 = vld [vmem:[#allocation3 + $0xb0] sm:$0xff]
      %v7075 = vld [vmem:[#allocation3 + $0xb8] sm:$0xff]
      %v7076 = vld [vmem:[#allocation3 + $0xc0] sm:$0xff]
      %v7077 = vld [vmem:[#allocation3 + $0xc8] sm:$0xff]
      %v7078 = vld [vmem:[#allocation3 + $0xd0] sm:$0xff]
      %v7079 = vld [vmem:[#allocation3 + $0xd8] sm:$0xff]
      %v7080 = vld [vmem:[#allocation3 + $0xe0] sm:$0xff]
      %v7081 = vld [vmem:[#allocation3 + $0xe8] sm:$0xff]
      %v7082 = vld [vmem:[#allocation3 + $0xf0] sm:$0xff]
      %v7083 = vld [vmem:[#allocation3 + $0xf8] sm:$0xff]
      %v7084 = vld [vmem:[#allocation3 + $0x100] sm:$0xff]
      %v7085 = vld [vmem:[#allocation3 + $0x108] sm:$0xff]
      %v7086 = vld [vmem:[#allocation3 + $0x110] sm:$0xff]
      %v7087 = vld [vmem:[#allocation3 + $0x118] sm:$0xff]
      %v7088 = vld [vmem:[#allocation3 + $0x120] sm:$0xff]
      %v7089 = vld [vmem:[#allocation3 + $0x128] sm:$0xff]
      %v7090 = vld [vmem:[#allocation3 + $0x130] sm:$0xff]
      %v7091 = vld [vmem:[#allocation3 + $0x138] sm:$0xff]
      %v7092 = vld [vmem:[#allocation3 + $0x140] sm:$0xff]
      %v7093 = vld [vmem:[#allocation3 + $0x148] sm:$0xff]
      %v7094 = vld [vmem:[#allocation3 + $0x150] sm:$0xff]
      %v7095 = vld [vmem:[#allocation3 + $0x158] sm:$0xff]
      %v7096 = vld [vmem:[#allocation3 + $0x160] sm:$0xff]
      %v7097 = vld [vmem:[#allocation3 + $0x168] sm:$0xff]
      %v7098 = vld [vmem:[#allocation3 + $0x170] sm:$0xff]
      %v7099 = vld [vmem:[#allocation3 + $0x178] sm:$0xff]
      %v7100 = vld [vmem:[#allocation3 + $0x180] sm:$0xff]
      %v7101 = vld [vmem:[#allocation3 + $0x188] sm:$0xff]
      %v7102 = vld [vmem:[#allocation3 + $0x190] sm:$0xff]
      %v7103 = vld [vmem:[#allocation3 + $0x198] sm:$0xff]
      %v7104 = vld [vmem:[#allocation3 + $0x1a0] sm:$0xff]
      %v7105 = vld [vmem:[#allocation3 + $0x1a8] sm:$0xff]
      %v7106 = vld [vmem:[#allocation3 + $0x1b0] sm:$0xff]
      %v7107 = vld [vmem:[#allocation3 + $0x1b8] sm:$0xff]
      %v7108 = vld [vmem:[#allocation3 + $0x1c0] sm:$0xff]
      %v7109 = vld [vmem:[#allocation3 + $0x1c8] sm:$0xff]
      %v7110 = vld [vmem:[#allocation3 + $0x1d0] sm:$0xff]
      %v7111 = vld [vmem:[#allocation3 + $0x1d8] sm:$0xff]
      %v7112 = vld [vmem:[#allocation3 + $0x1e0] sm:$0xff]
      %v7113 = vld [vmem:[#allocation3 + $0x1e8] sm:$0xff]
      %v7114 = vld [vmem:[#allocation3 + $0x1f0] sm:$0xff]
      %v7115 = vld [vmem:[#allocation3 + $0x1f8] sm:$0xff]
      %v7116 = vld [vmem:[#allocation3 + $0x200] sm:$0xff]
      %v7117 = vld [vmem:[#allocation3 + $0x208] sm:$0xff]
      %v7118 = vld [vmem:[#allocation3 + $0x210] sm:$0xff]
      %v7119 = vld [vmem:[#allocation3 + $0x218] sm:$0xff]
      %v7120 = vld [vmem:[#allocation3 + $0x220] sm:$0xff]
      %v7121 = vld [vmem:[#allocation3 + $0x228] sm:$0xff]
      %v7122 = vld [vmem:[#allocation3 + $0x230] sm:$0xff]
      %v7123 = vld [vmem:[#allocation3 + $0x238] sm:$0xff]
      %v7124 = vld [vmem:[#allocation3 + $0x240] sm:$0xff]
      %v7125 = vld [vmem:[#allocation3 + $0x248] sm:$0xff]
      %v7126 = vld [vmem:[#allocation3 + $0x250] sm:$0xff]
      %v7127 = vld [vmem:[#allocation3 + $0x258] sm:$0xff]
      %v7128 = vld [vmem:[#allocation3 + $0x260] sm:$0xff]
      %v7129 = vld [vmem:[#allocation3 + $0x268] sm:$0xff]
      %v7130 = vld [vmem:[#allocation3 + $0x270] sm:$0xff]
      %v7131 = vld [vmem:[#allocation3 + $0x278] sm:$0xff]
      %v7132 = vld [vmem:[#allocation3 + $0x280] sm:$0xff]
      %v7133 = vld [vmem:[#allocation3 + $0x288] sm:$0xff]
      %v7134 = vld [vmem:[#allocation3 + $0x290] sm:$0xff]
      %v7135 = vld [vmem:[#allocation3 + $0x298] sm:$0xff]
      %v7136 = vld [vmem:[#allocation3 + $0x2a0] sm:$0xff]
      %v7137 = vld [vmem:[#allocation3 + $0x2a8] sm:$0xff]
      %v7138 = vld [vmem:[#allocation3 + $0x2b0] sm:$0xff]
      %v7139 = vld [vmem:[#allocation3 + $0x2b8] sm:$0xff]
      %v7140 = vld [vmem:[#allocation3 + $0x2c0] sm:$0xff]
      %v7141 = vld [vmem:[#allocation3 + $0x2c8] sm:$0xff]
      %v7142 = vld [vmem:[#allocation3 + $0x2d0] sm:$0xff]
      %v7143 = vld [vmem:[#allocation3 + $0x2d8] sm:$0xff]
      %v7144 = vld [vmem:[#allocation3 + $0x2e0] sm:$0xff]
      %v7145 = vld [vmem:[#allocation3 + $0x2e8] sm:$0xff]
      %v7146 = vld [vmem:[#allocation3 + $0x2f0] sm:$0xff]
      %v7147 = vld [vmem:[#allocation3 + $0x2f8] sm:$0xff]
      %v7148 = vld [vmem:[#allocation3 + $0x300] sm:$0xff]
      %v7149 = vld [vmem:[#allocation3 + $0x308] sm:$0xff]
      %v7150 = vld [vmem:[#allocation3 + $0x310] sm:$0xff]
      %v7151 = vld [vmem:[#allocation3 + $0x318] sm:$0xff]
      %v7152 = vld [vmem:[#allocation3 + $0x320] sm:$0xff]
      %v7153 = vld [vmem:[#allocation3 + $0x328] sm:$0xff]
      %v7154 = vld [vmem:[#allocation3 + $0x330] sm:$0xff]
      %v7155 = vld [vmem:[#allocation3 + $0x338] sm:$0xff]
      %v7156 = vld [vmem:[#allocation3 + $0x340] sm:$0xff]
      %v7157 = vld [vmem:[#allocation3 + $0x348] sm:$0xff]
      %v7158 = vld [vmem:[#allocation3 + $0x350] sm:$0xff]
      %v7159 = vld [vmem:[#allocation3 + $0x358] sm:$0xff]
      %v7160 = vld [vmem:[#allocation3 + $0x360] sm:$0xff]
      %v7161 = vld [vmem:[#allocation3 + $0x368] sm:$0xff]
      %v7162 = vld [vmem:[#allocation3 + $0x370] sm:$0xff]
      %v7163 = vld [vmem:[#allocation3 + $0x378] sm:$0xff]
      %v7164 = vld [vmem:[#allocation3 + $0x380] sm:$0xff]
      %v7165 = vld [vmem:[#allocation3 + $0x388] sm:$0xff]
      %v7166 = vld [vmem:[#allocation3 + $0x390] sm:$0xff]
      %v7167 = vld [vmem:[#allocation3 + $0x398] sm:$0xff]
      %v7168 = vld [vmem:[#allocation3 + $0x3a0] sm:$0xff]
      %v7169 = vld [vmem:[#allocation3 + $0x3a8] sm:$0xff]
      %v7170 = vld [vmem:[#allocation3 + $0x3b0] sm:$0xff]
      %v7171 = vld [vmem:[#allocation3 + $0x3b8] sm:$0xff]
      %v7172 = vld [vmem:[#allocation3 + $0x3c0] sm:$0xff]
      %v7173 = vld [vmem:[#allocation3 + $0x3c8] sm:$0xff]
      %v7174 = vld [vmem:[#allocation3 + $0x3d0] sm:$0xff]
      %v7175 = vld [vmem:[#allocation3 + $0x3d8] sm:$0xff]
      %v7176 = vld [vmem:[#allocation3 + $0x3e0] sm:$0xff]
      %v7177 = vld [vmem:[#allocation3 + $0x3e8] sm:$0xff]
      %v7178 = vld [vmem:[#allocation3 + $0x3f0] sm:$0xff]
      %v7179 = vld [vmem:[#allocation3 + $0x3f8] sm:$0xff]
      %v7180 = vld [vmem:[#allocation3 + $0x400] sm:$0xff]
      %v7181 = vld [vmem:[#allocation3 + $0x408] sm:$0xff]
      %v7182 = vld [vmem:[#allocation3 + $0x410] sm:$0xff]
      %v7183 = vld [vmem:[#allocation3 + $0x418] sm:$0xff]
      %v7184 = vld [vmem:[#allocation3 + $0x420] sm:$0xff]
      %v7185 = vld [vmem:[#allocation3 + $0x428] sm:$0xff]
      %v7186 = vld [vmem:[#allocation3 + $0x430] sm:$0xff]
      %v7187 = vld [vmem:[#allocation3 + $0x438] sm:$0xff]
      %v7188 = vld [vmem:[#allocation3 + $0x440] sm:$0xff]
      %v7189 = vld [vmem:[#allocation3 + $0x448] sm:$0xff]
      %v7190 = vld [vmem:[#allocation3 + $0x450] sm:$0xff]
      %v7191 = vld [vmem:[#allocation3 + $0x458] sm:$0xff]
      %v7192 = vld [vmem:[#allocation3 + $0x460] sm:$0xff]
      %v7193 = vld [vmem:[#allocation3 + $0x468] sm:$0xff]
      %v7194 = vld [vmem:[#allocation3 + $0x470] sm:$0xff]
      %v7195 = vld [vmem:[#allocation3 + $0x478] sm:$0xff]
      %v7196 = vld [vmem:[#allocation3 + $0x480] sm:$0xff]
      %v7197 = vld [vmem:[#allocation3 + $0x488] sm:$0xff]
      %v7198 = vld [vmem:[#allocation3 + $0x490] sm:$0xff]
      %v7199 = vld [vmem:[#allocation3 + $0x498] sm:$0xff]
      %v7200 = vld [vmem:[#allocation3 + $0x4a0] sm:$0xff]
      %v7201 = vld [vmem:[#allocation3 + $0x4a8] sm:$0xff]
      %v7202 = vld [vmem:[#allocation3 + $0x4b0] sm:$0xff]
      %v7203 = vld [vmem:[#allocation3 + $0x4b8] sm:$0xff]
      %v7204 = vld [vmem:[#allocation3 + $0x4c0] sm:$0xff]
      %v7205 = vld [vmem:[#allocation3 + $0x4c8] sm:$0xff]
      %v7206 = vld [vmem:[#allocation3 + $0x4d0] sm:$0xff]
      %v7207 = vld [vmem:[#allocation3 + $0x4d8] sm:$0xff]
      %v7208 = vld [vmem:[#allocation3 + $0x4e0] sm:$0xff]
      %v7209 = vld [vmem:[#allocation3 + $0x4e8] sm:$0xff]
      %v7210 = vld [vmem:[#allocation3 + $0x4f0] sm:$0xff]
      %v7211 = vld [vmem:[#allocation3 + $0x4f8] sm:$0xff]
      %v7212 = vld [vmem:[#allocation3 + $0x500] sm:$0xff]
      %v7213 = vld [vmem:[#allocation3 + $0x508] sm:$0xff]
      %v7214 = vld [vmem:[#allocation3 + $0x510] sm:$0xff]
      %v7215 = vld [vmem:[#allocation3 + $0x518] sm:$0xff]
      %v7216 = vld [vmem:[#allocation3 + $0x520] sm:$0xff]
      %v7217 = vld [vmem:[#allocation3 + $0x528] sm:$0xff]
      %v7218 = vld [vmem:[#allocation3 + $0x530] sm:$0xff]
      %v7219 = vld [vmem:[#allocation3 + $0x538] sm:$0xff]
      %v7220 = vld [vmem:[#allocation3 + $0x540] sm:$0xff]
      %v7221 = vld [vmem:[#allocation3 + $0x548] sm:$0xff]
      %v7222 = vld [vmem:[#allocation3 + $0x550] sm:$0xff]
      %v7223 = vld [vmem:[#allocation3 + $0x558] sm:$0xff]
      %v7224 = vld [vmem:[#allocation3 + $0x560] sm:$0xff]
      %v7225 = vld [vmem:[#allocation3 + $0x568] sm:$0xff]
      %v7226 = vld [vmem:[#allocation3 + $0x570] sm:$0xff]
      %v7227 = vld [vmem:[#allocation3 + $0x578] sm:$0xff]
      %v7228 = vld [vmem:[#allocation3 + $0x580] sm:$0xff]
      %v7229 = vld [vmem:[#allocation3 + $0x588] sm:$0xff]
      %v7230 = vld [vmem:[#allocation3 + $0x590] sm:$0xff]
      %v7231 = vld [vmem:[#allocation3 + $0x598] sm:$0xff]
      %v7232 = vld [vmem:[#allocation3 + $0x5a0] sm:$0xff]
      %v7233 = vld [vmem:[#allocation3 + $0x5a8] sm:$0xff]
      %v7234 = vld [vmem:[#allocation3 + $0x5b0] sm:$0xff]
      %v7235 = vld [vmem:[#allocation3 + $0x5b8] sm:$0xff]
      %v7236 = vld [vmem:[#allocation3 + $0x5c0] sm:$0xff]
      %v7237 = vld [vmem:[#allocation3 + $0x5c8] sm:$0xff]
      %v7238 = vld [vmem:[#allocation3 + $0x5d0] sm:$0xff]
      %v7239 = vld [vmem:[#allocation3 + $0x5d8] sm:$0xff]
      %v7240 = vld [vmem:[#allocation3 + $0x5e0] sm:$0xff]
      %v7241 = vld [vmem:[#allocation3 + $0x5e8] sm:$0xff]
      %v7242 = vld [vmem:[#allocation3 + $0x5f0] sm:$0xff]
      %v7243 = vld [vmem:[#allocation3 + $0x5f8] sm:$0xff]
      %v7244 = vld [vmem:[#allocation3 + $0x600] sm:$0xff]
      %v7245 = vld [vmem:[#allocation3 + $0x608] sm:$0xff]
      %v7246 = vld [vmem:[#allocation3 + $0x610] sm:$0xff]
      %v7247 = vld [vmem:[#allocation3 + $0x618] sm:$0xff]
      %v7248 = vld [vmem:[#allocation3 + $0x620] sm:$0xff]
      %v7249 = vld [vmem:[#allocation3 + $0x628] sm:$0xff]
      %v7250 = vld [vmem:[#allocation3 + $0x630] sm:$0xff]
      %v7251 = vld [vmem:[#allocation3 + $0x638] sm:$0xff]
      %v7252 = vld [vmem:[#allocation3 + $0x640] sm:$0xff]
      %v7253 = vld [vmem:[#allocation3 + $0x648] sm:$0xff]
      %v7254 = vld [vmem:[#allocation3 + $0x650] sm:$0xff]
      %v7255 = vld [vmem:[#allocation3 + $0x658] sm:$0xff]
      %v7256 = vld [vmem:[#allocation3 + $0x660] sm:$0xff]
      %v7257 = vld [vmem:[#allocation3 + $0x668] sm:$0xff]
      %v7258 = vld [vmem:[#allocation3 + $0x670] sm:$0xff]
      %v7259 = vld [vmem:[#allocation3 + $0x678] sm:$0xff]
      %v7260 = vld [vmem:[#allocation3 + $0x680] sm:$0xff]
      %v7261 = vld [vmem:[#allocation3 + $0x688] sm:$0xff]
      %v7262 = vld [vmem:[#allocation3 + $0x690] sm:$0xff]
      %v7263 = vld [vmem:[#allocation3 + $0x698] sm:$0xff]
      %v7264 = vld [vmem:[#allocation3 + $0x6a0] sm:$0xff]
      %v7265 = vld [vmem:[#allocation3 + $0x6a8] sm:$0xff]
      %v7266 = vld [vmem:[#allocation3 + $0x6b0] sm:$0xff]
      %v7267 = vld [vmem:[#allocation3 + $0x6b8] sm:$0xff]
      %7269 = vset.pattern.permute.xlu0 0
      %7270 = vperm.xlu0 %7269, %v5825
      %v7271 = vpop.permute.xlu0 %7270
      %7274 = vset.pattern.permute.xlu0 0
      %7275 = vperm.xlu0 %7274, %v5826
      %v7276 = vpop.permute.xlu0 %7275
      %7279 = vset.pattern.permute.xlu0 0
      %7280 = vperm.xlu0 %7279, %v5827
      %v7281 = vpop.permute.xlu0 %7280
      %vm7283 = vcmask 719872
      %v7285 = vsel %vm7283, %v5820, 0
      %v7288 = vsel %vm7283, %v5822, 0
      %v7291 = vsel %vm7283, %v5824, 0
      %7293 = vmatprep.subr.mxu0 %v7053
      %7294 = vmatpush1.msra.mxu0 %v7052
      %7295 = vmatprep.subr.mxu0 %v7061
      %7296 = vmatpush1.msra.mxu0 %v7060
      %7297 = vmatprep.subr.mxu0 %v7069
      %7298 = vmatpush1.msra.mxu0 %v7068
      %7299 = vmatprep.subr.mxu0 %v7077
      %7300 = vmatpush1.msra.mxu0 %v7076
      %7301 = vmatprep.subr.mxu0 %v7085
      %7302 = vmatpush1.msra.mxu0 %v7084
      %7303 = vmatprep.subr.mxu0 %v7093
      %7304 = vmatpush1.msra.mxu0 %v7092
      %7305 = vmatprep.subr.mxu0 %v7101
      %7306 = vmatpush1.msra.mxu0 %v7100
      %7307 = vmatprep.subr.mxu0 %v7109
      %7308 = vmatpush1.msra.mxu0 %v7108
      %7309 = vmatprep.subr.mxu0 %v7117
      %7310 = vmatpush1.msra.mxu0 %v7116
      %7311 = vmatprep.subr.mxu0 %v7125
      %7312 = vmatpush1.msra.mxu0 %v7124
      %7313 = vmatprep.subr.mxu0 %v7133
      %7314 = vmatpush1.msra.mxu0 %v7132
      %7315 = vmatprep.subr.mxu0 %v7141
      %7316 = vmatpush1.msra.mxu0 %v7140
      %7317 = vmatprep.subr.mxu0 %v7149
      %7318 = vmatpush1.msra.mxu0 %v7148
      %7319 = vmatprep.subr.mxu0 %v7157
      %7320 = vmatpush1.msra.mxu0 %v7156
      %7321 = vmatprep.subr.mxu0 %v7165
      %7322 = vmatpush1.msra.mxu0 %v7164
      %7323 = vmatprep.subr.mxu0 %v7173
      %7324 = vmatpush1.msra.mxu0 %v7172
      %7325 = vmatprep.subr.mxu0 %v7181
      %7326 = vmatpush1.msra.mxu0 %v7180
      %7327 = vmatprep.subr.mxu0 %v7189
      %7328 = vmatpush1.msra.mxu0 %v7188
      %7329 = vmatprep.subr.mxu0 %v7197
      %7330 = vmatpush1.msra.mxu0 %v7196
      %7331 = vmatprep.subr.mxu0 %v7205
      %7332 = vmatpush1.msra.mxu0 %v7204
      %7333 = vmatprep.subr.mxu0 %v7213
      %7334 = vmatpush1.msra.mxu0 %v7212
      %7335 = vmatprep.subr.mxu0 %v7221
      %7336 = vmatpush1.msra.mxu0 %v7220
      %7337 = vmatprep.subr.mxu0 %v7229
      %7338 = vmatpush1.msra.mxu0 %v7228
      %7339 = vmatprep.subr.mxu0 %v7237
      %7340 = vmatpush1.msra.mxu0 %v7236
      %7341 = vmatprep.subr.mxu0 %v7245
      %7342 = vmatpush1.msra.mxu0 %v7244
      %7343 = vmatprep.subr.mxu0 %v7253
      %7344 = vmatpush1.msra.mxu0 %v7252
      %7345 = vmatprep.subr.mxu0 %v7261
      %7346 = vmatpush1.msra.mxu0 %v7260
      %7347 = vmatprep.subr.mxu0 0.0
      %7348 = vmatpush1.msra.mxu0 0.0
      %7349 = vmatprep.subr.mxu0 0.0
      %7350 = vmatpush1.msra.mxu0 0.0
      %7351 = vmatprep.subr.mxu0 0.0
      %7352 = vmatpush1.msra.mxu0 0.0
      %7353 = vmatprep.subr.mxu0 0.0
      %7354 = vmatpush1.msra.mxu0 0.0
      %7355 = vmatprep.subr.mxu0 0.0
      %7356 = vmatpush1.msra.mxu0 0.0
      %7357 = vmatprep.mubr.f32.mxu0 %v7285
      %7358 = vmatmul.mubr.f32.gmra.mrb[0].mxu0 %v5819
      %v7359 = vpop.f32.mrb[0].mxu0
      %v7360 = vadd.f32 %v7271, %v7359
      %v7361 = vpop.f32.mrb[0].mxu0
      %v7362 = vadd.f32 %v7271, %v7361
      %7363 = vmatprep.mubr.f32.mxu0 %v7288
      %7364 = vmatmul.mubr.f32.gmra.mrb[0].mxu0 %v5821
      %v7365 = vpop.f32.mrb[0].mxu0
      %v7366 = vadd.f32 %v7276, %v7365
      %v7367 = vpop.f32.mrb[0].mxu0
      %v7368 = vadd.f32 %v7276, %v7367
      %7369 = vmatprep.mubr.f32.mxu0 %v7291
      %7370 = vmatmul.mubr.f32.gmra.mrb[0].mxu0 %v5823
      %v7371 = vpop.f32.mrb[0].mxu0
      %v7372 = vadd.f32 %v7281, %v7371
      %v7373 = vpop.f32.mrb[0].mxu0
      %v7374 = vadd.f32 %v7281, %v7373
      %7375 = vdwg.mxu0
      %7376 = vmatprep.subr.mxu0 %v7055
      %7377 = vmatpush1.msra.mxu0 %v7054
      %7378 = vmatprep.subr.mxu0 %v7063
      %7379 = vmatpush1.msra.mxu0 %v7062
      %7380 = vmatprep.subr.mxu0 %v7071
      %7381 = vmatpush1.msra.mxu0 %v7070
      %7382 = vmatprep.subr.mxu0 %v7079
      %7383 = vmatpush1.msra.mxu0 %v7078
      %7384 = vmatprep.subr.mxu0 %v7087
      %7385 = vmatpush1.msra.mxu0 %v7086
      %7386 = vmatprep.subr.mxu0 %v7095
      %7387 = vmatpush1.msra.mxu0 %v7094
      %7388 = vmatprep.subr.mxu0 %v7103
      %7389 = vmatpush1.msra.mxu0 %v7102
      %7390 = vmatprep.subr.mxu0 %v7111
      %7391 = vmatpush1.msra.mxu0 %v7110
      %7392 = vmatprep.subr.mxu0 %v7119
      %7393 = vmatpush1.msra.mxu0 %v7118
      %7394 = vmatprep.subr.mxu0 %v7127
      %7395 = vmatpush1.msra.mxu0 %v7126
      %7396 = vmatprep.subr.mxu0 %v7135
      %7397 = vmatpush1.msra.mxu0 %v7134
      %7398 = vmatprep.subr.mxu0 %v7143
      %7399 = vmatpush1.msra.mxu0 %v7142
      %7400 = vmatprep.subr.mxu0 %v7151
      %7401 = vmatpush1.msra.mxu0 %v7150
      %7402 = vmatprep.subr.mxu0 %v7159
      %7403 = vmatpush1.msra.mxu0 %v7158
      %7404 = vmatprep.subr.mxu0 %v7167
      %7405 = vmatpush1.msra.mxu0 %v7166
      %7406 = vmatprep.subr.mxu0 %v7175
      %7407 = vmatpush1.msra.mxu0 %v7174
      %7408 = vmatprep.subr.mxu0 %v7183
      %7409 = vmatpush1.msra.mxu0 %v7182
      %7410 = vmatprep.subr.mxu0 %v7191
      %7411 = vmatpush1.msra.mxu0 %v7190
      %7412 = vmatprep.subr.mxu0 %v7199
      %7413 = vmatpush1.msra.mxu0 %v7198
      %7414 = vmatprep.subr.mxu0 %v7207
      %7415 = vmatpush1.msra.mxu0 %v7206
      %7416 = vmatprep.subr.mxu0 %v7215
      %7417 = vmatpush1.msra.mxu0 %v7214
      %7418 = vmatprep.subr.mxu0 %v7223
      %7419 = vmatpush1.msra.mxu0 %v7222
      %7420 = vmatprep.subr.mxu0 %v7231
      %7421 = vmatpush1.msra.mxu0 %v7230
      %7422 = vmatprep.subr.mxu0 %v7239
      %7423 = vmatpush1.msra.mxu0 %v7238
      %7424 = vmatprep.subr.mxu0 %v7247
      %7425 = vmatpush1.msra.mxu0 %v7246
      %7426 = vmatprep.subr.mxu0 %v7255
      %7427 = vmatpush1.msra.mxu0 %v7254
      %7428 = vmatprep.subr.mxu0 %v7263
      %7429 = vmatpush1.msra.mxu0 %v7262
      %7430 = vmatprep.subr.mxu0 0.0
      %7431 = vmatpush1.msra.mxu0 0.0
      %7432 = vmatprep.subr.mxu0 0.0
      %7433 = vmatpush1.msra.mxu0 0.0
      %7434 = vmatprep.subr.mxu0 0.0
      %7435 = vmatpush1.msra.mxu0 0.0
      %7436 = vmatprep.subr.mxu0 0.0
      %7437 = vmatpush1.msra.mxu0 0.0
      %7438 = vmatprep.subr.mxu0 0.0
      %7439 = vmatpush1.msra.mxu0 0.0
      %7440 = vmatprep.mubr.f32.mxu0 %v7285
      %7441 = vmatmul.mubr.f32.gmra.mrb[0].mxu0 %v5819
      %v7442 = vpop.f32.mrb[0].mxu0
      %v7443 = vadd.f32 %v7271, %v7442
      %v7444 = vpop.f32.mrb[0].mxu0
      %v7445 = vadd.f32 %v7271, %v7444
      %7446 = vmatprep.mubr.f32.mxu0 %v7288
      %7447 = vmatmul.mubr.f32.gmra.mrb[0].mxu0 %v5821
      %v7448 = vpop.f32.mrb[0].mxu0
      %v7449 = vadd.f32 %v7276, %v7448
      %v7450 = vpop.f32.mrb[0].mxu0
      %v7451 = vadd.f32 %v7276, %v7450
      %7452 = vmatprep.mubr.f32.mxu0 %v7291
      %7453 = vmatmul.mubr.f32.gmra.mrb[0].mxu0 %v5823
      %v7454 = vpop.f32.mrb[0].mxu0
      %v7455 = vadd.f32 %v7281, %v7454
      %v7456 = vpop.f32.mrb[0].mxu0
      %v7457 = vadd.f32 %v7281, %v7456
      %7458 = vdwg.mxu0
      %7459 = vmatprep.subr.mxu0 %v7057
      %7460 = vmatpush1.msra.mxu0 %v7056
      %7461 = vmatprep.subr.mxu0 %v7065
      %7462 = vmatpush1.msra.mxu0 %v7064
      %7463 = vmatprep.subr.mxu0 %v7073
      %7464 = vmatpush1.msra.mxu0 %v7072
      %7465 = vmatprep.subr.mxu0 %v7081
      %7466 = vmatpush1.msra.mxu0 %v7080
      %7467 = vmatprep.subr.mxu0 %v7089
      %7468 = vmatpush1.msra.mxu0 %v7088
      %7469 = vmatprep.subr.mxu0 %v7097
      %7470 = vmatpush1.msra.mxu0 %v7096
      %7471 = vmatprep.subr.mxu0 %v7105
      %7472 = vmatpush1.msra.mxu0 %v7104
      %7473 = vmatprep.subr.mxu0 %v7113
      %7474 = vmatpush1.msra.mxu0 %v7112
      %7475 = vmatprep.subr.mxu0 %v7121
      %7476 = vmatpush1.msra.mxu0 %v7120
      %7477 = vmatprep.subr.mxu0 %v7129
      %7478 = vmatpush1.msra.mxu0 %v7128
      %7479 = vmatprep.subr.mxu0 %v7137
      %7480 = vmatpush1.msra.mxu0 %v7136
      %7481 = vmatprep.subr.mxu0 %v7145
      %7482 = vmatpush1.msra.mxu0 %v7144
      %7483 = vmatprep.subr.mxu0 %v7153
      %7484 = vmatpush1.msra.mxu0 %v7152
      %7485 = vmatprep.subr.mxu0 %v7161
      %7486 = vmatpush1.msra.mxu0 %v7160
      %7487 = vmatprep.subr.mxu0 %v7169
      %7488 = vmatpush1.msra.mxu0 %v7168
      %7489 = vmatprep.subr.mxu0 %v7177
      %7490 = vmatpush1.msra.mxu0 %v7176
      %7491 = vmatprep.subr.mxu0 %v7185
      %7492 = vmatpush1.msra.mxu0 %v7184
      %7493 = vmatprep.subr.mxu0 %v7193
      %7494 = vmatpush1.msra.mxu0 %v7192
      %7495 = vmatprep.subr.mxu0 %v7201
      %7496 = vmatpush1.msra.mxu0 %v7200
      %7497 = vmatprep.subr.mxu0 %v7209
      %7498 = vmatpush1.msra.mxu0 %v7208
      %7499 = vmatprep.subr.mxu0 %v7217
      %7500 = vmatpush1.msra.mxu0 %v7216
      %7501 = vmatprep.subr.mxu0 %v7225
      %7502 = vmatpush1.msra.mxu0 %v7224
      %7503 = vmatprep.subr.mxu0 %v7233
      %7504 = vmatpush1.msra.mxu0 %v7232
      %7505 = vmatprep.subr.mxu0 %v7241
      %7506 = vmatpush1.msra.mxu0 %v7240
      %7507 = vmatprep.subr.mxu0 %v7249
      %7508 = vmatpush1.msra.mxu0 %v7248
      %7509 = vmatprep.subr.mxu0 %v7257
      %7510 = vmatpush1.msra.mxu0 %v7256
      %7511 = vmatprep.subr.mxu0 %v7265
      %7512 = vmatpush1.msra.mxu0 %v7264
      %7513 = vmatprep.subr.mxu0 0.0
      %7514 = vmatpush1.msra.mxu0 0.0
      %7515 = vmatprep.subr.mxu0 0.0
      %7516 = vmatpush1.msra.mxu0 0.0
      %7517 = vmatprep.subr.mxu0 0.0
      %7518 = vmatpush1.msra.mxu0 0.0
      %7519 = vmatprep.subr.mxu0 0.0
      %7520 = vmatpush1.msra.mxu0 0.0
      %7521 = vmatprep.subr.mxu0 0.0
      %7522 = vmatpush1.msra.mxu0 0.0
      %7523 = vmatprep.mubr.f32.mxu0 %v7285
      %7524 = vmatmul.mubr.f32.gmra.mrb[0].mxu0 %v5819
      %v7525 = vpop.f32.mrb[0].mxu0
      %v7526 = vadd.f32 %v7271, %v7525
      %v7527 = vpop.f32.mrb[0].mxu0
      %v7528 = vadd.f32 %v7271, %v7527
      %7529 = vmatprep.mubr.f32.mxu0 %v7288
      %7530 = vmatmul.mubr.f32.gmra.mrb[0].mxu0 %v5821
      %v7531 = vpop.f32.mrb[0].mxu0
      %v7532 = vadd.f32 %v7276, %v7531
      %v7533 = vpop.f32.mrb[0].mxu0
      %v7534 = vadd.f32 %v7276, %v7533
      %7535 = vmatprep.mubr.f32.mxu0 %v7291
      %7536 = vmatmul.mubr.f32.gmra.mrb[0].mxu0 %v5823
      %v7537 = vpop.f32.mrb[0].mxu0
      %v7538 = vadd.f32 %v7281, %v7537
      %v7539 = vpop.f32.mrb[0].mxu0
      %v7540 = vadd.f32 %v7281, %v7539
      %7541 = vdwg.mxu0
      %7542 = vmatprep.subr.mxu0 %v7059
      %7543 = vmatpush1.msra.mxu0 %v7058
      %7544 = vmatprep.subr.mxu0 %v7067
      %7545 = vmatpush1.msra.mxu0 %v7066
      %7546 = vmatprep.subr.mxu0 %v7075
      %7547 = vmatpush1.msra.mxu0 %v7074
      %7548 = vmatprep.subr.mxu0 %v7083
      %7549 = vmatpush1.msra.mxu0 %v7082
      %7550 = vmatprep.subr.mxu0 %v7091
      %7551 = vmatpush1.msra.mxu0 %v7090
      %7552 = vmatprep.subr.mxu0 %v7099
      %7553 = vmatpush1.msra.mxu0 %v7098
      %7554 = vmatprep.subr.mxu0 %v7107
      %7555 = vmatpush1.msra.mxu0 %v7106
      %7556 = vmatprep.subr.mxu0 %v7115
      %7557 = vmatpush1.msra.mxu0 %v7114
      %7558 = vmatprep.subr.mxu0 %v7123
      %7559 = vmatpush1.msra.mxu0 %v7122
      %7560 = vmatprep.subr.mxu0 %v7131
      %7561 = vmatpush1.msra.mxu0 %v7130
      %7562 = vmatprep.subr.mxu0 %v7139
      %7563 = vmatpush1.msra.mxu0 %v7138
      %7564 = vmatprep.subr.mxu0 %v7147
      %7565 = vmatpush1.msra.mxu0 %v7146
      %7566 = vmatprep.subr.mxu0 %v7155
      %7567 = vmatpush1.msra.mxu0 %v7154
      %7568 = vmatprep.subr.mxu0 %v7163
      %7569 = vmatpush1.msra.mxu0 %v7162
      %7570 = vmatprep.subr.mxu0 %v7171
      %7571 = vmatpush1.msra.mxu0 %v7170
      %7572 = vmatprep.subr.mxu0 %v7179
      %7573 = vmatpush1.msra.mxu0 %v7178
      %7574 = vmatprep.subr.mxu0 %v7187
      %7575 = vmatpush1.msra.mxu0 %v7186
      %7576 = vmatprep.subr.mxu0 %v7195
      %7577 = vmatpush1.msra.mxu0 %v7194
      %7578 = vmatprep.subr.mxu0 %v7203
      %7579 = vmatpush1.msra.mxu0 %v7202
      %7580 = vmatprep.subr.mxu0 %v7211
      %7581 = vmatpush1.msra.mxu0 %v7210
      %7582 = vmatprep.subr.mxu0 %v7219
      %7583 = vmatpush1.msra.mxu0 %v7218
      %7584 = vmatprep.subr.mxu0 %v7227
      %7585 = vmatpush1.msra.mxu0 %v7226
      %7586 = vmatprep.subr.mxu0 %v7235
      %7587 = vmatpush1.msra.mxu0 %v7234
      %7588 = vmatprep.subr.mxu0 %v7243
      %7589 = vmatpush1.msra.mxu0 %v7242
      %7590 = vmatprep.subr.mxu0 %v7251
      %7591 = vmatpush1.msra.mxu0 %v7250
      %7592 = vmatprep.subr.mxu0 %v7259
      %7593 = vmatpush1.msra.mxu0 %v7258
      %7594 = vmatprep.subr.mxu0 %v7267
      %7595 = vmatpush1.msra.mxu0 %v7266
      %7596 = vmatprep.subr.mxu0 0.0
      %7597 = vmatpush1.msra.mxu0 0.0
      %7598 = vmatprep.subr.mxu0 0.0
      %7599 = vmatpush1.msra.mxu0 0.0
      %7600 = vmatprep.subr.mxu0 0.0
      %7601 = vmatpush1.msra.mxu0 0.0
      %7602 = vmatprep.subr.mxu0 0.0
      %7603 = vmatpush1.msra.mxu0 0.0
      %7604 = vmatprep.subr.mxu0 0.0
      %7605 = vmatpush1.msra.mxu0 0.0
      %7606 = vmatprep.mubr.f32.mxu0 %v7285
      %7607 = vmatmul.mubr.f32.gmra.mrb[0].mxu0 %v5819
      %v7608 = vpop.f32.mrb[0].mxu0
      %v7609 = vadd.f32 %v7271, %v7608
      %v7610 = vpop.f32.mrb[0].mxu0
      %v7611 = vadd.f32 %v7271, %v7610
      %7612 = vmatprep.mubr.f32.mxu0 %v7288
      %7613 = vmatmul.mubr.f32.gmra.mrb[0].mxu0 %v5821
      %v7614 = vpop.f32.mrb[0].mxu0
      %v7615 = vadd.f32 %v7276, %v7614
      %v7616 = vpop.f32.mrb[0].mxu0
      %v7617 = vadd.f32 %v7276, %v7616
      %7618 = vmatprep.mubr.f32.mxu0 %v7291
      %7619 = vmatmul.mubr.f32.gmra.mrb[0].mxu0 %v5823
      %v7620 = vpop.f32.mrb[0].mxu0
      %v7621 = vadd.f32 %v7281, %v7620
      %v7622 = vpop.f32.mrb[0].mxu0
      %v7623 = vadd.f32 %v7281, %v7622
      %7624 = vdwg.mxu0
      %v7625 = vld [vmem:[%s19] sm:$0xff]
      %v7626 = vld [vmem:[%s19 + $0x8] sm:$0xff]
      %v7627 = vld [vmem:[%s20] sm:$0xff]
      %7631 = vrot.lane.b32.xlu0 %v7611, 33
      %v7632 = vpop.permute.xlu0 %7631
      %7633 = vrot.lane.b32.xlu0 %v7617, 33
      %v7634 = vpop.permute.xlu0 %7633
      %7635 = vrot.lane.b32.xlu0 %v7623, 33
      %v7636 = vpop.permute.xlu0 %7635
      %7661 = vrot.lane.b32.xlu0 %v7360, 33
      %v7662 = vpop.permute.xlu0 %7661
      %7663 = vrot.lane.b32.xlu0 %v7362, 33
      %v7664 = vpop.permute.xlu0 %7663
      %7665 = vrot.lane.b32.xlu0 %v7443, 33
      %v7666 = vpop.permute.xlu0 %7665
      %7667 = vrot.lane.b32.xlu0 %v7445, 33
      %v7668 = vpop.permute.xlu0 %7667
      %7669 = vrot.lane.b32.xlu0 %v7526, 33
      %v7670 = vpop.permute.xlu0 %7669
      %7671 = vrot.lane.b32.xlu0 %v7528, 33
      %v7672 = vpop.permute.xlu0 %7671
      %7673 = vrot.lane.b32.xlu0 %v7609, 33
      %v7674 = vpop.permute.xlu0 %7673
      %7675 = vrot.lane.b32.xlu0 %v7366, 33
      %v7676 = vpop.permute.xlu0 %7675
      %7677 = vrot.lane.b32.xlu0 %v7368, 33
      %v7678 = vpop.permute.xlu0 %7677
      %7679 = vrot.lane.b32.xlu0 %v7449, 33
      %v7680 = vpop.permute.xlu0 %7679
      %7681 = vrot.lane.b32.xlu0 %v7451, 33
      %v7682 = vpop.permute.xlu0 %7681
      %7683 = vrot.lane.b32.xlu0 %v7532, 33
      %v7684 = vpop.permute.xlu0 %7683
      %7685 = vrot.lane.b32.xlu0 %v7534, 33
      %v7686 = vpop.permute.xlu0 %7685
      %7687 = vrot.lane.b32.xlu0 %v7615, 33
      %v7688 = vpop.permute.xlu0 %7687
      %7689 = vrot.lane.b32.xlu0 %v7372, 33
      %v7690 = vpop.permute.xlu0 %7689
      %7691 = vrot.lane.b32.xlu0 %v7374, 33
      %v7692 = vpop.permute.xlu0 %7691
      %7693 = vrot.lane.b32.xlu0 %v7455, 33
      %v7694 = vpop.permute.xlu0 %7693
      %7695 = vrot.lane.b32.xlu0 %v7457, 33
      %v7696 = vpop.permute.xlu0 %7695
      %7697 = vrot.lane.b32.xlu0 %v7538, 33
      %v7698 = vpop.permute.xlu0 %7697
      %7699 = vrot.lane.b32.xlu0 %v7540, 33
      %v7700 = vpop.permute.xlu0 %7699
      %7701 = vrot.lane.b32.xlu0 %v7621, 33
      %v7702 = vpop.permute.xlu0 %7701
      %v7703 = vsel %vm1999, %v7662, %v7664
      %v7704 = vsel %vm1999, %v7664, %v7666
      %v7705 = vsel %vm1999, %v7666, %v7668
      %v7706 = vsel %vm1999, %v7668, %v7670
      %v7707 = vsel %vm1999, %v7670, %v7672
      %v7708 = vsel %vm1999, %v7672, %v7674
      %v7709 = vsel %vm1999, %v7674, %v7632
      %v7710 = vsel %vm1999, %v7676, %v7678
      %v7711 = vsel %vm1999, %v7678, %v7680
      %v7712 = vsel %vm1999, %v7680, %v7682
      %v7713 = vsel %vm1999, %v7682, %v7684
      %v7714 = vsel %vm1999, %v7684, %v7686
      %v7715 = vsel %vm1999, %v7686, %v7688
      %v7716 = vsel %vm1999, %v7688, %v7634
      %v7717 = vsel %vm1999, %v7690, %v7692
      %v7718 = vsel %vm1999, %v7692, %v7694
      %v7719 = vsel %vm1999, %v7694, %v7696
      %v7720 = vsel %vm1999, %v7696, %v7698
      %v7721 = vsel %vm1999, %v7698, %v7700
      %v7722 = vsel %vm1999, %v7700, %v7702
      %v7723 = vsel %vm1999, %v7702, %v7636
      %v7748 = vsel %vm1999, %v7632, %v7662
      %v7749 = vsel %vm1999, %v7634, %v7676
      %v7750 = vsel %vm1999, %v7636, %v7690
      %v7751 = vmul.f32 %v7748, %v2020
      %v7752 = vmul.f32 %v7703, %v2024
      %v7753 = vmul.f32 %v7704, %v2028
      %v7754 = vmul.f32 %v7705, %v2032
      %v7755 = vmul.f32 %v7706, %v2036
      %v7756 = vmul.f32 %v7707, %v2040
      %v7757 = vmul.f32 %v7708, %v2044
      %v7758 = vmul.f32 %v7709, %v2048
      %v7759 = vmul.f32 %v7749, %v2020
      %v7760 = vmul.f32 %v7710, %v2024
      %v7761 = vmul.f32 %v7711, %v2028
      %v7762 = vmul.f32 %v7712, %v2032
      %v7763 = vmul.f32 %v7713, %v2036
      %v7764 = vmul.f32 %v7714, %v2040
      %v7765 = vmul.f32 %v7715, %v2044
      %v7766 = vmul.f32 %v7716, %v2048
      %v7767 = vmul.f32 %v7750, %v2020
      %v7768 = vmul.f32 %v7717, %v2024
      %v7769 = vmul.f32 %v7718, %v2028
      %v7770 = vmul.f32 %v7719, %v2032
      %v7771 = vmul.f32 %v7720, %v2036
      %v7772 = vmul.f32 %v7721, %v2040
      %v7773 = vmul.f32 %v7722, %v2044
      %v7774 = vmul.f32 %v7723, %v2048
      %7775 = vst [vmem:[#allocation3] sm:$0xff] %v7751
      %7776 = vst [vmem:[#allocation3 + $0x8] sm:$0xff] %v7752
      %7777 = vst [vmem:[#allocation3 + $0x10] sm:$0xff] %v7753
      %7778 = vst [vmem:[#allocation3 + $0x18] sm:$0xff] %v7754
      %7779 = vst [vmem:[#allocation3 + $0x20] sm:$0xff] %v7755
      %7780 = vst [vmem:[#allocation3 + $0x28] sm:$0xff] %v7756
      %7781 = vst [vmem:[#allocation3 + $0x30] sm:$0xff] %v7757
      %7782 = vst [vmem:[#allocation3 + $0x38] sm:$0xff] %v7758
      %7783 = vst [vmem:[#allocation3 + $0x40] sm:$0xff] %v7759
      %7784 = vst [vmem:[#allocation3 + $0x48] sm:$0xff] %v7760
      %7785 = vst [vmem:[#allocation3 + $0x50] sm:$0xff] %v7761
      %7786 = vst [vmem:[#allocation3 + $0x58] sm:$0xff] %v7762
      %7787 = vst [vmem:[#allocation3 + $0x60] sm:$0xff] %v7763
      %7788 = vst [vmem:[#allocation3 + $0x68] sm:$0xff] %v7764
      %7789 = vst [vmem:[#allocation3 + $0x70] sm:$0xff] %v7765
      %7790 = vst [vmem:[#allocation3 + $0x78] sm:$0xff] %v7766
      %7791 = vst [vmem:[#allocation3 + $0x80] sm:$0xff] %v7767
      %7792 = vst [vmem:[#allocation3 + $0x88] sm:$0xff] %v7768
      %7793 = vst [vmem:[#allocation3 + $0x90] sm:$0xff] %v7769
      %7794 = vst [vmem:[#allocation3 + $0x98] sm:$0xff] %v7770
      %7795 = vst [vmem:[#allocation3 + $0xa0] sm:$0xff] %v7771
      %7796 = vst [vmem:[#allocation3 + $0xa8] sm:$0xff] %v7772
      %7797 = vst [vmem:[#allocation3 + $0xb0] sm:$0xff] %v7773
      %7798 = vst [vmem:[#allocation3 + $0xb8] sm:$0xff] %v7774
      %7799 = vrot.lane.b32.xlu0 %v7611, 32
      %v7800 = vpop.permute.xlu0 %7799
      %7801 = vrot.lane.b32.xlu0 %v7617, 32
      %v7802 = vpop.permute.xlu0 %7801
      %7803 = vrot.lane.b32.xlu0 %v7623, 32
      %v7804 = vpop.permute.xlu0 %7803
      %7808 = vrot.lane.b32.xlu0 %v7360, 32
      %v7809 = vpop.permute.xlu0 %7808
      %7810 = vrot.lane.b32.xlu0 %v7362, 32
      %v7811 = vpop.permute.xlu0 %7810
      %7812 = vrot.lane.b32.xlu0 %v7443, 32
      %v7813 = vpop.permute.xlu0 %7812
      %7814 = vrot.lane.b32.xlu0 %v7445, 32
      %v7815 = vpop.permute.xlu0 %7814
      %7816 = vrot.lane.b32.xlu0 %v7526, 32
      %v7817 = vpop.permute.xlu0 %7816
      %7818 = vrot.lane.b32.xlu0 %v7528, 32
      %v7819 = vpop.permute.xlu0 %7818
      %7820 = vrot.lane.b32.xlu0 %v7609, 32
      %v7821 = vpop.permute.xlu0 %7820
      %7822 = vrot.lane.b32.xlu0 %v7366, 32
      %v7823 = vpop.permute.xlu0 %7822
      %7824 = vrot.lane.b32.xlu0 %v7368, 32
      %v7825 = vpop.permute.xlu0 %7824
      %7826 = vrot.lane.b32.xlu0 %v7449, 32
      %v7827 = vpop.permute.xlu0 %7826
      %7828 = vrot.lane.b32.xlu0 %v7451, 32
      %v7829 = vpop.permute.xlu0 %7828
      %7830 = vrot.lane.b32.xlu0 %v7532, 32
      %v7831 = vpop.permute.xlu0 %7830
      %7832 = vrot.lane.b32.xlu0 %v7534, 32
      %v7833 = vpop.permute.xlu0 %7832
      %7834 = vrot.lane.b32.xlu0 %v7615, 32
      %v7835 = vpop.permute.xlu0 %7834
      %7836 = vrot.lane.b32.xlu0 %v7372, 32
      %v7837 = vpop.permute.xlu0 %7836
      %7838 = vrot.lane.b32.xlu0 %v7374, 32
      %v7839 = vpop.permute.xlu0 %7838
      %7840 = vrot.lane.b32.xlu0 %v7455, 32
      %v7841 = vpop.permute.xlu0 %7840
      %7842 = vrot.lane.b32.xlu0 %v7457, 32
      %v7843 = vpop.permute.xlu0 %7842
      %7844 = vrot.lane.b32.xlu0 %v7538, 32
      %v7845 = vpop.permute.xlu0 %7844
      %7846 = vrot.lane.b32.xlu0 %v7540, 32
      %v7847 = vpop.permute.xlu0 %7846
      %7848 = vrot.lane.b32.xlu0 %v7621, 32
      %v7849 = vpop.permute.xlu0 %7848
      %v7850 = vsel %vm2090, %v7809, %v7811
      %v7851 = vsel %vm2090, %v7811, %v7813
      %v7852 = vsel %vm2090, %v7813, %v7815
      %v7853 = vsel %vm2090, %v7815, %v7817
      %v7854 = vsel %vm2090, %v7817, %v7819
      %v7855 = vsel %vm2090, %v7819, %v7821
      %v7856 = vsel %vm2090, %v7821, %v7800
      %v7857 = vsel %vm2090, %v7823, %v7825
      %v7858 = vsel %vm2090, %v7825, %v7827
      %v7859 = vsel %vm2090, %v7827, %v7829
      %v7860 = vsel %vm2090, %v7829, %v7831
      %v7861 = vsel %vm2090, %v7831, %v7833
      %v7862 = vsel %vm2090, %v7833, %v7835
      %v7863 = vsel %vm2090, %v7835, %v7802
      %v7864 = vsel %vm2090, %v7837, %v7839
      %v7865 = vsel %vm2090, %v7839, %v7841
      %v7866 = vsel %vm2090, %v7841, %v7843
      %v7867 = vsel %vm2090, %v7843, %v7845
      %v7868 = vsel %vm2090, %v7845, %v7847
      %v7869 = vsel %vm2090, %v7847, %v7849
      %v7870 = vsel %vm2090, %v7849, %v7804
      %v7895 = vsel %vm2090, %v7800, %v7809
      %v7896 = vsel %vm2090, %v7802, %v7823
      %v7897 = vsel %vm2090, %v7804, %v7837
      %v7898 = vmul.f32 %v7895, %v2111
      %v7899 = vmul.f32 %v7850, %v2115
      %v7900 = vmul.f32 %v7851, %v2119
      %v7901 = vmul.f32 %v7852, %v2123
      %v7902 = vmul.f32 %v7853, %v2127
      %v7903 = vmul.f32 %v7854, %v2131
      %v7904 = vmul.f32 %v7855, %v2135
      %v7905 = vmul.f32 %v7856, %v2139
      %v7906 = vmul.f32 %v7896, %v2111
      %v7907 = vmul.f32 %v7857, %v2115
      %v7908 = vmul.f32 %v7858, %v2119
      %v7909 = vmul.f32 %v7859, %v2123
      %v7910 = vmul.f32 %v7860, %v2127
      %v7911 = vmul.f32 %v7861, %v2131
      %v7912 = vmul.f32 %v7862, %v2135
      %v7913 = vmul.f32 %v7863, %v2139
      %v7914 = vmul.f32 %v7897, %v2111
      %v7915 = vmul.f32 %v7864, %v2115
      %v7916 = vmul.f32 %v7865, %v2119
      %v7917 = vmul.f32 %v7866, %v2123
      %v7918 = vmul.f32 %v7867, %v2127
      %v7919 = vmul.f32 %v7868, %v2131
      %v7920 = vmul.f32 %v7869, %v2135
      %v7921 = vmul.f32 %v7870, %v2139
      %7922 = vst [vmem:[#allocation3 + $0xc0] sm:$0xff] %v7898
      %7923 = vst [vmem:[#allocation3 + $0xc8] sm:$0xff] %v7899
      %7924 = vst [vmem:[#allocation3 + $0xd0] sm:$0xff] %v7900
      %7925 = vst [vmem:[#allocation3 + $0xd8] sm:$0xff] %v7901
      %7926 = vst [vmem:[#allocation3 + $0xe0] sm:$0xff] %v7902
      %7927 = vst [vmem:[#allocation3 + $0xe8] sm:$0xff] %v7903
      %7928 = vst [vmem:[#allocation3 + $0xf0] sm:$0xff] %v7904
      %7929 = vst [vmem:[#allocation3 + $0xf8] sm:$0xff] %v7905
      %7930 = vst [vmem:[#allocation3 + $0x100] sm:$0xff] %v7906
      %7931 = vst [vmem:[#allocation3 + $0x108] sm:$0xff] %v7907
      %7932 = vst [vmem:[#allocation3 + $0x110] sm:$0xff] %v7908
      %7933 = vst [vmem:[#allocation3 + $0x118] sm:$0xff] %v7909
      %7934 = vst [vmem:[#allocation3 + $0x120] sm:$0xff] %v7910
      %7935 = vst [vmem:[#allocation3 + $0x128] sm:$0xff] %v7911
      %7936 = vst [vmem:[#allocation3 + $0x130] sm:$0xff] %v7912
      %7937 = vst [vmem:[#allocation3 + $0x138] sm:$0xff] %v7913
      %7938 = vst [vmem:[#allocation3 + $0x140] sm:$0xff] %v7914
      %7939 = vst [vmem:[#allocation3 + $0x148] sm:$0xff] %v7915
      %7940 = vst [vmem:[#allocation3 + $0x150] sm:$0xff] %v7916
      %7941 = vst [vmem:[#allocation3 + $0x158] sm:$0xff] %v7917
      %7942 = vst [vmem:[#allocation3 + $0x160] sm:$0xff] %v7918
      %7943 = vst [vmem:[#allocation3 + $0x168] sm:$0xff] %v7919
      %7944 = vst [vmem:[#allocation3 + $0x170] sm:$0xff] %v7920
      %7945 = vst [vmem:[#allocation3 + $0x178] sm:$0xff] %v7921
      %7946 = vrot.lane.b32.xlu0 %v7611, 31
      %v7947 = vpop.permute.xlu0 %7946
      %7948 = vrot.lane.b32.xlu0 %v7617, 31
      %v7949 = vpop.permute.xlu0 %7948
      %7950 = vrot.lane.b32.xlu0 %v7623, 31
      %v7951 = vpop.permute.xlu0 %7950
      %7955 = vrot.lane.b32.xlu0 %v7360, 31
      %v7956 = vpop.permute.xlu0 %7955
      %7957 = vrot.lane.b32.xlu0 %v7362, 31
      %v7958 = vpop.permute.xlu0 %7957
      %7959 = vrot.lane.b32.xlu0 %v7443, 31
      %v7960 = vpop.permute.xlu0 %7959
      %7961 = vrot.lane.b32.xlu0 %v7445, 31
      %v7962 = vpop.permute.xlu0 %7961
      %7963 = vrot.lane.b32.xlu0 %v7526, 31
      %v7964 = vpop.permute.xlu0 %7963
      %7965 = vrot.lane.b32.xlu0 %v7528, 31
      %v7966 = vpop.permute.xlu0 %7965
      %7967 = vrot.lane.b32.xlu0 %v7609, 31
      %v7968 = vpop.permute.xlu0 %7967
      %7969 = vrot.lane.b32.xlu0 %v7366, 31
      %v7970 = vpop.permute.xlu0 %7969
      %7971 = vrot.lane.b32.xlu0 %v7368, 31
      %v7972 = vpop.permute.xlu0 %7971
      %7973 = vrot.lane.b32.xlu0 %v7449, 31
      %v7974 = vpop.permute.xlu0 %7973
      %7975 = vrot.lane.b32.xlu0 %v7451, 31
      %v7976 = vpop.permute.xlu0 %7975
      %7977 = vrot.lane.b32.xlu0 %v7532, 31
      %v7978 = vpop.permute.xlu0 %7977
      %7979 = vrot.lane.b32.xlu0 %v7534, 31
      %v7980 = vpop.permute.xlu0 %7979
      %7981 = vrot.lane.b32.xlu0 %v7615, 31
      %v7982 = vpop.permute.xlu0 %7981
      %7983 = vrot.lane.b32.xlu0 %v7372, 31
      %v7984 = vpop.permute.xlu0 %7983
      %7985 = vrot.lane.b32.xlu0 %v7374, 31
      %v7986 = vpop.permute.xlu0 %7985
      %7987 = vrot.lane.b32.xlu0 %v7455, 31
      %v7988 = vpop.permute.xlu0 %7987
      %7989 = vrot.lane.b32.xlu0 %v7457, 31
      %v7990 = vpop.permute.xlu0 %7989
      %7991 = vrot.lane.b32.xlu0 %v7538, 31
      %v7992 = vpop.permute.xlu0 %7991
      %7993 = vrot.lane.b32.xlu0 %v7540, 31
      %v7994 = vpop.permute.xlu0 %7993
      %7995 = vrot.lane.b32.xlu0 %v7621, 31
      %v7996 = vpop.permute.xlu0 %7995
      %v7997 = vsel %vm2181, %v7956, %v7958
      %v7998 = vsel %vm2181, %v7958, %v7960
      %v7999 = vsel %vm2181, %v7960, %v7962
      %v8000 = vsel %vm2181, %v7962, %v7964
      %v8001 = vsel %vm2181, %v7964, %v7966
      %v8002 = vsel %vm2181, %v7966, %v7968
      %v8003 = vsel %vm2181, %v7968, %v7947
      %v8004 = vsel %vm2181, %v7970, %v7972
      %v8005 = vsel %vm2181, %v7972, %v7974
      %v8006 = vsel %vm2181, %v7974, %v7976
      %v8007 = vsel %vm2181, %v7976, %v7978
      %v8008 = vsel %vm2181, %v7978, %v7980
      %v8009 = vsel %vm2181, %v7980, %v7982
      %v8010 = vsel %vm2181, %v7982, %v7949
      %v8011 = vsel %vm2181, %v7984, %v7986
      %v8012 = vsel %vm2181, %v7986, %v7988
      %v8013 = vsel %vm2181, %v7988, %v7990
      %v8014 = vsel %vm2181, %v7990, %v7992
      %v8015 = vsel %vm2181, %v7992, %v7994
      %v8016 = vsel %vm2181, %v7994, %v7996
      %v8017 = vsel %vm2181, %v7996, %v7951
      %v8042 = vsel %vm2181, %v7947, %v7956
      %v8043 = vsel %vm2181, %v7949, %v7970
      %v8044 = vsel %vm2181, %v7951, %v7984
      %v8045 = vmul.f32 %v8042, %v2202
      %v8046 = vmul.f32 %v7997, %v2206
      %v8047 = vmul.f32 %v7998, %v2210
      %v8048 = vmul.f32 %v7999, %v2214
      %v8049 = vmul.f32 %v8000, %v2218
      %v8050 = vmul.f32 %v8001, %v2222
      %v8051 = vmul.f32 %v8002, %v2226
      %v8052 = vmul.f32 %v8003, %v2230
      %v8053 = vmul.f32 %v8043, %v2202
      %v8054 = vmul.f32 %v8004, %v2206
      %v8055 = vmul.f32 %v8005, %v2210
      %v8056 = vmul.f32 %v8006, %v2214
      %v8057 = vmul.f32 %v8007, %v2218
      %v8058 = vmul.f32 %v8008, %v2222
      %v8059 = vmul.f32 %v8009, %v2226
      %v8060 = vmul.f32 %v8010, %v2230
      %v8061 = vmul.f32 %v8044, %v2202
      %v8062 = vmul.f32 %v8011, %v2206
      %v8063 = vmul.f32 %v8012, %v2210
      %v8064 = vmul.f32 %v8013, %v2214
      %v8065 = vmul.f32 %v8014, %v2218
      %v8066 = vmul.f32 %v8015, %v2222
      %v8067 = vmul.f32 %v8016, %v2226
      %v8068 = vmul.f32 %v8017, %v2230
      %8069 = vst [vmem:[#allocation3 + $0x180] sm:$0xff] %v8045
      %8070 = vst [vmem:[#allocation3 + $0x188] sm:$0xff] %v8046
      %8071 = vst [vmem:[#allocation3 + $0x190] sm:$0xff] %v8047
      %8072 = vst [vmem:[#allocation3 + $0x198] sm:$0xff] %v8048
      %8073 = vst [vmem:[#allocation3 + $0x1a0] sm:$0xff] %v8049
      %8074 = vst [vmem:[#allocation3 + $0x1a8] sm:$0xff] %v8050
      %8075 = vst [vmem:[#allocation3 + $0x1b0] sm:$0xff] %v8051
      %8076 = vst [vmem:[#allocation3 + $0x1b8] sm:$0xff] %v8052
      %8077 = vst [vmem:[#allocation3 + $0x1c0] sm:$0xff] %v8053
      %8078 = vst [vmem:[#allocation3 + $0x1c8] sm:$0xff] %v8054
      %8079 = vst [vmem:[#allocation3 + $0x1d0] sm:$0xff] %v8055
      %8080 = vst [vmem:[#allocation3 + $0x1d8] sm:$0xff] %v8056
      %8081 = vst [vmem:[#allocation3 + $0x1e0] sm:$0xff] %v8057
      %8082 = vst [vmem:[#allocation3 + $0x1e8] sm:$0xff] %v8058
      %8083 = vst [vmem:[#allocation3 + $0x1f0] sm:$0xff] %v8059
      %8084 = vst [vmem:[#allocation3 + $0x1f8] sm:$0xff] %v8060
      %8085 = vst [vmem:[#allocation3 + $0x200] sm:$0xff] %v8061
      %8086 = vst [vmem:[#allocation3 + $0x208] sm:$0xff] %v8062
      %8087 = vst [vmem:[#allocation3 + $0x210] sm:$0xff] %v8063
      %8088 = vst [vmem:[#allocation3 + $0x218] sm:$0xff] %v8064
      %8089 = vst [vmem:[#allocation3 + $0x220] sm:$0xff] %v8065
      %8090 = vst [vmem:[#allocation3 + $0x228] sm:$0xff] %v8066
      %8091 = vst [vmem:[#allocation3 + $0x230] sm:$0xff] %v8067
      %8092 = vst [vmem:[#allocation3 + $0x238] sm:$0xff] %v8068
      %8093 = vrot.lane.b32.xlu0 %v7611, 1
      %v8094 = vpop.permute.xlu0 %8093
      %8095 = vrot.lane.b32.xlu0 %v7617, 1
      %v8096 = vpop.permute.xlu0 %8095
      %8097 = vrot.lane.b32.xlu0 %v7623, 1
      %v8098 = vpop.permute.xlu0 %8097
      %8102 = vrot.lane.b32.xlu0 %v7360, 1
      %v8103 = vpop.permute.xlu0 %8102
      %8104 = vrot.lane.b32.xlu0 %v7362, 1
      %v8105 = vpop.permute.xlu0 %8104
      %8106 = vrot.lane.b32.xlu0 %v7443, 1
      %v8107 = vpop.permute.xlu0 %8106
      %8108 = vrot.lane.b32.xlu0 %v7445, 1
      %v8109 = vpop.permute.xlu0 %8108
      %8110 = vrot.lane.b32.xlu0 %v7526, 1
      %v8111 = vpop.permute.xlu0 %8110
      %8112 = vrot.lane.b32.xlu0 %v7528, 1
      %v8113 = vpop.permute.xlu0 %8112
      %8114 = vrot.lane.b32.xlu0 %v7609, 1
      %v8115 = vpop.permute.xlu0 %8114
      %8116 = vrot.lane.b32.xlu0 %v7366, 1
      %v8117 = vpop.permute.xlu0 %8116
      %8118 = vrot.lane.b32.xlu0 %v7368, 1
      %v8119 = vpop.permute.xlu0 %8118
      %8120 = vrot.lane.b32.xlu0 %v7449, 1
      %v8121 = vpop.permute.xlu0 %8120
      %8122 = vrot.lane.b32.xlu0 %v7451, 1
      %v8123 = vpop.permute.xlu0 %8122
      %8124 = vrot.lane.b32.xlu0 %v7532, 1
      %v8125 = vpop.permute.xlu0 %8124
      %8126 = vrot.lane.b32.xlu0 %v7534, 1
      %v8127 = vpop.permute.xlu0 %8126
      %8128 = vrot.lane.b32.xlu0 %v7615, 1
      %v8129 = vpop.permute.xlu0 %8128
      %8130 = vrot.lane.b32.xlu0 %v7372, 1
      %v8131 = vpop.permute.xlu0 %8130
      %8132 = vrot.lane.b32.xlu0 %v7374, 1
      %v8133 = vpop.permute.xlu0 %8132
      %8134 = vrot.lane.b32.xlu0 %v7455, 1
      %v8135 = vpop.permute.xlu0 %8134
      %8136 = vrot.lane.b32.xlu0 %v7457, 1
      %v8137 = vpop.permute.xlu0 %8136
      %8138 = vrot.lane.b32.xlu0 %v7538, 1
      %v8139 = vpop.permute.xlu0 %8138
      %8140 = vrot.lane.b32.xlu0 %v7540, 1
      %v8141 = vpop.permute.xlu0 %8140
      %8142 = vrot.lane.b32.xlu0 %v7621, 1
      %v8143 = vpop.permute.xlu0 %8142
      %v8144 = vsel %vm1736, %v8103, %v8105
      %v8145 = vsel %vm1736, %v8105, %v8107
      %v8146 = vsel %vm1736, %v8107, %v8109
      %v8147 = vsel %vm1736, %v8109, %v8111
      %v8148 = vsel %vm1736, %v8111, %v8113
      %v8149 = vsel %vm1736, %v8113, %v8115
      %v8150 = vsel %vm1736, %v8115, %v8094
      %v8151 = vsel %vm1736, %v8117, %v8119
      %v8152 = vsel %vm1736, %v8119, %v8121
      %v8153 = vsel %vm1736, %v8121, %v8123
      %v8154 = vsel %vm1736, %v8123, %v8125
      %v8155 = vsel %vm1736, %v8125, %v8127
      %v8156 = vsel %vm1736, %v8127, %v8129
      %v8157 = vsel %vm1736, %v8129, %v8096
      %v8158 = vsel %vm1736, %v8131, %v8133
      %v8159 = vsel %vm1736, %v8133, %v8135
      %v8160 = vsel %vm1736, %v8135, %v8137
      %v8161 = vsel %vm1736, %v8137, %v8139
      %v8162 = vsel %vm1736, %v8139, %v8141
      %v8163 = vsel %vm1736, %v8141, %v8143
      %v8164 = vsel %vm1736, %v8143, %v8098
      %v8189 = vsel %vm1736, %v8094, %v8103
      %v8190 = vsel %vm1736, %v8096, %v8117
      %v8191 = vsel %vm1736, %v8098, %v8131
      %v8192 = vmul.f32 %v8189, %v2292
      %v8193 = vmul.f32 %v8144, %v2296
      %v8194 = vmul.f32 %v8145, %v2300
      %v8195 = vmul.f32 %v8146, %v2304
      %v8196 = vmul.f32 %v8147, %v2308
      %v8197 = vmul.f32 %v8148, %v2312
      %v8198 = vmul.f32 %v8149, %v2316
      %v8199 = vmul.f32 %v8150, %v2320
      %v8200 = vmul.f32 %v8190, %v2292
      %v8201 = vmul.f32 %v8151, %v2296
      %v8202 = vmul.f32 %v8152, %v2300
      %v8203 = vmul.f32 %v8153, %v2304
      %v8204 = vmul.f32 %v8154, %v2308
      %v8205 = vmul.f32 %v8155, %v2312
      %v8206 = vmul.f32 %v8156, %v2316
      %v8207 = vmul.f32 %v8157, %v2320
      %v8208 = vmul.f32 %v8191, %v2292
      %v8209 = vmul.f32 %v8158, %v2296
      %v8210 = vmul.f32 %v8159, %v2300
      %v8211 = vmul.f32 %v8160, %v2304
      %v8212 = vmul.f32 %v8161, %v2308
      %v8213 = vmul.f32 %v8162, %v2312
      %v8214 = vmul.f32 %v8163, %v2316
      %v8215 = vmul.f32 %v8164, %v2320
      %8216 = vst [vmem:[#allocation3 + $0x240] sm:$0xff] %v8192
      %8217 = vst [vmem:[#allocation3 + $0x248] sm:$0xff] %v8193
      %8218 = vst [vmem:[#allocation3 + $0x250] sm:$0xff] %v8194
      %8219 = vst [vmem:[#allocation3 + $0x258] sm:$0xff] %v8195
      %8220 = vst [vmem:[#allocation3 + $0x260] sm:$0xff] %v8196
      %8221 = vst [vmem:[#allocation3 + $0x268] sm:$0xff] %v8197
      %8222 = vst [vmem:[#allocation3 + $0x270] sm:$0xff] %v8198
      %8223 = vst [vmem:[#allocation3 + $0x278] sm:$0xff] %v8199
      %8224 = vst [vmem:[#allocation3 + $0x280] sm:$0xff] %v8200
      %8225 = vst [vmem:[#allocation3 + $0x288] sm:$0xff] %v8201
      %8226 = vst [vmem:[#allocation3 + $0x290] sm:$0xff] %v8202
      %8227 = vst [vmem:[#allocation3 + $0x298] sm:$0xff] %v8203
      %8228 = vst [vmem:[#allocation3 + $0x2a0] sm:$0xff] %v8204
      %8229 = vst [vmem:[#allocation3 + $0x2a8] sm:$0xff] %v8205
      %8230 = vst [vmem:[#allocation3 + $0x2b0] sm:$0xff] %v8206
      %8231 = vst [vmem:[#allocation3 + $0x2b8] sm:$0xff] %v8207
      %8232 = vst [vmem:[#allocation3 + $0x2c0] sm:$0xff] %v8208
      %8233 = vst [vmem:[#allocation3 + $0x2c8] sm:$0xff] %v8209
      %8234 = vst [vmem:[#allocation3 + $0x2d0] sm:$0xff] %v8210
      %8235 = vst [vmem:[#allocation3 + $0x2d8] sm:$0xff] %v8211
      %8236 = vst [vmem:[#allocation3 + $0x2e0] sm:$0xff] %v8212
      %8237 = vst [vmem:[#allocation3 + $0x2e8] sm:$0xff] %v8213
      %8238 = vst [vmem:[#allocation3 + $0x2f0] sm:$0xff] %v8214
      %8239 = vst [vmem:[#allocation3 + $0x2f8] sm:$0xff] %v8215
      %8240 = vst [vmem:[#allocation3 + $0x300] sm:$0xff] %v7360
      %8241 = vst [vmem:[#allocation3 + $0x308] sm:$0xff] %v7362
      %8242 = vst [vmem:[#allocation3 + $0x310] sm:$0xff] %v7443
      %8243 = vst [vmem:[#allocation3 + $0x318] sm:$0xff] %v7445
      %8244 = vst [vmem:[#allocation3 + $0x320] sm:$0xff] %v7526
      %8245 = vst [vmem:[#allocation3 + $0x328] sm:$0xff] %v7528
      %8246 = vst [vmem:[#allocation3 + $0x330] sm:$0xff] %v7609
      %8247 = vst [vmem:[#allocation3 + $0x338] sm:$0xff] %v7611
      %8248 = vst [vmem:[#allocation3 + $0x340] sm:$0xff] %v7366
      %8249 = vst [vmem:[#allocation3 + $0x348] sm:$0xff] %v7368
      %8250 = vst [vmem:[#allocation3 + $0x350] sm:$0xff] %v7449
      %8251 = vst [vmem:[#allocation3 + $0x358] sm:$0xff] %v7451
      %8252 = vst [vmem:[#allocation3 + $0x360] sm:$0xff] %v7532
      %8253 = vst [vmem:[#allocation3 + $0x368] sm:$0xff] %v7534
      %8254 = vst [vmem:[#allocation3 + $0x370] sm:$0xff] %v7615
      %8255 = vst [vmem:[#allocation3 + $0x378] sm:$0xff] %v7617
      %8256 = vst [vmem:[#allocation3 + $0x380] sm:$0xff] %v7372
      %8257 = vst [vmem:[#allocation3 + $0x388] sm:$0xff] %v7374
      %8258 = vst [vmem:[#allocation3 + $0x390] sm:$0xff] %v7455
      %8259 = vst [vmem:[#allocation3 + $0x398] sm:$0xff] %v7457
      %8260 = vst [vmem:[#allocation3 + $0x3a0] sm:$0xff] %v7538
      %8261 = vst [vmem:[#allocation3 + $0x3a8] sm:$0xff] %v7540
      %8262 = vst [vmem:[#allocation3 + $0x3b0] sm:$0xff] %v7621
      %8263 = vst [vmem:[#allocation3 + $0x3b8] sm:$0xff] %v7623
      %8264 = vrot.lane.b32.xlu0 %v7360, 127
      %v8265 = vpop.permute.xlu0 %8264
      %8266 = vrot.lane.b32.xlu0 %v7362, 127
      %v8267 = vpop.permute.xlu0 %8266
      %8268 = vrot.lane.b32.xlu0 %v7443, 127
      %v8269 = vpop.permute.xlu0 %8268
      %8270 = vrot.lane.b32.xlu0 %v7445, 127
      %v8271 = vpop.permute.xlu0 %8270
      %8272 = vrot.lane.b32.xlu0 %v7526, 127
      %v8273 = vpop.permute.xlu0 %8272
      %8274 = vrot.lane.b32.xlu0 %v7528, 127
      %v8275 = vpop.permute.xlu0 %8274
      %8276 = vrot.lane.b32.xlu0 %v7609, 127
      %v8277 = vpop.permute.xlu0 %8276
      %8278 = vrot.lane.b32.xlu0 %v7611, 127
      %v8279 = vpop.permute.xlu0 %8278
      %8280 = vrot.lane.b32.xlu0 %v7366, 127
      %v8281 = vpop.permute.xlu0 %8280
      %8282 = vrot.lane.b32.xlu0 %v7368, 127
      %v8283 = vpop.permute.xlu0 %8282
      %8284 = vrot.lane.b32.xlu0 %v7449, 127
      %v8285 = vpop.permute.xlu0 %8284
      %8286 = vrot.lane.b32.xlu0 %v7451, 127
      %v8287 = vpop.permute.xlu0 %8286
      %8288 = vrot.lane.b32.xlu0 %v7532, 127
      %v8289 = vpop.permute.xlu0 %8288
      %8290 = vrot.lane.b32.xlu0 %v7534, 127
      %v8291 = vpop.permute.xlu0 %8290
      %8292 = vrot.lane.b32.xlu0 %v7615, 127
      %v8293 = vpop.permute.xlu0 %8292
      %8294 = vrot.lane.b32.xlu0 %v7617, 127
      %v8295 = vpop.permute.xlu0 %8294
      %8296 = vrot.lane.b32.xlu0 %v7372, 127
      %v8297 = vpop.permute.xlu0 %8296
      %8298 = vrot.lane.b32.xlu0 %v7374, 127
      %v8299 = vpop.permute.xlu0 %8298
      %8300 = vrot.lane.b32.xlu0 %v7455, 127
      %v8301 = vpop.permute.xlu0 %8300
      %8302 = vrot.lane.b32.xlu0 %v7457, 127
      %v8303 = vpop.permute.xlu0 %8302
      %8304 = vrot.lane.b32.xlu0 %v7538, 127
      %v8305 = vpop.permute.xlu0 %8304
      %8306 = vrot.lane.b32.xlu0 %v7540, 127
      %v8307 = vpop.permute.xlu0 %8306
      %8308 = vrot.lane.b32.xlu0 %v7621, 127
      %v8309 = vpop.permute.xlu0 %8308
      %8310 = vrot.lane.b32.xlu0 %v7623, 127
      %v8311 = vpop.permute.xlu0 %8310
      %v8312 = vsel %vm1762, %v8265, %v8267
      %v8313 = vsel %vm1762, %v8267, %v8269
      %v8314 = vsel %vm1762, %v8269, %v8271
      %v8315 = vsel %vm1762, %v8271, %v8273
      %v8316 = vsel %vm1762, %v8273, %v8275
      %v8317 = vsel %vm1762, %v8275, %v8277
      %v8318 = vsel %vm1762, %v8277, %v8279
      %v8319 = vsel %vm1762, %v8281, %v8283
      %v8320 = vsel %vm1762, %v8283, %v8285
      %v8321 = vsel %vm1762, %v8285, %v8287
      %v8322 = vsel %vm1762, %v8287, %v8289
      %v8323 = vsel %vm1762, %v8289, %v8291
      %v8324 = vsel %vm1762, %v8291, %v8293
      %v8325 = vsel %vm1762, %v8293, %v8295
      %v8326 = vsel %vm1762, %v8297, %v8299
      %v8327 = vsel %vm1762, %v8299, %v8301
      %v8328 = vsel %vm1762, %v8301, %v8303
      %v8329 = vsel %vm1762, %v8303, %v8305
      %v8330 = vsel %vm1762, %v8305, %v8307
      %v8331 = vsel %vm1762, %v8307, %v8309
      %v8332 = vsel %vm1762, %v8309, %v8311
      %v8360 = vsel %vm1762, %v8279, %v8265
      %v8361 = vsel %vm1762, %v8295, %v8281
      %v8362 = vsel %vm1762, %v8311, %v8297
      %v8363 = vmul.f32 %v8312, %v2390
      %v8364 = vmul.f32 %v8313, %v2394
      %v8365 = vmul.f32 %v8314, %v2398
      %v8366 = vmul.f32 %v8315, %v2402
      %v8367 = vmul.f32 %v8316, %v2406
      %v8368 = vmul.f32 %v8317, %v2410
      %v8369 = vmul.f32 %v8318, %v2414
      %v8370 = vmul.f32 %v8360, %v2418
      %v8371 = vmul.f32 %v8319, %v2390
      %v8372 = vmul.f32 %v8320, %v2394
      %v8373 = vmul.f32 %v8321, %v2398
      %v8374 = vmul.f32 %v8322, %v2402
      %v8375 = vmul.f32 %v8323, %v2406
      %v8376 = vmul.f32 %v8324, %v2410
      %v8377 = vmul.f32 %v8325, %v2414
      %v8378 = vmul.f32 %v8361, %v2418
      %v8379 = vmul.f32 %v8326, %v2390
      %v8380 = vmul.f32 %v8327, %v2394
      %v8381 = vmul.f32 %v8328, %v2398
      %v8382 = vmul.f32 %v8329, %v2402
      %v8383 = vmul.f32 %v8330, %v2406
      %v8384 = vmul.f32 %v8331, %v2410
      %v8385 = vmul.f32 %v8332, %v2414
      %v8386 = vmul.f32 %v8362, %v2418
      %8387 = vst [vmem:[#allocation3 + $0x3c0] sm:$0xff] %v8363
      %8388 = vst [vmem:[#allocation3 + $0x3c8] sm:$0xff] %v8364
      %8389 = vst [vmem:[#allocation3 + $0x3d0] sm:$0xff] %v8365
      %8390 = vst [vmem:[#allocation3 + $0x3d8] sm:$0xff] %v8366
      %8391 = vst [vmem:[#allocation3 + $0x3e0] sm:$0xff] %v8367
      %8392 = vst [vmem:[#allocation3 + $0x3e8] sm:$0xff] %v8368
      %8393 = vst [vmem:[#allocation3 + $0x3f0] sm:$0xff] %v8369
      %8394 = vst [vmem:[#allocation3 + $0x3f8] sm:$0xff] %v8370
      %8395 = vst [vmem:[#allocation3 + $0x400] sm:$0xff] %v8371
      %8396 = vst [vmem:[#allocation3 + $0x408] sm:$0xff] %v8372
      %8397 = vst [vmem:[#allocation3 + $0x410] sm:$0xff] %v8373
      %8398 = vst [vmem:[#allocation3 + $0x418] sm:$0xff] %v8374
      %8399 = vst [vmem:[#allocation3 + $0x420] sm:$0xff] %v8375
      %8400 = vst [vmem:[#allocation3 + $0x428] sm:$0xff] %v8376
      %8401 = vst [vmem:[#allocation3 + $0x430] sm:$0xff] %v8377
      %8402 = vst [vmem:[#allocation3 + $0x438] sm:$0xff] %v8378
      %8403 = vst [vmem:[#allocation3 + $0x440] sm:$0xff] %v8379
      %8404 = vst [vmem:[#allocation3 + $0x448] sm:$0xff] %v8380
      %8405 = vst [vmem:[#allocation3 + $0x450] sm:$0xff] %v8381
      %8406 = vst [vmem:[#allocation3 + $0x458] sm:$0xff] %v8382
      %8407 = vst [vmem:[#allocation3 + $0x460] sm:$0xff] %v8383
      %8408 = vst [vmem:[#allocation3 + $0x468] sm:$0xff] %v8384
      %8409 = vst [vmem:[#allocation3 + $0x470] sm:$0xff] %v8385
      %8410 = vst [vmem:[#allocation3 + $0x478] sm:$0xff] %v8386
      %8411 = vrot.lane.b32.xlu0 %v7360, 97
      %v8412 = vpop.permute.xlu0 %8411
      %8413 = vrot.lane.b32.xlu0 %v7362, 97
      %v8414 = vpop.permute.xlu0 %8413
      %8415 = vrot.lane.b32.xlu0 %v7443, 97
      %v8416 = vpop.permute.xlu0 %8415
      %8417 = vrot.lane.b32.xlu0 %v7445, 97
      %v8418 = vpop.permute.xlu0 %8417
      %8419 = vrot.lane.b32.xlu0 %v7526, 97
      %v8420 = vpop.permute.xlu0 %8419
      %8421 = vrot.lane.b32.xlu0 %v7528, 97
      %v8422 = vpop.permute.xlu0 %8421
      %8423 = vrot.lane.b32.xlu0 %v7609, 97
      %v8424 = vpop.permute.xlu0 %8423
      %8425 = vrot.lane.b32.xlu0 %v7611, 97
      %v8426 = vpop.permute.xlu0 %8425
      %8427 = vrot.lane.b32.xlu0 %v7366, 97
      %v8428 = vpop.permute.xlu0 %8427
      %8429 = vrot.lane.b32.xlu0 %v7368, 97
      %v8430 = vpop.permute.xlu0 %8429
      %8431 = vrot.lane.b32.xlu0 %v7449, 97
      %v8432 = vpop.permute.xlu0 %8431
      %8433 = vrot.lane.b32.xlu0 %v7451, 97
      %v8434 = vpop.permute.xlu0 %8433
      %8435 = vrot.lane.b32.xlu0 %v7532, 97
      %v8436 = vpop.permute.xlu0 %8435
      %8437 = vrot.lane.b32.xlu0 %v7534, 97
      %v8438 = vpop.permute.xlu0 %8437
      %8439 = vrot.lane.b32.xlu0 %v7615, 97
      %v8440 = vpop.permute.xlu0 %8439
      %8441 = vrot.lane.b32.xlu0 %v7617, 97
      %v8442 = vpop.permute.xlu0 %8441
      %8443 = vrot.lane.b32.xlu0 %v7372, 97
      %v8444 = vpop.permute.xlu0 %8443
      %8445 = vrot.lane.b32.xlu0 %v7374, 97
      %v8446 = vpop.permute.xlu0 %8445
      %8447 = vrot.lane.b32.xlu0 %v7455, 97
      %v8448 = vpop.permute.xlu0 %8447
      %8449 = vrot.lane.b32.xlu0 %v7457, 97
      %v8450 = vpop.permute.xlu0 %8449
      %8451 = vrot.lane.b32.xlu0 %v7538, 97
      %v8452 = vpop.permute.xlu0 %8451
      %8453 = vrot.lane.b32.xlu0 %v7540, 97
      %v8454 = vpop.permute.xlu0 %8453
      %8455 = vrot.lane.b32.xlu0 %v7621, 97
      %v8456 = vpop.permute.xlu0 %8455
      %8457 = vrot.lane.b32.xlu0 %v7623, 97
      %v8458 = vpop.permute.xlu0 %8457
      %v8459 = vsel %vm2459, %v8412, %v8414
      %v8460 = vsel %vm2459, %v8414, %v8416
      %v8461 = vsel %vm2459, %v8416, %v8418
      %v8462 = vsel %vm2459, %v8418, %v8420
      %v8463 = vsel %vm2459, %v8420, %v8422
      %v8464 = vsel %vm2459, %v8422, %v8424
      %v8465 = vsel %vm2459, %v8424, %v8426
      %v8466 = vsel %vm2459, %v8428, %v8430
      %v8467 = vsel %vm2459, %v8430, %v8432
      %v8468 = vsel %vm2459, %v8432, %v8434
      %v8469 = vsel %vm2459, %v8434, %v8436
      %v8470 = vsel %vm2459, %v8436, %v8438
      %v8471 = vsel %vm2459, %v8438, %v8440
      %v8472 = vsel %vm2459, %v8440, %v8442
      %v8473 = vsel %vm2459, %v8444, %v8446
      %v8474 = vsel %vm2459, %v8446, %v8448
      %v8475 = vsel %vm2459, %v8448, %v8450
      %v8476 = vsel %vm2459, %v8450, %v8452
      %v8477 = vsel %vm2459, %v8452, %v8454
      %v8478 = vsel %vm2459, %v8454, %v8456
      %v8479 = vsel %vm2459, %v8456, %v8458
      %v8507 = vsel %vm2459, %v8426, %v8412
      %v8508 = vsel %vm2459, %v8442, %v8428
      %v8509 = vsel %vm2459, %v8458, %v8444
      %v8510 = vmul.f32 %v8459, %v2481
      %v8511 = vmul.f32 %v8460, %v2485
      %v8512 = vmul.f32 %v8461, %v2489
      %v8513 = vmul.f32 %v8462, %v2493
      %v8514 = vmul.f32 %v8463, %v2497
      %v8515 = vmul.f32 %v8464, %v2501
      %v8516 = vmul.f32 %v8465, %v2505
      %v8517 = vmul.f32 %v8507, %v2509
      %v8518 = vmul.f32 %v8466, %v2481
      %v8519 = vmul.f32 %v8467, %v2485
      %v8520 = vmul.f32 %v8468, %v2489
      %v8521 = vmul.f32 %v8469, %v2493
      %v8522 = vmul.f32 %v8470, %v2497
      %v8523 = vmul.f32 %v8471, %v2501
      %v8524 = vmul.f32 %v8472, %v2505
      %v8525 = vmul.f32 %v8508, %v2509
      %v8526 = vmul.f32 %v8473, %v2481
      %v8527 = vmul.f32 %v8474, %v2485
      %v8528 = vmul.f32 %v8475, %v2489
      %v8529 = vmul.f32 %v8476, %v2493
      %v8530 = vmul.f32 %v8477, %v2497
      %v8531 = vmul.f32 %v8478, %v2501
      %v8532 = vmul.f32 %v8479, %v2505
      %v8533 = vmul.f32 %v8509, %v2509
      %8534 = vst [vmem:[#allocation3 + $0x480] sm:$0xff] %v8510
      %8535 = vst [vmem:[#allocation3 + $0x488] sm:$0xff] %v8511
      %8536 = vst [vmem:[#allocation3 + $0x490] sm:$0xff] %v8512
      %8537 = vst [vmem:[#allocation3 + $0x498] sm:$0xff] %v8513
      %8538 = vst [vmem:[#allocation3 + $0x4a0] sm:$0xff] %v8514
      %8539 = vst [vmem:[#allocation3 + $0x4a8] sm:$0xff] %v8515
      %8540 = vst [vmem:[#allocation3 + $0x4b0] sm:$0xff] %v8516
      %8541 = vst [vmem:[#allocation3 + $0x4b8] sm:$0xff] %v8517
      %8542 = vst [vmem:[#allocation3 + $0x4c0] sm:$0xff] %v8518
      %8543 = vst [vmem:[#allocation3 + $0x4c8] sm:$0xff] %v8519
      %8544 = vst [vmem:[#allocation3 + $0x4d0] sm:$0xff] %v8520
      %8545 = vst [vmem:[#allocation3 + $0x4d8] sm:$0xff] %v8521
      %8546 = vst [vmem:[#allocation3 + $0x4e0] sm:$0xff] %v8522
      %8547 = vst [vmem:[#allocation3 + $0x4e8] sm:$0xff] %v8523
      %8548 = vst [vmem:[#allocation3 + $0x4f0] sm:$0xff] %v8524
      %8549 = vst [vmem:[#allocation3 + $0x4f8] sm:$0xff] %v8525
      %8550 = vst [vmem:[#allocation3 + $0x500] sm:$0xff] %v8526
      %8551 = vst [vmem:[#allocation3 + $0x508] sm:$0xff] %v8527
      %8552 = vst [vmem:[#allocation3 + $0x510] sm:$0xff] %v8528
      %8553 = vst [vmem:[#allocation3 + $0x518] sm:$0xff] %v8529
      %8554 = vst [vmem:[#allocation3 + $0x520] sm:$0xff] %v8530
      %8555 = vst [vmem:[#allocation3 + $0x528] sm:$0xff] %v8531
      %8556 = vst [vmem:[#allocation3 + $0x530] sm:$0xff] %v8532
      %8557 = vst [vmem:[#allocation3 + $0x538] sm:$0xff] %v8533
      %8558 = vrot.lane.b32.xlu0 %v7360, 96
      %v8559 = vpop.permute.xlu0 %8558
      %8560 = vrot.lane.b32.xlu0 %v7362, 96
      %v8561 = vpop.permute.xlu0 %8560
      %8562 = vrot.lane.b32.xlu0 %v7443, 96
      %v8563 = vpop.permute.xlu0 %8562
      %8564 = vrot.lane.b32.xlu0 %v7445, 96
      %v8565 = vpop.permute.xlu0 %8564
      %8566 = vrot.lane.b32.xlu0 %v7526, 96
      %v8567 = vpop.permute.xlu0 %8566
      %8568 = vrot.lane.b32.xlu0 %v7528, 96
      %v8569 = vpop.permute.xlu0 %8568
      %8570 = vrot.lane.b32.xlu0 %v7609, 96
      %v8571 = vpop.permute.xlu0 %8570
      %8572 = vrot.lane.b32.xlu0 %v7611, 96
      %v8573 = vpop.permute.xlu0 %8572
      %8574 = vrot.lane.b32.xlu0 %v7366, 96
      %v8575 = vpop.permute.xlu0 %8574
      %8576 = vrot.lane.b32.xlu0 %v7368, 96
      %v8577 = vpop.permute.xlu0 %8576
      %8578 = vrot.lane.b32.xlu0 %v7449, 96
      %v8579 = vpop.permute.xlu0 %8578
      %8580 = vrot.lane.b32.xlu0 %v7451, 96
      %v8581 = vpop.permute.xlu0 %8580
      %8582 = vrot.lane.b32.xlu0 %v7532, 96
      %v8583 = vpop.permute.xlu0 %8582
      %8584 = vrot.lane.b32.xlu0 %v7534, 96
      %v8585 = vpop.permute.xlu0 %8584
      %8586 = vrot.lane.b32.xlu0 %v7615, 96
      %v8587 = vpop.permute.xlu0 %8586
      %8588 = vrot.lane.b32.xlu0 %v7617, 96
      %v8589 = vpop.permute.xlu0 %8588
      %8590 = vrot.lane.b32.xlu0 %v7372, 96
      %v8591 = vpop.permute.xlu0 %8590
      %8592 = vrot.lane.b32.xlu0 %v7374, 96
      %v8593 = vpop.permute.xlu0 %8592
      %8594 = vrot.lane.b32.xlu0 %v7455, 96
      %v8595 = vpop.permute.xlu0 %8594
      %8596 = vrot.lane.b32.xlu0 %v7457, 96
      %v8597 = vpop.permute.xlu0 %8596
      %8598 = vrot.lane.b32.xlu0 %v7538, 96
      %v8599 = vpop.permute.xlu0 %8598
      %8600 = vrot.lane.b32.xlu0 %v7540, 96
      %v8601 = vpop.permute.xlu0 %8600
      %8602 = vrot.lane.b32.xlu0 %v7621, 96
      %v8603 = vpop.permute.xlu0 %8602
      %8604 = vrot.lane.b32.xlu0 %v7623, 96
      %v8605 = vpop.permute.xlu0 %8604
      %v8606 = vsel %vm2550, %v8559, %v8561
      %v8607 = vsel %vm2550, %v8561, %v8563
      %v8608 = vsel %vm2550, %v8563, %v8565
      %v8609 = vsel %vm2550, %v8565, %v8567
      %v8610 = vsel %vm2550, %v8567, %v8569
      %v8611 = vsel %vm2550, %v8569, %v8571
      %v8612 = vsel %vm2550, %v8571, %v8573
      %v8613 = vsel %vm2550, %v8575, %v8577
      %v8614 = vsel %vm2550, %v8577, %v8579
      %v8615 = vsel %vm2550, %v8579, %v8581
      %v8616 = vsel %vm2550, %v8581, %v8583
      %v8617 = vsel %vm2550, %v8583, %v8585
      %v8618 = vsel %vm2550, %v8585, %v8587
      %v8619 = vsel %vm2550, %v8587, %v8589
      %v8620 = vsel %vm2550, %v8591, %v8593
      %v8621 = vsel %vm2550, %v8593, %v8595
      %v8622 = vsel %vm2550, %v8595, %v8597
      %v8623 = vsel %vm2550, %v8597, %v8599
      %v8624 = vsel %vm2550, %v8599, %v8601
      %v8625 = vsel %vm2550, %v8601, %v8603
      %v8626 = vsel %vm2550, %v8603, %v8605
      %v8654 = vsel %vm2550, %v8573, %v8559
      %v8655 = vsel %vm2550, %v8589, %v8575
      %v8656 = vsel %vm2550, %v8605, %v8591
      %v8657 = vmul.f32 %v8606, %v2572
      %v8658 = vmul.f32 %v8607, %v2576
      %v8659 = vmul.f32 %v8608, %v2580
      %v8660 = vmul.f32 %v8609, %v2584
      %v8661 = vmul.f32 %v8610, %v2588
      %v8662 = vmul.f32 %v8611, %v2592
      %v8663 = vmul.f32 %v8612, %v2596
      %v8664 = vmul.f32 %v8654, %v2600
      %v8665 = vmul.f32 %v8613, %v2572
      %v8666 = vmul.f32 %v8614, %v2576
      %v8667 = vmul.f32 %v8615, %v2580
      %v8668 = vmul.f32 %v8616, %v2584
      %v8669 = vmul.f32 %v8617, %v2588
      %v8670 = vmul.f32 %v8618, %v2592
      %v8671 = vmul.f32 %v8619, %v2596
      %v8672 = vmul.f32 %v8655, %v2600
      %v8673 = vmul.f32 %v8620, %v2572
      %v8674 = vmul.f32 %v8621, %v2576
      %v8675 = vmul.f32 %v8622, %v2580
      %v8676 = vmul.f32 %v8623, %v2584
      %v8677 = vmul.f32 %v8624, %v2588
      %v8678 = vmul.f32 %v8625, %v2592
      %v8679 = vmul.f32 %v8626, %v2596
      %v8680 = vmul.f32 %v8656, %v2600
      %8681 = vst [vmem:[#allocation3 + $0x540] sm:$0xff] %v8657
      %8682 = vst [vmem:[#allocation3 + $0x548] sm:$0xff] %v8658
      %8683 = vst [vmem:[#allocation3 + $0x550] sm:$0xff] %v8659
      %8684 = vst [vmem:[#allocation3 + $0x558] sm:$0xff] %v8660
      %8685 = vst [vmem:[#allocation3 + $0x560] sm:$0xff] %v8661
      %8686 = vst [vmem:[#allocation3 + $0x568] sm:$0xff] %v8662
      %8687 = vst [vmem:[#allocation3 + $0x570] sm:$0xff] %v8663
      %8688 = vst [vmem:[#allocation3 + $0x578] sm:$0xff] %v8664
      %8689 = vst [vmem:[#allocation3 + $0x580] sm:$0xff] %v8665
      %8690 = vst [vmem:[#allocation3 + $0x588] sm:$0xff] %v8666
      %8691 = vst [vmem:[#allocation3 + $0x590] sm:$0xff] %v8667
      %8692 = vst [vmem:[#allocation3 + $0x598] sm:$0xff] %v8668
      %8693 = vst [vmem:[#allocation3 + $0x5a0] sm:$0xff] %v8669
      %8694 = vst [vmem:[#allocation3 + $0x5a8] sm:$0xff] %v8670
      %8695 = vst [vmem:[#allocation3 + $0x5b0] sm:$0xff] %v8671
      %8696 = vst [vmem:[#allocation3 + $0x5b8] sm:$0xff] %v8672
      %8697 = vst [vmem:[#allocation3 + $0x5c0] sm:$0xff] %v8673
      %8698 = vst [vmem:[#allocation3 + $0x5c8] sm:$0xff] %v8674
      %8699 = vst [vmem:[#allocation3 + $0x5d0] sm:$0xff] %v8675
      %8700 = vst [vmem:[#allocation3 + $0x5d8] sm:$0xff] %v8676
      %8701 = vst [vmem:[#allocation3 + $0x5e0] sm:$0xff] %v8677
      %8702 = vst [vmem:[#allocation3 + $0x5e8] sm:$0xff] %v8678
      %8703 = vst [vmem:[#allocation3 + $0x5f0] sm:$0xff] %v8679
      %8704 = vst [vmem:[#allocation3 + $0x5f8] sm:$0xff] %v8680
      %8705 = vrot.lane.b32.xlu0 %v7360, 95
      %v8706 = vpop.permute.xlu0 %8705
      %8707 = vrot.lane.b32.xlu0 %v7362, 95
      %v8708 = vpop.permute.xlu0 %8707
      %8709 = vrot.lane.b32.xlu0 %v7443, 95
      %v8710 = vpop.permute.xlu0 %8709
      %8711 = vrot.lane.b32.xlu0 %v7445, 95
      %v8712 = vpop.permute.xlu0 %8711
      %8713 = vrot.lane.b32.xlu0 %v7526, 95
      %v8714 = vpop.permute.xlu0 %8713
      %8715 = vrot.lane.b32.xlu0 %v7528, 95
      %v8716 = vpop.permute.xlu0 %8715
      %8717 = vrot.lane.b32.xlu0 %v7609, 95
      %v8718 = vpop.permute.xlu0 %8717
      %8719 = vrot.lane.b32.xlu0 %v7611, 95
      %v8720 = vpop.permute.xlu0 %8719
      %8721 = vrot.lane.b32.xlu0 %v7366, 95
      %v8722 = vpop.permute.xlu0 %8721
      %8723 = vrot.lane.b32.xlu0 %v7368, 95
      %v8724 = vpop.permute.xlu0 %8723
      %8725 = vrot.lane.b32.xlu0 %v7449, 95
      %v8726 = vpop.permute.xlu0 %8725
      %8727 = vrot.lane.b32.xlu0 %v7451, 95
      %v8728 = vpop.permute.xlu0 %8727
      %8729 = vrot.lane.b32.xlu0 %v7532, 95
      %v8730 = vpop.permute.xlu0 %8729
      %8731 = vrot.lane.b32.xlu0 %v7534, 95
      %v8732 = vpop.permute.xlu0 %8731
      %8733 = vrot.lane.b32.xlu0 %v7615, 95
      %v8734 = vpop.permute.xlu0 %8733
      %8735 = vrot.lane.b32.xlu0 %v7617, 95
      %v8736 = vpop.permute.xlu0 %8735
      %8737 = vrot.lane.b32.xlu0 %v7372, 95
      %v8738 = vpop.permute.xlu0 %8737
      %8739 = vrot.lane.b32.xlu0 %v7374, 95
      %v8740 = vpop.permute.xlu0 %8739
      %8741 = vrot.lane.b32.xlu0 %v7455, 95
      %v8742 = vpop.permute.xlu0 %8741
      %8743 = vrot.lane.b32.xlu0 %v7457, 95
      %v8744 = vpop.permute.xlu0 %8743
      %8745 = vrot.lane.b32.xlu0 %v7538, 95
      %v8746 = vpop.permute.xlu0 %8745
      %8747 = vrot.lane.b32.xlu0 %v7540, 95
      %v8748 = vpop.permute.xlu0 %8747
      %8749 = vrot.lane.b32.xlu0 %v7621, 95
      %v8750 = vpop.permute.xlu0 %8749
      %8751 = vrot.lane.b32.xlu0 %v7623, 95
      %v8752 = vpop.permute.xlu0 %8751
      %v8753 = vsel %vm2641, %v8706, %v8708
      %v8754 = vsel %vm2641, %v8708, %v8710
      %v8755 = vsel %vm2641, %v8710, %v8712
      %v8756 = vsel %vm2641, %v8712, %v8714
      %v8757 = vsel %vm2641, %v8714, %v8716
      %v8758 = vsel %vm2641, %v8716, %v8718
      %v8759 = vsel %vm2641, %v8718, %v8720
      %v8760 = vsel %vm2641, %v8722, %v8724
      %v8761 = vsel %vm2641, %v8724, %v8726
      %v8762 = vsel %vm2641, %v8726, %v8728
      %v8763 = vsel %vm2641, %v8728, %v8730
      %v8764 = vsel %vm2641, %v8730, %v8732
      %v8765 = vsel %vm2641, %v8732, %v8734
      %v8766 = vsel %vm2641, %v8734, %v8736
      %v8767 = vsel %vm2641, %v8738, %v8740
      %v8768 = vsel %vm2641, %v8740, %v8742
      %v8769 = vsel %vm2641, %v8742, %v8744
      %v8770 = vsel %vm2641, %v8744, %v8746
      %v8771 = vsel %vm2641, %v8746, %v8748
      %v8772 = vsel %vm2641, %v8748, %v8750
      %v8773 = vsel %vm2641, %v8750, %v8752
      %v8801 = vsel %vm2641, %v8720, %v8706
      %v8802 = vsel %vm2641, %v8736, %v8722
      %v8803 = vsel %vm2641, %v8752, %v8738
      %v8804 = vmul.f32 %v8753, %v2663
      %v8805 = vmul.f32 %v8754, %v2667
      %v8806 = vmul.f32 %v8755, %v2671
      %v8807 = vmul.f32 %v8756, %v2675
      %v8808 = vmul.f32 %v8757, %v2679
      %v8809 = vmul.f32 %v8758, %v2683
      %v8810 = vmul.f32 %v8759, %v2687
      %v8811 = vmul.f32 %v8801, %v2691
      %v8812 = vmul.f32 %v8760, %v2663
      %v8813 = vmul.f32 %v8761, %v2667
      %v8814 = vmul.f32 %v8762, %v2671
      %v8815 = vmul.f32 %v8763, %v2675
      %v8816 = vmul.f32 %v8764, %v2679
      %v8817 = vmul.f32 %v8765, %v2683
      %v8818 = vmul.f32 %v8766, %v2687
      %v8819 = vmul.f32 %v8802, %v2691
      %v8820 = vmul.f32 %v8767, %v2663
      %v8821 = vmul.f32 %v8768, %v2667
      %v8822 = vmul.f32 %v8769, %v2671
      %v8823 = vmul.f32 %v8770, %v2675
      %v8824 = vmul.f32 %v8771, %v2679
      %v8825 = vmul.f32 %v8772, %v2683
      %v8826 = vmul.f32 %v8773, %v2687
      %v8827 = vmul.f32 %v8803, %v2691
      %8828 = vst [vmem:[#allocation3 + $0x600] sm:$0xff] %v8804
      %8829 = vst [vmem:[#allocation3 + $0x608] sm:$0xff] %v8805
      %8830 = vst [vmem:[#allocation3 + $0x610] sm:$0xff] %v8806
      %8831 = vst [vmem:[#allocation3 + $0x618] sm:$0xff] %v8807
      %8832 = vst [vmem:[#allocation3 + $0x620] sm:$0xff] %v8808
      %8833 = vst [vmem:[#allocation3 + $0x628] sm:$0xff] %v8809
      %8834 = vst [vmem:[#allocation3 + $0x630] sm:$0xff] %v8810
      %8835 = vst [vmem:[#allocation3 + $0x638] sm:$0xff] %v8811
      %8836 = vst [vmem:[#allocation3 + $0x640] sm:$0xff] %v8812
      %8837 = vst [vmem:[#allocation3 + $0x648] sm:$0xff] %v8813
      %8838 = vst [vmem:[#allocation3 + $0x650] sm:$0xff] %v8814
      %8839 = vst [vmem:[#allocation3 + $0x658] sm:$0xff] %v8815
      %8840 = vst [vmem:[#allocation3 + $0x660] sm:$0xff] %v8816
      %8841 = vst [vmem:[#allocation3 + $0x668] sm:$0xff] %v8817
      %8842 = vst [vmem:[#allocation3 + $0x670] sm:$0xff] %v8818
      %8843 = vst [vmem:[#allocation3 + $0x678] sm:$0xff] %v8819
      %8844 = vst [vmem:[#allocation3 + $0x680] sm:$0xff] %v8820
      %8845 = vst [vmem:[#allocation3 + $0x688] sm:$0xff] %v8821
      %8846 = vst [vmem:[#allocation3 + $0x690] sm:$0xff] %v8822
      %8847 = vst [vmem:[#allocation3 + $0x698] sm:$0xff] %v8823
      %8848 = vst [vmem:[#allocation3 + $0x6a0] sm:$0xff] %v8824
      %8849 = vst [vmem:[#allocation3 + $0x6a8] sm:$0xff] %v8825
      %8850 = vst [vmem:[#allocation3 + $0x6b0] sm:$0xff] %v8826
      %8851 = vst [vmem:[#allocation3 + $0x6b8] sm:$0xff] %v8827
      %v8852 = vld [vmem:[#allocation3] sm:$0xff]
      %v8853 = vld [vmem:[#allocation3 + $0x8] sm:$0xff]
      %v8854 = vld [vmem:[#allocation3 + $0x10] sm:$0xff]
      %v8855 = vld [vmem:[#allocation3 + $0x18] sm:$0xff]
      %v8856 = vld [vmem:[#allocation3 + $0x20] sm:$0xff]
      %v8857 = vld [vmem:[#allocation3 + $0x28] sm:$0xff]
      %v8858 = vld [vmem:[#allocation3 + $0x30] sm:$0xff]
      %v8859 = vld [vmem:[#allocation3 + $0x38] sm:$0xff]
      %v8860 = vld [vmem:[#allocation3 + $0x40] sm:$0xff]
      %v8861 = vld [vmem:[#allocation3 + $0x48] sm:$0xff]
      %v8862 = vld [vmem:[#allocation3 + $0x50] sm:$0xff]
      %v8863 = vld [vmem:[#allocation3 + $0x58] sm:$0xff]
      %v8864 = vld [vmem:[#allocation3 + $0x60] sm:$0xff]
      %v8865 = vld [vmem:[#allocation3 + $0x68] sm:$0xff]
      %v8866 = vld [vmem:[#allocation3 + $0x70] sm:$0xff]
      %v8867 = vld [vmem:[#allocation3 + $0x78] sm:$0xff]
      %v8868 = vld [vmem:[#allocation3 + $0x80] sm:$0xff]
      %v8869 = vld [vmem:[#allocation3 + $0x88] sm:$0xff]
      %v8870 = vld [vmem:[#allocation3 + $0x90] sm:$0xff]
      %v8871 = vld [vmem:[#allocation3 + $0x98] sm:$0xff]
      %v8872 = vld [vmem:[#allocation3 + $0xa0] sm:$0xff]
      %v8873 = vld [vmem:[#allocation3 + $0xa8] sm:$0xff]
      %v8874 = vld [vmem:[#allocation3 + $0xb0] sm:$0xff]
      %v8875 = vld [vmem:[#allocation3 + $0xb8] sm:$0xff]
      %v8876 = vld [vmem:[#allocation3 + $0xc0] sm:$0xff]
      %v8877 = vld [vmem:[#allocation3 + $0xc8] sm:$0xff]
      %v8878 = vld [vmem:[#allocation3 + $0xd0] sm:$0xff]
      %v8879 = vld [vmem:[#allocation3 + $0xd8] sm:$0xff]
      %v8880 = vld [vmem:[#allocation3 + $0xe0] sm:$0xff]
      %v8881 = vld [vmem:[#allocation3 + $0xe8] sm:$0xff]
      %v8882 = vld [vmem:[#allocation3 + $0xf0] sm:$0xff]
      %v8883 = vld [vmem:[#allocation3 + $0xf8] sm:$0xff]
      %v8884 = vld [vmem:[#allocation3 + $0x100] sm:$0xff]
      %v8885 = vld [vmem:[#allocation3 + $0x108] sm:$0xff]
      %v8886 = vld [vmem:[#allocation3 + $0x110] sm:$0xff]
      %v8887 = vld [vmem:[#allocation3 + $0x118] sm:$0xff]
      %v8888 = vld [vmem:[#allocation3 + $0x120] sm:$0xff]
      %v8889 = vld [vmem:[#allocation3 + $0x128] sm:$0xff]
      %v8890 = vld [vmem:[#allocation3 + $0x130] sm:$0xff]
      %v8891 = vld [vmem:[#allocation3 + $0x138] sm:$0xff]
      %v8892 = vld [vmem:[#allocation3 + $0x140] sm:$0xff]
      %v8893 = vld [vmem:[#allocation3 + $0x148] sm:$0xff]
      %v8894 = vld [vmem:[#allocation3 + $0x150] sm:$0xff]
      %v8895 = vld [vmem:[#allocation3 + $0x158] sm:$0xff]
      %v8896 = vld [vmem:[#allocation3 + $0x160] sm:$0xff]
      %v8897 = vld [vmem:[#allocation3 + $0x168] sm:$0xff]
      %v8898 = vld [vmem:[#allocation3 + $0x170] sm:$0xff]
      %v8899 = vld [vmem:[#allocation3 + $0x178] sm:$0xff]
      %v8900 = vld [vmem:[#allocation3 + $0x180] sm:$0xff]
      %v8901 = vld [vmem:[#allocation3 + $0x188] sm:$0xff]
      %v8902 = vld [vmem:[#allocation3 + $0x190] sm:$0xff]
      %v8903 = vld [vmem:[#allocation3 + $0x198] sm:$0xff]
      %v8904 = vld [vmem:[#allocation3 + $0x1a0] sm:$0xff]
      %v8905 = vld [vmem:[#allocation3 + $0x1a8] sm:$0xff]
      %v8906 = vld [vmem:[#allocation3 + $0x1b0] sm:$0xff]
      %v8907 = vld [vmem:[#allocation3 + $0x1b8] sm:$0xff]
      %v8908 = vld [vmem:[#allocation3 + $0x1c0] sm:$0xff]
      %v8909 = vld [vmem:[#allocation3 + $0x1c8] sm:$0xff]
      %v8910 = vld [vmem:[#allocation3 + $0x1d0] sm:$0xff]
      %v8911 = vld [vmem:[#allocation3 + $0x1d8] sm:$0xff]
      %v8912 = vld [vmem:[#allocation3 + $0x1e0] sm:$0xff]
      %v8913 = vld [vmem:[#allocation3 + $0x1e8] sm:$0xff]
      %v8914 = vld [vmem:[#allocation3 + $0x1f0] sm:$0xff]
      %v8915 = vld [vmem:[#allocation3 + $0x1f8] sm:$0xff]
      %v8916 = vld [vmem:[#allocation3 + $0x200] sm:$0xff]
      %v8917 = vld [vmem:[#allocation3 + $0x208] sm:$0xff]
      %v8918 = vld [vmem:[#allocation3 + $0x210] sm:$0xff]
      %v8919 = vld [vmem:[#allocation3 + $0x218] sm:$0xff]
      %v8920 = vld [vmem:[#allocation3 + $0x220] sm:$0xff]
      %v8921 = vld [vmem:[#allocation3 + $0x228] sm:$0xff]
      %v8922 = vld [vmem:[#allocation3 + $0x230] sm:$0xff]
      %v8923 = vld [vmem:[#allocation3 + $0x238] sm:$0xff]
      %v8924 = vld [vmem:[#allocation3 + $0x240] sm:$0xff]
      %v8925 = vld [vmem:[#allocation3 + $0x248] sm:$0xff]
      %v8926 = vld [vmem:[#allocation3 + $0x250] sm:$0xff]
      %v8927 = vld [vmem:[#allocation3 + $0x258] sm:$0xff]
      %v8928 = vld [vmem:[#allocation3 + $0x260] sm:$0xff]
      %v8929 = vld [vmem:[#allocation3 + $0x268] sm:$0xff]
      %v8930 = vld [vmem:[#allocation3 + $0x270] sm:$0xff]
      %v8931 = vld [vmem:[#allocation3 + $0x278] sm:$0xff]
      %v8932 = vld [vmem:[#allocation3 + $0x280] sm:$0xff]
      %v8933 = vld [vmem:[#allocation3 + $0x288] sm:$0xff]
      %v8934 = vld [vmem:[#allocation3 + $0x290] sm:$0xff]
      %v8935 = vld [vmem:[#allocation3 + $0x298] sm:$0xff]
      %v8936 = vld [vmem:[#allocation3 + $0x2a0] sm:$0xff]
      %v8937 = vld [vmem:[#allocation3 + $0x2a8] sm:$0xff]
      %v8938 = vld [vmem:[#allocation3 + $0x2b0] sm:$0xff]
      %v8939 = vld [vmem:[#allocation3 + $0x2b8] sm:$0xff]
      %v8940 = vld [vmem:[#allocation3 + $0x2c0] sm:$0xff]
      %v8941 = vld [vmem:[#allocation3 + $0x2c8] sm:$0xff]
      %v8942 = vld [vmem:[#allocation3 + $0x2d0] sm:$0xff]
      %v8943 = vld [vmem:[#allocation3 + $0x2d8] sm:$0xff]
      %v8944 = vld [vmem:[#allocation3 + $0x2e0] sm:$0xff]
      %v8945 = vld [vmem:[#allocation3 + $0x2e8] sm:$0xff]
      %v8946 = vld [vmem:[#allocation3 + $0x2f0] sm:$0xff]
      %v8947 = vld [vmem:[#allocation3 + $0x2f8] sm:$0xff]
      %v8948 = vld [vmem:[#allocation3 + $0x300] sm:$0xff]
      %v8949 = vld [vmem:[#allocation3 + $0x308] sm:$0xff]
      %v8950 = vld [vmem:[#allocation3 + $0x310] sm:$0xff]
      %v8951 = vld [vmem:[#allocation3 + $0x318] sm:$0xff]
      %v8952 = vld [vmem:[#allocation3 + $0x320] sm:$0xff]
      %v8953 = vld [vmem:[#allocation3 + $0x328] sm:$0xff]
      %v8954 = vld [vmem:[#allocation3 + $0x330] sm:$0xff]
      %v8955 = vld [vmem:[#allocation3 + $0x338] sm:$0xff]
      %v8956 = vld [vmem:[#allocation3 + $0x340] sm:$0xff]
      %v8957 = vld [vmem:[#allocation3 + $0x348] sm:$0xff]
      %v8958 = vld [vmem:[#allocation3 + $0x350] sm:$0xff]
      %v8959 = vld [vmem:[#allocation3 + $0x358] sm:$0xff]
      %v8960 = vld [vmem:[#allocation3 + $0x360] sm:$0xff]
      %v8961 = vld [vmem:[#allocation3 + $0x368] sm:$0xff]
      %v8962 = vld [vmem:[#allocation3 + $0x370] sm:$0xff]
      %v8963 = vld [vmem:[#allocation3 + $0x378] sm:$0xff]
      %v8964 = vld [vmem:[#allocation3 + $0x380] sm:$0xff]
      %v8965 = vld [vmem:[#allocation3 + $0x388] sm:$0xff]
      %v8966 = vld [vmem:[#allocation3 + $0x390] sm:$0xff]
      %v8967 = vld [vmem:[#allocation3 + $0x398] sm:$0xff]
      %v8968 = vld [vmem:[#allocation3 + $0x3a0] sm:$0xff]
      %v8969 = vld [vmem:[#allocation3 + $0x3a8] sm:$0xff]
      %v8970 = vld [vmem:[#allocation3 + $0x3b0] sm:$0xff]
      %v8971 = vld [vmem:[#allocation3 + $0x3b8] sm:$0xff]
      %v8972 = vld [vmem:[#allocation3 + $0x3c0] sm:$0xff]
      %v8973 = vld [vmem:[#allocation3 + $0x3c8] sm:$0xff]
      %v8974 = vld [vmem:[#allocation3 + $0x3d0] sm:$0xff]
      %v8975 = vld [vmem:[#allocation3 + $0x3d8] sm:$0xff]
      %v8976 = vld [vmem:[#allocation3 + $0x3e0] sm:$0xff]
      %v8977 = vld [vmem:[#allocation3 + $0x3e8] sm:$0xff]
      %v8978 = vld [vmem:[#allocation3 + $0x3f0] sm:$0xff]
      %v8979 = vld [vmem:[#allocation3 + $0x3f8] sm:$0xff]
      %v8980 = vld [vmem:[#allocation3 + $0x400] sm:$0xff]
      %v8981 = vld [vmem:[#allocation3 + $0x408] sm:$0xff]
      %v8982 = vld [vmem:[#allocation3 + $0x410] sm:$0xff]
      %v8983 = vld [vmem:[#allocation3 + $0x418] sm:$0xff]
      %v8984 = vld [vmem:[#allocation3 + $0x420] sm:$0xff]
      %v8985 = vld [vmem:[#allocation3 + $0x428] sm:$0xff]
      %v8986 = vld [vmem:[#allocation3 + $0x430] sm:$0xff]
      %v8987 = vld [vmem:[#allocation3 + $0x438] sm:$0xff]
      %v8988 = vld [vmem:[#allocation3 + $0x440] sm:$0xff]
      %v8989 = vld [vmem:[#allocation3 + $0x448] sm:$0xff]
      %v8990 = vld [vmem:[#allocation3 + $0x450] sm:$0xff]
      %v8991 = vld [vmem:[#allocation3 + $0x458] sm:$0xff]
      %v8992 = vld [vmem:[#allocation3 + $0x460] sm:$0xff]
      %v8993 = vld [vmem:[#allocation3 + $0x468] sm:$0xff]
      %v8994 = vld [vmem:[#allocation3 + $0x470] sm:$0xff]
      %v8995 = vld [vmem:[#allocation3 + $0x478] sm:$0xff]
      %v8996 = vld [vmem:[#allocation3 + $0x480] sm:$0xff]
      %v8997 = vld [vmem:[#allocation3 + $0x488] sm:$0xff]
      %v8998 = vld [vmem:[#allocation3 + $0x490] sm:$0xff]
      %v8999 = vld [vmem:[#allocation3 + $0x498] sm:$0xff]
      %v9000 = vld [vmem:[#allocation3 + $0x4a0] sm:$0xff]
      %v9001 = vld [vmem:[#allocation3 + $0x4a8] sm:$0xff]
      %v9002 = vld [vmem:[#allocation3 + $0x4b0] sm:$0xff]
      %v9003 = vld [vmem:[#allocation3 + $0x4b8] sm:$0xff]
      %v9004 = vld [vmem:[#allocation3 + $0x4c0] sm:$0xff]
      %v9005 = vld [vmem:[#allocation3 + $0x4c8] sm:$0xff]
      %v9006 = vld [vmem:[#allocation3 + $0x4d0] sm:$0xff]
      %v9007 = vld [vmem:[#allocation3 + $0x4d8] sm:$0xff]
      %v9008 = vld [vmem:[#allocation3 + $0x4e0] sm:$0xff]
      %v9009 = vld [vmem:[#allocation3 + $0x4e8] sm:$0xff]
      %v9010 = vld [vmem:[#allocation3 + $0x4f0] sm:$0xff]
      %v9011 = vld [vmem:[#allocation3 + $0x4f8] sm:$0xff]
      %v9012 = vld [vmem:[#allocation3 + $0x500] sm:$0xff]
      %v9013 = vld [vmem:[#allocation3 + $0x508] sm:$0xff]
      %v9014 = vld [vmem:[#allocation3 + $0x510] sm:$0xff]
      %v9015 = vld [vmem:[#allocation3 + $0x518] sm:$0xff]
      %v9016 = vld [vmem:[#allocation3 + $0x520] sm:$0xff]
      %v9017 = vld [vmem:[#allocation3 + $0x528] sm:$0xff]
      %v9018 = vld [vmem:[#allocation3 + $0x530] sm:$0xff]
      %v9019 = vld [vmem:[#allocation3 + $0x538] sm:$0xff]
      %v9020 = vld [vmem:[#allocation3 + $0x540] sm:$0xff]
      %v9021 = vld [vmem:[#allocation3 + $0x548] sm:$0xff]
      %v9022 = vld [vmem:[#allocation3 + $0x550] sm:$0xff]
      %v9023 = vld [vmem:[#allocation3 + $0x558] sm:$0xff]
      %v9024 = vld [vmem:[#allocation3 + $0x560] sm:$0xff]
      %v9025 = vld [vmem:[#allocation3 + $0x568] sm:$0xff]
      %v9026 = vld [vmem:[#allocation3 + $0x570] sm:$0xff]
      %v9027 = vld [vmem:[#allocation3 + $0x578] sm:$0xff]
      %v9028 = vld [vmem:[#allocation3 + $0x580] sm:$0xff]
      %v9029 = vld [vmem:[#allocation3 + $0x588] sm:$0xff]
      %v9030 = vld [vmem:[#allocation3 + $0x590] sm:$0xff]
      %v9031 = vld [vmem:[#allocation3 + $0x598] sm:$0xff]
      %v9032 = vld [vmem:[#allocation3 + $0x5a0] sm:$0xff]
      %v9033 = vld [vmem:[#allocation3 + $0x5a8] sm:$0xff]
      %v9034 = vld [vmem:[#allocation3 + $0x5b0] sm:$0xff]
      %v9035 = vld [vmem:[#allocation3 + $0x5b8] sm:$0xff]
      %v9036 = vld [vmem:[#allocation3 + $0x5c0] sm:$0xff]
      %v9037 = vld [vmem:[#allocation3 + $0x5c8] sm:$0xff]
      %v9038 = vld [vmem:[#allocation3 + $0x5d0] sm:$0xff]
      %v9039 = vld [vmem:[#allocation3 + $0x5d8] sm:$0xff]
      %v9040 = vld [vmem:[#allocation3 + $0x5e0] sm:$0xff]
      %v9041 = vld [vmem:[#allocation3 + $0x5e8] sm:$0xff]
      %v9042 = vld [vmem:[#allocation3 + $0x5f0] sm:$0xff]
      %v9043 = vld [vmem:[#allocation3 + $0x5f8] sm:$0xff]
      %v9044 = vld [vmem:[#allocation3 + $0x600] sm:$0xff]
      %v9045 = vld [vmem:[#allocation3 + $0x608] sm:$0xff]
      %v9046 = vld [vmem:[#allocation3 + $0x610] sm:$0xff]
      %v9047 = vld [vmem:[#allocation3 + $0x618] sm:$0xff]
      %v9048 = vld [vmem:[#allocation3 + $0x620] sm:$0xff]
      %v9049 = vld [vmem:[#allocation3 + $0x628] sm:$0xff]
      %v9050 = vld [vmem:[#allocation3 + $0x630] sm:$0xff]
      %v9051 = vld [vmem:[#allocation3 + $0x638] sm:$0xff]
      %v9052 = vld [vmem:[#allocation3 + $0x640] sm:$0xff]
      %v9053 = vld [vmem:[#allocation3 + $0x648] sm:$0xff]
      %v9054 = vld [vmem:[#allocation3 + $0x650] sm:$0xff]
      %v9055 = vld [vmem:[#allocation3 + $0x658] sm:$0xff]
      %v9056 = vld [vmem:[#allocation3 + $0x660] sm:$0xff]
      %v9057 = vld [vmem:[#allocation3 + $0x668] sm:$0xff]
      %v9058 = vld [vmem:[#allocation3 + $0x670] sm:$0xff]
      %v9059 = vld [vmem:[#allocation3 + $0x678] sm:$0xff]
      %v9060 = vld [vmem:[#allocation3 + $0x680] sm:$0xff]
      %v9061 = vld [vmem:[#allocation3 + $0x688] sm:$0xff]
      %v9062 = vld [vmem:[#allocation3 + $0x690] sm:$0xff]
      %v9063 = vld [vmem:[#allocation3 + $0x698] sm:$0xff]
      %v9064 = vld [vmem:[#allocation3 + $0x6a0] sm:$0xff]
      %v9065 = vld [vmem:[#allocation3 + $0x6a8] sm:$0xff]
      %v9066 = vld [vmem:[#allocation3 + $0x6b0] sm:$0xff]
      %v9067 = vld [vmem:[#allocation3 + $0x6b8] sm:$0xff]
      %9069 = vset.pattern.permute.xlu0 0
      %9070 = vperm.xlu0 %9069, %v7627
      %v9071 = vpop.permute.xlu0 %9070
      %v9074 = vsel %vm7283, %v7626, 0
      %9076 = vmatprep.subr.mxu0 %v8853
      %9077 = vmatpush1.msra.mxu0 %v8852
      %9078 = vmatprep.subr.mxu0 %v8861
      %9079 = vmatpush1.msra.mxu0 %v8860
      %9080 = vmatprep.subr.mxu0 %v8869
      %9081 = vmatpush1.msra.mxu0 %v8868
      %9082 = vmatprep.subr.mxu0 %v8877
      %9083 = vmatpush1.msra.mxu0 %v8876
      %9084 = vmatprep.subr.mxu0 %v8885
      %9085 = vmatpush1.msra.mxu0 %v8884
      %9086 = vmatprep.subr.mxu0 %v8893
      %9087 = vmatpush1.msra.mxu0 %v8892
      %9088 = vmatprep.subr.mxu0 %v8901
      %9089 = vmatpush1.msra.mxu0 %v8900
      %9090 = vmatprep.subr.mxu0 %v8909
      %9091 = vmatpush1.msra.mxu0 %v8908
      %9092 = vmatprep.subr.mxu0 %v8917
      %9093 = vmatpush1.msra.mxu0 %v8916
      %9094 = vmatprep.subr.mxu0 %v8925
      %9095 = vmatpush1.msra.mxu0 %v8924
      %9096 = vmatprep.subr.mxu0 %v8933
      %9097 = vmatpush1.msra.mxu0 %v8932
      %9098 = vmatprep.subr.mxu0 %v8941
      %9099 = vmatpush1.msra.mxu0 %v8940
      %9100 = vmatprep.subr.mxu0 %v8949
      %9101 = vmatpush1.msra.mxu0 %v8948
      %9102 = vmatprep.subr.mxu0 %v8957
      %9103 = vmatpush1.msra.mxu0 %v8956
      %9104 = vmatprep.subr.mxu0 %v8965
      %9105 = vmatpush1.msra.mxu0 %v8964
      %9106 = vmatprep.subr.mxu0 %v8973
      %9107 = vmatpush1.msra.mxu0 %v8972
      %9108 = vmatprep.subr.mxu0 %v8981
      %9109 = vmatpush1.msra.mxu0 %v8980
      %9110 = vmatprep.subr.mxu0 %v8989
      %9111 = vmatpush1.msra.mxu0 %v8988
      %9112 = vmatprep.subr.mxu0 %v8997
      %9113 = vmatpush1.msra.mxu0 %v8996
      %9114 = vmatprep.subr.mxu0 %v9005
      %9115 = vmatpush1.msra.mxu0 %v9004
      %9116 = vmatprep.subr.mxu0 %v9013
      %9117 = vmatpush1.msra.mxu0 %v9012
      %9118 = vmatprep.subr.mxu0 %v9021
      %9119 = vmatpush1.msra.mxu0 %v9020
      %9120 = vmatprep.subr.mxu0 %v9029
      %9121 = vmatpush1.msra.mxu0 %v9028
      %9122 = vmatprep.subr.mxu0 %v9037
      %9123 = vmatpush1.msra.mxu0 %v9036
      %9124 = vmatprep.subr.mxu0 %v9045
      %9125 = vmatpush1.msra.mxu0 %v9044
      %9126 = vmatprep.subr.mxu0 %v9053
      %9127 = vmatpush1.msra.mxu0 %v9052
      %9128 = vmatprep.subr.mxu0 %v9061
      %9129 = vmatpush1.msra.mxu0 %v9060
      %9130 = vmatprep.subr.mxu0 0.0
      %9131 = vmatpush1.msra.mxu0 0.0
      %9132 = vmatprep.subr.mxu0 0.0
      %9133 = vmatpush1.msra.mxu0 0.0
      %9134 = vmatprep.subr.mxu0 0.0
      %9135 = vmatpush1.msra.mxu0 0.0
      %9136 = vmatprep.subr.mxu0 0.0
      %9137 = vmatpush1.msra.mxu0 0.0
      %9138 = vmatprep.subr.mxu0 0.0
      %9139 = vmatpush1.msra.mxu0 0.0
      %9140 = vmatprep.mubr.f32.mxu0 %v9074
      %9141 = vmatmul.mubr.f32.gmra.mrb[0].mxu0 %v7625
      %v9142 = vpop.f32.mrb[0].mxu0
      %v9143 = vadd.f32 %v9071, %v9142
      %v9144 = vpop.f32.mrb[0].mxu0
      %v9145 = vadd.f32 %v9071, %v9144
      %9146 = vdwg.mxu0
      %9147 = vmatprep.subr.mxu0 %v8855
      %9148 = vmatpush1.msra.mxu0 %v8854
      %9149 = vmatprep.subr.mxu0 %v8863
      %9150 = vmatpush1.msra.mxu0 %v8862
      %9151 = vmatprep.subr.mxu0 %v8871
      %9152 = vmatpush1.msra.mxu0 %v8870
      %9153 = vmatprep.subr.mxu0 %v8879
      %9154 = vmatpush1.msra.mxu0 %v8878
      %9155 = vmatprep.subr.mxu0 %v8887
      %9156 = vmatpush1.msra.mxu0 %v8886
      %9157 = vmatprep.subr.mxu0 %v8895
      %9158 = vmatpush1.msra.mxu0 %v8894
      %9159 = vmatprep.subr.mxu0 %v8903
      %9160 = vmatpush1.msra.mxu0 %v8902
      %9161 = vmatprep.subr.mxu0 %v8911
      %9162 = vmatpush1.msra.mxu0 %v8910
      %9163 = vmatprep.subr.mxu0 %v8919
      %9164 = vmatpush1.msra.mxu0 %v8918
      %9165 = vmatprep.subr.mxu0 %v8927
      %9166 = vmatpush1.msra.mxu0 %v8926
      %9167 = vmatprep.subr.mxu0 %v8935
      %9168 = vmatpush1.msra.mxu0 %v8934
      %9169 = vmatprep.subr.mxu0 %v8943
      %9170 = vmatpush1.msra.mxu0 %v8942
      %9171 = vmatprep.subr.mxu0 %v8951
      %9172 = vmatpush1.msra.mxu0 %v8950
      %9173 = vmatprep.subr.mxu0 %v8959
      %9174 = vmatpush1.msra.mxu0 %v8958
      %9175 = vmatprep.subr.mxu0 %v8967
      %9176 = vmatpush1.msra.mxu0 %v8966
      %9177 = vmatprep.subr.mxu0 %v8975
      %9178 = vmatpush1.msra.mxu0 %v8974
      %9179 = vmatprep.subr.mxu0 %v8983
      %9180 = vmatpush1.msra.mxu0 %v8982
      %9181 = vmatprep.subr.mxu0 %v8991
      %9182 = vmatpush1.msra.mxu0 %v8990
      %9183 = vmatprep.subr.mxu0 %v8999
      %9184 = vmatpush1.msra.mxu0 %v8998
      %9185 = vmatprep.subr.mxu0 %v9007
      %9186 = vmatpush1.msra.mxu0 %v9006
      %9187 = vmatprep.subr.mxu0 %v9015
      %9188 = vmatpush1.msra.mxu0 %v9014
      %9189 = vmatprep.subr.mxu0 %v9023
      %9190 = vmatpush1.msra.mxu0 %v9022
      %9191 = vmatprep.subr.mxu0 %v9031
      %9192 = vmatpush1.msra.mxu0 %v9030
      %9193 = vmatprep.subr.mxu0 %v9039
      %9194 = vmatpush1.msra.mxu0 %v9038
      %9195 = vmatprep.subr.mxu0 %v9047
      %9196 = vmatpush1.msra.mxu0 %v9046
      %9197 = vmatprep.subr.mxu0 %v9055
      %9198 = vmatpush1.msra.mxu0 %v9054
      %9199 = vmatprep.subr.mxu0 %v9063
      %9200 = vmatpush1.msra.mxu0 %v9062
      %9201 = vmatprep.subr.mxu0 0.0
      %9202 = vmatpush1.msra.mxu0 0.0
      %9203 = vmatprep.subr.mxu0 0.0
      %9204 = vmatpush1.msra.mxu0 0.0
      %9205 = vmatprep.subr.mxu0 0.0
      %9206 = vmatpush1.msra.mxu0 0.0
      %9207 = vmatprep.subr.mxu0 0.0
      %9208 = vmatpush1.msra.mxu0 0.0
      %9209 = vmatprep.subr.mxu0 0.0
      %9210 = vmatpush1.msra.mxu0 0.0
      %9211 = vmatprep.mubr.f32.mxu0 %v9074
      %9212 = vmatmul.mubr.f32.gmra.mrb[0].mxu0 %v7625
      %v9213 = vpop.f32.mrb[0].mxu0
      %v9214 = vadd.f32 %v9071, %v9213
      %v9215 = vpop.f32.mrb[0].mxu0
      %v9216 = vadd.f32 %v9071, %v9215
      %9217 = vdwg.mxu0
      %9218 = vmatprep.subr.mxu0 %v8857
      %9219 = vmatpush1.msra.mxu0 %v8856
      %9220 = vmatprep.subr.mxu0 %v8865
      %9221 = vmatpush1.msra.mxu0 %v8864
      %9222 = vmatprep.subr.mxu0 %v8873
      %9223 = vmatpush1.msra.mxu0 %v8872
      %9224 = vmatprep.subr.mxu0 %v8881
      %9225 = vmatpush1.msra.mxu0 %v8880
      %9226 = vmatprep.subr.mxu0 %v8889
      %9227 = vmatpush1.msra.mxu0 %v8888
      %9228 = vmatprep.subr.mxu0 %v8897
      %9229 = vmatpush1.msra.mxu0 %v8896
      %9230 = vmatprep.subr.mxu0 %v8905
      %9231 = vmatpush1.msra.mxu0 %v8904
      %9232 = vmatprep.subr.mxu0 %v8913
      %9233 = vmatpush1.msra.mxu0 %v8912
      %9234 = vmatprep.subr.mxu0 %v8921
      %9235 = vmatpush1.msra.mxu0 %v8920
      %9236 = vmatprep.subr.mxu0 %v8929
      %9237 = vmatpush1.msra.mxu0 %v8928
      %9238 = vmatprep.subr.mxu0 %v8937
      %9239 = vmatpush1.msra.mxu0 %v8936
      %9240 = vmatprep.subr.mxu0 %v8945
      %9241 = vmatpush1.msra.mxu0 %v8944
      %9242 = vmatprep.subr.mxu0 %v8953
      %9243 = vmatpush1.msra.mxu0 %v8952
      %9244 = vmatprep.subr.mxu0 %v8961
      %9245 = vmatpush1.msra.mxu0 %v8960
      %9246 = vmatprep.subr.mxu0 %v8969
      %9247 = vmatpush1.msra.mxu0 %v8968
      %9248 = vmatprep.subr.mxu0 %v8977
      %9249 = vmatpush1.msra.mxu0 %v8976
      %9250 = vmatprep.subr.mxu0 %v8985
      %9251 = vmatpush1.msra.mxu0 %v8984
      %9252 = vmatprep.subr.mxu0 %v8993
      %9253 = vmatpush1.msra.mxu0 %v8992
      %9254 = vmatprep.subr.mxu0 %v9001
      %9255 = vmatpush1.msra.mxu0 %v9000
      %9256 = vmatprep.subr.mxu0 %v9009
      %9257 = vmatpush1.msra.mxu0 %v9008
      %9258 = vmatprep.subr.mxu0 %v9017
      %9259 = vmatpush1.msra.mxu0 %v9016
      %9260 = vmatprep.subr.mxu0 %v9025
      %9261 = vmatpush1.msra.mxu0 %v9024
      %9262 = vmatprep.subr.mxu0 %v9033
      %9263 = vmatpush1.msra.mxu0 %v9032
      %9264 = vmatprep.subr.mxu0 %v9041
      %9265 = vmatpush1.msra.mxu0 %v9040
      %9266 = vmatprep.subr.mxu0 %v9049
      %9267 = vmatpush1.msra.mxu0 %v9048
      %9268 = vmatprep.subr.mxu0 %v9057
      %9269 = vmatpush1.msra.mxu0 %v9056
      %9270 = vmatprep.subr.mxu0 %v9065
      %9271 = vmatpush1.msra.mxu0 %v9064
      %9272 = vmatprep.subr.mxu0 0.0
      %9273 = vmatpush1.msra.mxu0 0.0
      %9274 = vmatprep.subr.mxu0 0.0
      %9275 = vmatpush1.msra.mxu0 0.0
      %9276 = vmatprep.subr.mxu0 0.0
      %9277 = vmatpush1.msra.mxu0 0.0
      %9278 = vmatprep.subr.mxu0 0.0
      %9279 = vmatpush1.msra.mxu0 0.0
      %9280 = vmatprep.subr.mxu0 0.0
      %9281 = vmatpush1.msra.mxu0 0.0
      %9282 = vmatprep.mubr.f32.mxu0 %v9074
      %9283 = vmatmul.mubr.f32.gmra.mrb[0].mxu0 %v7625
      %v9284 = vpop.f32.mrb[0].mxu0
      %v9285 = vadd.f32 %v9071, %v9284
      %v9286 = vpop.f32.mrb[0].mxu0
      %v9287 = vadd.f32 %v9071, %v9286
      %9288 = vdwg.mxu0
      %9289 = vmatprep.subr.mxu0 %v8859
      %9290 = vmatpush1.msra.mxu0 %v8858
      %9291 = vmatprep.subr.mxu0 %v8867
      %9292 = vmatpush1.msra.mxu0 %v8866
      %9293 = vmatprep.subr.mxu0 %v8875
      %9294 = vmatpush1.msra.mxu0 %v8874
      %9295 = vmatprep.subr.mxu0 %v8883
      %9296 = vmatpush1.msra.mxu0 %v8882
      %9297 = vmatprep.subr.mxu0 %v8891
      %9298 = vmatpush1.msra.mxu0 %v8890
      %9299 = vmatprep.subr.mxu0 %v8899
      %9300 = vmatpush1.msra.mxu0 %v8898
      %9301 = vmatprep.subr.mxu0 %v8907
      %9302 = vmatpush1.msra.mxu0 %v8906
      %9303 = vmatprep.subr.mxu0 %v8915
      %9304 = vmatpush1.msra.mxu0 %v8914
      %9305 = vmatprep.subr.mxu0 %v8923
      %9306 = vmatpush1.msra.mxu0 %v8922
      %9307 = vmatprep.subr.mxu0 %v8931
      %9308 = vmatpush1.msra.mxu0 %v8930
      %9309 = vmatprep.subr.mxu0 %v8939
      %9310 = vmatpush1.msra.mxu0 %v8938
      %9311 = vmatprep.subr.mxu0 %v8947
      %9312 = vmatpush1.msra.mxu0 %v8946
      %9313 = vmatprep.subr.mxu0 %v8955
      %9314 = vmatpush1.msra.mxu0 %v8954
      %9315 = vmatprep.subr.mxu0 %v8963
      %9316 = vmatpush1.msra.mxu0 %v8962
      %9317 = vmatprep.subr.mxu0 %v8971
      %9318 = vmatpush1.msra.mxu0 %v8970
      %9319 = vmatprep.subr.mxu0 %v8979
      %9320 = vmatpush1.msra.mxu0 %v8978
      %9321 = vmatprep.subr.mxu0 %v8987
      %9322 = vmatpush1.msra.mxu0 %v8986
      %9323 = vmatprep.subr.mxu0 %v8995
      %9324 = vmatpush1.msra.mxu0 %v8994
      %9325 = vmatprep.subr.mxu0 %v9003
      %9326 = vmatpush1.msra.mxu0 %v9002
      %9327 = vmatprep.subr.mxu0 %v9011
      %9328 = vmatpush1.msra.mxu0 %v9010
      %9329 = vmatprep.subr.mxu0 %v9019
      %9330 = vmatpush1.msra.mxu0 %v9018
      %9331 = vmatprep.subr.mxu0 %v9027
      %9332 = vmatpush1.msra.mxu0 %v9026
      %9333 = vmatprep.subr.mxu0 %v9035
      %9334 = vmatpush1.msra.mxu0 %v9034
      %9335 = vmatprep.subr.mxu0 %v9043
      %9336 = vmatpush1.msra.mxu0 %v9042
      %9337 = vmatprep.subr.mxu0 %v9051
      %9338 = vmatpush1.msra.mxu0 %v9050
      %9339 = vmatprep.subr.mxu0 %v9059
      %9340 = vmatpush1.msra.mxu0 %v9058
      %9341 = vmatprep.subr.mxu0 %v9067
      %9342 = vmatpush1.msra.mxu0 %v9066
      %9343 = vmatprep.subr.mxu0 0.0
      %9344 = vmatpush1.msra.mxu0 0.0
      %9345 = vmatprep.subr.mxu0 0.0
      %9346 = vmatpush1.msra.mxu0 0.0
      %9347 = vmatprep.subr.mxu0 0.0
      %9348 = vmatpush1.msra.mxu0 0.0
      %9349 = vmatprep.subr.mxu0 0.0
      %9350 = vmatpush1.msra.mxu0 0.0
      %9351 = vmatprep.subr.mxu0 0.0
      %9352 = vmatpush1.msra.mxu0 0.0
      %9353 = vmatprep.mubr.f32.mxu0 %v9074
      %9354 = vmatmul.mubr.f32.gmra.mrb[0].mxu0 %v7625
      %v9355 = vpop.f32.mrb[0].mxu0
      %v9356 = vadd.f32 %v9071, %v9355
      %v9357 = vpop.f32.mrb[0].mxu0
      %v9358 = vadd.f32 %v9071, %v9357
      %9359 = vdwg.mxu0
      %9360 = vst [vmem:[%s693] sm:$0xff] %v9143
      %9361 = vst [vmem:[%s693 + $0x8] sm:$0xff] %v9145
      %9362 = vst [vmem:[%s693 + $0x10] sm:$0xff] %v9214
      %9363 = vst [vmem:[%s693 + $0x18] sm:$0xff] %v9216
      %9364 = vst [vmem:[%s693 + $0x20] sm:$0xff] %v9285
      %9365 = vst [vmem:[%s693 + $0x28] sm:$0xff] %v9287
      %9366 = vst [vmem:[%s693 + $0x30] sm:$0xff] %v9356
      %9367 = vst [vmem:[%s693 + $0x38] sm:$0xff] %v9358
      %p9368 = scmp.lt.s32.totalorder %s32, 1
      %s9369 = scalar_select %p9368, %s32, 1
      %s9370 = smul.addr %s9369, 8
      %s9371 = smul.addr %s9370, 8
      %s9372 = scalar_lea.vmem %s21, %s9371
      // Predicated region
      $region105: #{cfm_forward_pallas.1} parent=103 // pred_check
        %p9373 = pneg %p506
      $region106: #{cfm_forward_pallas.1} parent=103 // pred_check_branch
        %9375 = sbr.rel (%p9373) target = $region108
      $region107: #{cfm_forward_pallas.1} parent=103 // pred_region
        _
      $region108: #{cfm_forward_pallas.1} parent=103 // pred_fallthru
        _
    $region104: #{cfm_forward_pallas.1} parent=5 // pred_fallthru
      _
    %p9376 = scmp.le.s32.totalorder 2, %s27
    // Predicated region
    $region109: #{cfm_forward_pallas.1} parent=5 // pred_check
      %p9377 = pneg %p9376
    $region110: #{cfm_forward_pallas.1} parent=5 // pred_check_branch
      %9379 = sbr.rel (%p9377) target = $region112
    $region111: #{cfm_forward_pallas.1} parent=5 // pred_region
      %s9380 = ssub.s32 %s27, 2
      // Predicated region
      $region113: #{cfm_forward_pallas.1} parent=111 // pred_check
        %p9381 = pneg %p512
      $region114: #{cfm_forward_pallas.1} parent=111 // pred_check_branch
        %9383 = sbr.rel (%p9381) target = $region116
      $region115: #{cfm_forward_pallas.1} parent=111 // pred_region
        %p9384 = scmp.lt.s32.totalorder %s33, 1
        %s9385 = scalar_select %p9384, %s33, 1
        %s9386 = smul.addr %s9385, 8
        %s9387 = smul.addr %s9386, 8
        %s9388 = scalar_lea.vmem %s21, %s9387
      $region116: #{cfm_forward_pallas.1} parent=111 // pred_fallthru
        _
    $region112: #{cfm_forward_pallas.1} parent=5 // pred_fallthru
      _
  $region6: #{cfm_forward_pallas.1} parent=0 // loop_footer
    %s31 = sadd.s32 1, %s27
  $region7: #{cfm_forward_pallas.1} parent=0 // loop_footer_branch
    %26 = sbr.rel target = $region3
  $region8: #{cfm_forward_pallas.1} parent=0 // loop_exit
    _

</llo_original>
